<compile_context>
chip_gen: v5e
topology: v5e:2x2
jax: 0.10.0
libtpu: 0.0.40
codegen_flags: <defaults>
</compile_context>

<pallas_src>
import jax
import jax.numpy as jnp
from jax.experimental import pallas as pl
from jax.experimental.pallas import tpu as pltpu


def _pairwise_sqdist(a, bt):
    """Exact pairwise squared distances.  a: (R,3) channels-last, bt: (3,C)
    channels-first.  Pure VPU broadcast sub/mul/add, result is exactly >= 0 and
    has an exact-zero diagonal when a and bt come from the same cloud."""
    d0 = a[:, 0:1] - bt[0:1, :]
    d1 = a[:, 1:2] - bt[1:2, :]
    d2 = a[:, 2:3] - bt[2:3, :]
    return d0 * d0 + d1 * d1 + d2 * d2


def _col_kth(D, kmax, wanted):
    """Per-COLUMN k-th smallest values of D via kmax min passes.

    All reductions run along axis=0 (sublane direction) so they are mostly VPU
    cross-vreg folds instead of full 128-lane XLU reductions.  Returns
    {k: (1,C) k-th smallest value per column} for k in `wanted`.
    (With exact ties this thresholds to >k neighbours, unlike torch.topk.)
    """
    Dm = D
    out = {}
    for t in range(kmax):
        cmin = jnp.min(Dm, axis=0, keepdims=True)           # (1, C)
        if (t + 1) in wanted:
            out[t + 1] = cmin
        if t + 1 < kmax:
            Dm = jnp.where(Dm <= cmin, 1e30, Dm)
    return out


def _make_kernel(level_meta, weights):
    """Kernel for one batch element over all pyramid levels.

    Inputs: cl_ref (S_cl, 3) packed channels-last [pc1|pc2|flow per level],
            cf_ref (3, S_cf) packed channels-first copies.
    Output: (1, 3) level-weighted sums of [chamfer, smoothness, curvature].
    """
    L = len(level_meta)

    def kernel(cl_ref, cf_ref, out_ref):
        ch_acc = 0.0
        sm_acc = 0.0
        cv_acc = 0.0

        for l in range(L):
            n, m, off = level_meta[l]
            w_l = weights[l]

            o = off["pc1_cl"];  pc1 = cl_ref[o:o + n, :]        # (n,3)
            o = off["pc2_cl"];  pc2 = cl_ref[o:o + m, :]        # (m,3)
            o = off["flow_cl"]; flow = cl_ref[o:o + n, :]       # (n,3)
            o = off["pc1_cf"];  pc1t = cf_ref[:, o:o + n]       # (3,n)
            o = off["pc2_cf"];  pc2t = cf_ref[:, o:o + m]       # (3,m)
            o = off["flow_cf"]; flowt = cf_ref[:, o:o + n]      # (3,n)

            warpt = pc1t + flowt                                # (3,n) warped pc1

            # ---- stage 1: pc1 self-distances -> 9/10-NN thresholds ---------
            D11 = _pairwise_sqdist(pc1, pc1t)                   # (n,n) sym, 0 diag
            v11 = _col_kth(D11, 10, (9, 10))                    # sublane passes
            m11_9t = D11 <= v11[9]                              # bool, transposed mask
            m11_10t = (D11 <= v11[10]).astype(jnp.bfloat16)     # bf16 for the MXU
            # D11 (and its working copy) die here.

            # curvatureWarp in channels-first form: standard-orientation matmul
            movedT = (jnp.dot(warpt.astype(jnp.bfloat16), m11_10t,
                              preferred_element_type=jnp.float32)
                      - 10.0 * warpt) * (1.0 / 9.0)             # (3,n)

            # ---- stage 2: smoothness (built & consumed immediately) --------
            # Dff and the D11 mask are both symmetric, so the transposed mask
            # gives the identical total sum.
            Dff = _pairwise_sqdist(flow, flowt)                 # (n,n)
            sm = jnp.sum(jnp.sqrt(jnp.where(m11_9t, Dff, 0.0)),
                         keepdims=True) * (1.0 / 8.0)           # (1,1)
            # Dff, m11_9t die here.

            # ---- stage 3: warp->pc2 distances, built TRANSPOSED (m,n) ------
            # column i = warp point i, so the 5-NN selection, chamfer dist1 and
            # the interpolation-weight normalisation are all sublane reductions.
            D2w = _pairwise_sqdist(pc2, warpt)                  # (m,n)
            vw = _col_kth(D2w, 5, (1, 5))
            dist2 = jnp.min(D2w, axis=1, keepdims=True)         # (m,1) per-pc2 1-NN
            ch = (jnp.sum(vw[1], keepdims=True)                 # dist1 reuse (1,n)
                  + jnp.sum(dist2, keepdims=True))              # (1,1)
            inv_dT = jnp.where(D2w <= vw[5],
                               pl.reciprocal(D2w + 1e-8, approx=True),
                               0.0)                             # (m,n)
            norm = jnp.sum(inv_dT, axis=0, keepdims=True)       # (1,n) sublane sum
            inv_dT = inv_dT.astype(jnp.bfloat16)
            # D2w dies here.

            # ---- stage 4: pc2 curvature (channels-first) -------------------
            D22 = _pairwise_sqdist(pc2, pc2t)                   # (m,m) sym
            v22 = _col_kth(D22, 10, (10,))
            m22_10t = (D22 <= v22[10]).astype(jnp.bfloat16)
            curv2T = (jnp.dot(pc2t.astype(jnp.bfloat16), m22_10t,
                              preferred_element_type=jnp.float32)
                      - 10.0 * pc2t) * (1.0 / 9.0)              # (3,m)
            # D22, m22_10t die here.

            # ---- stage 5: interpolation + curvature loss -------------------
            # normalisation folded AFTER the matmul: (3,n) multiply, not (n,m)
            interT = (jnp.dot(curv2T.astype(jnp.bfloat16), inv_dT,
                              preferred_element_type=jnp.float32)
                      * pl.reciprocal(norm, approx=True))       # (3,n)
            cv = jnp.sum((interT - movedT) ** 2, keepdims=True) # (1,1)

            ch_acc = ch_acc + w_l * ch
            sm_acc = sm_acc + w_l * sm
            cv_acc = cv_acc + w_l * cv

        out_ref[:, 0:1] = ch_acc
        out_ref[:, 1:2] = sm_acc
        out_ref[:, 2:3] = cv_acc

    return kernel


def scene_flow_loss(pc1_list, pc2_list, flow_list,
                    weights=(0.02, 0.04, 0.08, 0.16),
                    f_curvature=0.3, f_smoothness=1.0, f_chamfer=1.0):
    """Multi-scale scene-flow loss; matches SceneFlowLossModel.forward."""
    L = len(pc1_list)
    B = pc1_list[0].shape[0]

    # Pack all per-level arrays into two buffers (two DMAs per grid step):
    #   channels-last  (B, S_cl, 3)  with 8-sublane-aligned segment offsets
    #   channels-first (B, 3, S_cf)  with 128-lane-aligned segment offsets
    cl_parts, cf_parts = [], []
    level_meta = []
    cl_off = 0
    cf_off = 0
    for l in range(L):
        pc1 = pc1_list[l].astype(jnp.float32)
        pc2 = pc2_list[l].astype(jnp.float32)
        flow = flow_list[l].astype(jnp.float32)
        n, m = pc1.shape[1], pc2.shape[1]
        offs = {}
        for name, arr in (("pc1", pc1), ("pc2", pc2), ("flow", flow)):
            cnt = arr.shape[1]
            rpad = (-cnt) % 8
            cl_parts.append(jnp.pad(arr, ((0, 0), (0, rpad), (0, 0)))
                            if rpad else arr)
            offs[name + "_cl"] = cl_off
            cl_off += cnt + rpad

            arr_t = jnp.transpose(arr, (0, 2, 1))               # (B,3,cnt)
            cpad = (-cnt) % 128
            cf_parts.append(jnp.pad(arr_t, ((0, 0), (0, 0), (0, cpad)))
                            if cpad else arr_t)
            offs[name + "_cf"] = cf_off
            cf_off += cnt + cpad
        level_meta.append((n, m, offs))

    cl_all = jnp.concatenate(cl_parts, axis=1)                  # (B, S_cl, 3)
    cf_all = jnp.concatenate(cf_parts, axis=2)                  # (B, 3, S_cf)

    kernel = _make_kernel(tuple(level_meta),
                          tuple(float(w) for w in weights[:L]))

    idx_map = lambda b: (b, 0, 0)
    sums = pl.pallas_call(
        kernel,
        out_shape=jax.ShapeDtypeStruct((B, 1, 3), jnp.float32),
        grid=(B,),
        in_specs=[pl.BlockSpec((None, cl_all.shape[1], cl_all.shape[2]), idx_map),
                  pl.BlockSpec((None, cf_all.shape[1], cf_all.shape[2]), idx_map)],
        out_specs=pl.BlockSpec((None, 1, 3), idx_map),
        compiler_params=pltpu.CompilerParams(
            dimension_semantics=("parallel",),
            # well under v7x's 64 MiB/TC (review: keep <= ~48-56 MiB there)
            vmem_limit_bytes=32 * 1024 * 1024),
    )(cl_all, cf_all)                                           # (B, 1, 3)

    # trivial glue: batch mean + final coefficients
    terms = jnp.mean(sums[:, 0, :], axis=0)                     # (3,)
    return (f_chamfer * terms[0]
            + f_smoothness * terms[1]
            + f_curvature * terms[2])


if __name__ == "__main__":
    key = jax.random.PRNGKey(0)
    B = 2
    Ns = (64, 32, 16, 16)       # four pyramid levels (all >= 10 points for 10-NN)
    pc1_list, pc2_list, flow_list = [], [], []
    for n in Ns:
        key, k1, k2, k3 = jax.random.split(key, 4)
        pc1_list.append(jax.random.normal(k1, (B, n, 3), dtype=jnp.float32))
        pc2_list.append(jax.random.normal(k2, (B, n, 3), dtype=jnp.float32))
        flow_list.append(0.1 * jax.random.normal(k3, (B, n, 3), dtype=jnp.float32))

    loss = scene_flow_loss(pc1_list, pc2_list, flow_list)
    jax.block_until_ready(loss)
    print("KERNEL_OK")
</pallas_src>

<mosaic_0001>
module attributes {stable_mosaic.version = 11 : i64} {
  func.func @kernel(%arg0: i32, %arg1: memref<1x384x3xf32, #tpu.memory_space<vmem>>, %arg2: memref<1x3x1536xf32, #tpu.memory_space<vmem>>, %arg3: memref<1x1x3xf32, #tpu.memory_space<vmem>>) attributes {dimension_semantics = [#tpu.dimension_semantics<parallel>], iteration_bounds = array<i64: 2>, scalar_prefetch = 0 : i64, scratch_operands = 0 : i64, tpu.core_type = #tpu.core_type<tc>, window_params = [{transform_indices = @transform_0, window_bounds = array<i64: 1, 384, 3>}, {transform_indices = @transform_1, window_bounds = array<i64: 1, 3, 1536>}, {transform_indices = @transform_2, window_bounds = array<i64: 1, 1, 3>}]} {
    %c0 = arith.constant 0 : index
    %c0_0 = arith.constant 0 : index
    %c0_1 = arith.constant 0 : index
    %0 = vector.load %arg1[%c0, %c0_0, %c0_1] : memref<1x384x3xf32, #tpu.memory_space<vmem>>, vector<1x64x3xf32>
    %1 = vector.shape_cast %0 : vector<1x64x3xf32> to vector<64x3xf32>
    %c0_2 = arith.constant 0 : index
    %c64 = arith.constant 64 : index
    %c0_3 = arith.constant 0 : index
    %2 = vector.load %arg1[%c0_2, %c64, %c0_3] : memref<1x384x3xf32, #tpu.memory_space<vmem>>, vector<1x64x3xf32>
    %3 = vector.shape_cast %2 : vector<1x64x3xf32> to vector<64x3xf32>
    %c0_4 = arith.constant 0 : index
    %c128 = arith.constant 128 : index
    %c0_5 = arith.constant 0 : index
    %4 = vector.load %arg1[%c0_4, %c128, %c0_5] : memref<1x384x3xf32, #tpu.memory_space<vmem>>, vector<1x64x3xf32>
    %5 = vector.shape_cast %4 : vector<1x64x3xf32> to vector<64x3xf32>
    %c0_6 = arith.constant 0 : index
    %c0_7 = arith.constant 0 : index
    %c0_8 = arith.constant 0 : index
    %6 = vector.load %arg2[%c0_6, %c0_7, %c0_8] : memref<1x3x1536xf32, #tpu.memory_space<vmem>>, vector<1x3x64xf32>
    %7 = vector.shape_cast %6 : vector<1x3x64xf32> to vector<3x64xf32>
    %c0_9 = arith.constant 0 : index
    %c0_10 = arith.constant 0 : index
    %c128_11 = arith.constant 128 : index
    %8 = vector.load %arg2[%c0_9, %c0_10, %c128_11] : memref<1x3x1536xf32, #tpu.memory_space<vmem>>, vector<1x3x64xf32>
    %9 = vector.shape_cast %8 : vector<1x3x64xf32> to vector<3x64xf32>
    %c0_12 = arith.constant 0 : index
    %c0_13 = arith.constant 0 : index
    %c256 = arith.constant 256 : index
    %10 = vector.load %arg2[%c0_12, %c0_13, %c256] : memref<1x3x1536xf32, #tpu.memory_space<vmem>>, vector<1x3x64xf32>
    %11 = vector.shape_cast %10 : vector<1x3x64xf32> to vector<3x64xf32>
    %12 = arith.addf %7, %11 : vector<3x64xf32>
    %13 = vector.extract_strided_slice %1 {offsets = [0, 0], sizes = [64, 1], strides = [1, 1]} : vector<64x3xf32> to vector<64x1xf32>
    %14 = vector.extract_strided_slice %7 {offsets = [0, 0], sizes = [1, 64], strides = [1, 1]} : vector<3x64xf32> to vector<1x64xf32>
    %15 = vector.broadcast %13 : vector<64x1xf32> to vector<64x64xf32>
    %16 = vector.broadcast %14 : vector<1x64xf32> to vector<64x64xf32>
    %17 = arith.subf %15, %16 : vector<64x64xf32>
    %18 = vector.extract_strided_slice %1 {offsets = [0, 1], sizes = [64, 1], strides = [1, 1]} : vector<64x3xf32> to vector<64x1xf32>
    %19 = vector.extract_strided_slice %7 {offsets = [1, 0], sizes = [1, 64], strides = [1, 1]} : vector<3x64xf32> to vector<1x64xf32>
    %20 = vector.broadcast %18 : vector<64x1xf32> to vector<64x64xf32>
    %21 = vector.broadcast %19 : vector<1x64xf32> to vector<64x64xf32>
    %22 = arith.subf %20, %21 : vector<64x64xf32>
    %23 = vector.extract_strided_slice %1 {offsets = [0, 2], sizes = [64, 1], strides = [1, 1]} : vector<64x3xf32> to vector<64x1xf32>
    %24 = vector.extract_strided_slice %7 {offsets = [2, 0], sizes = [1, 64], strides = [1, 1]} : vector<3x64xf32> to vector<1x64xf32>
    %25 = vector.broadcast %23 : vector<64x1xf32> to vector<64x64xf32>
    %26 = vector.broadcast %24 : vector<1x64xf32> to vector<64x64xf32>
    %27 = arith.subf %25, %26 : vector<64x64xf32>
    %28 = arith.mulf %17, %17 : vector<64x64xf32>
    %29 = arith.mulf %22, %22 : vector<64x64xf32>
    %30 = arith.addf %28, %29 : vector<64x64xf32>
    %31 = arith.mulf %27, %27 : vector<64x64xf32>
    %32 = arith.addf %30, %31 : vector<64x64xf32>
    %cst = arith.constant dense<0x7F800000> : vector<64xf32>
    %33 = vector.multi_reduction <minimumf>, %32, %cst [0] : vector<64x64xf32> to vector<64xf32>
    %34 = vector.shape_cast %33 : vector<64xf32> to vector<1x64xf32>
    %35 = vector.broadcast %34 : vector<1x64xf32> to vector<64x64xf32>
    %36 = arith.cmpf ole, %32, %35 : vector<64x64xf32>
    %cst_14 = arith.constant 1.000000e+30 : f32
    %37 = vector.broadcast %cst_14 : f32 to vector<64x64xf32>
    %38 = arith.select %36, %37, %32 : vector<64x64xi1>, vector<64x64xf32>
    %cst_15 = arith.constant dense<0x7F800000> : vector<64xf32>
    %39 = vector.multi_reduction <minimumf>, %38, %cst_15 [0] : vector<64x64xf32> to vector<64xf32>
    %40 = vector.shape_cast %39 : vector<64xf32> to vector<1x64xf32>
    %41 = vector.broadcast %40 : vector<1x64xf32> to vector<64x64xf32>
    %42 = arith.cmpf ole, %38, %41 : vector<64x64xf32>
    %cst_16 = arith.constant 1.000000e+30 : f32
    %43 = vector.broadcast %cst_16 : f32 to vector<64x64xf32>
    %44 = arith.select %42, %43, %38 : vector<64x64xi1>, vector<64x64xf32>
    %cst_17 = arith.constant dense<0x7F800000> : vector<64xf32>
    %45 = vector.multi_reduction <minimumf>, %44, %cst_17 [0] : vector<64x64xf32> to vector<64xf32>
    %46 = vector.shape_cast %45 : vector<64xf32> to vector<1x64xf32>
    %47 = vector.broadcast %46 : vector<1x64xf32> to vector<64x64xf32>
    %48 = arith.cmpf ole, %44, %47 : vector<64x64xf32>
    %cst_18 = arith.constant 1.000000e+30 : f32
    %49 = vector.broadcast %cst_18 : f32 to vector<64x64xf32>
    %50 = arith.select %48, %49, %44 : vector<64x64xi1>, vector<64x64xf32>
    %cst_19 = arith.constant dense<0x7F800000> : vector<64xf32>
    %51 = vector.multi_reduction <minimumf>, %50, %cst_19 [0] : vector<64x64xf32> to vector<64xf32>
    %52 = vector.shape_cast %51 : vector<64xf32> to vector<1x64xf32>
    %53 = vector.broadcast %52 : vector<1x64xf32> to vector<64x64xf32>
    %54 = arith.cmpf ole, %50, %53 : vector<64x64xf32>
    %cst_20 = arith.constant 1.000000e+30 : f32
    %55 = vector.broadcast %cst_20 : f32 to vector<64x64xf32>
    %56 = arith.select %54, %55, %50 : vector<64x64xi1>, vector<64x64xf32>
    %cst_21 = arith.constant dense<0x7F800000> : vector<64xf32>
    %57 = vector.multi_reduction <minimumf>, %56, %cst_21 [0] : vector<64x64xf32> to vector<64xf32>
    %58 = vector.shape_cast %57 : vector<64xf32> to vector<1x64xf32>
    %59 = vector.broadcast %58 : vector<1x64xf32> to vector<64x64xf32>
    %60 = arith.cmpf ole, %56, %59 : vector<64x64xf32>
    %cst_22 = arith.constant 1.000000e+30 : f32
    %61 = vector.broadcast %cst_22 : f32 to vector<64x64xf32>
    %62 = arith.select %60, %61, %56 : vector<64x64xi1>, vector<64x64xf32>
    %cst_23 = arith.constant dense<0x7F800000> : vector<64xf32>
    %63 = vector.multi_reduction <minimumf>, %62, %cst_23 [0] : vector<64x64xf32> to vector<64xf32>
    %64 = vector.shape_cast %63 : vector<64xf32> to vector<1x64xf32>
    %65 = vector.broadcast %64 : vector<1x64xf32> to vector<64x64xf32>
    %66 = arith.cmpf ole, %62, %65 : vector<64x64xf32>
    %cst_24 = arith.constant 1.000000e+30 : f32
    %67 = vector.broadcast %cst_24 : f32 to vector<64x64xf32>
    %68 = arith.select %66, %67, %62 : vector<64x64xi1>, vector<64x64xf32>
    %cst_25 = arith.constant dense<0x7F800000> : vector<64xf32>
    %69 = vector.multi_reduction <minimumf>, %68, %cst_25 [0] : vector<64x64xf32> to vector<64xf32>
    %70 = vector.shape_cast %69 : vector<64xf32> to vector<1x64xf32>
    %71 = vector.broadcast %70 : vector<1x64xf32> to vector<64x64xf32>
    %72 = arith.cmpf ole, %68, %71 : vector<64x64xf32>
    %cst_26 = arith.constant 1.000000e+30 : f32
    %73 = vector.broadcast %cst_26 : f32 to vector<64x64xf32>
    %74 = arith.select %72, %73, %68 : vector<64x64xi1>, vector<64x64xf32>
    %cst_27 = arith.constant dense<0x7F800000> : vector<64xf32>
    %75 = vector.multi_reduction <minimumf>, %74, %cst_27 [0] : vector<64x64xf32> to vector<64xf32>
    %76 = vector.shape_cast %75 : vector<64xf32> to vector<1x64xf32>
    %77 = vector.broadcast %76 : vector<1x64xf32> to vector<64x64xf32>
    %78 = arith.cmpf ole, %74, %77 : vector<64x64xf32>
    %cst_28 = arith.constant 1.000000e+30 : f32
    %79 = vector.broadcast %cst_28 : f32 to vector<64x64xf32>
    %80 = arith.select %78, %79, %74 : vector<64x64xi1>, vector<64x64xf32>
    %cst_29 = arith.constant dense<0x7F800000> : vector<64xf32>
    %81 = vector.multi_reduction <minimumf>, %80, %cst_29 [0] : vector<64x64xf32> to vector<64xf32>
    %82 = vector.shape_cast %81 : vector<64xf32> to vector<1x64xf32>
    %83 = vector.broadcast %82 : vector<1x64xf32> to vector<64x64xf32>
    %84 = arith.cmpf ole, %80, %83 : vector<64x64xf32>
    %cst_30 = arith.constant 1.000000e+30 : f32
    %85 = vector.broadcast %cst_30 : f32 to vector<64x64xf32>
    %86 = arith.select %84, %85, %80 : vector<64x64xi1>, vector<64x64xf32>
    %cst_31 = arith.constant dense<0x7F800000> : vector<64xf32>
    %87 = vector.multi_reduction <minimumf>, %86, %cst_31 [0] : vector<64x64xf32> to vector<64xf32>
    %88 = vector.shape_cast %87 : vector<64xf32> to vector<1x64xf32>
    %89 = vector.broadcast %82 : vector<1x64xf32> to vector<64x64xf32>
    %90 = arith.cmpf ole, %32, %89 : vector<64x64xf32>
    %91 = vector.broadcast %88 : vector<1x64xf32> to vector<64x64xf32>
    %92 = arith.cmpf ole, %32, %91 : vector<64x64xf32>
    %93 = arith.extui %92 : vector<64x64xi1> to vector<64x64xi32>
    %94 = arith.sitofp %93 : vector<64x64xi32> to vector<64x64xf32>
    %95 = arith.truncf %94 : vector<64x64xf32> to vector<64x64xbf16>
    %96 = arith.truncf %12 : vector<3x64xf32> to vector<3x64xbf16>
    %cst_32 = arith.constant dense<0.000000e+00> : vector<3x64xf32>
    %97 = tpu.matmul %96, %95, %cst_32 {dimension_numbers = #tpu.dot_dimension_numbers<[1], [0], [0], [1], [0, 0, 1, 1], [], []>} : vector<3x64xbf16>, vector<64x64xbf16>, vector<3x64xf32> -> vector<3x64xf32>
    %cst_33 = arith.constant 1.000000e+01 : f32
    %98 = vector.broadcast %cst_33 : f32 to vector<3x64xf32>
    %99 = arith.mulf %98, %12 : vector<3x64xf32>
    %100 = arith.subf %97, %99 : vector<3x64xf32>
    %cst_34 = arith.constant 0.111111112 : f32
    %101 = vector.broadcast %cst_34 : f32 to vector<3x64xf32>
    %102 = arith.mulf %100, %101 : vector<3x64xf32>
    %103 = vector.extract_strided_slice %5 {offsets = [0, 0], sizes = [64, 1], strides = [1, 1]} : vector<64x3xf32> to vector<64x1xf32>
    %104 = vector.extract_strided_slice %11 {offsets = [0, 0], sizes = [1, 64], strides = [1, 1]} : vector<3x64xf32> to vector<1x64xf32>
    %105 = vector.broadcast %103 : vector<64x1xf32> to vector<64x64xf32>
    %106 = vector.broadcast %104 : vector<1x64xf32> to vector<64x64xf32>
    %107 = arith.subf %105, %106 : vector<64x64xf32>
    %108 = vector.extract_strided_slice %5 {offsets = [0, 1], sizes = [64, 1], strides = [1, 1]} : vector<64x3xf32> to vector<64x1xf32>
    %109 = vector.extract_strided_slice %11 {offsets = [1, 0], sizes = [1, 64], strides = [1, 1]} : vector<3x64xf32> to vector<1x64xf32>
    %110 = vector.broadcast %108 : vector<64x1xf32> to vector<64x64xf32>
    %111 = vector.broadcast %109 : vector<1x64xf32> to vector<64x64xf32>
    %112 = arith.subf %110, %111 : vector<64x64xf32>
    %113 = vector.extract_strided_slice %5 {offsets = [0, 2], sizes = [64, 1], strides = [1, 1]} : vector<64x3xf32> to vector<64x1xf32>
    %114 = vector.extract_strided_slice %11 {offsets = [2, 0], sizes = [1, 64], strides = [1, 1]} : vector<3x64xf32> to vector<1x64xf32>
    %115 = vector.broadcast %113 : vector<64x1xf32> to vector<64x64xf32>
    %116 = vector.broadcast %114 : vector<1x64xf32> to vector<64x64xf32>
    %117 = arith.subf %115, %116 : vector<64x64xf32>
    %118 = arith.mulf %107, %107 : vector<64x64xf32>
    %119 = arith.mulf %112, %112 : vector<64x64xf32>
    %120 = arith.addf %118, %119 : vector<64x64xf32>
    %121 = arith.mulf %117, %117 : vector<64x64xf32>
    %122 = arith.addf %120, %121 : vector<64x64xf32>
    %cst_35 = arith.constant 0.000000e+00 : f32
    %123 = vector.broadcast %cst_35 : f32 to vector<64x64xf32>
    %124 = arith.select %90, %122, %123 : vector<64x64xi1>, vector<64x64xf32>
    %125 = math.sqrt %124 : vector<64x64xf32>
    %126 = vector.shape_cast %125 : vector<64x64xf32> to vector<1x64x64xf32>
    %cst_36 = arith.constant dense<0.000000e+00> : vector<1xf32>
    %127 = vector.multi_reduction <add>, %126, %cst_36 [1, 2] : vector<1x64x64xf32> to vector<1xf32>
    %128 = vector.shape_cast %127 : vector<1xf32> to vector<1x1x1xf32>
    %129 = vector.extract %128[0, 0, 0] : f32 from vector<1x1x1xf32>
    %130 = vector.broadcast %129 : f32 to vector<1x1xf32>
    %cst_37 = arith.constant 1.250000e-01 : f32
    %131 = vector.broadcast %cst_37 : f32 to vector<1x1xf32>
    %132 = arith.mulf %130, %131 : vector<1x1xf32>
    %133 = vector.extract_strided_slice %3 {offsets = [0, 0], sizes = [64, 1], strides = [1, 1]} : vector<64x3xf32> to vector<64x1xf32>
    %134 = vector.extract_strided_slice %12 {offsets = [0, 0], sizes = [1, 64], strides = [1, 1]} : vector<3x64xf32> to vector<1x64xf32>
    %135 = vector.broadcast %133 : vector<64x1xf32> to vector<64x64xf32>
    %136 = vector.broadcast %134 : vector<1x64xf32> to vector<64x64xf32>
    %137 = arith.subf %135, %136 : vector<64x64xf32>
    %138 = vector.extract_strided_slice %3 {offsets = [0, 1], sizes = [64, 1], strides = [1, 1]} : vector<64x3xf32> to vector<64x1xf32>
    %139 = vector.extract_strided_slice %12 {offsets = [1, 0], sizes = [1, 64], strides = [1, 1]} : vector<3x64xf32> to vector<1x64xf32>
    %140 = vector.broadcast %138 : vector<64x1xf32> to vector<64x64xf32>
    %141 = vector.broadcast %139 : vector<1x64xf32> to vector<64x64xf32>
    %142 = arith.subf %140, %141 : vector<64x64xf32>
    %143 = vector.extract_strided_slice %3 {offsets = [0, 2], sizes = [64, 1], strides = [1, 1]} : vector<64x3xf32> to vector<64x1xf32>
    %144 = vector.extract_strided_slice %12 {offsets = [2, 0], sizes = [1, 64], strides = [1, 1]} : vector<3x64xf32> to vector<1x64xf32>
    %145 = vector.broadcast %143 : vector<64x1xf32> to vector<64x64xf32>
    %146 = vector.broadcast %144 : vector<1x64xf32> to vector<64x64xf32>
    %147 = arith.subf %145, %146 : vector<64x64xf32>
    %148 = arith.mulf %137, %137 : vector<64x64xf32>
    %149 = arith.mulf %142, %142 : vector<64x64xf32>
    %150 = arith.addf %148, %149 : vector<64x64xf32>
    %151 = arith.mulf %147, %147 : vector<64x64xf32>
    %152 = arith.addf %150, %151 : vector<64x64xf32>
    %cst_38 = arith.constant dense<0x7F800000> : vector<64xf32>
    %153 = vector.multi_reduction <minimumf>, %152, %cst_38 [0] : vector<64x64xf32> to vector<64xf32>
    %154 = vector.shape_cast %153 : vector<64xf32> to vector<1x64xf32>
    %155 = vector.broadcast %154 : vector<1x64xf32> to vector<64x64xf32>
    %156 = arith.cmpf ole, %152, %155 : vector<64x64xf32>
    %cst_39 = arith.constant 1.000000e+30 : f32
    %157 = vector.broadcast %cst_39 : f32 to vector<64x64xf32>
    %158 = arith.select %156, %157, %152 : vector<64x64xi1>, vector<64x64xf32>
    %cst_40 = arith.constant dense<0x7F800000> : vector<64xf32>
    %159 = vector.multi_reduction <minimumf>, %158, %cst_40 [0] : vector<64x64xf32> to vector<64xf32>
    %160 = vector.shape_cast %159 : vector<64xf32> to vector<1x64xf32>
    %161 = vector.broadcast %160 : vector<1x64xf32> to vector<64x64xf32>
    %162 = arith.cmpf ole, %158, %161 : vector<64x64xf32>
    %cst_41 = arith.constant 1.000000e+30 : f32
    %163 = vector.broadcast %cst_41 : f32 to vector<64x64xf32>
    %164 = arith.select %162, %163, %158 : vector<64x64xi1>, vector<64x64xf32>
    %cst_42 = arith.constant dense<0x7F800000> : vector<64xf32>
    %165 = vector.multi_reduction <minimumf>, %164, %cst_42 [0] : vector<64x64xf32> to vector<64xf32>
    %166 = vector.shape_cast %165 : vector<64xf32> to vector<1x64xf32>
    %167 = vector.broadcast %166 : vector<1x64xf32> to vector<64x64xf32>
    %168 = arith.cmpf ole, %164, %167 : vector<64x64xf32>
    %cst_43 = arith.constant 1.000000e+30 : f32
    %169 = vector.broadcast %cst_43 : f32 to vector<64x64xf32>
    %170 = arith.select %168, %169, %164 : vector<64x64xi1>, vector<64x64xf32>
    %cst_44 = arith.constant dense<0x7F800000> : vector<64xf32>
    %171 = vector.multi_reduction <minimumf>, %170, %cst_44 [0] : vector<64x64xf32> to vector<64xf32>
    %172 = vector.shape_cast %171 : vector<64xf32> to vector<1x64xf32>
    %173 = vector.broadcast %172 : vector<1x64xf32> to vector<64x64xf32>
    %174 = arith.cmpf ole, %170, %173 : vector<64x64xf32>
    %cst_45 = arith.constant 1.000000e+30 : f32
    %175 = vector.broadcast %cst_45 : f32 to vector<64x64xf32>
    %176 = arith.select %174, %175, %170 : vector<64x64xi1>, vector<64x64xf32>
    %cst_46 = arith.constant dense<0x7F800000> : vector<64xf32>
    %177 = vector.multi_reduction <minimumf>, %176, %cst_46 [0] : vector<64x64xf32> to vector<64xf32>
    %178 = vector.shape_cast %177 : vector<64xf32> to vector<1x64xf32>
    %cst_47 = arith.constant dense<0x7F800000> : vector<64xf32>
    %179 = vector.multi_reduction <minimumf>, %152, %cst_47 [1] : vector<64x64xf32> to vector<64xf32>
    %180 = vector.shape_cast %179 : vector<64xf32> to vector<64x1xf32>
    %181 = vector.shape_cast %154 : vector<1x64xf32> to vector<1x1x64xf32>
    %cst_48 = arith.constant dense<0.000000e+00> : vector<1xf32>
    %182 = vector.multi_reduction <add>, %181, %cst_48 [1, 2] : vector<1x1x64xf32> to vector<1xf32>
    %183 = vector.shape_cast %182 : vector<1xf32> to vector<1x1x1xf32>
    %184 = vector.extract %183[0, 0, 0] : f32 from vector<1x1x1xf32>
    %185 = vector.broadcast %184 : f32 to vector<1x1xf32>
    %186 = vector.shape_cast %180 : vector<64x1xf32> to vector<1x64x1xf32>
    %cst_49 = arith.constant dense<0.000000e+00> : vector<1xf32>
    %187 = vector.multi_reduction <add>, %186, %cst_49 [1, 2] : vector<1x64x1xf32> to vector<1xf32>
    %188 = vector.shape_cast %187 : vector<1xf32> to vector<1x1x1xf32>
    %189 = vector.extract %188[0, 0, 0] : f32 from vector<1x1x1xf32>
    %190 = vector.broadcast %189 : f32 to vector<1x1xf32>
    %191 = arith.addf %185, %190 : vector<1x1xf32>
    %192 = vector.broadcast %178 : vector<1x64xf32> to vector<64x64xf32>
    %193 = arith.cmpf ole, %152, %192 : vector<64x64xf32>
    %cst_50 = arith.constant 9.99999993E-9 : f32
    %194 = vector.broadcast %cst_50 : f32 to vector<64x64xf32>
    %195 = arith.addf %152, %194 : vector<64x64xf32>
    %196 = tpu.reciprocal %195 {approx = true} : vector<64x64xf32> -> vector<64x64xf32>
    %cst_51 = arith.constant 0.000000e+00 : f32
    %197 = vector.broadcast %cst_51 : f32 to vector<64x64xf32>
    %198 = arith.select %193, %196, %197 : vector<64x64xi1>, vector<64x64xf32>
    %cst_52 = arith.constant dense<0.000000e+00> : vector<64xf32>
    %199 = vector.multi_reduction <add>, %198, %cst_52 [0] : vector<64x64xf32> to vector<64xf32>
    %200 = vector.shape_cast %199 : vector<64xf32> to vector<1x64xf32>
    %201 = arith.truncf %198 : vector<64x64xf32> to vector<64x64xbf16>
    %202 = vector.extract_strided_slice %3 {offsets = [0, 0], sizes = [64, 1], strides = [1, 1]} : vector<64x3xf32> to vector<64x1xf32>
    %203 = vector.extract_strided_slice %9 {offsets = [0, 0], sizes = [1, 64], strides = [1, 1]} : vector<3x64xf32> to vector<1x64xf32>
    %204 = vector.broadcast %202 : vector<64x1xf32> to vector<64x64xf32>
    %205 = vector.broadcast %203 : vector<1x64xf32> to vector<64x64xf32>
    %206 = arith.subf %204, %205 : vector<64x64xf32>
    %207 = vector.extract_strided_slice %3 {offsets = [0, 1], sizes = [64, 1], strides = [1, 1]} : vector<64x3xf32> to vector<64x1xf32>
    %208 = vector.extract_strided_slice %9 {offsets = [1, 0], sizes = [1, 64], strides = [1, 1]} : vector<3x64xf32> to vector<1x64xf32>
    %209 = vector.broadcast %207 : vector<64x1xf32> to vector<64x64xf32>
    %210 = vector.broadcast %208 : vector<1x64xf32> to vector<64x64xf32>
    %211 = arith.subf %209, %210 : vector<64x64xf32>
    %212 = vector.extract_strided_slice %3 {offsets = [0, 2], sizes = [64, 1], strides = [1, 1]} : vector<64x3xf32> to vector<64x1xf32>
    %213 = vector.extract_strided_slice %9 {offsets = [2, 0], sizes = [1, 64], strides = [1, 1]} : vector<3x64xf32> to vector<1x64xf32>
    %214 = vector.broadcast %212 : vector<64x1xf32> to vector<64x64xf32>
    %215 = vector.broadcast %213 : vector<1x64xf32> to vector<64x64xf32>
    %216 = arith.subf %214, %215 : vector<64x64xf32>
    %217 = arith.mulf %206, %206 : vector<64x64xf32>
    %218 = arith.mulf %211, %211 : vector<64x64xf32>
    %219 = arith.addf %217, %218 : vector<64x64xf32>
    %220 = arith.mulf %216, %216 : vector<64x64xf32>
    %221 = arith.addf %219, %220 : vector<64x64xf32>
    %cst_53 = arith.constant dense<0x7F800000> : vector<64xf32>
    %222 = vector.multi_reduction <minimumf>, %221, %cst_53 [0] : vector<64x64xf32> to vector<64xf32>
    %223 = vector.shape_cast %222 : vector<64xf32> to vector<1x64xf32>
    %224 = vector.broadcast %223 : vector<1x64xf32> to vector<64x64xf32>
    %225 = arith.cmpf ole, %221, %224 : vector<64x64xf32>
    %cst_54 = arith.constant 1.000000e+30 : f32
    %226 = vector.broadcast %cst_54 : f32 to vector<64x64xf32>
    %227 = arith.select %225, %226, %221 : vector<64x64xi1>, vector<64x64xf32>
    %cst_55 = arith.constant dense<0x7F800000> : vector<64xf32>
    %228 = vector.multi_reduction <minimumf>, %227, %cst_55 [0] : vector<64x64xf32> to vector<64xf32>
    %229 = vector.shape_cast %228 : vector<64xf32> to vector<1x64xf32>
    %230 = vector.broadcast %229 : vector<1x64xf32> to vector<64x64xf32>
    %231 = arith.cmpf ole, %227, %230 : vector<64x64xf32>
    %cst_56 = arith.constant 1.000000e+30 : f32
    %232 = vector.broadcast %cst_56 : f32 to vector<64x64xf32>
    %233 = arith.select %231, %232, %227 : vector<64x64xi1>, vector<64x64xf32>
    %cst_57 = arith.constant dense<0x7F800000> : vector<64xf32>
    %234 = vector.multi_reduction <minimumf>, %233, %cst_57 [0] : vector<64x64xf32> to vector<64xf32>
    %235 = vector.shape_cast %234 : vector<64xf32> to vector<1x64xf32>
    %236 = vector.broadcast %235 : vector<1x64xf32> to vector<64x64xf32>
    %237 = arith.cmpf ole, %233, %236 : vector<64x64xf32>
    %cst_58 = arith.constant 1.000000e+30 : f32
    %238 = vector.broadcast %cst_58 : f32 to vector<64x64xf32>
    %239 = arith.select %237, %238, %233 : vector<64x64xi1>, vector<64x64xf32>
    %cst_59 = arith.constant dense<0x7F800000> : vector<64xf32>
    %240 = vector.multi_reduction <minimumf>, %239, %cst_59 [0] : vector<64x64xf32> to vector<64xf32>
    %241 = vector.shape_cast %240 : vector<64xf32> to vector<1x64xf32>
    %242 = vector.broadcast %241 : vector<1x64xf32> to vector<64x64xf32>
    %243 = arith.cmpf ole, %239, %242 : vector<64x64xf32>
    %cst_60 = arith.constant 1.000000e+30 : f32
    %244 = vector.broadcast %cst_60 : f32 to vector<64x64xf32>
    %245 = arith.select %243, %244, %239 : vector<64x64xi1>, vector<64x64xf32>
    %cst_61 = arith.constant dense<0x7F800000> : vector<64xf32>
    %246 = vector.multi_reduction <minimumf>, %245, %cst_61 [0] : vector<64x64xf32> to vector<64xf32>
    %247 = vector.shape_cast %246 : vector<64xf32> to vector<1x64xf32>
    %248 = vector.broadcast %247 : vector<1x64xf32> to vector<64x64xf32>
    %249 = arith.cmpf ole, %245, %248 : vector<64x64xf32>
    %cst_62 = arith.constant 1.000000e+30 : f32
    %250 = vector.broadcast %cst_62 : f32 to vector<64x64xf32>
    %251 = arith.select %249, %250, %245 : vector<64x64xi1>, vector<64x64xf32>
    %cst_63 = arith.constant dense<0x7F800000> : vector<64xf32>
    %252 = vector.multi_reduction <minimumf>, %251, %cst_63 [0] : vector<64x64xf32> to vector<64xf32>
    %253 = vector.shape_cast %252 : vector<64xf32> to vector<1x64xf32>
    %254 = vector.broadcast %253 : vector<1x64xf32> to vector<64x64xf32>
    %255 = arith.cmpf ole, %251, %254 : vector<64x64xf32>
    %cst_64 = arith.constant 1.000000e+30 : f32
    %256 = vector.broadcast %cst_64 : f32 to vector<64x64xf32>
    %257 = arith.select %255, %256, %251 : vector<64x64xi1>, vector<64x64xf32>
    %cst_65 = arith.constant dense<0x7F800000> : vector<64xf32>
    %258 = vector.multi_reduction <minimumf>, %257, %cst_65 [0] : vector<64x64xf32> to vector<64xf32>
    %259 = vector.shape_cast %258 : vector<64xf32> to vector<1x64xf32>
    %260 = vector.broadcast %259 : vector<1x64xf32> to vector<64x64xf32>
    %261 = arith.cmpf ole, %257, %260 : vector<64x64xf32>
    %cst_66 = arith.constant 1.000000e+30 : f32
    %262 = vector.broadcast %cst_66 : f32 to vector<64x64xf32>
    %263 = arith.select %261, %262, %257 : vector<64x64xi1>, vector<64x64xf32>
    %cst_67 = arith.constant dense<0x7F800000> : vector<64xf32>
    %264 = vector.multi_reduction <minimumf>, %263, %cst_67 [0] : vector<64x64xf32> to vector<64xf32>
    %265 = vector.shape_cast %264 : vector<64xf32> to vector<1x64xf32>
    %266 = vector.broadcast %265 : vector<1x64xf32> to vector<64x64xf32>
    %267 = arith.cmpf ole, %263, %266 : vector<64x64xf32>
    %cst_68 = arith.constant 1.000000e+30 : f32
    %268 = vector.broadcast %cst_68 : f32 to vector<64x64xf32>
    %269 = arith.select %267, %268, %263 : vector<64x64xi1>, vector<64x64xf32>
    %cst_69 = arith.constant dense<0x7F800000> : vector<64xf32>
    %270 = vector.multi_reduction <minimumf>, %269, %cst_69 [0] : vector<64x64xf32> to vector<64xf32>
    %271 = vector.shape_cast %270 : vector<64xf32> to vector<1x64xf32>
    %272 = vector.broadcast %271 : vector<1x64xf32> to vector<64x64xf32>
    %273 = arith.cmpf ole, %269, %272 : vector<64x64xf32>
    %cst_70 = arith.constant 1.000000e+30 : f32
    %274 = vector.broadcast %cst_70 : f32 to vector<64x64xf32>
    %275 = arith.select %273, %274, %269 : vector<64x64xi1>, vector<64x64xf32>
    %cst_71 = arith.constant dense<0x7F800000> : vector<64xf32>
    %276 = vector.multi_reduction <minimumf>, %275, %cst_71 [0] : vector<64x64xf32> to vector<64xf32>
    %277 = vector.shape_cast %276 : vector<64xf32> to vector<1x64xf32>
    %278 = vector.broadcast %277 : vector<1x64xf32> to vector<64x64xf32>
    %279 = arith.cmpf ole, %221, %278 : vector<64x64xf32>
    %280 = arith.extui %279 : vector<64x64xi1> to vector<64x64xi32>
    %281 = arith.sitofp %280 : vector<64x64xi32> to vector<64x64xf32>
    %282 = arith.truncf %281 : vector<64x64xf32> to vector<64x64xbf16>
    %283 = arith.truncf %9 : vector<3x64xf32> to vector<3x64xbf16>
    %cst_72 = arith.constant dense<0.000000e+00> : vector<3x64xf32>
    %284 = tpu.matmul %283, %282, %cst_72 {dimension_numbers = #tpu.dot_dimension_numbers<[1], [0], [0], [1], [0, 0, 1, 1], [], []>} : vector<3x64xbf16>, vector<64x64xbf16>, vector<3x64xf32> -> vector<3x64xf32>
    %cst_73 = arith.constant 1.000000e+01 : f32
    %285 = vector.broadcast %cst_73 : f32 to vector<3x64xf32>
    %286 = arith.mulf %285, %9 : vector<3x64xf32>
    %287 = arith.subf %284, %286 : vector<3x64xf32>
    %cst_74 = arith.constant 0.111111112 : f32
    %288 = vector.broadcast %cst_74 : f32 to vector<3x64xf32>
    %289 = arith.mulf %287, %288 : vector<3x64xf32>
    %290 = arith.truncf %289 : vector<3x64xf32> to vector<3x64xbf16>
    %cst_75 = arith.constant dense<0.000000e+00> : vector<3x64xf32>
    %291 = tpu.matmul %290, %201, %cst_75 {dimension_numbers = #tpu.dot_dimension_numbers<[1], [0], [0], [1], [0, 0, 1, 1], [], []>} : vector<3x64xbf16>, vector<64x64xbf16>, vector<3x64xf32> -> vector<3x64xf32>
    %292 = tpu.reciprocal %200 {approx = true} : vector<1x64xf32> -> vector<1x64xf32>
    %293 = vector.broadcast %292 : vector<1x64xf32> to vector<3x64xf32>
    %294 = arith.mulf %291, %293 : vector<3x64xf32>
    %295 = arith.subf %294, %102 : vector<3x64xf32>
    %296 = arith.mulf %295, %295 : vector<3x64xf32>
    %297 = vector.shape_cast %296 : vector<3x64xf32> to vector<1x3x64xf32>
    %cst_76 = arith.constant dense<0.000000e+00> : vector<1xf32>
    %298 = vector.multi_reduction <add>, %297, %cst_76 [1, 2] : vector<1x3x64xf32> to vector<1xf32>
    %299 = vector.shape_cast %298 : vector<1xf32> to vector<1x1x1xf32>
    %300 = vector.extract %299[0, 0, 0] : f32 from vector<1x1x1xf32>
    %301 = vector.broadcast %300 : f32 to vector<1x1xf32>
    %cst_77 = arith.constant 2.000000e-02 : f32
    %302 = vector.broadcast %cst_77 : f32 to vector<1x1xf32>
    %303 = arith.mulf %302, %191 : vector<1x1xf32>
    %cst_78 = arith.constant 0.000000e+00 : f32
    %304 = vector.broadcast %cst_78 : f32 to vector<1x1xf32>
    %305 = arith.addf %304, %303 : vector<1x1xf32>
    %cst_79 = arith.constant 2.000000e-02 : f32
    %306 = vector.broadcast %cst_79 : f32 to vector<1x1xf32>
    %307 = arith.mulf %306, %132 : vector<1x1xf32>
    %cst_80 = arith.constant 0.000000e+00 : f32
    %308 = vector.broadcast %cst_80 : f32 to vector<1x1xf32>
    %309 = arith.addf %308, %307 : vector<1x1xf32>
    %cst_81 = arith.constant 2.000000e-02 : f32
    %310 = vector.broadcast %cst_81 : f32 to vector<1x1xf32>
    %311 = arith.mulf %310, %301 : vector<1x1xf32>
    %cst_82 = arith.constant 0.000000e+00 : f32
    %312 = vector.broadcast %cst_82 : f32 to vector<1x1xf32>
    %313 = arith.addf %312, %311 : vector<1x1xf32>
    %c0_83 = arith.constant 0 : index
    %c192 = arith.constant 192 : index
    %c0_84 = arith.constant 0 : index
    %314 = vector.load %arg1[%c0_83, %c192, %c0_84] : memref<1x384x3xf32, #tpu.memory_space<vmem>>, vector<1x32x3xf32>
    %315 = vector.shape_cast %314 : vector<1x32x3xf32> to vector<32x3xf32>
    %c0_85 = arith.constant 0 : index
    %c224 = arith.constant 224 : index
    %c0_86 = arith.constant 0 : index
    %316 = vector.load %arg1[%c0_85, %c224, %c0_86] : memref<1x384x3xf32, #tpu.memory_space<vmem>>, vector<1x32x3xf32>
    %317 = vector.shape_cast %316 : vector<1x32x3xf32> to vector<32x3xf32>
    %c0_87 = arith.constant 0 : index
    %c256_88 = arith.constant 256 : index
    %c0_89 = arith.constant 0 : index
    %318 = vector.load %arg1[%c0_87, %c256_88, %c0_89] : memref<1x384x3xf32, #tpu.memory_space<vmem>>, vector<1x32x3xf32>
    %319 = vector.shape_cast %318 : vector<1x32x3xf32> to vector<32x3xf32>
    %c0_90 = arith.constant 0 : index
    %c0_91 = arith.constant 0 : index
    %c384 = arith.constant 384 : index
    %320 = vector.load %arg2[%c0_90, %c0_91, %c384] : memref<1x3x1536xf32, #tpu.memory_space<vmem>>, vector<1x3x32xf32>
    %321 = vector.shape_cast %320 : vector<1x3x32xf32> to vector<3x32xf32>
    %c0_92 = arith.constant 0 : index
    %c0_93 = arith.constant 0 : index
    %c512 = arith.constant 512 : index
    %322 = vector.load %arg2[%c0_92, %c0_93, %c512] : memref<1x3x1536xf32, #tpu.memory_space<vmem>>, vector<1x3x32xf32>
    %323 = vector.shape_cast %322 : vector<1x3x32xf32> to vector<3x32xf32>
    %c0_94 = arith.constant 0 : index
    %c0_95 = arith.constant 0 : index
    %c640 = arith.constant 640 : index
    %324 = vector.load %arg2[%c0_94, %c0_95, %c640] : memref<1x3x1536xf32, #tpu.memory_space<vmem>>, vector<1x3x32xf32>
    %325 = vector.shape_cast %324 : vector<1x3x32xf32> to vector<3x32xf32>
    %326 = arith.addf %321, %325 : vector<3x32xf32>
    %327 = vector.extract_strided_slice %315 {offsets = [0, 0], sizes = [32, 1], strides = [1, 1]} : vector<32x3xf32> to vector<32x1xf32>
    %328 = vector.extract_strided_slice %321 {offsets = [0, 0], sizes = [1, 32], strides = [1, 1]} : vector<3x32xf32> to vector<1x32xf32>
    %329 = vector.broadcast %327 : vector<32x1xf32> to vector<32x32xf32>
    %330 = vector.broadcast %328 : vector<1x32xf32> to vector<32x32xf32>
    %331 = arith.subf %329, %330 : vector<32x32xf32>
    %332 = vector.extract_strided_slice %315 {offsets = [0, 1], sizes = [32, 1], strides = [1, 1]} : vector<32x3xf32> to vector<32x1xf32>
    %333 = vector.extract_strided_slice %321 {offsets = [1, 0], sizes = [1, 32], strides = [1, 1]} : vector<3x32xf32> to vector<1x32xf32>
    %334 = vector.broadcast %332 : vector<32x1xf32> to vector<32x32xf32>
    %335 = vector.broadcast %333 : vector<1x32xf32> to vector<32x32xf32>
    %336 = arith.subf %334, %335 : vector<32x32xf32>
    %337 = vector.extract_strided_slice %315 {offsets = [0, 2], sizes = [32, 1], strides = [1, 1]} : vector<32x3xf32> to vector<32x1xf32>
    %338 = vector.extract_strided_slice %321 {offsets = [2, 0], sizes = [1, 32], strides = [1, 1]} : vector<3x32xf32> to vector<1x32xf32>
    %339 = vector.broadcast %337 : vector<32x1xf32> to vector<32x32xf32>
    %340 = vector.broadcast %338 : vector<1x32xf32> to vector<32x32xf32>
    %341 = arith.subf %339, %340 : vector<32x32xf32>
    %342 = arith.mulf %331, %331 : vector<32x32xf32>
    %343 = arith.mulf %336, %336 : vector<32x32xf32>
    %344 = arith.addf %342, %343 : vector<32x32xf32>
    %345 = arith.mulf %341, %341 : vector<32x32xf32>
    %346 = arith.addf %344, %345 : vector<32x32xf32>
    %cst_96 = arith.constant dense<0x7F800000> : vector<32xf32>
    %347 = vector.multi_reduction <minimumf>, %346, %cst_96 [0] : vector<32x32xf32> to vector<32xf32>
    %348 = vector.shape_cast %347 : vector<32xf32> to vector<1x32xf32>
    %349 = vector.broadcast %348 : vector<1x32xf32> to vector<32x32xf32>
    %350 = arith.cmpf ole, %346, %349 : vector<32x32xf32>
    %cst_97 = arith.constant 1.000000e+30 : f32
    %351 = vector.broadcast %cst_97 : f32 to vector<32x32xf32>
    %352 = arith.select %350, %351, %346 : vector<32x32xi1>, vector<32x32xf32>
    %cst_98 = arith.constant dense<0x7F800000> : vector<32xf32>
    %353 = vector.multi_reduction <minimumf>, %352, %cst_98 [0] : vector<32x32xf32> to vector<32xf32>
    %354 = vector.shape_cast %353 : vector<32xf32> to vector<1x32xf32>
    %355 = vector.broadcast %354 : vector<1x32xf32> to vector<32x32xf32>
    %356 = arith.cmpf ole, %352, %355 : vector<32x32xf32>
    %cst_99 = arith.constant 1.000000e+30 : f32
    %357 = vector.broadcast %cst_99 : f32 to vector<32x32xf32>
    %358 = arith.select %356, %357, %352 : vector<32x32xi1>, vector<32x32xf32>
    %cst_100 = arith.constant dense<0x7F800000> : vector<32xf32>
    %359 = vector.multi_reduction <minimumf>, %358, %cst_100 [0] : vector<32x32xf32> to vector<32xf32>
    %360 = vector.shape_cast %359 : vector<32xf32> to vector<1x32xf32>
    %361 = vector.broadcast %360 : vector<1x32xf32> to vector<32x32xf32>
    %362 = arith.cmpf ole, %358, %361 : vector<32x32xf32>
    %cst_101 = arith.constant 1.000000e+30 : f32
    %363 = vector.broadcast %cst_101 : f32 to vector<32x32xf32>
    %364 = arith.select %362, %363, %358 : vector<32x32xi1>, vector<32x32xf32>
    %cst_102 = arith.constant dense<0x7F800000> : vector<32xf32>
    %365 = vector.multi_reduction <minimumf>, %364, %cst_102 [0] : vector<32x32xf32> to vector<32xf32>
    %366 = vector.shape_cast %365 : vector<32xf32> to vector<1x32xf32>
    %367 = vector.broadcast %366 : vector<1x32xf32> to vector<32x32xf32>
    %368 = arith.cmpf ole, %364, %367 : vector<32x32xf32>
    %cst_103 = arith.constant 1.000000e+30 : f32
    %369 = vector.broadcast %cst_103 : f32 to vector<32x32xf32>
    %370 = arith.select %368, %369, %364 : vector<32x32xi1>, vector<32x32xf32>
    %cst_104 = arith.constant dense<0x7F800000> : vector<32xf32>
    %371 = vector.multi_reduction <minimumf>, %370, %cst_104 [0] : vector<32x32xf32> to vector<32xf32>
    %372 = vector.shape_cast %371 : vector<32xf32> to vector<1x32xf32>
    %373 = vector.broadcast %372 : vector<1x32xf32> to vector<32x32xf32>
    %374 = arith.cmpf ole, %370, %373 : vector<32x32xf32>
    %cst_105 = arith.constant 1.000000e+30 : f32
    %375 = vector.broadcast %cst_105 : f32 to vector<32x32xf32>
    %376 = arith.select %374, %375, %370 : vector<32x32xi1>, vector<32x32xf32>
    %cst_106 = arith.constant dense<0x7F800000> : vector<32xf32>
    %377 = vector.multi_reduction <minimumf>, %376, %cst_106 [0] : vector<32x32xf32> to vector<32xf32>
    %378 = vector.shape_cast %377 : vector<32xf32> to vector<1x32xf32>
    %379 = vector.broadcast %378 : vector<1x32xf32> to vector<32x32xf32>
    %380 = arith.cmpf ole, %376, %379 : vector<32x32xf32>
    %cst_107 = arith.constant 1.000000e+30 : f32
    %381 = vector.broadcast %cst_107 : f32 to vector<32x32xf32>
    %382 = arith.select %380, %381, %376 : vector<32x32xi1>, vector<32x32xf32>
    %cst_108 = arith.constant dense<0x7F800000> : vector<32xf32>
    %383 = vector.multi_reduction <minimumf>, %382, %cst_108 [0] : vector<32x32xf32> to vector<32xf32>
    %384 = vector.shape_cast %383 : vector<32xf32> to vector<1x32xf32>
    %385 = vector.broadcast %384 : vector<1x32xf32> to vector<32x32xf32>
    %386 = arith.cmpf ole, %382, %385 : vector<32x32xf32>
    %cst_109 = arith.constant 1.000000e+30 : f32
    %387 = vector.broadcast %cst_109 : f32 to vector<32x32xf32>
    %388 = arith.select %386, %387, %382 : vector<32x32xi1>, vector<32x32xf32>
    %cst_110 = arith.constant dense<0x7F800000> : vector<32xf32>
    %389 = vector.multi_reduction <minimumf>, %388, %cst_110 [0] : vector<32x32xf32> to vector<32xf32>
    %390 = vector.shape_cast %389 : vector<32xf32> to vector<1x32xf32>
    %391 = vector.broadcast %390 : vector<1x32xf32> to vector<32x32xf32>
    %392 = arith.cmpf ole, %388, %391 : vector<32x32xf32>
    %cst_111 = arith.constant 1.000000e+30 : f32
    %393 = vector.broadcast %cst_111 : f32 to vector<32x32xf32>
    %394 = arith.select %392, %393, %388 : vector<32x32xi1>, vector<32x32xf32>
    %cst_112 = arith.constant dense<0x7F800000> : vector<32xf32>
    %395 = vector.multi_reduction <minimumf>, %394, %cst_112 [0] : vector<32x32xf32> to vector<32xf32>
    %396 = vector.shape_cast %395 : vector<32xf32> to vector<1x32xf32>
    %397 = vector.broadcast %396 : vector<1x32xf32> to vector<32x32xf32>
    %398 = arith.cmpf ole, %394, %397 : vector<32x32xf32>
    %cst_113 = arith.constant 1.000000e+30 : f32
    %399 = vector.broadcast %cst_113 : f32 to vector<32x32xf32>
    %400 = arith.select %398, %399, %394 : vector<32x32xi1>, vector<32x32xf32>
    %cst_114 = arith.constant dense<0x7F800000> : vector<32xf32>
    %401 = vector.multi_reduction <minimumf>, %400, %cst_114 [0] : vector<32x32xf32> to vector<32xf32>
    %402 = vector.shape_cast %401 : vector<32xf32> to vector<1x32xf32>
    %403 = vector.broadcast %396 : vector<1x32xf32> to vector<32x32xf32>
    %404 = arith.cmpf ole, %346, %403 : vector<32x32xf32>
    %405 = vector.broadcast %402 : vector<1x32xf32> to vector<32x32xf32>
    %406 = arith.cmpf ole, %346, %405 : vector<32x32xf32>
    %407 = arith.extui %406 : vector<32x32xi1> to vector<32x32xi32>
    %408 = arith.sitofp %407 : vector<32x32xi32> to vector<32x32xf32>
    %409 = arith.truncf %408 : vector<32x32xf32> to vector<32x32xbf16>
    %410 = arith.truncf %326 : vector<3x32xf32> to vector<3x32xbf16>
    %cst_115 = arith.constant dense<0.000000e+00> : vector<3x32xf32>
    %411 = tpu.matmul %410, %409, %cst_115 {dimension_numbers = #tpu.dot_dimension_numbers<[1], [0], [0], [1], [0, 0, 1, 1], [], []>} : vector<3x32xbf16>, vector<32x32xbf16>, vector<3x32xf32> -> vector<3x32xf32>
    %cst_116 = arith.constant 1.000000e+01 : f32
    %412 = vector.broadcast %cst_116 : f32 to vector<3x32xf32>
    %413 = arith.mulf %412, %326 : vector<3x32xf32>
    %414 = arith.subf %411, %413 : vector<3x32xf32>
    %cst_117 = arith.constant 0.111111112 : f32
    %415 = vector.broadcast %cst_117 : f32 to vector<3x32xf32>
    %416 = arith.mulf %414, %415 : vector<3x32xf32>
    %417 = vector.extract_strided_slice %319 {offsets = [0, 0], sizes = [32, 1], strides = [1, 1]} : vector<32x3xf32> to vector<32x1xf32>
    %418 = vector.extract_strided_slice %325 {offsets = [0, 0], sizes = [1, 32], strides = [1, 1]} : vector<3x32xf32> to vector<1x32xf32>
    %419 = vector.broadcast %417 : vector<32x1xf32> to vector<32x32xf32>
    %420 = vector.broadcast %418 : vector<1x32xf32> to vector<32x32xf32>
    %421 = arith.subf %419, %420 : vector<32x32xf32>
    %422 = vector.extract_strided_slice %319 {offsets = [0, 1], sizes = [32, 1], strides = [1, 1]} : vector<32x3xf32> to vector<32x1xf32>
    %423 = vector.extract_strided_slice %325 {offsets = [1, 0], sizes = [1, 32], strides = [1, 1]} : vector<3x32xf32> to vector<1x32xf32>
    %424 = vector.broadcast %422 : vector<32x1xf32> to vector<32x32xf32>
    %425 = vector.broadcast %423 : vector<1x32xf32> to vector<32x32xf32>
    %426 = arith.subf %424, %425 : vector<32x32xf32>
    %427 = vector.extract_strided_slice %319 {offsets = [0, 2], sizes = [32, 1], strides = [1, 1]} : vector<32x3xf32> to vector<32x1xf32>
    %428 = vector.extract_strided_slice %325 {offsets = [2, 0], sizes = [1, 32], strides = [1, 1]} : vector<3x32xf32> to vector<1x32xf32>
    %429 = vector.broadcast %427 : vector<32x1xf32> to vector<32x32xf32>
    %430 = vector.broadcast %428 : vector<1x32xf32> to vector<32x32xf32>
    %431 = arith.subf %429, %430 : vector<32x32xf32>
    %432 = arith.mulf %421, %421 : vector<32x32xf32>
    %433 = arith.mulf %426, %426 : vector<32x32xf32>
    %434 = arith.addf %432, %433 : vector<32x32xf32>
    %435 = arith.mulf %431, %431 : vector<32x32xf32>
    %436 = arith.addf %434, %435 : vector<32x32xf32>
    %cst_118 = arith.constant 0.000000e+00 : f32
    %437 = vector.broadcast %cst_118 : f32 to vector<32x32xf32>
    %438 = arith.select %404, %436, %437 : vector<32x32xi1>, vector<32x32xf32>
    %439 = math.sqrt %438 : vector<32x32xf32>
    %440 = vector.shape_cast %439 : vector<32x32xf32> to vector<1x32x32xf32>
    %cst_119 = arith.constant dense<0.000000e+00> : vector<1xf32>
    %441 = vector.multi_reduction <add>, %440, %cst_119 [1, 2] : vector<1x32x32xf32> to vector<1xf32>
    %442 = vector.shape_cast %441 : vector<1xf32> to vector<1x1x1xf32>
    %443 = vector.extract %442[0, 0, 0] : f32 from vector<1x1x1xf32>
    %444 = vector.broadcast %443 : f32 to vector<1x1xf32>
    %cst_120 = arith.constant 1.250000e-01 : f32
    %445 = vector.broadcast %cst_120 : f32 to vector<1x1xf32>
    %446 = arith.mulf %444, %445 : vector<1x1xf32>
    %447 = vector.extract_strided_slice %317 {offsets = [0, 0], sizes = [32, 1], strides = [1, 1]} : vector<32x3xf32> to vector<32x1xf32>
    %448 = vector.extract_strided_slice %326 {offsets = [0, 0], sizes = [1, 32], strides = [1, 1]} : vector<3x32xf32> to vector<1x32xf32>
    %449 = vector.broadcast %447 : vector<32x1xf32> to vector<32x32xf32>
    %450 = vector.broadcast %448 : vector<1x32xf32> to vector<32x32xf32>
    %451 = arith.subf %449, %450 : vector<32x32xf32>
    %452 = vector.extract_strided_slice %317 {offsets = [0, 1], sizes = [32, 1], strides = [1, 1]} : vector<32x3xf32> to vector<32x1xf32>
    %453 = vector.extract_strided_slice %326 {offsets = [1, 0], sizes = [1, 32], strides = [1, 1]} : vector<3x32xf32> to vector<1x32xf32>
    %454 = vector.broadcast %452 : vector<32x1xf32> to vector<32x32xf32>
    %455 = vector.broadcast %453 : vector<1x32xf32> to vector<32x32xf32>
    %456 = arith.subf %454, %455 : vector<32x32xf32>
    %457 = vector.extract_strided_slice %317 {offsets = [0, 2], sizes = [32, 1], strides = [1, 1]} : vector<32x3xf32> to vector<32x1xf32>
    %458 = vector.extract_strided_slice %326 {offsets = [2, 0], sizes = [1, 32], strides = [1, 1]} : vector<3x32xf32> to vector<1x32xf32>
    %459 = vector.broadcast %457 : vector<32x1xf32> to vector<32x32xf32>
    %460 = vector.broadcast %458 : vector<1x32xf32> to vector<32x32xf32>
    %461 = arith.subf %459, %460 : vector<32x32xf32>
    %462 = arith.mulf %451, %451 : vector<32x32xf32>
    %463 = arith.mulf %456, %456 : vector<32x32xf32>
    %464 = arith.addf %462, %463 : vector<32x32xf32>
    %465 = arith.mulf %461, %461 : vector<32x32xf32>
    %466 = arith.addf %464, %465 : vector<32x32xf32>
    %cst_121 = arith.constant dense<0x7F800000> : vector<32xf32>
    %467 = vector.multi_reduction <minimumf>, %466, %cst_121 [0] : vector<32x32xf32> to vector<32xf32>
    %468 = vector.shape_cast %467 : vector<32xf32> to vector<1x32xf32>
    %469 = vector.broadcast %468 : vector<1x32xf32> to vector<32x32xf32>
    %470 = arith.cmpf ole, %466, %469 : vector<32x32xf32>
    %cst_122 = arith.constant 1.000000e+30 : f32
    %471 = vector.broadcast %cst_122 : f32 to vector<32x32xf32>
    %472 = arith.select %470, %471, %466 : vector<32x32xi1>, vector<32x32xf32>
    %cst_123 = arith.constant dense<0x7F800000> : vector<32xf32>
    %473 = vector.multi_reduction <minimumf>, %472, %cst_123 [0] : vector<32x32xf32> to vector<32xf32>
    %474 = vector.shape_cast %473 : vector<32xf32> to vector<1x32xf32>
    %475 = vector.broadcast %474 : vector<1x32xf32> to vector<32x32xf32>
    %476 = arith.cmpf ole, %472, %475 : vector<32x32xf32>
    %cst_124 = arith.constant 1.000000e+30 : f32
    %477 = vector.broadcast %cst_124 : f32 to vector<32x32xf32>
    %478 = arith.select %476, %477, %472 : vector<32x32xi1>, vector<32x32xf32>
    %cst_125 = arith.constant dense<0x7F800000> : vector<32xf32>
    %479 = vector.multi_reduction <minimumf>, %478, %cst_125 [0] : vector<32x32xf32> to vector<32xf32>
    %480 = vector.shape_cast %479 : vector<32xf32> to vector<1x32xf32>
    %481 = vector.broadcast %480 : vector<1x32xf32> to vector<32x32xf32>
    %482 = arith.cmpf ole, %478, %481 : vector<32x32xf32>
    %cst_126 = arith.constant 1.000000e+30 : f32
    %483 = vector.broadcast %cst_126 : f32 to vector<32x32xf32>
    %484 = arith.select %482, %483, %478 : vector<32x32xi1>, vector<32x32xf32>
    %cst_127 = arith.constant dense<0x7F800000> : vector<32xf32>
    %485 = vector.multi_reduction <minimumf>, %484, %cst_127 [0] : vector<32x32xf32> to vector<32xf32>
    %486 = vector.shape_cast %485 : vector<32xf32> to vector<1x32xf32>
    %487 = vector.broadcast %486 : vector<1x32xf32> to vector<32x32xf32>
    %488 = arith.cmpf ole, %484, %487 : vector<32x32xf32>
    %cst_128 = arith.constant 1.000000e+30 : f32
    %489 = vector.broadcast %cst_128 : f32 to vector<32x32xf32>
    %490 = arith.select %488, %489, %484 : vector<32x32xi1>, vector<32x32xf32>
    %cst_129 = arith.constant dense<0x7F800000> : vector<32xf32>
    %491 = vector.multi_reduction <minimumf>, %490, %cst_129 [0] : vector<32x32xf32> to vector<32xf32>
    %492 = vector.shape_cast %491 : vector<32xf32> to vector<1x32xf32>
    %cst_130 = arith.constant dense<0x7F800000> : vector<32xf32>
    %493 = vector.multi_reduction <minimumf>, %466, %cst_130 [1] : vector<32x32xf32> to vector<32xf32>
    %494 = vector.shape_cast %493 : vector<32xf32> to vector<32x1xf32>
    %495 = vector.shape_cast %468 : vector<1x32xf32> to vector<1x1x32xf32>
    %cst_131 = arith.constant dense<0.000000e+00> : vector<1xf32>
    %496 = vector.multi_reduction <add>, %495, %cst_131 [1, 2] : vector<1x1x32xf32> to vector<1xf32>
    %497 = vector.shape_cast %496 : vector<1xf32> to vector<1x1x1xf32>
    %498 = vector.extract %497[0, 0, 0] : f32 from vector<1x1x1xf32>
    %499 = vector.broadcast %498 : f32 to vector<1x1xf32>
    %500 = vector.shape_cast %494 : vector<32x1xf32> to vector<1x32x1xf32>
    %cst_132 = arith.constant dense<0.000000e+00> : vector<1xf32>
    %501 = vector.multi_reduction <add>, %500, %cst_132 [1, 2] : vector<1x32x1xf32> to vector<1xf32>
    %502 = vector.shape_cast %501 : vector<1xf32> to vector<1x1x1xf32>
    %503 = vector.extract %502[0, 0, 0] : f32 from vector<1x1x1xf32>
    %504 = vector.broadcast %503 : f32 to vector<1x1xf32>
    %505 = arith.addf %499, %504 : vector<1x1xf32>
    %506 = vector.broadcast %492 : vector<1x32xf32> to vector<32x32xf32>
    %507 = arith.cmpf ole, %466, %506 : vector<32x32xf32>
    %cst_133 = arith.constant 9.99999993E-9 : f32
    %508 = vector.broadcast %cst_133 : f32 to vector<32x32xf32>
    %509 = arith.addf %466, %508 : vector<32x32xf32>
    %510 = tpu.reciprocal %509 {approx = true} : vector<32x32xf32> -> vector<32x32xf32>
    %cst_134 = arith.constant 0.000000e+00 : f32
    %511 = vector.broadcast %cst_134 : f32 to vector<32x32xf32>
    %512 = arith.select %507, %510, %511 : vector<32x32xi1>, vector<32x32xf32>
    %cst_135 = arith.constant dense<0.000000e+00> : vector<32xf32>
    %513 = vector.multi_reduction <add>, %512, %cst_135 [0] : vector<32x32xf32> to vector<32xf32>
    %514 = vector.shape_cast %513 : vector<32xf32> to vector<1x32xf32>
    %515 = arith.truncf %512 : vector<32x32xf32> to vector<32x32xbf16>
    %516 = vector.extract_strided_slice %317 {offsets = [0, 0], sizes = [32, 1], strides = [1, 1]} : vector<32x3xf32> to vector<32x1xf32>
    %517 = vector.extract_strided_slice %323 {offsets = [0, 0], sizes = [1, 32], strides = [1, 1]} : vector<3x32xf32> to vector<1x32xf32>
    %518 = vector.broadcast %516 : vector<32x1xf32> to vector<32x32xf32>
    %519 = vector.broadcast %517 : vector<1x32xf32> to vector<32x32xf32>
    %520 = arith.subf %518, %519 : vector<32x32xf32>
    %521 = vector.extract_strided_slice %317 {offsets = [0, 1], sizes = [32, 1], strides = [1, 1]} : vector<32x3xf32> to vector<32x1xf32>
    %522 = vector.extract_strided_slice %323 {offsets = [1, 0], sizes = [1, 32], strides = [1, 1]} : vector<3x32xf32> to vector<1x32xf32>
    %523 = vector.broadcast %521 : vector<32x1xf32> to vector<32x32xf32>
    %524 = vector.broadcast %522 : vector<1x32xf32> to vector<32x32xf32>
    %525 = arith.subf %523, %524 : vector<32x32xf32>
    %526 = vector.extract_strided_slice %317 {offsets = [0, 2], sizes = [32, 1], strides = [1, 1]} : vector<32x3xf32> to vector<32x1xf32>
    %527 = vector.extract_strided_slice %323 {offsets = [2, 0], sizes = [1, 32], strides = [1, 1]} : vector<3x32xf32> to vector<1x32xf32>
    %528 = vector.broadcast %526 : vector<32x1xf32> to vector<32x32xf32>
    %529 = vector.broadcast %527 : vector<1x32xf32> to vector<32x32xf32>
    %530 = arith.subf %528, %529 : vector<32x32xf32>
    %531 = arith.mulf %520, %520 : vector<32x32xf32>
    %532 = arith.mulf %525, %525 : vector<32x32xf32>
    %533 = arith.addf %531, %532 : vector<32x32xf32>
    %534 = arith.mulf %530, %530 : vector<32x32xf32>
    %535 = arith.addf %533, %534 : vector<32x32xf32>
    %cst_136 = arith.constant dense<0x7F800000> : vector<32xf32>
    %536 = vector.multi_reduction <minimumf>, %535, %cst_136 [0] : vector<32x32xf32> to vector<32xf32>
    %537 = vector.shape_cast %536 : vector<32xf32> to vector<1x32xf32>
    %538 = vector.broadcast %537 : vector<1x32xf32> to vector<32x32xf32>
    %539 = arith.cmpf ole, %535, %538 : vector<32x32xf32>
    %cst_137 = arith.constant 1.000000e+30 : f32
    %540 = vector.broadcast %cst_137 : f32 to vector<32x32xf32>
    %541 = arith.select %539, %540, %535 : vector<32x32xi1>, vector<32x32xf32>
    %cst_138 = arith.constant dense<0x7F800000> : vector<32xf32>
    %542 = vector.multi_reduction <minimumf>, %541, %cst_138 [0] : vector<32x32xf32> to vector<32xf32>
    %543 = vector.shape_cast %542 : vector<32xf32> to vector<1x32xf32>
    %544 = vector.broadcast %543 : vector<1x32xf32> to vector<32x32xf32>
    %545 = arith.cmpf ole, %541, %544 : vector<32x32xf32>
    %cst_139 = arith.constant 1.000000e+30 : f32
    %546 = vector.broadcast %cst_139 : f32 to vector<32x32xf32>
    %547 = arith.select %545, %546, %541 : vector<32x32xi1>, vector<32x32xf32>
    %cst_140 = arith.constant dense<0x7F800000> : vector<32xf32>
    %548 = vector.multi_reduction <minimumf>, %547, %cst_140 [0] : vector<32x32xf32> to vector<32xf32>
    %549 = vector.shape_cast %548 : vector<32xf32> to vector<1x32xf32>
    %550 = vector.broadcast %549 : vector<1x32xf32> to vector<32x32xf32>
    %551 = arith.cmpf ole, %547, %550 : vector<32x32xf32>
    %cst_141 = arith.constant 1.000000e+30 : f32
    %552 = vector.broadcast %cst_141 : f32 to vector<32x32xf32>
    %553 = arith.select %551, %552, %547 : vector<32x32xi1>, vector<32x32xf32>
    %cst_142 = arith.constant dense<0x7F800000> : vector<32xf32>
    %554 = vector.multi_reduction <minimumf>, %553, %cst_142 [0] : vector<32x32xf32> to vector<32xf32>
    %555 = vector.shape_cast %554 : vector<32xf32> to vector<1x32xf32>
    %556 = vector.broadcast %555 : vector<1x32xf32> to vector<32x32xf32>
    %557 = arith.cmpf ole, %553, %556 : vector<32x32xf32>
    %cst_143 = arith.constant 1.000000e+30 : f32
    %558 = vector.broadcast %cst_143 : f32 to vector<32x32xf32>
    %559 = arith.select %557, %558, %553 : vector<32x32xi1>, vector<32x32xf32>
    %cst_144 = arith.constant dense<0x7F800000> : vector<32xf32>
    %560 = vector.multi_reduction <minimumf>, %559, %cst_144 [0] : vector<32x32xf32> to vector<32xf32>
    %561 = vector.shape_cast %560 : vector<32xf32> to vector<1x32xf32>
    %562 = vector.broadcast %561 : vector<1x32xf32> to vector<32x32xf32>
    %563 = arith.cmpf ole, %559, %562 : vector<32x32xf32>
    %cst_145 = arith.constant 1.000000e+30 : f32
    %564 = vector.broadcast %cst_145 : f32 to vector<32x32xf32>
    %565 = arith.select %563, %564, %559 : vector<32x32xi1>, vector<32x32xf32>
    %cst_146 = arith.constant dense<0x7F800000> : vector<32xf32>
    %566 = vector.multi_reduction <minimumf>, %565, %cst_146 [0] : vector<32x32xf32> to vector<32xf32>
    %567 = vector.shape_cast %566 : vector<32xf32> to vector<1x32xf32>
    %568 = vector.broadcast %567 : vector<1x32xf32> to vector<32x32xf32>
    %569 = arith.cmpf ole, %565, %568 : vector<32x32xf32>
    %cst_147 = arith.constant 1.000000e+30 : f32
    %570 = vector.broadcast %cst_147 : f32 to vector<32x32xf32>
    %571 = arith.select %569, %570, %565 : vector<32x32xi1>, vector<32x32xf32>
    %cst_148 = arith.constant dense<0x7F800000> : vector<32xf32>
    %572 = vector.multi_reduction <minimumf>, %571, %cst_148 [0] : vector<32x32xf32> to vector<32xf32>
    %573 = vector.shape_cast %572 : vector<32xf32> to vector<1x32xf32>
    %574 = vector.broadcast %573 : vector<1x32xf32> to vector<32x32xf32>
    %575 = arith.cmpf ole, %571, %574 : vector<32x32xf32>
    %cst_149 = arith.constant 1.000000e+30 : f32
    %576 = vector.broadcast %cst_149 : f32 to vector<32x32xf32>
    %577 = arith.select %575, %576, %571 : vector<32x32xi1>, vector<32x32xf32>
    %cst_150 = arith.constant dense<0x7F800000> : vector<32xf32>
    %578 = vector.multi_reduction <minimumf>, %577, %cst_150 [0] : vector<32x32xf32> to vector<32xf32>
    %579 = vector.shape_cast %578 : vector<32xf32> to vector<1x32xf32>
    %580 = vector.broadcast %579 : vector<1x32xf32> to vector<32x32xf32>
    %581 = arith.cmpf ole, %577, %580 : vector<32x32xf32>
    %cst_151 = arith.constant 1.000000e+30 : f32
    %582 = vector.broadcast %cst_151 : f32 to vector<32x32xf32>
    %583 = arith.select %581, %582, %577 : vector<32x32xi1>, vector<32x32xf32>
    %cst_152 = arith.constant dense<0x7F800000> : vector<32xf32>
    %584 = vector.multi_reduction <minimumf>, %583, %cst_152 [0] : vector<32x32xf32> to vector<32xf32>
    %585 = vector.shape_cast %584 : vector<32xf32> to vector<1x32xf32>
    %586 = vector.broadcast %585 : vector<1x32xf32> to vector<32x32xf32>
    %587 = arith.cmpf ole, %583, %586 : vector<32x32xf32>
    %cst_153 = arith.constant 1.000000e+30 : f32
    %588 = vector.broadcast %cst_153 : f32 to vector<32x32xf32>
    %589 = arith.select %587, %588, %583 : vector<32x32xi1>, vector<32x32xf32>
    %cst_154 = arith.constant dense<0x7F800000> : vector<32xf32>
    %590 = vector.multi_reduction <minimumf>, %589, %cst_154 [0] : vector<32x32xf32> to vector<32xf32>
    %591 = vector.shape_cast %590 : vector<32xf32> to vector<1x32xf32>
    %592 = vector.broadcast %591 : vector<1x32xf32> to vector<32x32xf32>
    %593 = arith.cmpf ole, %535, %592 : vector<32x32xf32>
    %594 = arith.extui %593 : vector<32x32xi1> to vector<32x32xi32>
    %595 = arith.sitofp %594 : vector<32x32xi32> to vector<32x32xf32>
    %596 = arith.truncf %595 : vector<32x32xf32> to vector<32x32xbf16>
    %597 = arith.truncf %323 : vector<3x32xf32> to vector<3x32xbf16>
    %cst_155 = arith.constant dense<0.000000e+00> : vector<3x32xf32>
    %598 = tpu.matmul %597, %596, %cst_155 {dimension_numbers = #tpu.dot_dimension_numbers<[1], [0], [0], [1], [0, 0, 1, 1], [], []>} : vector<3x32xbf16>, vector<32x32xbf16>, vector<3x32xf32> -> vector<3x32xf32>
    %cst_156 = arith.constant 1.000000e+01 : f32
    %599 = vector.broadcast %cst_156 : f32 to vector<3x32xf32>
    %600 = arith.mulf %599, %323 : vector<3x32xf32>
    %601 = arith.subf %598, %600 : vector<3x32xf32>
    %cst_157 = arith.constant 0.111111112 : f32
    %602 = vector.broadcast %cst_157 : f32 to vector<3x32xf32>
    %603 = arith.mulf %601, %602 : vector<3x32xf32>
    %604 = arith.truncf %603 : vector<3x32xf32> to vector<3x32xbf16>
    %cst_158 = arith.constant dense<0.000000e+00> : vector<3x32xf32>
    %605 = tpu.matmul %604, %515, %cst_158 {dimension_numbers = #tpu.dot_dimension_numbers<[1], [0], [0], [1], [0, 0, 1, 1], [], []>} : vector<3x32xbf16>, vector<32x32xbf16>, vector<3x32xf32> -> vector<3x32xf32>
    %606 = tpu.reciprocal %514 {approx = true} : vector<1x32xf32> -> vector<1x32xf32>
    %607 = vector.broadcast %606 : vector<1x32xf32> to vector<3x32xf32>
    %608 = arith.mulf %605, %607 : vector<3x32xf32>
    %609 = arith.subf %608, %416 : vector<3x32xf32>
    %610 = arith.mulf %609, %609 : vector<3x32xf32>
    %611 = vector.shape_cast %610 : vector<3x32xf32> to vector<1x3x32xf32>
    %cst_159 = arith.constant dense<0.000000e+00> : vector<1xf32>
    %612 = vector.multi_reduction <add>, %611, %cst_159 [1, 2] : vector<1x3x32xf32> to vector<1xf32>
    %613 = vector.shape_cast %612 : vector<1xf32> to vector<1x1x1xf32>
    %614 = vector.extract %613[0, 0, 0] : f32 from vector<1x1x1xf32>
    %615 = vector.broadcast %614 : f32 to vector<1x1xf32>
    %cst_160 = arith.constant 4.000000e-02 : f32
    %616 = vector.broadcast %cst_160 : f32 to vector<1x1xf32>
    %617 = arith.mulf %616, %505 : vector<1x1xf32>
    %618 = arith.addf %305, %617 : vector<1x1xf32>
    %cst_161 = arith.constant 4.000000e-02 : f32
    %619 = vector.broadcast %cst_161 : f32 to vector<1x1xf32>
    %620 = arith.mulf %619, %446 : vector<1x1xf32>
    %621 = arith.addf %309, %620 : vector<1x1xf32>
    %cst_162 = arith.constant 4.000000e-02 : f32
    %622 = vector.broadcast %cst_162 : f32 to vector<1x1xf32>
    %623 = arith.mulf %622, %615 : vector<1x1xf32>
    %624 = arith.addf %313, %623 : vector<1x1xf32>
    %c0_163 = arith.constant 0 : index
    %c288 = arith.constant 288 : index
    %c0_164 = arith.constant 0 : index
    %625 = vector.load %arg1[%c0_163, %c288, %c0_164] : memref<1x384x3xf32, #tpu.memory_space<vmem>>, vector<1x16x3xf32>
    %626 = vector.shape_cast %625 : vector<1x16x3xf32> to vector<16x3xf32>
    %c0_165 = arith.constant 0 : index
    %c304 = arith.constant 304 : index
    %c0_166 = arith.constant 0 : index
    %627 = vector.load %arg1[%c0_165, %c304, %c0_166] : memref<1x384x3xf32, #tpu.memory_space<vmem>>, vector<1x16x3xf32>
    %628 = vector.shape_cast %627 : vector<1x16x3xf32> to vector<16x3xf32>
    %c0_167 = arith.constant 0 : index
    %c320 = arith.constant 320 : index
    %c0_168 = arith.constant 0 : index
    %629 = vector.load %arg1[%c0_167, %c320, %c0_168] : memref<1x384x3xf32, #tpu.memory_space<vmem>>, vector<1x16x3xf32>
    %630 = vector.shape_cast %629 : vector<1x16x3xf32> to vector<16x3xf32>
    %c0_169 = arith.constant 0 : index
    %c0_170 = arith.constant 0 : index
    %c768 = arith.constant 768 : index
    %631 = vector.load %arg2[%c0_169, %c0_170, %c768] : memref<1x3x1536xf32, #tpu.memory_space<vmem>>, vector<1x3x16xf32>
    %632 = vector.shape_cast %631 : vector<1x3x16xf32> to vector<3x16xf32>
    %c0_171 = arith.constant 0 : index
    %c0_172 = arith.constant 0 : index
    %c896 = arith.constant 896 : index
    %633 = vector.load %arg2[%c0_171, %c0_172, %c896] : memref<1x3x1536xf32, #tpu.memory_space<vmem>>, vector<1x3x16xf32>
    %634 = vector.shape_cast %633 : vector<1x3x16xf32> to vector<3x16xf32>
    %c0_173 = arith.constant 0 : index
    %c0_174 = arith.constant 0 : index
    %c1024 = arith.constant 1024 : index
    %635 = vector.load %arg2[%c0_173, %c0_174, %c1024] : memref<1x3x1536xf32, #tpu.memory_space<vmem>>, vector<1x3x16xf32>
    %636 = vector.shape_cast %635 : vector<1x3x16xf32> to vector<3x16xf32>
    %637 = arith.addf %632, %636 : vector<3x16xf32>
    %638 = vector.extract_strided_slice %626 {offsets = [0, 0], sizes = [16, 1], strides = [1, 1]} : vector<16x3xf32> to vector<16x1xf32>
    %639 = vector.extract_strided_slice %632 {offsets = [0, 0], sizes = [1, 16], strides = [1, 1]} : vector<3x16xf32> to vector<1x16xf32>
    %640 = vector.broadcast %638 : vector<16x1xf32> to vector<16x16xf32>
    %641 = vector.broadcast %639 : vector<1x16xf32> to vector<16x16xf32>
    %642 = arith.subf %640, %641 : vector<16x16xf32>
    %643 = vector.extract_strided_slice %626 {offsets = [0, 1], sizes = [16, 1], strides = [1, 1]} : vector<16x3xf32> to vector<16x1xf32>
    %644 = vector.extract_strided_slice %632 {offsets = [1, 0], sizes = [1, 16], strides = [1, 1]} : vector<3x16xf32> to vector<1x16xf32>
    %645 = vector.broadcast %643 : vector<16x1xf32> to vector<16x16xf32>
    %646 = vector.broadcast %644 : vector<1x16xf32> to vector<16x16xf32>
    %647 = arith.subf %645, %646 : vector<16x16xf32>
    %648 = vector.extract_strided_slice %626 {offsets = [0, 2], sizes = [16, 1], strides = [1, 1]} : vector<16x3xf32> to vector<16x1xf32>
    %649 = vector.extract_strided_slice %632 {offsets = [2, 0], sizes = [1, 16], strides = [1, 1]} : vector<3x16xf32> to vector<1x16xf32>
    %650 = vector.broadcast %648 : vector<16x1xf32> to vector<16x16xf32>
    %651 = vector.broadcast %649 : vector<1x16xf32> to vector<16x16xf32>
    %652 = arith.subf %650, %651 : vector<16x16xf32>
    %653 = arith.mulf %642, %642 : vector<16x16xf32>
    %654 = arith.mulf %647, %647 : vector<16x16xf32>
    %655 = arith.addf %653, %654 : vector<16x16xf32>
    %656 = arith.mulf %652, %652 : vector<16x16xf32>
    %657 = arith.addf %655, %656 : vector<16x16xf32>
    %cst_175 = arith.constant dense<0x7F800000> : vector<16xf32>
    %658 = vector.multi_reduction <minimumf>, %657, %cst_175 [0] : vector<16x16xf32> to vector<16xf32>
    %659 = vector.shape_cast %658 : vector<16xf32> to vector<1x16xf32>
    %660 = vector.broadcast %659 : vector<1x16xf32> to vector<16x16xf32>
    %661 = arith.cmpf ole, %657, %660 : vector<16x16xf32>
    %cst_176 = arith.constant 1.000000e+30 : f32
    %662 = vector.broadcast %cst_176 : f32 to vector<16x16xf32>
    %663 = arith.select %661, %662, %657 : vector<16x16xi1>, vector<16x16xf32>
    %cst_177 = arith.constant dense<0x7F800000> : vector<16xf32>
    %664 = vector.multi_reduction <minimumf>, %663, %cst_177 [0] : vector<16x16xf32> to vector<16xf32>
    %665 = vector.shape_cast %664 : vector<16xf32> to vector<1x16xf32>
    %666 = vector.broadcast %665 : vector<1x16xf32> to vector<16x16xf32>
    %667 = arith.cmpf ole, %663, %666 : vector<16x16xf32>
    %cst_178 = arith.constant 1.000000e+30 : f32
    %668 = vector.broadcast %cst_178 : f32 to vector<16x16xf32>
    %669 = arith.select %667, %668, %663 : vector<16x16xi1>, vector<16x16xf32>
    %cst_179 = arith.constant dense<0x7F800000> : vector<16xf32>
    %670 = vector.multi_reduction <minimumf>, %669, %cst_179 [0] : vector<16x16xf32> to vector<16xf32>
    %671 = vector.shape_cast %670 : vector<16xf32> to vector<1x16xf32>
    %672 = vector.broadcast %671 : vector<1x16xf32> to vector<16x16xf32>
    %673 = arith.cmpf ole, %669, %672 : vector<16x16xf32>
    %cst_180 = arith.constant 1.000000e+30 : f32
    %674 = vector.broadcast %cst_180 : f32 to vector<16x16xf32>
    %675 = arith.select %673, %674, %669 : vector<16x16xi1>, vector<16x16xf32>
    %cst_181 = arith.constant dense<0x7F800000> : vector<16xf32>
    %676 = vector.multi_reduction <minimumf>, %675, %cst_181 [0] : vector<16x16xf32> to vector<16xf32>
    %677 = vector.shape_cast %676 : vector<16xf32> to vector<1x16xf32>
    %678 = vector.broadcast %677 : vector<1x16xf32> to vector<16x16xf32>
    %679 = arith.cmpf ole, %675, %678 : vector<16x16xf32>
    %cst_182 = arith.constant 1.000000e+30 : f32
    %680 = vector.broadcast %cst_182 : f32 to vector<16x16xf32>
    %681 = arith.select %679, %680, %675 : vector<16x16xi1>, vector<16x16xf32>
    %cst_183 = arith.constant dense<0x7F800000> : vector<16xf32>
    %682 = vector.multi_reduction <minimumf>, %681, %cst_183 [0] : vector<16x16xf32> to vector<16xf32>
    %683 = vector.shape_cast %682 : vector<16xf32> to vector<1x16xf32>
    %684 = vector.broadcast %683 : vector<1x16xf32> to vector<16x16xf32>
    %685 = arith.cmpf ole, %681, %684 : vector<16x16xf32>
    %cst_184 = arith.constant 1.000000e+30 : f32
    %686 = vector.broadcast %cst_184 : f32 to vector<16x16xf32>
    %687 = arith.select %685, %686, %681 : vector<16x16xi1>, vector<16x16xf32>
    %cst_185 = arith.constant dense<0x7F800000> : vector<16xf32>
    %688 = vector.multi_reduction <minimumf>, %687, %cst_185 [0] : vector<16x16xf32> to vector<16xf32>
    %689 = vector.shape_cast %688 : vector<16xf32> to vector<1x16xf32>
    %690 = vector.broadcast %689 : vector<1x16xf32> to vector<16x16xf32>
    %691 = arith.cmpf ole, %687, %690 : vector<16x16xf32>
    %cst_186 = arith.constant 1.000000e+30 : f32
    %692 = vector.broadcast %cst_186 : f32 to vector<16x16xf32>
    %693 = arith.select %691, %692, %687 : vector<16x16xi1>, vector<16x16xf32>
    %cst_187 = arith.constant dense<0x7F800000> : vector<16xf32>
    %694 = vector.multi_reduction <minimumf>, %693, %cst_187 [0] : vector<16x16xf32> to vector<16xf32>
    %695 = vector.shape_cast %694 : vector<16xf32> to vector<1x16xf32>
    %696 = vector.broadcast %695 : vector<1x16xf32> to vector<16x16xf32>
    %697 = arith.cmpf ole, %693, %696 : vector<16x16xf32>
    %cst_188 = arith.constant 1.000000e+30 : f32
    %698 = vector.broadcast %cst_188 : f32 to vector<16x16xf32>
    %699 = arith.select %697, %698, %693 : vector<16x16xi1>, vector<16x16xf32>
    %cst_189 = arith.constant dense<0x7F800000> : vector<16xf32>
    %700 = vector.multi_reduction <minimumf>, %699, %cst_189 [0] : vector<16x16xf32> to vector<16xf32>
    %701 = vector.shape_cast %700 : vector<16xf32> to vector<1x16xf32>
    %702 = vector.broadcast %701 : vector<1x16xf32> to vector<16x16xf32>
    %703 = arith.cmpf ole, %699, %702 : vector<16x16xf32>
    %cst_190 = arith.constant 1.000000e+30 : f32
    %704 = vector.broadcast %cst_190 : f32 to vector<16x16xf32>
    %705 = arith.select %703, %704, %699 : vector<16x16xi1>, vector<16x16xf32>
    %cst_191 = arith.constant dense<0x7F800000> : vector<16xf32>
    %706 = vector.multi_reduction <minimumf>, %705, %cst_191 [0] : vector<16x16xf32> to vector<16xf32>
    %707 = vector.shape_cast %706 : vector<16xf32> to vector<1x16xf32>
    %708 = vector.broadcast %707 : vector<1x16xf32> to vector<16x16xf32>
    %709 = arith.cmpf ole, %705, %708 : vector<16x16xf32>
    %cst_192 = arith.constant 1.000000e+30 : f32
    %710 = vector.broadcast %cst_192 : f32 to vector<16x16xf32>
    %711 = arith.select %709, %710, %705 : vector<16x16xi1>, vector<16x16xf32>
    %cst_193 = arith.constant dense<0x7F800000> : vector<16xf32>
    %712 = vector.multi_reduction <minimumf>, %711, %cst_193 [0] : vector<16x16xf32> to vector<16xf32>
    %713 = vector.shape_cast %712 : vector<16xf32> to vector<1x16xf32>
    %714 = vector.broadcast %707 : vector<1x16xf32> to vector<16x16xf32>
    %715 = arith.cmpf ole, %657, %714 : vector<16x16xf32>
    %716 = vector.broadcast %713 : vector<1x16xf32> to vector<16x16xf32>
    %717 = arith.cmpf ole, %657, %716 : vector<16x16xf32>
    %718 = arith.extui %717 : vector<16x16xi1> to vector<16x16xi32>
    %719 = arith.sitofp %718 : vector<16x16xi32> to vector<16x16xf32>
    %720 = arith.truncf %719 : vector<16x16xf32> to vector<16x16xbf16>
    %721 = arith.truncf %637 : vector<3x16xf32> to vector<3x16xbf16>
    %cst_194 = arith.constant dense<0.000000e+00> : vector<3x16xf32>
    %722 = tpu.matmul %721, %720, %cst_194 {dimension_numbers = #tpu.dot_dimension_numbers<[1], [0], [0], [1], [0, 0, 1, 1], [], []>} : vector<3x16xbf16>, vector<16x16xbf16>, vector<3x16xf32> -> vector<3x16xf32>
    %cst_195 = arith.constant 1.000000e+01 : f32
    %723 = vector.broadcast %cst_195 : f32 to vector<3x16xf32>
    %724 = arith.mulf %723, %637 : vector<3x16xf32>
    %725 = arith.subf %722, %724 : vector<3x16xf32>
    %cst_196 = arith.constant 0.111111112 : f32
    %726 = vector.broadcast %cst_196 : f32 to vector<3x16xf32>
    %727 = arith.mulf %725, %726 : vector<3x16xf32>
    %728 = vector.extract_strided_slice %630 {offsets = [0, 0], sizes = [16, 1], strides = [1, 1]} : vector<16x3xf32> to vector<16x1xf32>
    %729 = vector.extract_strided_slice %636 {offsets = [0, 0], sizes = [1, 16], strides = [1, 1]} : vector<3x16xf32> to vector<1x16xf32>
    %730 = vector.broadcast %728 : vector<16x1xf32> to vector<16x16xf32>
    %731 = vector.broadcast %729 : vector<1x16xf32> to vector<16x16xf32>
    %732 = arith.subf %730, %731 : vector<16x16xf32>
    %733 = vector.extract_strided_slice %630 {offsets = [0, 1], sizes = [16, 1], strides = [1, 1]} : vector<16x3xf32> to vector<16x1xf32>
    %734 = vector.extract_strided_slice %636 {offsets = [1, 0], sizes = [1, 16], strides = [1, 1]} : vector<3x16xf32> to vector<1x16xf32>
    %735 = vector.broadcast %733 : vector<16x1xf32> to vector<16x16xf32>
    %736 = vector.broadcast %734 : vector<1x16xf32> to vector<16x16xf32>
    %737 = arith.subf %735, %736 : vector<16x16xf32>
    %738 = vector.extract_strided_slice %630 {offsets = [0, 2], sizes = [16, 1], strides = [1, 1]} : vector<16x3xf32> to vector<16x1xf32>
    %739 = vector.extract_strided_slice %636 {offsets = [2, 0], sizes = [1, 16], strides = [1, 1]} : vector<3x16xf32> to vector<1x16xf32>
    %740 = vector.broadcast %738 : vector<16x1xf32> to vector<16x16xf32>
    %741 = vector.broadcast %739 : vector<1x16xf32> to vector<16x16xf32>
    %742 = arith.subf %740, %741 : vector<16x16xf32>
    %743 = arith.mulf %732, %732 : vector<16x16xf32>
    %744 = arith.mulf %737, %737 : vector<16x16xf32>
    %745 = arith.addf %743, %744 : vector<16x16xf32>
    %746 = arith.mulf %742, %742 : vector<16x16xf32>
    %747 = arith.addf %745, %746 : vector<16x16xf32>
    %cst_197 = arith.constant 0.000000e+00 : f32
    %748 = vector.broadcast %cst_197 : f32 to vector<16x16xf32>
    %749 = arith.select %715, %747, %748 : vector<16x16xi1>, vector<16x16xf32>
    %750 = math.sqrt %749 : vector<16x16xf32>
    %751 = vector.shape_cast %750 : vector<16x16xf32> to vector<1x16x16xf32>
    %cst_198 = arith.constant dense<0.000000e+00> : vector<1xf32>
    %752 = vector.multi_reduction <add>, %751, %cst_198 [1, 2] : vector<1x16x16xf32> to vector<1xf32>
    %753 = vector.shape_cast %752 : vector<1xf32> to vector<1x1x1xf32>
    %754 = vector.extract %753[0, 0, 0] : f32 from vector<1x1x1xf32>
    %755 = vector.broadcast %754 : f32 to vector<1x1xf32>
    %cst_199 = arith.constant 1.250000e-01 : f32
    %756 = vector.broadcast %cst_199 : f32 to vector<1x1xf32>
    %757 = arith.mulf %755, %756 : vector<1x1xf32>
    %758 = vector.extract_strided_slice %628 {offsets = [0, 0], sizes = [16, 1], strides = [1, 1]} : vector<16x3xf32> to vector<16x1xf32>
    %759 = vector.extract_strided_slice %637 {offsets = [0, 0], sizes = [1, 16], strides = [1, 1]} : vector<3x16xf32> to vector<1x16xf32>
    %760 = vector.broadcast %758 : vector<16x1xf32> to vector<16x16xf32>
    %761 = vector.broadcast %759 : vector<1x16xf32> to vector<16x16xf32>
    %762 = arith.subf %760, %761 : vector<16x16xf32>
    %763 = vector.extract_strided_slice %628 {offsets = [0, 1], sizes = [16, 1], strides = [1, 1]} : vector<16x3xf32> to vector<16x1xf32>
    %764 = vector.extract_strided_slice %637 {offsets = [1, 0], sizes = [1, 16], strides = [1, 1]} : vector<3x16xf32> to vector<1x16xf32>
    %765 = vector.broadcast %763 : vector<16x1xf32> to vector<16x16xf32>
    %766 = vector.broadcast %764 : vector<1x16xf32> to vector<16x16xf32>
    %767 = arith.subf %765, %766 : vector<16x16xf32>
    %768 = vector.extract_strided_slice %628 {offsets = [0, 2], sizes = [16, 1], strides = [1, 1]} : vector<16x3xf32> to vector<16x1xf32>
    %769 = vector.extract_strided_slice %637 {offsets = [2, 0], sizes = [1, 16], strides = [1, 1]} : vector<3x16xf32> to vector<1x16xf32>
    %770 = vector.broadcast %768 : vector<16x1xf32> to vector<16x16xf32>
    %771 = vector.broadcast %769 : vector<1x16xf32> to vector<16x16xf32>
    %772 = arith.subf %770, %771 : vector<16x16xf32>
    %773 = arith.mulf %762, %762 : vector<16x16xf32>
    %774 = arith.mulf %767, %767 : vector<16x16xf32>
    %775 = arith.addf %773, %774 : vector<16x16xf32>
    %776 = arith.mulf %772, %772 : vector<16x16xf32>
    %777 = arith.addf %775, %776 : vector<16x16xf32>
    %cst_200 = arith.constant dense<0x7F800000> : vector<16xf32>
    %778 = vector.multi_reduction <minimumf>, %777, %cst_200 [0] : vector<16x16xf32> to vector<16xf32>
    %779 = vector.shape_cast %778 : vector<16xf32> to vector<1x16xf32>
    %780 = vector.broadcast %779 : vector<1x16xf32> to vector<16x16xf32>
    %781 = arith.cmpf ole, %777, %780 : vector<16x16xf32>
    %cst_201 = arith.constant 1.000000e+30 : f32
    %782 = vector.broadcast %cst_201 : f32 to vector<16x16xf32>
    %783 = arith.select %781, %782, %777 : vector<16x16xi1>, vector<16x16xf32>
    %cst_202 = arith.constant dense<0x7F800000> : vector<16xf32>
    %784 = vector.multi_reduction <minimumf>, %783, %cst_202 [0] : vector<16x16xf32> to vector<16xf32>
    %785 = vector.shape_cast %784 : vector<16xf32> to vector<1x16xf32>
    %786 = vector.broadcast %785 : vector<1x16xf32> to vector<16x16xf32>
    %787 = arith.cmpf ole, %783, %786 : vector<16x16xf32>
    %cst_203 = arith.constant 1.000000e+30 : f32
    %788 = vector.broadcast %cst_203 : f32 to vector<16x16xf32>
    %789 = arith.select %787, %788, %783 : vector<16x16xi1>, vector<16x16xf32>
    %cst_204 = arith.constant dense<0x7F800000> : vector<16xf32>
    %790 = vector.multi_reduction <minimumf>, %789, %cst_204 [0] : vector<16x16xf32> to vector<16xf32>
    %791 = vector.shape_cast %790 : vector<16xf32> to vector<1x16xf32>
    %792 = vector.broadcast %791 : vector<1x16xf32> to vector<16x16xf32>
    %793 = arith.cmpf ole, %789, %792 : vector<16x16xf32>
    %cst_205 = arith.constant 1.000000e+30 : f32
    %794 = vector.broadcast %cst_205 : f32 to vector<16x16xf32>
    %795 = arith.select %793, %794, %789 : vector<16x16xi1>, vector<16x16xf32>
    %cst_206 = arith.constant dense<0x7F800000> : vector<16xf32>
    %796 = vector.multi_reduction <minimumf>, %795, %cst_206 [0] : vector<16x16xf32> to vector<16xf32>
    %797 = vector.shape_cast %796 : vector<16xf32> to vector<1x16xf32>
    %798 = vector.broadcast %797 : vector<1x16xf32> to vector<16x16xf32>
    %799 = arith.cmpf ole, %795, %798 : vector<16x16xf32>
    %cst_207 = arith.constant 1.000000e+30 : f32
    %800 = vector.broadcast %cst_207 : f32 to vector<16x16xf32>
    %801 = arith.select %799, %800, %795 : vector<16x16xi1>, vector<16x16xf32>
    %cst_208 = arith.constant dense<0x7F800000> : vector<16xf32>
    %802 = vector.multi_reduction <minimumf>, %801, %cst_208 [0] : vector<16x16xf32> to vector<16xf32>
    %803 = vector.shape_cast %802 : vector<16xf32> to vector<1x16xf32>
    %cst_209 = arith.constant dense<0x7F800000> : vector<16xf32>
    %804 = vector.multi_reduction <minimumf>, %777, %cst_209 [1] : vector<16x16xf32> to vector<16xf32>
    %805 = vector.shape_cast %804 : vector<16xf32> to vector<16x1xf32>
    %806 = vector.shape_cast %779 : vector<1x16xf32> to vector<1x1x16xf32>
    %cst_210 = arith.constant dense<0.000000e+00> : vector<1xf32>
    %807 = vector.multi_reduction <add>, %806, %cst_210 [1, 2] : vector<1x1x16xf32> to vector<1xf32>
    %808 = vector.shape_cast %807 : vector<1xf32> to vector<1x1x1xf32>
    %809 = vector.extract %808[0, 0, 0] : f32 from vector<1x1x1xf32>
    %810 = vector.broadcast %809 : f32 to vector<1x1xf32>
    %811 = vector.shape_cast %805 : vector<16x1xf32> to vector<1x16x1xf32>
    %cst_211 = arith.constant dense<0.000000e+00> : vector<1xf32>
    %812 = vector.multi_reduction <add>, %811, %cst_211 [1, 2] : vector<1x16x1xf32> to vector<1xf32>
    %813 = vector.shape_cast %812 : vector<1xf32> to vector<1x1x1xf32>
    %814 = vector.extract %813[0, 0, 0] : f32 from vector<1x1x1xf32>
    %815 = vector.broadcast %814 : f32 to vector<1x1xf32>
    %816 = arith.addf %810, %815 : vector<1x1xf32>
    %817 = vector.broadcast %803 : vector<1x16xf32> to vector<16x16xf32>
    %818 = arith.cmpf ole, %777, %817 : vector<16x16xf32>
    %cst_212 = arith.constant 9.99999993E-9 : f32
    %819 = vector.broadcast %cst_212 : f32 to vector<16x16xf32>
    %820 = arith.addf %777, %819 : vector<16x16xf32>
    %821 = tpu.reciprocal %820 {approx = true} : vector<16x16xf32> -> vector<16x16xf32>
    %cst_213 = arith.constant 0.000000e+00 : f32
    %822 = vector.broadcast %cst_213 : f32 to vector<16x16xf32>
    %823 = arith.select %818, %821, %822 : vector<16x16xi1>, vector<16x16xf32>
    %cst_214 = arith.constant dense<0.000000e+00> : vector<16xf32>
    %824 = vector.multi_reduction <add>, %823, %cst_214 [0] : vector<16x16xf32> to vector<16xf32>
    %825 = vector.shape_cast %824 : vector<16xf32> to vector<1x16xf32>
    %826 = arith.truncf %823 : vector<16x16xf32> to vector<16x16xbf16>
    %827 = vector.extract_strided_slice %628 {offsets = [0, 0], sizes = [16, 1], strides = [1, 1]} : vector<16x3xf32> to vector<16x1xf32>
    %828 = vector.extract_strided_slice %634 {offsets = [0, 0], sizes = [1, 16], strides = [1, 1]} : vector<3x16xf32> to vector<1x16xf32>
    %829 = vector.broadcast %827 : vector<16x1xf32> to vector<16x16xf32>
    %830 = vector.broadcast %828 : vector<1x16xf32> to vector<16x16xf32>
    %831 = arith.subf %829, %830 : vector<16x16xf32>
    %832 = vector.extract_strided_slice %628 {offsets = [0, 1], sizes = [16, 1], strides = [1, 1]} : vector<16x3xf32> to vector<16x1xf32>
    %833 = vector.extract_strided_slice %634 {offsets = [1, 0], sizes = [1, 16], strides = [1, 1]} : vector<3x16xf32> to vector<1x16xf32>
    %834 = vector.broadcast %832 : vector<16x1xf32> to vector<16x16xf32>
    %835 = vector.broadcast %833 : vector<1x16xf32> to vector<16x16xf32>
    %836 = arith.subf %834, %835 : vector<16x16xf32>
    %837 = vector.extract_strided_slice %628 {offsets = [0, 2], sizes = [16, 1], strides = [1, 1]} : vector<16x3xf32> to vector<16x1xf32>
    %838 = vector.extract_strided_slice %634 {offsets = [2, 0], sizes = [1, 16], strides = [1, 1]} : vector<3x16xf32> to vector<1x16xf32>
    %839 = vector.broadcast %837 : vector<16x1xf32> to vector<16x16xf32>
    %840 = vector.broadcast %838 : vector<1x16xf32> to vector<16x16xf32>
    %841 = arith.subf %839, %840 : vector<16x16xf32>
    %842 = arith.mulf %831, %831 : vector<16x16xf32>
    %843 = arith.mulf %836, %836 : vector<16x16xf32>
    %844 = arith.addf %842, %843 : vector<16x16xf32>
    %845 = arith.mulf %841, %841 : vector<16x16xf32>
    %846 = arith.addf %844, %845 : vector<16x16xf32>
    %cst_215 = arith.constant dense<0x7F800000> : vector<16xf32>
    %847 = vector.multi_reduction <minimumf>, %846, %cst_215 [0] : vector<16x16xf32> to vector<16xf32>
    %848 = vector.shape_cast %847 : vector<16xf32> to vector<1x16xf32>
    %849 = vector.broadcast %848 : vector<1x16xf32> to vector<16x16xf32>
    %850 = arith.cmpf ole, %846, %849 : vector<16x16xf32>
    %cst_216 = arith.constant 1.000000e+30 : f32
    %851 = vector.broadcast %cst_216 : f32 to vector<16x16xf32>
    %852 = arith.select %850, %851, %846 : vector<16x16xi1>, vector<16x16xf32>
    %cst_217 = arith.constant dense<0x7F800000> : vector<16xf32>
    %853 = vector.multi_reduction <minimumf>, %852, %cst_217 [0] : vector<16x16xf32> to vector<16xf32>
    %854 = vector.shape_cast %853 : vector<16xf32> to vector<1x16xf32>
    %855 = vector.broadcast %854 : vector<1x16xf32> to vector<16x16xf32>
    %856 = arith.cmpf ole, %852, %855 : vector<16x16xf32>
    %cst_218 = arith.constant 1.000000e+30 : f32
    %857 = vector.broadcast %cst_218 : f32 to vector<16x16xf32>
    %858 = arith.select %856, %857, %852 : vector<16x16xi1>, vector<16x16xf32>
    %cst_219 = arith.constant dense<0x7F800000> : vector<16xf32>
    %859 = vector.multi_reduction <minimumf>, %858, %cst_219 [0] : vector<16x16xf32> to vector<16xf32>
    %860 = vector.shape_cast %859 : vector<16xf32> to vector<1x16xf32>
    %861 = vector.broadcast %860 : vector<1x16xf32> to vector<16x16xf32>
    %862 = arith.cmpf ole, %858, %861 : vector<16x16xf32>
    %cst_220 = arith.constant 1.000000e+30 : f32
    %863 = vector.broadcast %cst_220 : f32 to vector<16x16xf32>
    %864 = arith.select %862, %863, %858 : vector<16x16xi1>, vector<16x16xf32>
    %cst_221 = arith.constant dense<0x7F800000> : vector<16xf32>
    %865 = vector.multi_reduction <minimumf>, %864, %cst_221 [0] : vector<16x16xf32> to vector<16xf32>
    %866 = vector.shape_cast %865 : vector<16xf32> to vector<1x16xf32>
    %867 = vector.broadcast %866 : vector<1x16xf32> to vector<16x16xf32>
    %868 = arith.cmpf ole, %864, %867 : vector<16x16xf32>
    %cst_222 = arith.constant 1.000000e+30 : f32
    %869 = vector.broadcast %cst_222 : f32 to vector<16x16xf32>
    %870 = arith.select %868, %869, %864 : vector<16x16xi1>, vector<16x16xf32>
    %cst_223 = arith.constant dense<0x7F800000> : vector<16xf32>
    %871 = vector.multi_reduction <minimumf>, %870, %cst_223 [0] : vector<16x16xf32> to vector<16xf32>
    %872 = vector.shape_cast %871 : vector<16xf32> to vector<1x16xf32>
    %873 = vector.broadcast %872 : vector<1x16xf32> to vector<16x16xf32>
    %874 = arith.cmpf ole, %870, %873 : vector<16x16xf32>
    %cst_224 = arith.constant 1.000000e+30 : f32
    %875 = vector.broadcast %cst_224 : f32 to vector<16x16xf32>
    %876 = arith.select %874, %875, %870 : vector<16x16xi1>, vector<16x16xf32>
    %cst_225 = arith.constant dense<0x7F800000> : vector<16xf32>
    %877 = vector.multi_reduction <minimumf>, %876, %cst_225 [0] : vector<16x16xf32> to vector<16xf32>
    %878 = vector.shape_cast %877 : vector<16xf32> to vector<1x16xf32>
    %879 = vector.broadcast %878 : vector<1x16xf32> to vector<16x16xf32>
    %880 = arith.cmpf ole, %876, %879 : vector<16x16xf32>
    %cst_226 = arith.constant 1.000000e+30 : f32
    %881 = vector.broadcast %cst_226 : f32 to vector<16x16xf32>
    %882 = arith.select %880, %881, %876 : vector<16x16xi1>, vector<16x16xf32>
    %cst_227 = arith.constant dense<0x7F800000> : vector<16xf32>
    %883 = vector.multi_reduction <minimumf>, %882, %cst_227 [0] : vector<16x16xf32> to vector<16xf32>
    %884 = vector.shape_cast %883 : vector<16xf32> to vector<1x16xf32>
    %885 = vector.broadcast %884 : vector<1x16xf32> to vector<16x16xf32>
    %886 = arith.cmpf ole, %882, %885 : vector<16x16xf32>
    %cst_228 = arith.constant 1.000000e+30 : f32
    %887 = vector.broadcast %cst_228 : f32 to vector<16x16xf32>
    %888 = arith.select %886, %887, %882 : vector<16x16xi1>, vector<16x16xf32>
    %cst_229 = arith.constant dense<0x7F800000> : vector<16xf32>
    %889 = vector.multi_reduction <minimumf>, %888, %cst_229 [0] : vector<16x16xf32> to vector<16xf32>
    %890 = vector.shape_cast %889 : vector<16xf32> to vector<1x16xf32>
    %891 = vector.broadcast %890 : vector<1x16xf32> to vector<16x16xf32>
    %892 = arith.cmpf ole, %888, %891 : vector<16x16xf32>
    %cst_230 = arith.constant 1.000000e+30 : f32
    %893 = vector.broadcast %cst_230 : f32 to vector<16x16xf32>
    %894 = arith.select %892, %893, %888 : vector<16x16xi1>, vector<16x16xf32>
    %cst_231 = arith.constant dense<0x7F800000> : vector<16xf32>
    %895 = vector.multi_reduction <minimumf>, %894, %cst_231 [0] : vector<16x16xf32> to vector<16xf32>
    %896 = vector.shape_cast %895 : vector<16xf32> to vector<1x16xf32>
    %897 = vector.broadcast %896 : vector<1x16xf32> to vector<16x16xf32>
    %898 = arith.cmpf ole, %894, %897 : vector<16x16xf32>
    %cst_232 = arith.constant 1.000000e+30 : f32
    %899 = vector.broadcast %cst_232 : f32 to vector<16x16xf32>
    %900 = arith.select %898, %899, %894 : vector<16x16xi1>, vector<16x16xf32>
    %cst_233 = arith.constant dense<0x7F800000> : vector<16xf32>
    %901 = vector.multi_reduction <minimumf>, %900, %cst_233 [0] : vector<16x16xf32> to vector<16xf32>
    %902 = vector.shape_cast %901 : vector<16xf32> to vector<1x16xf32>
    %903 = vector.broadcast %902 : vector<1x16xf32> to vector<16x16xf32>
    %904 = arith.cmpf ole, %846, %903 : vector<16x16xf32>
    %905 = arith.extui %904 : vector<16x16xi1> to vector<16x16xi32>
    %906 = arith.sitofp %905 : vector<16x16xi32> to vector<16x16xf32>
    %907 = arith.truncf %906 : vector<16x16xf32> to vector<16x16xbf16>
    %908 = arith.truncf %634 : vector<3x16xf32> to vector<3x16xbf16>
    %cst_234 = arith.constant dense<0.000000e+00> : vector<3x16xf32>
    %909 = tpu.matmul %908, %907, %cst_234 {dimension_numbers = #tpu.dot_dimension_numbers<[1], [0], [0], [1], [0, 0, 1, 1], [], []>} : vector<3x16xbf16>, vector<16x16xbf16>, vector<3x16xf32> -> vector<3x16xf32>
    %cst_235 = arith.constant 1.000000e+01 : f32
    %910 = vector.broadcast %cst_235 : f32 to vector<3x16xf32>
    %911 = arith.mulf %910, %634 : vector<3x16xf32>
    %912 = arith.subf %909, %911 : vector<3x16xf32>
    %cst_236 = arith.constant 0.111111112 : f32
    %913 = vector.broadcast %cst_236 : f32 to vector<3x16xf32>
    %914 = arith.mulf %912, %913 : vector<3x16xf32>
    %915 = arith.truncf %914 : vector<3x16xf32> to vector<3x16xbf16>
    %cst_237 = arith.constant dense<0.000000e+00> : vector<3x16xf32>
    %916 = tpu.matmul %915, %826, %cst_237 {dimension_numbers = #tpu.dot_dimension_numbers<[1], [0], [0], [1], [0, 0, 1, 1], [], []>} : vector<3x16xbf16>, vector<16x16xbf16>, vector<3x16xf32> -> vector<3x16xf32>
    %917 = tpu.reciprocal %825 {approx = true} : vector<1x16xf32> -> vector<1x16xf32>
    %918 = vector.broadcast %917 : vector<1x16xf32> to vector<3x16xf32>
    %919 = arith.mulf %916, %918 : vector<3x16xf32>
    %920 = arith.subf %919, %727 : vector<3x16xf32>
    %921 = arith.mulf %920, %920 : vector<3x16xf32>
    %922 = vector.shape_cast %921 : vector<3x16xf32> to vector<1x3x16xf32>
    %cst_238 = arith.constant dense<0.000000e+00> : vector<1xf32>
    %923 = vector.multi_reduction <add>, %922, %cst_238 [1, 2] : vector<1x3x16xf32> to vector<1xf32>
    %924 = vector.shape_cast %923 : vector<1xf32> to vector<1x1x1xf32>
    %925 = vector.extract %924[0, 0, 0] : f32 from vector<1x1x1xf32>
    %926 = vector.broadcast %925 : f32 to vector<1x1xf32>
    %cst_239 = arith.constant 8.000000e-02 : f32
    %927 = vector.broadcast %cst_239 : f32 to vector<1x1xf32>
    %928 = arith.mulf %927, %816 : vector<1x1xf32>
    %929 = arith.addf %618, %928 : vector<1x1xf32>
    %cst_240 = arith.constant 8.000000e-02 : f32
    %930 = vector.broadcast %cst_240 : f32 to vector<1x1xf32>
    %931 = arith.mulf %930, %757 : vector<1x1xf32>
    %932 = arith.addf %621, %931 : vector<1x1xf32>
    %cst_241 = arith.constant 8.000000e-02 : f32
    %933 = vector.broadcast %cst_241 : f32 to vector<1x1xf32>
    %934 = arith.mulf %933, %926 : vector<1x1xf32>
    %935 = arith.addf %624, %934 : vector<1x1xf32>
    %c0_242 = arith.constant 0 : index
    %c336 = arith.constant 336 : index
    %c0_243 = arith.constant 0 : index
    %936 = vector.load %arg1[%c0_242, %c336, %c0_243] : memref<1x384x3xf32, #tpu.memory_space<vmem>>, vector<1x16x3xf32>
    %937 = vector.shape_cast %936 : vector<1x16x3xf32> to vector<16x3xf32>
    %c0_244 = arith.constant 0 : index
    %c352 = arith.constant 352 : index
    %c0_245 = arith.constant 0 : index
    %938 = vector.load %arg1[%c0_244, %c352, %c0_245] : memref<1x384x3xf32, #tpu.memory_space<vmem>>, vector<1x16x3xf32>
    %939 = vector.shape_cast %938 : vector<1x16x3xf32> to vector<16x3xf32>
    %c0_246 = arith.constant 0 : index
    %c368 = arith.constant 368 : index
    %c0_247 = arith.constant 0 : index
    %940 = vector.load %arg1[%c0_246, %c368, %c0_247] : memref<1x384x3xf32, #tpu.memory_space<vmem>>, vector<1x16x3xf32>
    %941 = vector.shape_cast %940 : vector<1x16x3xf32> to vector<16x3xf32>
    %c0_248 = arith.constant 0 : index
    %c0_249 = arith.constant 0 : index
    %c1152 = arith.constant 1152 : index
    %942 = vector.load %arg2[%c0_248, %c0_249, %c1152] : memref<1x3x1536xf32, #tpu.memory_space<vmem>>, vector<1x3x16xf32>
    %943 = vector.shape_cast %942 : vector<1x3x16xf32> to vector<3x16xf32>
    %c0_250 = arith.constant 0 : index
    %c0_251 = arith.constant 0 : index
    %c1280 = arith.constant 1280 : index
    %944 = vector.load %arg2[%c0_250, %c0_251, %c1280] : memref<1x3x1536xf32, #tpu.memory_space<vmem>>, vector<1x3x16xf32>
    %945 = vector.shape_cast %944 : vector<1x3x16xf32> to vector<3x16xf32>
    %c0_252 = arith.constant 0 : index
    %c0_253 = arith.constant 0 : index
    %c1408 = arith.constant 1408 : index
    %946 = vector.load %arg2[%c0_252, %c0_253, %c1408] : memref<1x3x1536xf32, #tpu.memory_space<vmem>>, vector<1x3x16xf32>
    %947 = vector.shape_cast %946 : vector<1x3x16xf32> to vector<3x16xf32>
    %948 = arith.addf %943, %947 : vector<3x16xf32>
    %949 = vector.extract_strided_slice %937 {offsets = [0, 0], sizes = [16, 1], strides = [1, 1]} : vector<16x3xf32> to vector<16x1xf32>
    %950 = vector.extract_strided_slice %943 {offsets = [0, 0], sizes = [1, 16], strides = [1, 1]} : vector<3x16xf32> to vector<1x16xf32>
    %951 = vector.broadcast %949 : vector<16x1xf32> to vector<16x16xf32>
    %952 = vector.broadcast %950 : vector<1x16xf32> to vector<16x16xf32>
    %953 = arith.subf %951, %952 : vector<16x16xf32>
    %954 = vector.extract_strided_slice %937 {offsets = [0, 1], sizes = [16, 1], strides = [1, 1]} : vector<16x3xf32> to vector<16x1xf32>
    %955 = vector.extract_strided_slice %943 {offsets = [1, 0], sizes = [1, 16], strides = [1, 1]} : vector<3x16xf32> to vector<1x16xf32>
    %956 = vector.broadcast %954 : vector<16x1xf32> to vector<16x16xf32>
    %957 = vector.broadcast %955 : vector<1x16xf32> to vector<16x16xf32>
    %958 = arith.subf %956, %957 : vector<16x16xf32>
    %959 = vector.extract_strided_slice %937 {offsets = [0, 2], sizes = [16, 1], strides = [1, 1]} : vector<16x3xf32> to vector<16x1xf32>
    %960 = vector.extract_strided_slice %943 {offsets = [2, 0], sizes = [1, 16], strides = [1, 1]} : vector<3x16xf32> to vector<1x16xf32>
    %961 = vector.broadcast %959 : vector<16x1xf32> to vector<16x16xf32>
    %962 = vector.broadcast %960 : vector<1x16xf32> to vector<16x16xf32>
    %963 = arith.subf %961, %962 : vector<16x16xf32>
    %964 = arith.mulf %953, %953 : vector<16x16xf32>
    %965 = arith.mulf %958, %958 : vector<16x16xf32>
    %966 = arith.addf %964, %965 : vector<16x16xf32>
    %967 = arith.mulf %963, %963 : vector<16x16xf32>
    %968 = arith.addf %966, %967 : vector<16x16xf32>
    %cst_254 = arith.constant dense<0x7F800000> : vector<16xf32>
    %969 = vector.multi_reduction <minimumf>, %968, %cst_254 [0] : vector<16x16xf32> to vector<16xf32>
    %970 = vector.shape_cast %969 : vector<16xf32> to vector<1x16xf32>
    %971 = vector.broadcast %970 : vector<1x16xf32> to vector<16x16xf32>
    %972 = arith.cmpf ole, %968, %971 : vector<16x16xf32>
    %cst_255 = arith.constant 1.000000e+30 : f32
    %973 = vector.broadcast %cst_255 : f32 to vector<16x16xf32>
    %974 = arith.select %972, %973, %968 : vector<16x16xi1>, vector<16x16xf32>
    %cst_256 = arith.constant dense<0x7F800000> : vector<16xf32>
    %975 = vector.multi_reduction <minimumf>, %974, %cst_256 [0] : vector<16x16xf32> to vector<16xf32>
    %976 = vector.shape_cast %975 : vector<16xf32> to vector<1x16xf32>
    %977 = vector.broadcast %976 : vector<1x16xf32> to vector<16x16xf32>
    %978 = arith.cmpf ole, %974, %977 : vector<16x16xf32>
    %cst_257 = arith.constant 1.000000e+30 : f32
    %979 = vector.broadcast %cst_257 : f32 to vector<16x16xf32>
    %980 = arith.select %978, %979, %974 : vector<16x16xi1>, vector<16x16xf32>
    %cst_258 = arith.constant dense<0x7F800000> : vector<16xf32>
    %981 = vector.multi_reduction <minimumf>, %980, %cst_258 [0] : vector<16x16xf32> to vector<16xf32>
    %982 = vector.shape_cast %981 : vector<16xf32> to vector<1x16xf32>
    %983 = vector.broadcast %982 : vector<1x16xf32> to vector<16x16xf32>
    %984 = arith.cmpf ole, %980, %983 : vector<16x16xf32>
    %cst_259 = arith.constant 1.000000e+30 : f32
    %985 = vector.broadcast %cst_259 : f32 to vector<16x16xf32>
    %986 = arith.select %984, %985, %980 : vector<16x16xi1>, vector<16x16xf32>
    %cst_260 = arith.constant dense<0x7F800000> : vector<16xf32>
    %987 = vector.multi_reduction <minimumf>, %986, %cst_260 [0] : vector<16x16xf32> to vector<16xf32>
    %988 = vector.shape_cast %987 : vector<16xf32> to vector<1x16xf32>
    %989 = vector.broadcast %988 : vector<1x16xf32> to vector<16x16xf32>
    %990 = arith.cmpf ole, %986, %989 : vector<16x16xf32>
    %cst_261 = arith.constant 1.000000e+30 : f32
    %991 = vector.broadcast %cst_261 : f32 to vector<16x16xf32>
    %992 = arith.select %990, %991, %986 : vector<16x16xi1>, vector<16x16xf32>
    %cst_262 = arith.constant dense<0x7F800000> : vector<16xf32>
    %993 = vector.multi_reduction <minimumf>, %992, %cst_262 [0] : vector<16x16xf32> to vector<16xf32>
    %994 = vector.shape_cast %993 : vector<16xf32> to vector<1x16xf32>
    %995 = vector.broadcast %994 : vector<1x16xf32> to vector<16x16xf32>
    %996 = arith.cmpf ole, %992, %995 : vector<16x16xf32>
    %cst_263 = arith.constant 1.000000e+30 : f32
    %997 = vector.broadcast %cst_263 : f32 to vector<16x16xf32>
    %998 = arith.select %996, %997, %992 : vector<16x16xi1>, vector<16x16xf32>
    %cst_264 = arith.constant dense<0x7F800000> : vector<16xf32>
    %999 = vector.multi_reduction <minimumf>, %998, %cst_264 [0] : vector<16x16xf32> to vector<16xf32>
    %1000 = vector.shape_cast %999 : vector<16xf32> to vector<1x16xf32>
    %1001 = vector.broadcast %1000 : vector<1x16xf32> to vector<16x16xf32>
    %1002 = arith.cmpf ole, %998, %1001 : vector<16x16xf32>
    %cst_265 = arith.constant 1.000000e+30 : f32
    %1003 = vector.broadcast %cst_265 : f32 to vector<16x16xf32>
    %1004 = arith.select %1002, %1003, %998 : vector<16x16xi1>, vector<16x16xf32>
    %cst_266 = arith.constant dense<0x7F800000> : vector<16xf32>
    %1005 = vector.multi_reduction <minimumf>, %1004, %cst_266 [0] : vector<16x16xf32> to vector<16xf32>
    %1006 = vector.shape_cast %1005 : vector<16xf32> to vector<1x16xf32>
    %1007 = vector.broadcast %1006 : vector<1x16xf32> to vector<16x16xf32>
    %1008 = arith.cmpf ole, %1004, %1007 : vector<16x16xf32>
    %cst_267 = arith.constant 1.000000e+30 : f32
    %1009 = vector.broadcast %cst_267 : f32 to vector<16x16xf32>
    %1010 = arith.select %1008, %1009, %1004 : vector<16x16xi1>, vector<16x16xf32>
    %cst_268 = arith.constant dense<0x7F800000> : vector<16xf32>
    %1011 = vector.multi_reduction <minimumf>, %1010, %cst_268 [0] : vector<16x16xf32> to vector<16xf32>
    %1012 = vector.shape_cast %1011 : vector<16xf32> to vector<1x16xf32>
    %1013 = vector.broadcast %1012 : vector<1x16xf32> to vector<16x16xf32>
    %1014 = arith.cmpf ole, %1010, %1013 : vector<16x16xf32>
    %cst_269 = arith.constant 1.000000e+30 : f32
    %1015 = vector.broadcast %cst_269 : f32 to vector<16x16xf32>
    %1016 = arith.select %1014, %1015, %1010 : vector<16x16xi1>, vector<16x16xf32>
    %cst_270 = arith.constant dense<0x7F800000> : vector<16xf32>
    %1017 = vector.multi_reduction <minimumf>, %1016, %cst_270 [0] : vector<16x16xf32> to vector<16xf32>
    %1018 = vector.shape_cast %1017 : vector<16xf32> to vector<1x16xf32>
    %1019 = vector.broadcast %1018 : vector<1x16xf32> to vector<16x16xf32>
    %1020 = arith.cmpf ole, %1016, %1019 : vector<16x16xf32>
    %cst_271 = arith.constant 1.000000e+30 : f32
    %1021 = vector.broadcast %cst_271 : f32 to vector<16x16xf32>
    %1022 = arith.select %1020, %1021, %1016 : vector<16x16xi1>, vector<16x16xf32>
    %cst_272 = arith.constant dense<0x7F800000> : vector<16xf32>
    %1023 = vector.multi_reduction <minimumf>, %1022, %cst_272 [0] : vector<16x16xf32> to vector<16xf32>
    %1024 = vector.shape_cast %1023 : vector<16xf32> to vector<1x16xf32>
    %1025 = vector.broadcast %1018 : vector<1x16xf32> to vector<16x16xf32>
    %1026 = arith.cmpf ole, %968, %1025 : vector<16x16xf32>
    %1027 = vector.broadcast %1024 : vector<1x16xf32> to vector<16x16xf32>
    %1028 = arith.cmpf ole, %968, %1027 : vector<16x16xf32>
    %1029 = arith.extui %1028 : vector<16x16xi1> to vector<16x16xi32>
    %1030 = arith.sitofp %1029 : vector<16x16xi32> to vector<16x16xf32>
    %1031 = arith.truncf %1030 : vector<16x16xf32> to vector<16x16xbf16>
    %1032 = arith.truncf %948 : vector<3x16xf32> to vector<3x16xbf16>
    %cst_273 = arith.constant dense<0.000000e+00> : vector<3x16xf32>
    %1033 = tpu.matmul %1032, %1031, %cst_273 {dimension_numbers = #tpu.dot_dimension_numbers<[1], [0], [0], [1], [0, 0, 1, 1], [], []>} : vector<3x16xbf16>, vector<16x16xbf16>, vector<3x16xf32> -> vector<3x16xf32>
    %cst_274 = arith.constant 1.000000e+01 : f32
    %1034 = vector.broadcast %cst_274 : f32 to vector<3x16xf32>
    %1035 = arith.mulf %1034, %948 : vector<3x16xf32>
    %1036 = arith.subf %1033, %1035 : vector<3x16xf32>
    %cst_275 = arith.constant 0.111111112 : f32
    %1037 = vector.broadcast %cst_275 : f32 to vector<3x16xf32>
    %1038 = arith.mulf %1036, %1037 : vector<3x16xf32>
    %1039 = vector.extract_strided_slice %941 {offsets = [0, 0], sizes = [16, 1], strides = [1, 1]} : vector<16x3xf32> to vector<16x1xf32>
    %1040 = vector.extract_strided_slice %947 {offsets = [0, 0], sizes = [1, 16], strides = [1, 1]} : vector<3x16xf32> to vector<1x16xf32>
    %1041 = vector.broadcast %1039 : vector<16x1xf32> to vector<16x16xf32>
    %1042 = vector.broadcast %1040 : vector<1x16xf32> to vector<16x16xf32>
    %1043 = arith.subf %1041, %1042 : vector<16x16xf32>
    %1044 = vector.extract_strided_slice %941 {offsets = [0, 1], sizes = [16, 1], strides = [1, 1]} : vector<16x3xf32> to vector<16x1xf32>
    %1045 = vector.extract_strided_slice %947 {offsets = [1, 0], sizes = [1, 16], strides = [1, 1]} : vector<3x16xf32> to vector<1x16xf32>
    %1046 = vector.broadcast %1044 : vector<16x1xf32> to vector<16x16xf32>
    %1047 = vector.broadcast %1045 : vector<1x16xf32> to vector<16x16xf32>
    %1048 = arith.subf %1046, %1047 : vector<16x16xf32>
    %1049 = vector.extract_strided_slice %941 {offsets = [0, 2], sizes = [16, 1], strides = [1, 1]} : vector<16x3xf32> to vector<16x1xf32>
    %1050 = vector.extract_strided_slice %947 {offsets = [2, 0], sizes = [1, 16], strides = [1, 1]} : vector<3x16xf32> to vector<1x16xf32>
    %1051 = vector.broadcast %1049 : vector<16x1xf32> to vector<16x16xf32>
    %1052 = vector.broadcast %1050 : vector<1x16xf32> to vector<16x16xf32>
    %1053 = arith.subf %1051, %1052 : vector<16x16xf32>
    %1054 = arith.mulf %1043, %1043 : vector<16x16xf32>
    %1055 = arith.mulf %1048, %1048 : vector<16x16xf32>
    %1056 = arith.addf %1054, %1055 : vector<16x16xf32>
    %1057 = arith.mulf %1053, %1053 : vector<16x16xf32>
    %1058 = arith.addf %1056, %1057 : vector<16x16xf32>
    %cst_276 = arith.constant 0.000000e+00 : f32
    %1059 = vector.broadcast %cst_276 : f32 to vector<16x16xf32>
    %1060 = arith.select %1026, %1058, %1059 : vector<16x16xi1>, vector<16x16xf32>
    %1061 = math.sqrt %1060 : vector<16x16xf32>
    %1062 = vector.shape_cast %1061 : vector<16x16xf32> to vector<1x16x16xf32>
    %cst_277 = arith.constant dense<0.000000e+00> : vector<1xf32>
    %1063 = vector.multi_reduction <add>, %1062, %cst_277 [1, 2] : vector<1x16x16xf32> to vector<1xf32>
    %1064 = vector.shape_cast %1063 : vector<1xf32> to vector<1x1x1xf32>
    %1065 = vector.extract %1064[0, 0, 0] : f32 from vector<1x1x1xf32>
    %1066 = vector.broadcast %1065 : f32 to vector<1x1xf32>
    %cst_278 = arith.constant 1.250000e-01 : f32
    %1067 = vector.broadcast %cst_278 : f32 to vector<1x1xf32>
    %1068 = arith.mulf %1066, %1067 : vector<1x1xf32>
    %1069 = vector.extract_strided_slice %939 {offsets = [0, 0], sizes = [16, 1], strides = [1, 1]} : vector<16x3xf32> to vector<16x1xf32>
    %1070 = vector.extract_strided_slice %948 {offsets = [0, 0], sizes = [1, 16], strides = [1, 1]} : vector<3x16xf32> to vector<1x16xf32>
    %1071 = vector.broadcast %1069 : vector<16x1xf32> to vector<16x16xf32>
    %1072 = vector.broadcast %1070 : vector<1x16xf32> to vector<16x16xf32>
    %1073 = arith.subf %1071, %1072 : vector<16x16xf32>
    %1074 = vector.extract_strided_slice %939 {offsets = [0, 1], sizes = [16, 1], strides = [1, 1]} : vector<16x3xf32> to vector<16x1xf32>
    %1075 = vector.extract_strided_slice %948 {offsets = [1, 0], sizes = [1, 16], strides = [1, 1]} : vector<3x16xf32> to vector<1x16xf32>
    %1076 = vector.broadcast %1074 : vector<16x1xf32> to vector<16x16xf32>
    %1077 = vector.broadcast %1075 : vector<1x16xf32> to vector<16x16xf32>
    %1078 = arith.subf %1076, %1077 : vector<16x16xf32>
    %1079 = vector.extract_strided_slice %939 {offsets = [0, 2], sizes = [16, 1], strides = [1, 1]} : vector<16x3xf32> to vector<16x1xf32>
    %1080 = vector.extract_strided_slice %948 {offsets = [2, 0], sizes = [1, 16], strides = [1, 1]} : vector<3x16xf32> to vector<1x16xf32>
    %1081 = vector.broadcast %1079 : vector<16x1xf32> to vector<16x16xf32>
    %1082 = vector.broadcast %1080 : vector<1x16xf32> to vector<16x16xf32>
    %1083 = arith.subf %1081, %1082 : vector<16x16xf32>
    %1084 = arith.mulf %1073, %1073 : vector<16x16xf32>
    %1085 = arith.mulf %1078, %1078 : vector<16x16xf32>
    %1086 = arith.addf %1084, %1085 : vector<16x16xf32>
    %1087 = arith.mulf %1083, %1083 : vector<16x16xf32>
    %1088 = arith.addf %1086, %1087 : vector<16x16xf32>
    %cst_279 = arith.constant dense<0x7F800000> : vector<16xf32>
    %1089 = vector.multi_reduction <minimumf>, %1088, %cst_279 [0] : vector<16x16xf32> to vector<16xf32>
    %1090 = vector.shape_cast %1089 : vector<16xf32> to vector<1x16xf32>
    %1091 = vector.broadcast %1090 : vector<1x16xf32> to vector<16x16xf32>
    %1092 = arith.cmpf ole, %1088, %1091 : vector<16x16xf32>
    %cst_280 = arith.constant 1.000000e+30 : f32
    %1093 = vector.broadcast %cst_280 : f32 to vector<16x16xf32>
    %1094 = arith.select %1092, %1093, %1088 : vector<16x16xi1>, vector<16x16xf32>
    %cst_281 = arith.constant dense<0x7F800000> : vector<16xf32>
    %1095 = vector.multi_reduction <minimumf>, %1094, %cst_281 [0] : vector<16x16xf32> to vector<16xf32>
    %1096 = vector.shape_cast %1095 : vector<16xf32> to vector<1x16xf32>
    %1097 = vector.broadcast %1096 : vector<1x16xf32> to vector<16x16xf32>
    %1098 = arith.cmpf ole, %1094, %1097 : vector<16x16xf32>
    %cst_282 = arith.constant 1.000000e+30 : f32
    %1099 = vector.broadcast %cst_282 : f32 to vector<16x16xf32>
    %1100 = arith.select %1098, %1099, %1094 : vector<16x16xi1>, vector<16x16xf32>
    %cst_283 = arith.constant dense<0x7F800000> : vector<16xf32>
    %1101 = vector.multi_reduction <minimumf>, %1100, %cst_283 [0] : vector<16x16xf32> to vector<16xf32>
    %1102 = vector.shape_cast %1101 : vector<16xf32> to vector<1x16xf32>
    %1103 = vector.broadcast %1102 : vector<1x16xf32> to vector<16x16xf32>
    %1104 = arith.cmpf ole, %1100, %1103 : vector<16x16xf32>
    %cst_284 = arith.constant 1.000000e+30 : f32
    %1105 = vector.broadcast %cst_284 : f32 to vector<16x16xf32>
    %1106 = arith.select %1104, %1105, %1100 : vector<16x16xi1>, vector<16x16xf32>
    %cst_285 = arith.constant dense<0x7F800000> : vector<16xf32>
    %1107 = vector.multi_reduction <minimumf>, %1106, %cst_285 [0] : vector<16x16xf32> to vector<16xf32>
    %1108 = vector.shape_cast %1107 : vector<16xf32> to vector<1x16xf32>
    %1109 = vector.broadcast %1108 : vector<1x16xf32> to vector<16x16xf32>
    %1110 = arith.cmpf ole, %1106, %1109 : vector<16x16xf32>
    %cst_286 = arith.constant 1.000000e+30 : f32
    %1111 = vector.broadcast %cst_286 : f32 to vector<16x16xf32>
    %1112 = arith.select %1110, %1111, %1106 : vector<16x16xi1>, vector<16x16xf32>
    %cst_287 = arith.constant dense<0x7F800000> : vector<16xf32>
    %1113 = vector.multi_reduction <minimumf>, %1112, %cst_287 [0] : vector<16x16xf32> to vector<16xf32>
    %1114 = vector.shape_cast %1113 : vector<16xf32> to vector<1x16xf32>
    %cst_288 = arith.constant dense<0x7F800000> : vector<16xf32>
    %1115 = vector.multi_reduction <minimumf>, %1088, %cst_288 [1] : vector<16x16xf32> to vector<16xf32>
    %1116 = vector.shape_cast %1115 : vector<16xf32> to vector<16x1xf32>
    %1117 = vector.shape_cast %1090 : vector<1x16xf32> to vector<1x1x16xf32>
    %cst_289 = arith.constant dense<0.000000e+00> : vector<1xf32>
    %1118 = vector.multi_reduction <add>, %1117, %cst_289 [1, 2] : vector<1x1x16xf32> to vector<1xf32>
    %1119 = vector.shape_cast %1118 : vector<1xf32> to vector<1x1x1xf32>
    %1120 = vector.extract %1119[0, 0, 0] : f32 from vector<1x1x1xf32>
    %1121 = vector.broadcast %1120 : f32 to vector<1x1xf32>
    %1122 = vector.shape_cast %1116 : vector<16x1xf32> to vector<1x16x1xf32>
    %cst_290 = arith.constant dense<0.000000e+00> : vector<1xf32>
    %1123 = vector.multi_reduction <add>, %1122, %cst_290 [1, 2] : vector<1x16x1xf32> to vector<1xf32>
    %1124 = vector.shape_cast %1123 : vector<1xf32> to vector<1x1x1xf32>
    %1125 = vector.extract %1124[0, 0, 0] : f32 from vector<1x1x1xf32>
    %1126 = vector.broadcast %1125 : f32 to vector<1x1xf32>
    %1127 = arith.addf %1121, %1126 : vector<1x1xf32>
    %1128 = vector.broadcast %1114 : vector<1x16xf32> to vector<16x16xf32>
    %1129 = arith.cmpf ole, %1088, %1128 : vector<16x16xf32>
    %cst_291 = arith.constant 9.99999993E-9 : f32
    %1130 = vector.broadcast %cst_291 : f32 to vector<16x16xf32>
    %1131 = arith.addf %1088, %1130 : vector<16x16xf32>
    %1132 = tpu.reciprocal %1131 {approx = true} : vector<16x16xf32> -> vector<16x16xf32>
    %cst_292 = arith.constant 0.000000e+00 : f32
    %1133 = vector.broadcast %cst_292 : f32 to vector<16x16xf32>
    %1134 = arith.select %1129, %1132, %1133 : vector<16x16xi1>, vector<16x16xf32>
    %cst_293 = arith.constant dense<0.000000e+00> : vector<16xf32>
    %1135 = vector.multi_reduction <add>, %1134, %cst_293 [0] : vector<16x16xf32> to vector<16xf32>
    %1136 = vector.shape_cast %1135 : vector<16xf32> to vector<1x16xf32>
    %1137 = arith.truncf %1134 : vector<16x16xf32> to vector<16x16xbf16>
    %1138 = vector.extract_strided_slice %939 {offsets = [0, 0], sizes = [16, 1], strides = [1, 1]} : vector<16x3xf32> to vector<16x1xf32>
    %1139 = vector.extract_strided_slice %945 {offsets = [0, 0], sizes = [1, 16], strides = [1, 1]} : vector<3x16xf32> to vector<1x16xf32>
    %1140 = vector.broadcast %1138 : vector<16x1xf32> to vector<16x16xf32>
    %1141 = vector.broadcast %1139 : vector<1x16xf32> to vector<16x16xf32>
    %1142 = arith.subf %1140, %1141 : vector<16x16xf32>
    %1143 = vector.extract_strided_slice %939 {offsets = [0, 1], sizes = [16, 1], strides = [1, 1]} : vector<16x3xf32> to vector<16x1xf32>
    %1144 = vector.extract_strided_slice %945 {offsets = [1, 0], sizes = [1, 16], strides = [1, 1]} : vector<3x16xf32> to vector<1x16xf32>
    %1145 = vector.broadcast %1143 : vector<16x1xf32> to vector<16x16xf32>
    %1146 = vector.broadcast %1144 : vector<1x16xf32> to vector<16x16xf32>
    %1147 = arith.subf %1145, %1146 : vector<16x16xf32>
    %1148 = vector.extract_strided_slice %939 {offsets = [0, 2], sizes = [16, 1], strides = [1, 1]} : vector<16x3xf32> to vector<16x1xf32>
    %1149 = vector.extract_strided_slice %945 {offsets = [2, 0], sizes = [1, 16], strides = [1, 1]} : vector<3x16xf32> to vector<1x16xf32>
    %1150 = vector.broadcast %1148 : vector<16x1xf32> to vector<16x16xf32>
    %1151 = vector.broadcast %1149 : vector<1x16xf32> to vector<16x16xf32>
    %1152 = arith.subf %1150, %1151 : vector<16x16xf32>
    %1153 = arith.mulf %1142, %1142 : vector<16x16xf32>
    %1154 = arith.mulf %1147, %1147 : vector<16x16xf32>
    %1155 = arith.addf %1153, %1154 : vector<16x16xf32>
    %1156 = arith.mulf %1152, %1152 : vector<16x16xf32>
    %1157 = arith.addf %1155, %1156 : vector<16x16xf32>
    %cst_294 = arith.constant dense<0x7F800000> : vector<16xf32>
    %1158 = vector.multi_reduction <minimumf>, %1157, %cst_294 [0] : vector<16x16xf32> to vector<16xf32>
    %1159 = vector.shape_cast %1158 : vector<16xf32> to vector<1x16xf32>
    %1160 = vector.broadcast %1159 : vector<1x16xf32> to vector<16x16xf32>
    %1161 = arith.cmpf ole, %1157, %1160 : vector<16x16xf32>
    %cst_295 = arith.constant 1.000000e+30 : f32
    %1162 = vector.broadcast %cst_295 : f32 to vector<16x16xf32>
    %1163 = arith.select %1161, %1162, %1157 : vector<16x16xi1>, vector<16x16xf32>
    %cst_296 = arith.constant dense<0x7F800000> : vector<16xf32>
    %1164 = vector.multi_reduction <minimumf>, %1163, %cst_296 [0] : vector<16x16xf32> to vector<16xf32>
    %1165 = vector.shape_cast %1164 : vector<16xf32> to vector<1x16xf32>
    %1166 = vector.broadcast %1165 : vector<1x16xf32> to vector<16x16xf32>
    %1167 = arith.cmpf ole, %1163, %1166 : vector<16x16xf32>
    %cst_297 = arith.constant 1.000000e+30 : f32
    %1168 = vector.broadcast %cst_297 : f32 to vector<16x16xf32>
    %1169 = arith.select %1167, %1168, %1163 : vector<16x16xi1>, vector<16x16xf32>
    %cst_298 = arith.constant dense<0x7F800000> : vector<16xf32>
    %1170 = vector.multi_reduction <minimumf>, %1169, %cst_298 [0] : vector<16x16xf32> to vector<16xf32>
    %1171 = vector.shape_cast %1170 : vector<16xf32> to vector<1x16xf32>
    %1172 = vector.broadcast %1171 : vector<1x16xf32> to vector<16x16xf32>
    %1173 = arith.cmpf ole, %1169, %1172 : vector<16x16xf32>
    %cst_299 = arith.constant 1.000000e+30 : f32
    %1174 = vector.broadcast %cst_299 : f32 to vector<16x16xf32>
    %1175 = arith.select %1173, %1174, %1169 : vector<16x16xi1>, vector<16x16xf32>
    %cst_300 = arith.constant dense<0x7F800000> : vector<16xf32>
    %1176 = vector.multi_reduction <minimumf>, %1175, %cst_300 [0] : vector<16x16xf32> to vector<16xf32>
    %1177 = vector.shape_cast %1176 : vector<16xf32> to vector<1x16xf32>
    %1178 = vector.broadcast %1177 : vector<1x16xf32> to vector<16x16xf32>
    %1179 = arith.cmpf ole, %1175, %1178 : vector<16x16xf32>
    %cst_301 = arith.constant 1.000000e+30 : f32
    %1180 = vector.broadcast %cst_301 : f32 to vector<16x16xf32>
    %1181 = arith.select %1179, %1180, %1175 : vector<16x16xi1>, vector<16x16xf32>
    %cst_302 = arith.constant dense<0x7F800000> : vector<16xf32>
    %1182 = vector.multi_reduction <minimumf>, %1181, %cst_302 [0] : vector<16x16xf32> to vector<16xf32>
    %1183 = vector.shape_cast %1182 : vector<16xf32> to vector<1x16xf32>
    %1184 = vector.broadcast %1183 : vector<1x16xf32> to vector<16x16xf32>
    %1185 = arith.cmpf ole, %1181, %1184 : vector<16x16xf32>
    %cst_303 = arith.constant 1.000000e+30 : f32
    %1186 = vector.broadcast %cst_303 : f32 to vector<16x16xf32>
    %1187 = arith.select %1185, %1186, %1181 : vector<16x16xi1>, vector<16x16xf32>
    %cst_304 = arith.constant dense<0x7F800000> : vector<16xf32>
    %1188 = vector.multi_reduction <minimumf>, %1187, %cst_304 [0] : vector<16x16xf32> to vector<16xf32>
    %1189 = vector.shape_cast %1188 : vector<16xf32> to vector<1x16xf32>
    %1190 = vector.broadcast %1189 : vector<1x16xf32> to vector<16x16xf32>
    %1191 = arith.cmpf ole, %1187, %1190 : vector<16x16xf32>
    %cst_305 = arith.constant 1.000000e+30 : f32
    %1192 = vector.broadcast %cst_305 : f32 to vector<16x16xf32>
    %1193 = arith.select %1191, %1192, %1187 : vector<16x16xi1>, vector<16x16xf32>
    %cst_306 = arith.constant dense<0x7F800000> : vector<16xf32>
    %1194 = vector.multi_reduction <minimumf>, %1193, %cst_306 [0] : vector<16x16xf32> to vector<16xf32>
    %1195 = vector.shape_cast %1194 : vector<16xf32> to vector<1x16xf32>
    %1196 = vector.broadcast %1195 : vector<1x16xf32> to vector<16x16xf32>
    %1197 = arith.cmpf ole, %1193, %1196 : vector<16x16xf32>
    %cst_307 = arith.constant 1.000000e+30 : f32
    %1198 = vector.broadcast %cst_307 : f32 to vector<16x16xf32>
    %1199 = arith.select %1197, %1198, %1193 : vector<16x16xi1>, vector<16x16xf32>
    %cst_308 = arith.constant dense<0x7F800000> : vector<16xf32>
    %1200 = vector.multi_reduction <minimumf>, %1199, %cst_308 [0] : vector<16x16xf32> to vector<16xf32>
    %1201 = vector.shape_cast %1200 : vector<16xf32> to vector<1x16xf32>
    %1202 = vector.broadcast %1201 : vector<1x16xf32> to vector<16x16xf32>
    %1203 = arith.cmpf ole, %1199, %1202 : vector<16x16xf32>
    %cst_309 = arith.constant 1.000000e+30 : f32
    %1204 = vector.broadcast %cst_309 : f32 to vector<16x16xf32>
    %1205 = arith.select %1203, %1204, %1199 : vector<16x16xi1>, vector<16x16xf32>
    %cst_310 = arith.constant dense<0x7F800000> : vector<16xf32>
    %1206 = vector.multi_reduction <minimumf>, %1205, %cst_310 [0] : vector<16x16xf32> to vector<16xf32>
    %1207 = vector.shape_cast %1206 : vector<16xf32> to vector<1x16xf32>
    %1208 = vector.broadcast %1207 : vector<1x16xf32> to vector<16x16xf32>
    %1209 = arith.cmpf ole, %1205, %1208 : vector<16x16xf32>
    %cst_311 = arith.constant 1.000000e+30 : f32
    %1210 = vector.broadcast %cst_311 : f32 to vector<16x16xf32>
    %1211 = arith.select %1209, %1210, %1205 : vector<16x16xi1>, vector<16x16xf32>
    %cst_312 = arith.constant dense<0x7F800000> : vector<16xf32>
    %1212 = vector.multi_reduction <minimumf>, %1211, %cst_312 [0] : vector<16x16xf32> to vector<16xf32>
    %1213 = vector.shape_cast %1212 : vector<16xf32> to vector<1x16xf32>
    %1214 = vector.broadcast %1213 : vector<1x16xf32> to vector<16x16xf32>
    %1215 = arith.cmpf ole, %1157, %1214 : vector<16x16xf32>
    %1216 = arith.extui %1215 : vector<16x16xi1> to vector<16x16xi32>
    %1217 = arith.sitofp %1216 : vector<16x16xi32> to vector<16x16xf32>
    %1218 = arith.truncf %1217 : vector<16x16xf32> to vector<16x16xbf16>
    %1219 = arith.truncf %945 : vector<3x16xf32> to vector<3x16xbf16>
    %cst_313 = arith.constant dense<0.000000e+00> : vector<3x16xf32>
    %1220 = tpu.matmul %1219, %1218, %cst_313 {dimension_numbers = #tpu.dot_dimension_numbers<[1], [0], [0], [1], [0, 0, 1, 1], [], []>} : vector<3x16xbf16>, vector<16x16xbf16>, vector<3x16xf32> -> vector<3x16xf32>
    %cst_314 = arith.constant 1.000000e+01 : f32
    %1221 = vector.broadcast %cst_314 : f32 to vector<3x16xf32>
    %1222 = arith.mulf %1221, %945 : vector<3x16xf32>
    %1223 = arith.subf %1220, %1222 : vector<3x16xf32>
    %cst_315 = arith.constant 0.111111112 : f32
    %1224 = vector.broadcast %cst_315 : f32 to vector<3x16xf32>
    %1225 = arith.mulf %1223, %1224 : vector<3x16xf32>
    %1226 = arith.truncf %1225 : vector<3x16xf32> to vector<3x16xbf16>
    %cst_316 = arith.constant dense<0.000000e+00> : vector<3x16xf32>
    %1227 = tpu.matmul %1226, %1137, %cst_316 {dimension_numbers = #tpu.dot_dimension_numbers<[1], [0], [0], [1], [0, 0, 1, 1], [], []>} : vector<3x16xbf16>, vector<16x16xbf16>, vector<3x16xf32> -> vector<3x16xf32>
    %1228 = tpu.reciprocal %1136 {approx = true} : vector<1x16xf32> -> vector<1x16xf32>
    %1229 = vector.broadcast %1228 : vector<1x16xf32> to vector<3x16xf32>
    %1230 = arith.mulf %1227, %1229 : vector<3x16xf32>
    %1231 = arith.subf %1230, %1038 : vector<3x16xf32>
    %1232 = arith.mulf %1231, %1231 : vector<3x16xf32>
    %1233 = vector.shape_cast %1232 : vector<3x16xf32> to vector<1x3x16xf32>
    %cst_317 = arith.constant dense<0.000000e+00> : vector<1xf32>
    %1234 = vector.multi_reduction <add>, %1233, %cst_317 [1, 2] : vector<1x3x16xf32> to vector<1xf32>
    %1235 = vector.shape_cast %1234 : vector<1xf32> to vector<1x1x1xf32>
    %1236 = vector.extract %1235[0, 0, 0] : f32 from vector<1x1x1xf32>
    %1237 = vector.broadcast %1236 : f32 to vector<1x1xf32>
    %cst_318 = arith.constant 1.600000e-01 : f32
    %1238 = vector.broadcast %cst_318 : f32 to vector<1x1xf32>
    %1239 = arith.mulf %1238, %1127 : vector<1x1xf32>
    %1240 = arith.addf %929, %1239 : vector<1x1xf32>
    %cst_319 = arith.constant 1.600000e-01 : f32
    %1241 = vector.broadcast %cst_319 : f32 to vector<1x1xf32>
    %1242 = arith.mulf %1241, %1068 : vector<1x1xf32>
    %1243 = arith.addf %932, %1242 : vector<1x1xf32>
    %cst_320 = arith.constant 1.600000e-01 : f32
    %1244 = vector.broadcast %cst_320 : f32 to vector<1x1xf32>
    %1245 = arith.mulf %1244, %1237 : vector<1x1xf32>
    %1246 = arith.addf %935, %1245 : vector<1x1xf32>
    %c0_321 = arith.constant 0 : index
    %c0_322 = arith.constant 0 : index
    %c0_323 = arith.constant 0 : index
    %1247 = vector.load %arg3[%c0_321, %c0_322, %c0_323] : memref<1x1x3xf32, #tpu.memory_space<vmem>>, vector<1x1x1xf32>
    %1248 = vector.shape_cast %1247 : vector<1x1x1xf32> to vector<1x1xf32>
    %1249 = vector.shape_cast %1240 : vector<1x1xf32> to vector<1x1x1xf32>
    tpu.vector_store %arg3[%c0_321, %c0_322, %c0_323], %1249 {strides = array<i32>} : memref<1x1x3xf32, #tpu.memory_space<vmem>>, vector<1x1x1xf32>,
    %c0_324 = arith.constant 0 : index
    %c0_325 = arith.constant 0 : index
    %c1 = arith.constant 1 : index
    %1250 = vector.load %arg3[%c0_324, %c0_325, %c1] : memref<1x1x3xf32, #tpu.memory_space<vmem>>, vector<1x1x1xf32>
    %1251 = vector.shape_cast %1250 : vector<1x1x1xf32> to vector<1x1xf32>
    %1252 = vector.shape_cast %1243 : vector<1x1xf32> to vector<1x1x1xf32>
    tpu.vector_store %arg3[%c0_324, %c0_325, %c1], %1252 {strides = array<i32>} : memref<1x1x3xf32, #tpu.memory_space<vmem>>, vector<1x1x1xf32>,
    %c0_326 = arith.constant 0 : index
    %c0_327 = arith.constant 0 : index
    %c2 = arith.constant 2 : index
    %1253 = vector.load %arg3[%c0_326, %c0_327, %c2] : memref<1x1x3xf32, #tpu.memory_space<vmem>>, vector<1x1x1xf32>
    %1254 = vector.shape_cast %1253 : vector<1x1x1xf32> to vector<1x1xf32>
    %1255 = vector.shape_cast %1246 : vector<1x1xf32> to vector<1x1x1xf32>
    tpu.vector_store %arg3[%c0_326, %c0_327, %c2], %1255 {strides = array<i32>} : memref<1x1x3xf32, #tpu.memory_space<vmem>>, vector<1x1x1xf32>,
    return
  }
  func.func @transform_0(%arg0: i32) -> (i32, i32, i32) {
    %c0_i32 = arith.constant 0 : i32
    %c0_i32_0 = arith.constant 0 : i32
    %c0_i32_1 = arith.constant 0 : i32
    return %arg0, %c0_i32, %c0_i32_0 : i32, i32, i32
  }
  func.func @transform_1(%arg0: i32) -> (i32, i32, i32) {
    %c0_i32 = arith.constant 0 : i32
    %c0_i32_0 = arith.constant 0 : i32
    %c0_i32_1 = arith.constant 0 : i32
    return %arg0, %c0_i32, %c0_i32_0 : i32, i32, i32
  }
  func.func @transform_2(%arg0: i32) -> (i32, i32, i32) {
    %c0_i32 = arith.constant 0 : i32
    %c0_i32_0 = arith.constant 0 : i32
    %c0_i32_1 = arith.constant 0 : i32
    return %arg0, %c0_i32, %c0_i32_0 : i32, i32, i32
  }
}

</mosaic_0001>

<llo_original>
// kernel: tpu_custom_call.1
$region0: #{tpu_custom_call.1}
  #allocation0 [shape = 'u32[]', space=smem, size = 0x4, offset = 0x4, fixed_abs, tag = 'smem constant byte address 0x4 - core index']
  #allocation1 [shape = 'u32[72,128]{1,0:T(1,128)}', space=vmem, size = 0x9000, scoped, tag = 'internal scratch']
  %s0 = inlined_call_operand.vmem [shape: f32[2,384,3], index: 0, kind: input, shape index: {}]
  %s1 = inlined_call_operand.vmem [shape: f32[2,3,1536], index: 1, kind: input, shape index: {}]
  %s2 = inlined_call_operand.hbm [shape: f32[2,1,3], index: 2, kind: output, shape index: {}]
  %s3 = sld [smem:[#allocation0]]
  $region41: #{tpu_custom_call.1} parent=0
    _
  %s5 = ssub.s32 1, %s3
  %s6 = scalar_select 0, %s5, %s3
  $region1: #{tpu_custom_call.1} parent=0
    #allocation2 [shape = 'u8[1024]{0}', space=vmem, size = 0x400, scoped, tag = 'output window, operand 0']
    #allocation3 [shape = 's32[2]{0}', space=sflag, size = 0x8, scoped, tag = 'scoped memory for tpu_custom_call.1']
    %7 = vsyncpa [#allocation3], 0
    %s8 = scalar_lea.sflag [#allocation3], 1
    %9 = vsyncpa %s8, 0
    loop: start=0, step=1, limit=4
    $region2: #{tpu_custom_call.1} parent=1 // loop_pre_header
      _
    $region3: #{tpu_custom_call.1} parent=1 // loop_header
      %s11 = sphi 0, %s15
      %p12 = scmp.ge.s32.totalorder %s11, 4
      %s21 = sphi 0, %s23
      %s24 = sphi 0, %s21
      %s25 = sphi 0, %s24
      %s41 = sphi 0, %s25
      %s47 = sphi 0, %s49
      %s50 = sphi 0, %s47
      %s51 = sphi 0, %s50
      %s67 = sphi 0, %s51
      %s73 = sphi 0, %s75
      %s76 = sphi 0, %s73
      %s77 = sphi 0, %s76
      %s93 = sphi 0, %s77
    $region4: #{tpu_custom_call.1} parent=1 // loop_header_branch
      %14 = sbr.rel (%p12) target = $region8
    $region5: #{tpu_custom_call.1} parent=1 // loop_body
      %s16 = ssub.s32 %s11, 1
      %s17 = ssub.s32 %s11, 2
      %s18 = sadd.s32 %s11, 1
      %s19 = ssub.s32 %s11, %s18
      %p20 = scmp.eq.s32.totalorder %s19, 0
      %s22 = sadd.s32 %s21, 1
      %s23 = scalar_select %p20, %s21, %s22
      %p26 = pneg %p20
      %p27 = scmp.eq.s32.totalorder %s11, 1
      %p28 = por %p26, %p27
      %p29 = scmp.ne.s32.totalorder %s21, %s24
      %p30 = scmp.eq.s32.totalorder %s11, 0
      %p31 = por %p29, %p30
      %p32 = scmp.ne.s32.totalorder %s21, %s24
      %p33 = scmp.eq.s32.totalorder %s16, 1
      %p34 = por %p32, %p33
      %p35 = scmp.ne.s32.totalorder %s24, %s25
      %p36 = scmp.eq.s32.totalorder %s16, 0
      %p37 = por %p35, %p36
      %p38 = scmp.ne.s32.totalorder %s24, %s25
      %p39 = scmp.eq.s32.totalorder %s17, 1
      %p40 = por %p38, %p39
      %p42 = scmp.ne.s32.totalorder %s25, %s41
      %p43 = scmp.eq.s32.totalorder %s17, 0
      %p44 = por %p42, %p43
      %s45 = ssub.s32 %s11, %s18
      %p46 = scmp.eq.s32.totalorder %s45, 0
      %s48 = sadd.s32 %s47, 1
      %s49 = scalar_select %p46, %s47, %s48
      %p52 = pneg %p46
      %p53 = scmp.eq.s32.totalorder %s11, 1
      %p54 = por %p52, %p53
      %p55 = scmp.ne.s32.totalorder %s47, %s50
      %p56 = scmp.eq.s32.totalorder %s11, 0
      %p57 = por %p55, %p56
      %p58 = scmp.ne.s32.totalorder %s47, %s50
      %p59 = scmp.eq.s32.totalorder %s16, 1
      %p60 = por %p58, %p59
      %p61 = scmp.ne.s32.totalorder %s50, %s51
      %p62 = scmp.eq.s32.totalorder %s16, 0
      %p63 = por %p61, %p62
      %p64 = scmp.ne.s32.totalorder %s50, %s51
      %p65 = scmp.eq.s32.totalorder %s17, 1
      %p66 = por %p64, %p65
      %p68 = scmp.ne.s32.totalorder %s51, %s67
      %p69 = scmp.eq.s32.totalorder %s17, 0
      %p70 = por %p68, %p69
      %s71 = ssub.s32 %s11, %s18
      %p72 = scmp.eq.s32.totalorder %s71, 0
      %s74 = sadd.s32 %s73, 1
      %s75 = scalar_select %p72, %s73, %s74
      %p78 = pneg %p72
      %p79 = scmp.eq.s32.totalorder %s11, 1
      %p80 = por %p78, %p79
      %p81 = scmp.ne.s32.totalorder %s73, %s76
      %p82 = scmp.eq.s32.totalorder %s11, 0
      %p83 = por %p81, %p82
      %p84 = scmp.ne.s32.totalorder %s73, %s76
      %p85 = scmp.eq.s32.totalorder %s16, 1
      %p86 = por %p84, %p85
      %p87 = scmp.ne.s32.totalorder %s76, %s77
      %p88 = scmp.eq.s32.totalorder %s16, 0
      %p89 = por %p87, %p88
      %p90 = scmp.ne.s32.totalorder %s76, %s77
      %p91 = scmp.eq.s32.totalorder %s17, 1
      %p92 = por %p90, %p91
      %p94 = scmp.ne.s32.totalorder %s77, %s93
      %p95 = scmp.eq.s32.totalorder %s17, 0
      %p96 = por %p94, %p95
      %p97 = scmp.le.s32.totalorder 1, %s11
      %p98 = scmp.lt.s32.totalorder %s11, 3
      %p99 = pnand %p97, %p98
      %p100 = pneg %p99
      // Predicated region
      $region9: #{tpu_custom_call.1} parent=5 // pred_check
        _
      $region10: #{tpu_custom_call.1} parent=5 // pred_check_branch
        %102 = sbr.rel (%p99) target = $region12
      $region11: #{tpu_custom_call.1} parent=5 // pred_region
        %s103 = ssub.s32 %s11, 1
      $region12: #{tpu_custom_call.1} parent=5 // pred_fallthru
        _
      %p104 = scmp.lt.s32.totalorder %s11, 2
      // Predicated region
      $region13: #{tpu_custom_call.1} parent=5 // pred_check
        %p105 = pneg %p104
      $region14: #{tpu_custom_call.1} parent=5 // pred_check_branch
        %107 = sbr.rel (%p105) target = $region16
      $region15: #{tpu_custom_call.1} parent=5 // pred_region
        // Predicated region
        $region17: #{tpu_custom_call.1} parent=15 // pred_check
          %p108 = pneg %p31
        $region18: #{tpu_custom_call.1} parent=15 // pred_check_branch
          %110 = sbr.rel (%p108) target = $region20
        $region19: #{tpu_custom_call.1} parent=15 // pred_region
          %p111 = scmp.lt.s32.totalorder %s11, 1
          %s112 = scalar_select %p111, %s11, 1
          %s113 = smul.addr %s112, 48
          %s114 = smul.addr %s113, 8
          %s115 = scalar_lea.vmem %s0, %s114
        $region20: #{tpu_custom_call.1} parent=15 // pred_fallthru
          _
        // Predicated region
        $region21: #{tpu_custom_call.1} parent=15 // pred_check
          %p116 = pneg %p57
        $region22: #{tpu_custom_call.1} parent=15 // pred_check_branch
          %118 = sbr.rel (%p116) target = $region24
        $region23: #{tpu_custom_call.1} parent=15 // pred_region
          %p119 = scmp.lt.s32.totalorder %s11, 1
          %s120 = scalar_select %p119, %s11, 1
          %s121 = smul.addr %s120, 12
          %s122 = smul.addr %s121, 4
          %s123 = scalar_lea.vmem %s1, %s122
        $region24: #{tpu_custom_call.1} parent=15 // pred_fallthru
          _
      $region16: #{tpu_custom_call.1} parent=5 // pred_fallthru
        _
      %p124 = scmp.le.s32.totalorder 1, %s11
      %p125 = scmp.lt.s32.totalorder %s11, 3
      %p126 = pnand %p124, %p125
      %p127 = pneg %p126
      // Predicated region
      $region25: #{tpu_custom_call.1} parent=5 // pred_check
        _
      $region26: #{tpu_custom_call.1} parent=5 // pred_check_branch
        %129 = sbr.rel (%p126) target = $region28
      $region27: #{tpu_custom_call.1} parent=5 // pred_region
        %s130 = ssub.s32 %s11, 1
        %p131 = scmp.lt.s32.totalorder %s16, 1
        %s132 = scalar_select %p131, %s16, 1
        %s133 = smul.addr %s132, 48
        %s134 = smul.addr %s133, 8
        %s135 = scalar_lea.vmem %s0, %s134
        %p136 = pneg %p37
        %p137 = pneg %p34
        %p138 = scmp.lt.s32.totalorder %s16, 1
        %s139 = scalar_select %p138, %s16, 1
        %s140 = smul.addr %s139, 12
        %s141 = smul.addr %s140, 4
        %s142 = scalar_lea.vmem %s1, %s141
        %p143 = pneg %p63
        %p144 = pneg %p60
        %p145 = pneg %p89
        %p146 = pneg %p86
        %s147 = sand.u32 %s76, 1
        %s148 = scalar_lea.sflag [#allocation3], %s147
        %s149 = sand.u32 %s76, 1
        %s150 = scalar_lea.vmem [#allocation2], %s149
        %p151 = scmp.lt.s32.totalorder %s16, 1
        %s152 = scalar_select %p151, %s16, 1
        %s153 = smul.addr %s152, 48
        %s154 = smul.addr %s153, 8
        %s155 = scalar_lea.vmem %s0, %s154
        %p156 = scmp.lt.s32.totalorder %s16, 1
        %s157 = scalar_select %p156, %s16, 1
        %s158 = smul.addr %s157, 12
        %s159 = smul.addr %s158, 4
        %s160 = scalar_lea.vmem %s1, %s159
        %v162 = vld [vmem:[%s155] sm:$0xff]
        %v163 = vld [vmem:[%s155 + $0x8] sm:$0xff]
        %v164 = vld [vmem:[%s155 + $0x10] sm:$0xff]
        %v165 = vld [vmem:[%s155 + $0x18] sm:$0xff]
        %v166 = vld [vmem:[%s155 + $0x20] sm:$0xff]
        %v167 = vld [vmem:[%s155 + $0x28] sm:$0xff]
        %v168 = vld [vmem:[%s155 + $0x30] sm:$0xff]
        %v169 = vld [vmem:[%s155 + $0x38] sm:$0xff]
        %v170 = vld [vmem:[%s155 + $0x40] sm:$0xff]
        %v171 = vld [vmem:[%s155 + $0x48] sm:$0xff]
        %v172 = vld [vmem:[%s155 + $0x50] sm:$0xff]
        %v173 = vld [vmem:[%s155 + $0x58] sm:$0xff]
        %v174 = vld [vmem:[%s155 + $0x60] sm:$0xff]
        %v175 = vld [vmem:[%s155 + $0x68] sm:$0xff]
        %v176 = vld [vmem:[%s155 + $0x70] sm:$0xff]
        %v177 = vld [vmem:[%s155 + $0x78] sm:$0xff]
        %v178 = vld [vmem:[%s155 + $0x80] sm:$0xff]
        %v179 = vld [vmem:[%s155 + $0x88] sm:$0xff]
        %v180 = vld [vmem:[%s155 + $0x90] sm:$0xff]
        %v181 = vld [vmem:[%s155 + $0x98] sm:$0xff]
        %v182 = vld [vmem:[%s155 + $0xa0] sm:$0xff]
        %v183 = vld [vmem:[%s155 + $0xa8] sm:$0xff]
        %v184 = vld [vmem:[%s155 + $0xb0] sm:$0xff]
        %v185 = vld [vmem:[%s155 + $0xb8] sm:$0xff]
        %v186 = vld [vmem:[%s160] sm:$0x7]
        %v187 = vld [vmem:[%s160 + $0x4] sm:$0x7]
        %v188 = vld [vmem:[%s160 + $0x8] sm:$0x7]
        %v189 = vadd.f32 %v186, %v188
        %191 = vset.pattern.permute.xlu0 0
        %192 = vperm.xlu0 %191, %v162
        %v193 = vpop.permute.xlu0 %192
        %196 = vset.pattern.permute.xlu0 0
        %197 = vperm.xlu0 %196, %v163
        %v198 = vpop.permute.xlu0 %197
        %201 = vset.pattern.permute.xlu0 0
        %202 = vperm.xlu0 %201, %v164
        %v203 = vpop.permute.xlu0 %202
        %206 = vset.pattern.permute.xlu0 0
        %207 = vperm.xlu0 %206, %v165
        %v208 = vpop.permute.xlu0 %207
        %211 = vset.pattern.permute.xlu0 0
        %212 = vperm.xlu0 %211, %v166
        %v213 = vpop.permute.xlu0 %212
        %216 = vset.pattern.permute.xlu0 0
        %217 = vperm.xlu0 %216, %v167
        %v218 = vpop.permute.xlu0 %217
        %221 = vset.pattern.permute.xlu0 0
        %222 = vperm.xlu0 %221, %v168
        %v223 = vpop.permute.xlu0 %222
        %226 = vset.pattern.permute.xlu0 0
        %227 = vperm.xlu0 %226, %v169
        %v228 = vpop.permute.xlu0 %227
        %v230 = vperm.slane %v186, 0
        %v231 = vsub.f32 %v193, %v230
        %v232 = vsub.f32 %v198, %v230
        %v233 = vsub.f32 %v203, %v230
        %v234 = vsub.f32 %v208, %v230
        %v235 = vsub.f32 %v213, %v230
        %v236 = vsub.f32 %v218, %v230
        %v237 = vsub.f32 %v223, %v230
        %v238 = vsub.f32 %v228, %v230
        %239 = vset.pattern.permute.xlu0 1
        %240 = vperm.xlu0 %239, %v162
        %v241 = vpop.permute.xlu0 %240
        %243 = vset.pattern.permute.xlu0 1
        %244 = vperm.xlu0 %243, %v163
        %v245 = vpop.permute.xlu0 %244
        %247 = vset.pattern.permute.xlu0 1
        %248 = vperm.xlu0 %247, %v164
        %v249 = vpop.permute.xlu0 %248
        %251 = vset.pattern.permute.xlu0 1
        %252 = vperm.xlu0 %251, %v165
        %v253 = vpop.permute.xlu0 %252
        %255 = vset.pattern.permute.xlu0 1
        %256 = vperm.xlu0 %255, %v166
        %v257 = vpop.permute.xlu0 %256
        %259 = vset.pattern.permute.xlu0 1
        %260 = vperm.xlu0 %259, %v167
        %v261 = vpop.permute.xlu0 %260
        %263 = vset.pattern.permute.xlu0 1
        %264 = vperm.xlu0 %263, %v168
        %v265 = vpop.permute.xlu0 %264
        %267 = vset.pattern.permute.xlu0 1
        %268 = vperm.xlu0 %267, %v169
        %v269 = vpop.permute.xlu0 %268
        %v271 = vperm.slane %v186, 1
        %v272 = vsub.f32 %v241, %v271
        %v273 = vsub.f32 %v245, %v271
        %v274 = vsub.f32 %v249, %v271
        %v275 = vsub.f32 %v253, %v271
        %v276 = vsub.f32 %v257, %v271
        %v277 = vsub.f32 %v261, %v271
        %v278 = vsub.f32 %v265, %v271
        %v279 = vsub.f32 %v269, %v271
        %280 = vset.pattern.permute.xlu0 2
        %281 = vperm.xlu0 %280, %v162
        %v282 = vpop.permute.xlu0 %281
        %284 = vset.pattern.permute.xlu0 2
        %285 = vperm.xlu0 %284, %v163
        %v286 = vpop.permute.xlu0 %285
        %288 = vset.pattern.permute.xlu0 2
        %289 = vperm.xlu0 %288, %v164
        %v290 = vpop.permute.xlu0 %289
        %292 = vset.pattern.permute.xlu0 2
        %293 = vperm.xlu0 %292, %v165
        %v294 = vpop.permute.xlu0 %293
        %296 = vset.pattern.permute.xlu0 2
        %297 = vperm.xlu0 %296, %v166
        %v298 = vpop.permute.xlu0 %297
        %300 = vset.pattern.permute.xlu0 2
        %301 = vperm.xlu0 %300, %v167
        %v302 = vpop.permute.xlu0 %301
        %304 = vset.pattern.permute.xlu0 2
        %305 = vperm.xlu0 %304, %v168
        %v306 = vpop.permute.xlu0 %305
        %308 = vset.pattern.permute.xlu0 2
        %309 = vperm.xlu0 %308, %v169
        %v310 = vpop.permute.xlu0 %309
        %v312 = vperm.slane %v186, 2
        %v313 = vsub.f32 %v282, %v312
        %v314 = vsub.f32 %v286, %v312
        %v315 = vsub.f32 %v290, %v312
        %v316 = vsub.f32 %v294, %v312
        %v317 = vsub.f32 %v298, %v312
        %v318 = vsub.f32 %v302, %v312
        %v319 = vsub.f32 %v306, %v312
        %v320 = vsub.f32 %v310, %v312
        %v321 = vmul.f32 %v231, %v231
        %v322 = vmul.f32 %v232, %v232
        %v323 = vmul.f32 %v233, %v233
        %v324 = vmul.f32 %v234, %v234
        %v325 = vmul.f32 %v235, %v235
        %v326 = vmul.f32 %v236, %v236
        %v327 = vmul.f32 %v237, %v237
        %v328 = vmul.f32 %v238, %v238
        %v329 = vmul.f32 %v272, %v272
        %v330 = vmul.f32 %v273, %v273
        %v331 = vmul.f32 %v274, %v274
        %v332 = vmul.f32 %v275, %v275
        %v333 = vmul.f32 %v276, %v276
        %v334 = vmul.f32 %v277, %v277
        %v335 = vmul.f32 %v278, %v278
        %v336 = vmul.f32 %v279, %v279
        %v337 = vadd.f32 %v321, %v329
        %v338 = vadd.f32 %v322, %v330
        %v339 = vadd.f32 %v323, %v331
        %v340 = vadd.f32 %v324, %v332
        %v341 = vadd.f32 %v325, %v333
        %v342 = vadd.f32 %v326, %v334
        %v343 = vadd.f32 %v327, %v335
        %v344 = vadd.f32 %v328, %v336
        %v345 = vmul.f32 %v313, %v313
        %v346 = vmul.f32 %v314, %v314
        %v347 = vmul.f32 %v315, %v315
        %v348 = vmul.f32 %v316, %v316
        %v349 = vmul.f32 %v317, %v317
        %v350 = vmul.f32 %v318, %v318
        %v351 = vmul.f32 %v319, %v319
        %v352 = vmul.f32 %v320, %v320
        %v353 = vadd.f32 %v337, %v345
        %v354 = vadd.f32 %v338, %v346
        %v355 = vadd.f32 %v339, %v347
        %v356 = vadd.f32 %v340, %v348
        %v357 = vadd.f32 %v341, %v349
        %v358 = vadd.f32 %v342, %v350
        %v359 = vadd.f32 %v343, %v351
        %v360 = vadd.f32 %v344, %v352
        %vm361 = vcmask 523264
        %v362 = vsel %vm361, %v353, inf
        %v363 = vsel %vm361, %v354, inf
        %v364 = vsel %vm361, %v355, inf
        %v365 = vsel %vm361, %v356, inf
        %v366 = vsel %vm361, %v357, inf
        %v367 = vmin.f32 %v362, %v366
        %v368 = vsel %vm361, %v358, inf
        %v369 = vmin.f32 %v363, %v368
        %v370 = vsel %vm361, %v359, inf
        %v371 = vmin.f32 %v364, %v370
        %v372 = vsel %vm361, %v360, inf
        %v373 = vmin.f32 %v365, %v372
        %v374 = vmin.f32 %v367, %v369
        %v375 = vmin.f32 %v371, %v373
        %v376 = vmin.f32 %v374, %v375
        %v377 = vrot.slane %v376, 4
        %v378 = vmin.f32 %v376, %v377
        %v379 = vrot.slane %v378, 2
        %v380 = vmin.f32 %v378, %v379
        %v381 = vrot.slane %v380, 1
        %v382 = vmin.f32 %v380, %v381
        %vm383 = vcmp.le.f32.partialorder %v353, %v382
        %vm384 = vcmp.le.f32.partialorder %v354, %v382
        %vm385 = vcmp.le.f32.partialorder %v355, %v382
        %vm386 = vcmp.le.f32.partialorder %v356, %v382
        %vm387 = vcmp.le.f32.partialorder %v357, %v382
        %vm388 = vcmp.le.f32.partialorder %v358, %v382
        %vm389 = vcmp.le.f32.partialorder %v359, %v382
        %vm390 = vcmp.le.f32.partialorder %v360, %v382
        %v391 = vsel %vm383, 1e+30, %v353
        %v392 = vsel %vm384, 1e+30, %v354
        %v393 = vsel %vm385, 1e+30, %v355
        %v394 = vsel %vm386, 1e+30, %v356
        %v395 = vsel %vm387, 1e+30, %v357
        %v396 = vsel %vm388, 1e+30, %v358
        %v397 = vsel %vm389, 1e+30, %v359
        %v398 = vsel %vm390, 1e+30, %v360
        %v399 = vsel %vm361, %v391, inf
        %v400 = vsel %vm361, %v392, inf
        %v401 = vsel %vm361, %v393, inf
        %v402 = vsel %vm361, %v394, inf
        %v403 = vsel %vm361, %v395, inf
        %v404 = vmin.f32 %v399, %v403
        %v405 = vsel %vm361, %v396, inf
        %v406 = vmin.f32 %v400, %v405
        %v407 = vsel %vm361, %v397, inf
        %v408 = vmin.f32 %v401, %v407
        %v409 = vsel %vm361, %v398, inf
        %v410 = vmin.f32 %v402, %v409
        %v411 = vmin.f32 %v404, %v406
        %v412 = vmin.f32 %v408, %v410
        %v413 = vmin.f32 %v411, %v412
        %v414 = vrot.slane %v413, 4
        %v415 = vmin.f32 %v413, %v414
        %v416 = vrot.slane %v415, 2
        %v417 = vmin.f32 %v415, %v416
        %v418 = vrot.slane %v417, 1
        %v419 = vmin.f32 %v417, %v418
        %vm420 = vcmp.le.f32.partialorder %v391, %v419
        %vm421 = vcmp.le.f32.partialorder %v392, %v419
        %vm422 = vcmp.le.f32.partialorder %v393, %v419
        %vm423 = vcmp.le.f32.partialorder %v394, %v419
        %vm424 = vcmp.le.f32.partialorder %v395, %v419
        %vm425 = vcmp.le.f32.partialorder %v396, %v419
        %vm426 = vcmp.le.f32.partialorder %v397, %v419
        %vm427 = vcmp.le.f32.partialorder %v398, %v419
        %v428 = vsel %vm420, 1e+30, %v391
        %v429 = vsel %vm421, 1e+30, %v392
        %v430 = vsel %vm422, 1e+30, %v393
        %v431 = vsel %vm423, 1e+30, %v394
        %v432 = vsel %vm424, 1e+30, %v395
        %v433 = vsel %vm425, 1e+30, %v396
        %v434 = vsel %vm426, 1e+30, %v397
        %v435 = vsel %vm427, 1e+30, %v398
        %v436 = vsel %vm361, %v428, inf
        %v437 = vsel %vm361, %v429, inf
        %v438 = vsel %vm361, %v430, inf
        %v439 = vsel %vm361, %v431, inf
        %v440 = vsel %vm361, %v432, inf
        %v441 = vmin.f32 %v436, %v440
        %v442 = vsel %vm361, %v433, inf
        %v443 = vmin.f32 %v437, %v442
        %v444 = vsel %vm361, %v434, inf
        %v445 = vmin.f32 %v438, %v444
        %v446 = vsel %vm361, %v435, inf
        %v447 = vmin.f32 %v439, %v446
        %v448 = vmin.f32 %v441, %v443
        %v449 = vmin.f32 %v445, %v447
        %v450 = vmin.f32 %v448, %v449
        %v451 = vrot.slane %v450, 4
        %v452 = vmin.f32 %v450, %v451
        %v453 = vrot.slane %v452, 2
        %v454 = vmin.f32 %v452, %v453
        %v455 = vrot.slane %v454, 1
        %v456 = vmin.f32 %v454, %v455
        %vm457 = vcmp.le.f32.partialorder %v428, %v456
        %vm458 = vcmp.le.f32.partialorder %v429, %v456
        %vm459 = vcmp.le.f32.partialorder %v430, %v456
        %vm460 = vcmp.le.f32.partialorder %v431, %v456
        %vm461 = vcmp.le.f32.partialorder %v432, %v456
        %vm462 = vcmp.le.f32.partialorder %v433, %v456
        %vm463 = vcmp.le.f32.partialorder %v434, %v456
        %vm464 = vcmp.le.f32.partialorder %v435, %v456
        %v465 = vsel %vm457, 1e+30, %v428
        %v466 = vsel %vm458, 1e+30, %v429
        %v467 = vsel %vm459, 1e+30, %v430
        %v468 = vsel %vm460, 1e+30, %v431
        %v469 = vsel %vm461, 1e+30, %v432
        %v470 = vsel %vm462, 1e+30, %v433
        %v471 = vsel %vm463, 1e+30, %v434
        %v472 = vsel %vm464, 1e+30, %v435
        %v473 = vsel %vm361, %v465, inf
        %v474 = vsel %vm361, %v466, inf
        %v475 = vsel %vm361, %v467, inf
        %v476 = vsel %vm361, %v468, inf
        %v477 = vsel %vm361, %v469, inf
        %v478 = vmin.f32 %v473, %v477
        %v479 = vsel %vm361, %v470, inf
        %v480 = vmin.f32 %v474, %v479
        %v481 = vsel %vm361, %v471, inf
        %v482 = vmin.f32 %v475, %v481
        %v483 = vsel %vm361, %v472, inf
        %v484 = vmin.f32 %v476, %v483
        %v485 = vmin.f32 %v478, %v480
        %v486 = vmin.f32 %v482, %v484
        %v487 = vmin.f32 %v485, %v486
        %v488 = vrot.slane %v487, 4
        %v489 = vmin.f32 %v487, %v488
        %v490 = vrot.slane %v489, 2
        %v491 = vmin.f32 %v489, %v490
        %v492 = vrot.slane %v491, 1
        %v493 = vmin.f32 %v491, %v492
        %vm494 = vcmp.le.f32.partialorder %v465, %v493
        %vm495 = vcmp.le.f32.partialorder %v466, %v493
        %vm496 = vcmp.le.f32.partialorder %v467, %v493
        %vm497 = vcmp.le.f32.partialorder %v468, %v493
        %vm498 = vcmp.le.f32.partialorder %v469, %v493
        %vm499 = vcmp.le.f32.partialorder %v470, %v493
        %vm500 = vcmp.le.f32.partialorder %v471, %v493
        %vm501 = vcmp.le.f32.partialorder %v472, %v493
        %v502 = vsel %vm494, 1e+30, %v465
        %v503 = vsel %vm495, 1e+30, %v466
        %v504 = vsel %vm496, 1e+30, %v467
        %v505 = vsel %vm497, 1e+30, %v468
        %v506 = vsel %vm498, 1e+30, %v469
        %v507 = vsel %vm499, 1e+30, %v470
        %v508 = vsel %vm500, 1e+30, %v471
        %v509 = vsel %vm501, 1e+30, %v472
        %v510 = vsel %vm361, %v502, inf
        %v511 = vsel %vm361, %v503, inf
        %v512 = vsel %vm361, %v504, inf
        %v513 = vsel %vm361, %v505, inf
        %v514 = vsel %vm361, %v506, inf
        %v515 = vmin.f32 %v510, %v514
        %v516 = vsel %vm361, %v507, inf
        %v517 = vmin.f32 %v511, %v516
        %v518 = vsel %vm361, %v508, inf
        %v519 = vmin.f32 %v512, %v518
        %v520 = vsel %vm361, %v509, inf
        %v521 = vmin.f32 %v513, %v520
        %v522 = vmin.f32 %v515, %v517
        %v523 = vmin.f32 %v519, %v521
        %v524 = vmin.f32 %v522, %v523
        %v525 = vrot.slane %v524, 4
        %v526 = vmin.f32 %v524, %v525
        %v527 = vrot.slane %v526, 2
        %v528 = vmin.f32 %v526, %v527
        %v529 = vrot.slane %v528, 1
        %v530 = vmin.f32 %v528, %v529
        %vm531 = vcmp.le.f32.partialorder %v502, %v530
        %vm532 = vcmp.le.f32.partialorder %v503, %v530
        %vm533 = vcmp.le.f32.partialorder %v504, %v530
        %vm534 = vcmp.le.f32.partialorder %v505, %v530
        %vm535 = vcmp.le.f32.partialorder %v506, %v530
        %vm536 = vcmp.le.f32.partialorder %v507, %v530
        %vm537 = vcmp.le.f32.partialorder %v508, %v530
        %vm538 = vcmp.le.f32.partialorder %v509, %v530
        %v539 = vsel %vm531, 1e+30, %v502
        %v540 = vsel %vm532, 1e+30, %v503
        %v541 = vsel %vm533, 1e+30, %v504
        %v542 = vsel %vm534, 1e+30, %v505
        %v543 = vsel %vm535, 1e+30, %v506
        %v544 = vsel %vm536, 1e+30, %v507
        %v545 = vsel %vm537, 1e+30, %v508
        %v546 = vsel %vm538, 1e+30, %v509
        %v547 = vsel %vm361, %v539, inf
        %v548 = vsel %vm361, %v540, inf
        %v549 = vsel %vm361, %v541, inf
        %v550 = vsel %vm361, %v542, inf
        %v551 = vsel %vm361, %v543, inf
        %v552 = vmin.f32 %v547, %v551
        %v553 = vsel %vm361, %v544, inf
        %v554 = vmin.f32 %v548, %v553
        %v555 = vsel %vm361, %v545, inf
        %v556 = vmin.f32 %v549, %v555
        %v557 = vsel %vm361, %v546, inf
        %v558 = vmin.f32 %v550, %v557
        %v559 = vmin.f32 %v552, %v554
        %v560 = vmin.f32 %v556, %v558
        %v561 = vmin.f32 %v559, %v560
        %v562 = vrot.slane %v561, 4
        %v563 = vmin.f32 %v561, %v562
        %v564 = vrot.slane %v563, 2
        %v565 = vmin.f32 %v563, %v564
        %v566 = vrot.slane %v565, 1
        %v567 = vmin.f32 %v565, %v566
        %vm568 = vcmp.le.f32.partialorder %v539, %v567
        %vm569 = vcmp.le.f32.partialorder %v540, %v567
        %vm570 = vcmp.le.f32.partialorder %v541, %v567
        %vm571 = vcmp.le.f32.partialorder %v542, %v567
        %vm572 = vcmp.le.f32.partialorder %v543, %v567
        %vm573 = vcmp.le.f32.partialorder %v544, %v567
        %vm574 = vcmp.le.f32.partialorder %v545, %v567
        %vm575 = vcmp.le.f32.partialorder %v546, %v567
        %v576 = vsel %vm568, 1e+30, %v539
        %v577 = vsel %vm569, 1e+30, %v540
        %v578 = vsel %vm570, 1e+30, %v541
        %v579 = vsel %vm571, 1e+30, %v542
        %v580 = vsel %vm572, 1e+30, %v543
        %v581 = vsel %vm573, 1e+30, %v544
        %v582 = vsel %vm574, 1e+30, %v545
        %v583 = vsel %vm575, 1e+30, %v546
        %v584 = vsel %vm361, %v576, inf
        %v585 = vsel %vm361, %v577, inf
        %v586 = vsel %vm361, %v578, inf
        %v587 = vsel %vm361, %v579, inf
        %v588 = vsel %vm361, %v580, inf
        %v589 = vmin.f32 %v584, %v588
        %v590 = vsel %vm361, %v581, inf
        %v591 = vmin.f32 %v585, %v590
        %v592 = vsel %vm361, %v582, inf
        %v593 = vmin.f32 %v586, %v592
        %v594 = vsel %vm361, %v583, inf
        %v595 = vmin.f32 %v587, %v594
        %v596 = vmin.f32 %v589, %v591
        %v597 = vmin.f32 %v593, %v595
        %v598 = vmin.f32 %v596, %v597
        %v599 = vrot.slane %v598, 4
        %v600 = vmin.f32 %v598, %v599
        %v601 = vrot.slane %v600, 2
        %v602 = vmin.f32 %v600, %v601
        %v603 = vrot.slane %v602, 1
        %v604 = vmin.f32 %v602, %v603
        %vm605 = vcmp.le.f32.partialorder %v576, %v604
        %vm606 = vcmp.le.f32.partialorder %v577, %v604
        %vm607 = vcmp.le.f32.partialorder %v578, %v604
        %vm608 = vcmp.le.f32.partialorder %v579, %v604
        %vm609 = vcmp.le.f32.partialorder %v580, %v604
        %vm610 = vcmp.le.f32.partialorder %v581, %v604
        %vm611 = vcmp.le.f32.partialorder %v582, %v604
        %vm612 = vcmp.le.f32.partialorder %v583, %v604
        %v613 = vsel %vm605, 1e+30, %v576
        %v614 = vsel %vm606, 1e+30, %v577
        %v615 = vsel %vm607, 1e+30, %v578
        %v616 = vsel %vm608, 1e+30, %v579
        %v617 = vsel %vm609, 1e+30, %v580
        %v618 = vsel %vm610, 1e+30, %v581
        %v619 = vsel %vm611, 1e+30, %v582
        %v620 = vsel %vm612, 1e+30, %v583
        %v621 = vsel %vm361, %v613, inf
        %v622 = vsel %vm361, %v614, inf
        %v623 = vsel %vm361, %v615, inf
        %v624 = vsel %vm361, %v616, inf
        %v625 = vsel %vm361, %v617, inf
        %v626 = vmin.f32 %v621, %v625
        %v627 = vsel %vm361, %v618, inf
        %v628 = vmin.f32 %v622, %v627
        %v629 = vsel %vm361, %v619, inf
        %v630 = vmin.f32 %v623, %v629
        %v631 = vsel %vm361, %v620, inf
        %v632 = vmin.f32 %v624, %v631
        %v633 = vmin.f32 %v626, %v628
        %v634 = vmin.f32 %v630, %v632
        %v635 = vmin.f32 %v633, %v634
        %v636 = vrot.slane %v635, 4
        %v637 = vmin.f32 %v635, %v636
        %v638 = vrot.slane %v637, 2
        %v639 = vmin.f32 %v637, %v638
        %v640 = vrot.slane %v639, 1
        %v641 = vmin.f32 %v639, %v640
        %vm642 = vcmp.le.f32.partialorder %v613, %v641
        %vm643 = vcmp.le.f32.partialorder %v614, %v641
        %vm644 = vcmp.le.f32.partialorder %v615, %v641
        %vm645 = vcmp.le.f32.partialorder %v616, %v641
        %vm646 = vcmp.le.f32.partialorder %v617, %v641
        %vm647 = vcmp.le.f32.partialorder %v618, %v641
        %vm648 = vcmp.le.f32.partialorder %v619, %v641
        %vm649 = vcmp.le.f32.partialorder %v620, %v641
        %v650 = vsel %vm642, 1e+30, %v613
        %v651 = vsel %vm643, 1e+30, %v614
        %v652 = vsel %vm644, 1e+30, %v615
        %v653 = vsel %vm645, 1e+30, %v616
        %v654 = vsel %vm646, 1e+30, %v617
        %v655 = vsel %vm647, 1e+30, %v618
        %v656 = vsel %vm648, 1e+30, %v619
        %v657 = vsel %vm649, 1e+30, %v620
        %v658 = vsel %vm361, %v650, inf
        %v659 = vsel %vm361, %v651, inf
        %v660 = vsel %vm361, %v652, inf
        %v661 = vsel %vm361, %v653, inf
        %v662 = vsel %vm361, %v654, inf
        %v663 = vmin.f32 %v658, %v662
        %v664 = vsel %vm361, %v655, inf
        %v665 = vmin.f32 %v659, %v664
        %v666 = vsel %vm361, %v656, inf
        %v667 = vmin.f32 %v660, %v666
        %v668 = vsel %vm361, %v657, inf
        %v669 = vmin.f32 %v661, %v668
        %v670 = vmin.f32 %v663, %v665
        %v671 = vmin.f32 %v667, %v669
        %v672 = vmin.f32 %v670, %v671
        %v673 = vrot.slane %v672, 4
        %v674 = vmin.f32 %v672, %v673
        %v675 = vrot.slane %v674, 2
        %v676 = vmin.f32 %v674, %v675
        %v677 = vrot.slane %v676, 1
        %v678 = vmin.f32 %v676, %v677
        %vm679 = vcmp.le.f32.partialorder %v650, %v678
        %vm680 = vcmp.le.f32.partialorder %v651, %v678
        %vm681 = vcmp.le.f32.partialorder %v652, %v678
        %vm682 = vcmp.le.f32.partialorder %v653, %v678
        %vm683 = vcmp.le.f32.partialorder %v654, %v678
        %vm684 = vcmp.le.f32.partialorder %v655, %v678
        %vm685 = vcmp.le.f32.partialorder %v656, %v678
        %vm686 = vcmp.le.f32.partialorder %v657, %v678
        %v687 = vsel %vm679, 1e+30, %v650
        %v688 = vsel %vm680, 1e+30, %v651
        %v689 = vsel %vm681, 1e+30, %v652
        %v690 = vsel %vm682, 1e+30, %v653
        %v691 = vsel %vm683, 1e+30, %v654
        %v692 = vsel %vm684, 1e+30, %v655
        %v693 = vsel %vm685, 1e+30, %v656
        %v694 = vsel %vm686, 1e+30, %v657
        %v695 = vsel %vm361, %v687, inf
        %v696 = vsel %vm361, %v688, inf
        %v697 = vsel %vm361, %v689, inf
        %v698 = vsel %vm361, %v690, inf
        %v699 = vsel %vm361, %v691, inf
        %v700 = vmin.f32 %v695, %v699
        %v701 = vsel %vm361, %v692, inf
        %v702 = vmin.f32 %v696, %v701
        %v703 = vsel %vm361, %v693, inf
        %v704 = vmin.f32 %v697, %v703
        %v705 = vsel %vm361, %v694, inf
        %v706 = vmin.f32 %v698, %v705
        %v707 = vmin.f32 %v700, %v702
        %v708 = vmin.f32 %v704, %v706
        %v709 = vmin.f32 %v707, %v708
        %v710 = vrot.slane %v709, 4
        %v711 = vmin.f32 %v709, %v710
        %v712 = vrot.slane %v711, 2
        %v713 = vmin.f32 %v711, %v712
        %v714 = vrot.slane %v713, 1
        %v715 = vmin.f32 %v713, %v714
        %vm716 = vcmp.le.f32.partialorder %v353, %v678
        %vm717 = vcmp.le.f32.partialorder %v354, %v678
        %vm718 = vcmp.le.f32.partialorder %v355, %v678
        %vm719 = vcmp.le.f32.partialorder %v356, %v678
        %vm720 = vcmp.le.f32.partialorder %v357, %v678
        %vm721 = vcmp.le.f32.partialorder %v358, %v678
        %vm722 = vcmp.le.f32.partialorder %v359, %v678
        %vm723 = vcmp.le.f32.partialorder %v360, %v678
        %vm724 = vcmp.le.f32.partialorder %v353, %v715
        %vm725 = vcmp.le.f32.partialorder %v354, %v715
        %vm726 = vcmp.le.f32.partialorder %v355, %v715
        %vm727 = vcmp.le.f32.partialorder %v356, %v715
        %vm728 = vcmp.le.f32.partialorder %v357, %v715
        %vm729 = vcmp.le.f32.partialorder %v358, %v715
        %vm730 = vcmp.le.f32.partialorder %v359, %v715
        %vm731 = vcmp.le.f32.partialorder %v360, %v715
        %v732 = vsel %vm724, 1, 0
        %v733 = vsel %vm725, 1, 0
        %v734 = vsel %vm726, 1, 0
        %v735 = vsel %vm727, 1, 0
        %v736 = vsel %vm728, 1, 0
        %v737 = vsel %vm729, 1, 0
        %v738 = vsel %vm730, 1, 0
        %v739 = vsel %vm731, 1, 0
        %v740 = vcvt.s32.f32 %v732
        %v741 = vcvt.s32.f32 %v733
        %v742 = vcvt.s32.f32 %v734
        %v743 = vcvt.s32.f32 %v735
        %v744 = vcvt.s32.f32 %v736
        %v745 = vcvt.s32.f32 %v737
        %v746 = vcvt.s32.f32 %v738
        %v747 = vcvt.s32.f32 %v739
        %v748 = vpack.c.bf16 %v741, %v740
        %v749 = vpack.c.bf16 %v743, %v742
        %v750 = vpack.c.bf16 %v745, %v744
        %v751 = vpack.c.bf16 %v747, %v746
        %v752 = vpack.c.bf16 %v189, %v189
        %v754 = vsel %vm361, %v752, 0
        %756 = vmatpush.bf16.msra.mxu0 0
        %757 = vmatpush.bf16.msra.mxu0 0
        %758 = vmatpush.bf16.msra.mxu0 0
        %759 = vmatpush.bf16.msra.mxu0 0
        %760 = vmatpush.bf16.msra.mxu0 %v751
        %761 = vmatpush.bf16.msra.mxu0 %v750
        %762 = vmatpush.bf16.msra.mxu0 %v749
        %763 = vmatpush.bf16.msra.mxu0 %v748
        %764 = vmatmul.bf16.gmra.mxu0 %v754
        %v765 = vpop.f32.mrf.mxu0
        %v766 = vadd.f32 0.0, %v765
        %v767 = vpop.f32.mrf.mxu0
        %768 = vdwg.mxu0
        %v769 = vmul.f32 %v189, 10.0
        %v770 = vsub.f32 %v766, %v769
        %v771 = vmul.f32 %v770, 0.11111111
        %773 = vset.pattern.permute.xlu0 0
        %774 = vperm.xlu0 %773, %v178
        %v775 = vpop.permute.xlu0 %774
        %778 = vset.pattern.permute.xlu0 0
        %779 = vperm.xlu0 %778, %v179
        %v780 = vpop.permute.xlu0 %779
        %783 = vset.pattern.permute.xlu0 0
        %784 = vperm.xlu0 %783, %v180
        %v785 = vpop.permute.xlu0 %784
        %788 = vset.pattern.permute.xlu0 0
        %789 = vperm.xlu0 %788, %v181
        %v790 = vpop.permute.xlu0 %789
        %793 = vset.pattern.permute.xlu0 0
        %794 = vperm.xlu0 %793, %v182
        %v795 = vpop.permute.xlu0 %794
        %798 = vset.pattern.permute.xlu0 0
        %799 = vperm.xlu0 %798, %v183
        %v800 = vpop.permute.xlu0 %799
        %803 = vset.pattern.permute.xlu0 0
        %804 = vperm.xlu0 %803, %v184
        %v805 = vpop.permute.xlu0 %804
        %808 = vset.pattern.permute.xlu0 0
        %809 = vperm.xlu0 %808, %v185
        %v810 = vpop.permute.xlu0 %809
        %v812 = vperm.slane %v188, 0
        %v813 = vsub.f32 %v775, %v812
        %v814 = vsub.f32 %v780, %v812
        %v815 = vsub.f32 %v785, %v812
        %v816 = vsub.f32 %v790, %v812
        %v817 = vsub.f32 %v795, %v812
        %v818 = vsub.f32 %v800, %v812
        %v819 = vsub.f32 %v805, %v812
        %v820 = vsub.f32 %v810, %v812
        %821 = vset.pattern.permute.xlu0 1
        %822 = vperm.xlu0 %821, %v178
        %v823 = vpop.permute.xlu0 %822
        %825 = vset.pattern.permute.xlu0 1
        %826 = vperm.xlu0 %825, %v179
        %v827 = vpop.permute.xlu0 %826
        %829 = vset.pattern.permute.xlu0 1
        %830 = vperm.xlu0 %829, %v180
        %v831 = vpop.permute.xlu0 %830
        %833 = vset.pattern.permute.xlu0 1
        %834 = vperm.xlu0 %833, %v181
        %v835 = vpop.permute.xlu0 %834
        %837 = vset.pattern.permute.xlu0 1
        %838 = vperm.xlu0 %837, %v182
        %v839 = vpop.permute.xlu0 %838
        %841 = vset.pattern.permute.xlu0 1
        %842 = vperm.xlu0 %841, %v183
        %v843 = vpop.permute.xlu0 %842
        %845 = vset.pattern.permute.xlu0 1
        %846 = vperm.xlu0 %845, %v184
        %v847 = vpop.permute.xlu0 %846
        %849 = vset.pattern.permute.xlu0 1
        %850 = vperm.xlu0 %849, %v185
        %v851 = vpop.permute.xlu0 %850
        %v853 = vperm.slane %v188, 1
        %v854 = vsub.f32 %v823, %v853
        %v855 = vsub.f32 %v827, %v853
        %v856 = vsub.f32 %v831, %v853
        %v857 = vsub.f32 %v835, %v853
        %v858 = vsub.f32 %v839, %v853
        %v859 = vsub.f32 %v843, %v853
        %v860 = vsub.f32 %v847, %v853
        %v861 = vsub.f32 %v851, %v853
        %862 = vset.pattern.permute.xlu0 2
        %863 = vperm.xlu0 %862, %v178
        %v864 = vpop.permute.xlu0 %863
        %866 = vset.pattern.permute.xlu0 2
        %867 = vperm.xlu0 %866, %v179
        %v868 = vpop.permute.xlu0 %867
        %870 = vset.pattern.permute.xlu0 2
        %871 = vperm.xlu0 %870, %v180
        %v872 = vpop.permute.xlu0 %871
        %874 = vset.pattern.permute.xlu0 2
        %875 = vperm.xlu0 %874, %v181
        %v876 = vpop.permute.xlu0 %875
        %878 = vset.pattern.permute.xlu0 2
        %879 = vperm.xlu0 %878, %v182
        %v880 = vpop.permute.xlu0 %879
        %882 = vset.pattern.permute.xlu0 2
        %883 = vperm.xlu0 %882, %v183
        %v884 = vpop.permute.xlu0 %883
        %886 = vset.pattern.permute.xlu0 2
        %887 = vperm.xlu0 %886, %v184
        %v888 = vpop.permute.xlu0 %887
        %890 = vset.pattern.permute.xlu0 2
        %891 = vperm.xlu0 %890, %v185
        %v892 = vpop.permute.xlu0 %891
        %v894 = vperm.slane %v188, 2
        %v895 = vsub.f32 %v864, %v894
        %v896 = vsub.f32 %v868, %v894
        %v897 = vsub.f32 %v872, %v894
        %v898 = vsub.f32 %v876, %v894
        %v899 = vsub.f32 %v880, %v894
        %v900 = vsub.f32 %v884, %v894
        %v901 = vsub.f32 %v888, %v894
        %v902 = vsub.f32 %v892, %v894
        %v903 = vmul.f32 %v813, %v813
        %v904 = vmul.f32 %v814, %v814
        %v905 = vmul.f32 %v815, %v815
        %v906 = vmul.f32 %v816, %v816
        %v907 = vmul.f32 %v817, %v817
        %v908 = vmul.f32 %v818, %v818
        %v909 = vmul.f32 %v819, %v819
        %v910 = vmul.f32 %v820, %v820
        %v911 = vmul.f32 %v854, %v854
        %v912 = vmul.f32 %v855, %v855
        %v913 = vmul.f32 %v856, %v856
        %v914 = vmul.f32 %v857, %v857
        %v915 = vmul.f32 %v858, %v858
        %v916 = vmul.f32 %v859, %v859
        %v917 = vmul.f32 %v860, %v860
        %v918 = vmul.f32 %v861, %v861
        %v919 = vadd.f32 %v903, %v911
        %v920 = vadd.f32 %v904, %v912
        %v921 = vadd.f32 %v905, %v913
        %v922 = vadd.f32 %v906, %v914
        %v923 = vadd.f32 %v907, %v915
        %v924 = vadd.f32 %v908, %v916
        %v925 = vadd.f32 %v909, %v917
        %v926 = vadd.f32 %v910, %v918
        %v927 = vmul.f32 %v895, %v895
        %v928 = vmul.f32 %v896, %v896
        %v929 = vmul.f32 %v897, %v897
        %v930 = vmul.f32 %v898, %v898
        %v931 = vmul.f32 %v899, %v899
        %v932 = vmul.f32 %v900, %v900
        %v933 = vmul.f32 %v901, %v901
        %v934 = vmul.f32 %v902, %v902
        %v935 = vadd.f32 %v919, %v927
        %v936 = vadd.f32 %v920, %v928
        %v937 = vadd.f32 %v921, %v929
        %v938 = vadd.f32 %v922, %v930
        %v939 = vadd.f32 %v923, %v931
        %v940 = vadd.f32 %v924, %v932
        %v941 = vadd.f32 %v925, %v933
        %v942 = vadd.f32 %v926, %v934
        %v943 = vsel %vm716, %v935, 0.0
        %v944 = vsel %vm717, %v936, 0.0
        %v945 = vsel %vm718, %v937, 0.0
        %v946 = vsel %vm719, %v938, 0.0
        %v947 = vsel %vm720, %v939, 0.0
        %v948 = vsel %vm721, %v940, 0.0
        %v949 = vsel %vm722, %v941, 0.0
        %v950 = vsel %vm723, %v942, 0.0
        %v951 = vrsqrt.pop %v943
        %v952 = vmul.f32 %v951, %v943
        %v953 = vmul.f32 %v952, %v951
        %v954 = vmul.f32 0.5, %v953
        %v955 = vsub.f32 1.5, %v954
        %v956 = vmul.f32 %v951, %v955
        %v957 = vmul.f32 %v943, %v956
        %vm958 = vcmp.eq.f32.partialorder %v943, inf
        %v959 = vsel %vm958, %v943, %v957
        %vm960 = vcmp.eq.f32.partialorder %v943, 0.0
        %v961 = vand.u32 %v943, 2147483648
        %v962 = vsel %vm960, %v961, %v959
        %v963 = vrsqrt.pop %v944
        %v964 = vmul.f32 %v963, %v944
        %v965 = vmul.f32 %v964, %v963
        %v966 = vmul.f32 0.5, %v965
        %v967 = vsub.f32 1.5, %v966
        %v968 = vmul.f32 %v963, %v967
        %v969 = vmul.f32 %v944, %v968
        %vm970 = vcmp.eq.f32.partialorder %v944, inf
        %v971 = vsel %vm970, %v944, %v969
        %vm972 = vcmp.eq.f32.partialorder %v944, 0.0
        %v973 = vand.u32 %v944, 2147483648
        %v974 = vsel %vm972, %v973, %v971
        %v975 = vrsqrt.pop %v945
        %v976 = vmul.f32 %v975, %v945
        %v977 = vmul.f32 %v976, %v975
        %v978 = vmul.f32 0.5, %v977
        %v979 = vsub.f32 1.5, %v978
        %v980 = vmul.f32 %v975, %v979
        %v981 = vmul.f32 %v945, %v980
        %vm982 = vcmp.eq.f32.partialorder %v945, inf
        %v983 = vsel %vm982, %v945, %v981
        %vm984 = vcmp.eq.f32.partialorder %v945, 0.0
        %v985 = vand.u32 %v945, 2147483648
        %v986 = vsel %vm984, %v985, %v983
        %v987 = vrsqrt.pop %v946
        %v988 = vmul.f32 %v987, %v946
        %v989 = vmul.f32 %v988, %v987
        %v990 = vmul.f32 0.5, %v989
        %v991 = vsub.f32 1.5, %v990
        %v992 = vmul.f32 %v987, %v991
        %v993 = vmul.f32 %v946, %v992
        %vm994 = vcmp.eq.f32.partialorder %v946, inf
        %v995 = vsel %vm994, %v946, %v993
        %vm996 = vcmp.eq.f32.partialorder %v946, 0.0
        %v997 = vand.u32 %v946, 2147483648
        %v998 = vsel %vm996, %v997, %v995
        %v999 = vrsqrt.pop %v947
        %v1000 = vmul.f32 %v999, %v947
        %v1001 = vmul.f32 %v1000, %v999
        %v1002 = vmul.f32 0.5, %v1001
        %v1003 = vsub.f32 1.5, %v1002
        %v1004 = vmul.f32 %v999, %v1003
        %v1005 = vmul.f32 %v947, %v1004
        %vm1006 = vcmp.eq.f32.partialorder %v947, inf
        %v1007 = vsel %vm1006, %v947, %v1005
        %vm1008 = vcmp.eq.f32.partialorder %v947, 0.0
        %v1009 = vand.u32 %v947, 2147483648
        %v1010 = vsel %vm1008, %v1009, %v1007
        %v1011 = vrsqrt.pop %v948
        %v1012 = vmul.f32 %v1011, %v948
        %v1013 = vmul.f32 %v1012, %v1011
        %v1014 = vmul.f32 0.5, %v1013
        %v1015 = vsub.f32 1.5, %v1014
        %v1016 = vmul.f32 %v1011, %v1015
        %v1017 = vmul.f32 %v948, %v1016
        %vm1018 = vcmp.eq.f32.partialorder %v948, inf
        %v1019 = vsel %vm1018, %v948, %v1017
        %vm1020 = vcmp.eq.f32.partialorder %v948, 0.0
        %v1021 = vand.u32 %v948, 2147483648
        %v1022 = vsel %vm1020, %v1021, %v1019
        %v1023 = vrsqrt.pop %v949
        %v1024 = vmul.f32 %v1023, %v949
        %v1025 = vmul.f32 %v1024, %v1023
        %v1026 = vmul.f32 0.5, %v1025
        %v1027 = vsub.f32 1.5, %v1026
        %v1028 = vmul.f32 %v1023, %v1027
        %v1029 = vmul.f32 %v949, %v1028
        %vm1030 = vcmp.eq.f32.partialorder %v949, inf
        %v1031 = vsel %vm1030, %v949, %v1029
        %vm1032 = vcmp.eq.f32.partialorder %v949, 0.0
        %v1033 = vand.u32 %v949, 2147483648
        %v1034 = vsel %vm1032, %v1033, %v1031
        %v1035 = vrsqrt.pop %v950
        %v1036 = vmul.f32 %v1035, %v950
        %v1037 = vmul.f32 %v1036, %v1035
        %v1038 = vmul.f32 0.5, %v1037
        %v1039 = vsub.f32 1.5, %v1038
        %v1040 = vmul.f32 %v1035, %v1039
        %v1041 = vmul.f32 %v950, %v1040
        %vm1042 = vcmp.eq.f32.partialorder %v950, inf
        %v1043 = vsel %vm1042, %v950, %v1041
        %vm1044 = vcmp.eq.f32.partialorder %v950, 0.0
        %v1045 = vand.u32 %v950, 2147483648
        %v1046 = vsel %vm1044, %v1045, %v1043
        %v1047 = vsel %vm361, %v962, 0.0
        %v1048 = vsel %vm361, %v974, 0.0
        %v1049 = vadd.f32 %v1047, %v1048
        %v1050 = vsel %vm361, %v986, 0.0
        %v1051 = vadd.f32 %v1049, %v1050
        %v1052 = vsel %vm361, %v998, 0.0
        %v1053 = vadd.f32 %v1051, %v1052
        %v1054 = vsel %vm361, %v1010, 0.0
        %v1055 = vadd.f32 %v1053, %v1054
        %v1056 = vsel %vm361, %v1022, 0.0
        %v1057 = vadd.f32 %v1055, %v1056
        %v1058 = vsel %vm361, %v1034, 0.0
        %v1059 = vadd.f32 %v1057, %v1058
        %v1060 = vsel %vm361, %v1046, 0.0
        %v1061 = vadd.f32 %v1059, %v1060
        %1062 = vadd.xlane.f32.xlu0 %v1061
        %v1063 = vpop.xlane.xlu0 %1062
        %v1064 = vrot.slane %v1063, 4
        %v1065 = vadd.f32 %v1063, %v1064
        %v1066 = vrot.slane %v1065, 2
        %v1067 = vadd.f32 %v1065, %v1066
        %v1068 = vrot.slane %v1067, 1
        %v1069 = vadd.f32 %v1067, %v1068
        %s1070 = vtos %v1069
        %v1071 = vstv %s1070
        %v1072 = vmul.f32 %v1071, 0.125
        %1074 = vset.pattern.permute.xlu0 0
        %1075 = vperm.xlu0 %1074, %v170
        %v1076 = vpop.permute.xlu0 %1075
        %1079 = vset.pattern.permute.xlu0 0
        %1080 = vperm.xlu0 %1079, %v171
        %v1081 = vpop.permute.xlu0 %1080
        %1084 = vset.pattern.permute.xlu0 0
        %1085 = vperm.xlu0 %1084, %v172
        %v1086 = vpop.permute.xlu0 %1085
        %1089 = vset.pattern.permute.xlu0 0
        %1090 = vperm.xlu0 %1089, %v173
        %v1091 = vpop.permute.xlu0 %1090
        %1094 = vset.pattern.permute.xlu0 0
        %1095 = vperm.xlu0 %1094, %v174
        %v1096 = vpop.permute.xlu0 %1095
        %1099 = vset.pattern.permute.xlu0 0
        %1100 = vperm.xlu0 %1099, %v175
        %v1101 = vpop.permute.xlu0 %1100
        %1104 = vset.pattern.permute.xlu0 0
        %1105 = vperm.xlu0 %1104, %v176
        %v1106 = vpop.permute.xlu0 %1105
        %1109 = vset.pattern.permute.xlu0 0
        %1110 = vperm.xlu0 %1109, %v177
        %v1111 = vpop.permute.xlu0 %1110
        %v1113 = vperm.slane %v189, 0
        %v1114 = vsub.f32 %v1076, %v1113
        %v1115 = vsub.f32 %v1081, %v1113
        %v1116 = vsub.f32 %v1086, %v1113
        %v1117 = vsub.f32 %v1091, %v1113
        %v1118 = vsub.f32 %v1096, %v1113
        %v1119 = vsub.f32 %v1101, %v1113
        %v1120 = vsub.f32 %v1106, %v1113
        %v1121 = vsub.f32 %v1111, %v1113
        %1122 = vset.pattern.permute.xlu0 1
        %1123 = vperm.xlu0 %1122, %v170
        %v1124 = vpop.permute.xlu0 %1123
        %1126 = vset.pattern.permute.xlu0 1
        %1127 = vperm.xlu0 %1126, %v171
        %v1128 = vpop.permute.xlu0 %1127
        %1130 = vset.pattern.permute.xlu0 1
        %1131 = vperm.xlu0 %1130, %v172
        %v1132 = vpop.permute.xlu0 %1131
        %1134 = vset.pattern.permute.xlu0 1
        %1135 = vperm.xlu0 %1134, %v173
        %v1136 = vpop.permute.xlu0 %1135
        %1138 = vset.pattern.permute.xlu0 1
        %1139 = vperm.xlu0 %1138, %v174
        %v1140 = vpop.permute.xlu0 %1139
        %1142 = vset.pattern.permute.xlu0 1
        %1143 = vperm.xlu0 %1142, %v175
        %v1144 = vpop.permute.xlu0 %1143
        %1146 = vset.pattern.permute.xlu0 1
        %1147 = vperm.xlu0 %1146, %v176
        %v1148 = vpop.permute.xlu0 %1147
        %1150 = vset.pattern.permute.xlu0 1
        %1151 = vperm.xlu0 %1150, %v177
        %v1152 = vpop.permute.xlu0 %1151
        %v1154 = vperm.slane %v189, 1
        %v1155 = vsub.f32 %v1124, %v1154
        %v1156 = vsub.f32 %v1128, %v1154
        %v1157 = vsub.f32 %v1132, %v1154
        %v1158 = vsub.f32 %v1136, %v1154
        %v1159 = vsub.f32 %v1140, %v1154
        %v1160 = vsub.f32 %v1144, %v1154
        %v1161 = vsub.f32 %v1148, %v1154
        %v1162 = vsub.f32 %v1152, %v1154
        %1163 = vset.pattern.permute.xlu0 2
        %1164 = vperm.xlu0 %1163, %v170
        %v1165 = vpop.permute.xlu0 %1164
        %1167 = vset.pattern.permute.xlu0 2
        %1168 = vperm.xlu0 %1167, %v171
        %v1169 = vpop.permute.xlu0 %1168
        %1171 = vset.pattern.permute.xlu0 2
        %1172 = vperm.xlu0 %1171, %v172
        %v1173 = vpop.permute.xlu0 %1172
        %1175 = vset.pattern.permute.xlu0 2
        %1176 = vperm.xlu0 %1175, %v173
        %v1177 = vpop.permute.xlu0 %1176
        %1179 = vset.pattern.permute.xlu0 2
        %1180 = vperm.xlu0 %1179, %v174
        %v1181 = vpop.permute.xlu0 %1180
        %1183 = vset.pattern.permute.xlu0 2
        %1184 = vperm.xlu0 %1183, %v175
        %v1185 = vpop.permute.xlu0 %1184
        %1187 = vset.pattern.permute.xlu0 2
        %1188 = vperm.xlu0 %1187, %v176
        %v1189 = vpop.permute.xlu0 %1188
        %1191 = vset.pattern.permute.xlu0 2
        %1192 = vperm.xlu0 %1191, %v177
        %v1193 = vpop.permute.xlu0 %1192
        %v1195 = vperm.slane %v189, 2
        %v1196 = vsub.f32 %v1165, %v1195
        %v1197 = vsub.f32 %v1169, %v1195
        %v1198 = vsub.f32 %v1173, %v1195
        %v1199 = vsub.f32 %v1177, %v1195
        %v1200 = vsub.f32 %v1181, %v1195
        %v1201 = vsub.f32 %v1185, %v1195
        %v1202 = vsub.f32 %v1189, %v1195
        %v1203 = vsub.f32 %v1193, %v1195
        %v1204 = vmul.f32 %v1114, %v1114
        %v1205 = vmul.f32 %v1115, %v1115
        %v1206 = vmul.f32 %v1116, %v1116
        %v1207 = vmul.f32 %v1117, %v1117
        %v1208 = vmul.f32 %v1118, %v1118
        %v1209 = vmul.f32 %v1119, %v1119
        %v1210 = vmul.f32 %v1120, %v1120
        %v1211 = vmul.f32 %v1121, %v1121
        %v1212 = vmul.f32 %v1155, %v1155
        %v1213 = vmul.f32 %v1156, %v1156
        %v1214 = vmul.f32 %v1157, %v1157
        %v1215 = vmul.f32 %v1158, %v1158
        %v1216 = vmul.f32 %v1159, %v1159
        %v1217 = vmul.f32 %v1160, %v1160
        %v1218 = vmul.f32 %v1161, %v1161
        %v1219 = vmul.f32 %v1162, %v1162
        %v1220 = vadd.f32 %v1204, %v1212
        %v1221 = vadd.f32 %v1205, %v1213
        %v1222 = vadd.f32 %v1206, %v1214
        %v1223 = vadd.f32 %v1207, %v1215
        %v1224 = vadd.f32 %v1208, %v1216
        %v1225 = vadd.f32 %v1209, %v1217
        %v1226 = vadd.f32 %v1210, %v1218
        %v1227 = vadd.f32 %v1211, %v1219
        %v1228 = vmul.f32 %v1196, %v1196
        %v1229 = vmul.f32 %v1197, %v1197
        %v1230 = vmul.f32 %v1198, %v1198
        %v1231 = vmul.f32 %v1199, %v1199
        %v1232 = vmul.f32 %v1200, %v1200
        %v1233 = vmul.f32 %v1201, %v1201
        %v1234 = vmul.f32 %v1202, %v1202
        %v1235 = vmul.f32 %v1203, %v1203
        %v1236 = vadd.f32 %v1220, %v1228
        %v1237 = vadd.f32 %v1221, %v1229
        %v1238 = vadd.f32 %v1222, %v1230
        %v1239 = vadd.f32 %v1223, %v1231
        %v1240 = vadd.f32 %v1224, %v1232
        %v1241 = vadd.f32 %v1225, %v1233
        %v1242 = vadd.f32 %v1226, %v1234
        %v1243 = vadd.f32 %v1227, %v1235
        %v1244 = vsel %vm361, %v1236, inf
        %v1245 = vsel %vm361, %v1237, inf
        %v1246 = vsel %vm361, %v1238, inf
        %v1247 = vsel %vm361, %v1239, inf
        %v1248 = vsel %vm361, %v1240, inf
        %v1249 = vmin.f32 %v1244, %v1248
        %v1250 = vsel %vm361, %v1241, inf
        %v1251 = vmin.f32 %v1245, %v1250
        %v1252 = vsel %vm361, %v1242, inf
        %v1253 = vmin.f32 %v1246, %v1252
        %v1254 = vsel %vm361, %v1243, inf
        %v1255 = vmin.f32 %v1247, %v1254
        %v1256 = vmin.f32 %v1249, %v1251
        %v1257 = vmin.f32 %v1253, %v1255
        %v1258 = vmin.f32 %v1256, %v1257
        %v1259 = vrot.slane %v1258, 4
        %v1260 = vmin.f32 %v1258, %v1259
        %v1261 = vrot.slane %v1260, 2
        %v1262 = vmin.f32 %v1260, %v1261
        %v1263 = vrot.slane %v1262, 1
        %v1264 = vmin.f32 %v1262, %v1263
        %vm1265 = vcmp.le.f32.partialorder %v1236, %v1264
        %vm1266 = vcmp.le.f32.partialorder %v1237, %v1264
        %vm1267 = vcmp.le.f32.partialorder %v1238, %v1264
        %vm1268 = vcmp.le.f32.partialorder %v1239, %v1264
        %vm1269 = vcmp.le.f32.partialorder %v1240, %v1264
        %vm1270 = vcmp.le.f32.partialorder %v1241, %v1264
        %vm1271 = vcmp.le.f32.partialorder %v1242, %v1264
        %vm1272 = vcmp.le.f32.partialorder %v1243, %v1264
        %v1273 = vsel %vm1265, 1e+30, %v1236
        %v1274 = vsel %vm1266, 1e+30, %v1237
        %v1275 = vsel %vm1267, 1e+30, %v1238
        %v1276 = vsel %vm1268, 1e+30, %v1239
        %v1277 = vsel %vm1269, 1e+30, %v1240
        %v1278 = vsel %vm1270, 1e+30, %v1241
        %v1279 = vsel %vm1271, 1e+30, %v1242
        %v1280 = vsel %vm1272, 1e+30, %v1243
        %v1281 = vsel %vm361, %v1273, inf
        %v1282 = vsel %vm361, %v1274, inf
        %v1283 = vsel %vm361, %v1275, inf
        %v1284 = vsel %vm361, %v1276, inf
        %v1285 = vsel %vm361, %v1277, inf
        %v1286 = vmin.f32 %v1281, %v1285
        %v1287 = vsel %vm361, %v1278, inf
        %v1288 = vmin.f32 %v1282, %v1287
        %v1289 = vsel %vm361, %v1279, inf
        %v1290 = vmin.f32 %v1283, %v1289
        %v1291 = vsel %vm361, %v1280, inf
        %v1292 = vmin.f32 %v1284, %v1291
        %v1293 = vmin.f32 %v1286, %v1288
        %v1294 = vmin.f32 %v1290, %v1292
        %v1295 = vmin.f32 %v1293, %v1294
        %v1296 = vrot.slane %v1295, 4
        %v1297 = vmin.f32 %v1295, %v1296
        %v1298 = vrot.slane %v1297, 2
        %v1299 = vmin.f32 %v1297, %v1298
        %v1300 = vrot.slane %v1299, 1
        %v1301 = vmin.f32 %v1299, %v1300
        %vm1302 = vcmp.le.f32.partialorder %v1273, %v1301
        %vm1303 = vcmp.le.f32.partialorder %v1274, %v1301
        %vm1304 = vcmp.le.f32.partialorder %v1275, %v1301
        %vm1305 = vcmp.le.f32.partialorder %v1276, %v1301
        %vm1306 = vcmp.le.f32.partialorder %v1277, %v1301
        %vm1307 = vcmp.le.f32.partialorder %v1278, %v1301
        %vm1308 = vcmp.le.f32.partialorder %v1279, %v1301
        %vm1309 = vcmp.le.f32.partialorder %v1280, %v1301
        %v1310 = vsel %vm1302, 1e+30, %v1273
        %v1311 = vsel %vm1303, 1e+30, %v1274
        %v1312 = vsel %vm1304, 1e+30, %v1275
        %v1313 = vsel %vm1305, 1e+30, %v1276
        %v1314 = vsel %vm1306, 1e+30, %v1277
        %v1315 = vsel %vm1307, 1e+30, %v1278
        %v1316 = vsel %vm1308, 1e+30, %v1279
        %v1317 = vsel %vm1309, 1e+30, %v1280
        %v1318 = vsel %vm361, %v1310, inf
        %v1319 = vsel %vm361, %v1311, inf
        %v1320 = vsel %vm361, %v1312, inf
        %v1321 = vsel %vm361, %v1313, inf
        %v1322 = vsel %vm361, %v1314, inf
        %v1323 = vmin.f32 %v1318, %v1322
        %v1324 = vsel %vm361, %v1315, inf
        %v1325 = vmin.f32 %v1319, %v1324
        %v1326 = vsel %vm361, %v1316, inf
        %v1327 = vmin.f32 %v1320, %v1326
        %v1328 = vsel %vm361, %v1317, inf
        %v1329 = vmin.f32 %v1321, %v1328
        %v1330 = vmin.f32 %v1323, %v1325
        %v1331 = vmin.f32 %v1327, %v1329
        %v1332 = vmin.f32 %v1330, %v1331
        %v1333 = vrot.slane %v1332, 4
        %v1334 = vmin.f32 %v1332, %v1333
        %v1335 = vrot.slane %v1334, 2
        %v1336 = vmin.f32 %v1334, %v1335
        %v1337 = vrot.slane %v1336, 1
        %v1338 = vmin.f32 %v1336, %v1337
        %vm1339 = vcmp.le.f32.partialorder %v1310, %v1338
        %vm1340 = vcmp.le.f32.partialorder %v1311, %v1338
        %vm1341 = vcmp.le.f32.partialorder %v1312, %v1338
        %vm1342 = vcmp.le.f32.partialorder %v1313, %v1338
        %vm1343 = vcmp.le.f32.partialorder %v1314, %v1338
        %vm1344 = vcmp.le.f32.partialorder %v1315, %v1338
        %vm1345 = vcmp.le.f32.partialorder %v1316, %v1338
        %vm1346 = vcmp.le.f32.partialorder %v1317, %v1338
        %v1347 = vsel %vm1339, 1e+30, %v1310
        %v1348 = vsel %vm1340, 1e+30, %v1311
        %v1349 = vsel %vm1341, 1e+30, %v1312
        %v1350 = vsel %vm1342, 1e+30, %v1313
        %v1351 = vsel %vm1343, 1e+30, %v1314
        %v1352 = vsel %vm1344, 1e+30, %v1315
        %v1353 = vsel %vm1345, 1e+30, %v1316
        %v1354 = vsel %vm1346, 1e+30, %v1317
        %v1355 = vsel %vm361, %v1347, inf
        %v1356 = vsel %vm361, %v1348, inf
        %v1357 = vsel %vm361, %v1349, inf
        %v1358 = vsel %vm361, %v1350, inf
        %v1359 = vsel %vm361, %v1351, inf
        %v1360 = vmin.f32 %v1355, %v1359
        %v1361 = vsel %vm361, %v1352, inf
        %v1362 = vmin.f32 %v1356, %v1361
        %v1363 = vsel %vm361, %v1353, inf
        %v1364 = vmin.f32 %v1357, %v1363
        %v1365 = vsel %vm361, %v1354, inf
        %v1366 = vmin.f32 %v1358, %v1365
        %v1367 = vmin.f32 %v1360, %v1362
        %v1368 = vmin.f32 %v1364, %v1366
        %v1369 = vmin.f32 %v1367, %v1368
        %v1370 = vrot.slane %v1369, 4
        %v1371 = vmin.f32 %v1369, %v1370
        %v1372 = vrot.slane %v1371, 2
        %v1373 = vmin.f32 %v1371, %v1372
        %v1374 = vrot.slane %v1373, 1
        %v1375 = vmin.f32 %v1373, %v1374
        %vm1376 = vcmp.le.f32.partialorder %v1347, %v1375
        %vm1377 = vcmp.le.f32.partialorder %v1348, %v1375
        %vm1378 = vcmp.le.f32.partialorder %v1349, %v1375
        %vm1379 = vcmp.le.f32.partialorder %v1350, %v1375
        %vm1380 = vcmp.le.f32.partialorder %v1351, %v1375
        %vm1381 = vcmp.le.f32.partialorder %v1352, %v1375
        %vm1382 = vcmp.le.f32.partialorder %v1353, %v1375
        %vm1383 = vcmp.le.f32.partialorder %v1354, %v1375
        %v1384 = vsel %vm1376, 1e+30, %v1347
        %v1385 = vsel %vm1377, 1e+30, %v1348
        %v1386 = vsel %vm1378, 1e+30, %v1349
        %v1387 = vsel %vm1379, 1e+30, %v1350
        %v1388 = vsel %vm1380, 1e+30, %v1351
        %v1389 = vsel %vm1381, 1e+30, %v1352
        %v1390 = vsel %vm1382, 1e+30, %v1353
        %v1391 = vsel %vm1383, 1e+30, %v1354
        %v1392 = vsel %vm361, %v1384, inf
        %v1393 = vsel %vm361, %v1385, inf
        %v1394 = vsel %vm361, %v1386, inf
        %v1395 = vsel %vm361, %v1387, inf
        %v1396 = vsel %vm361, %v1388, inf
        %v1397 = vmin.f32 %v1392, %v1396
        %v1398 = vsel %vm361, %v1389, inf
        %v1399 = vmin.f32 %v1393, %v1398
        %v1400 = vsel %vm361, %v1390, inf
        %v1401 = vmin.f32 %v1394, %v1400
        %v1402 = vsel %vm361, %v1391, inf
        %v1403 = vmin.f32 %v1395, %v1402
        %v1404 = vmin.f32 %v1397, %v1399
        %v1405 = vmin.f32 %v1401, %v1403
        %v1406 = vmin.f32 %v1404, %v1405
        %v1407 = vrot.slane %v1406, 4
        %v1408 = vmin.f32 %v1406, %v1407
        %v1409 = vrot.slane %v1408, 2
        %v1410 = vmin.f32 %v1408, %v1409
        %v1411 = vrot.slane %v1410, 1
        %v1412 = vmin.f32 %v1410, %v1411
        %1413 = vmin.xlane.f32.xlu0 %v1244
        %v1414 = vpop.xlane.xlu0 %1413
        %1415 = vmin.xlane.f32.xlu0 %v1245
        %v1416 = vpop.xlane.xlu0 %1415
        %1417 = vmin.xlane.f32.xlu0 %v1246
        %v1418 = vpop.xlane.xlu0 %1417
        %1419 = vmin.xlane.f32.xlu0 %v1247
        %v1420 = vpop.xlane.xlu0 %1419
        %1421 = vmin.xlane.f32.xlu0 %v1248
        %v1422 = vpop.xlane.xlu0 %1421
        %1423 = vmin.xlane.f32.xlu0 %v1250
        %v1424 = vpop.xlane.xlu0 %1423
        %1425 = vmin.xlane.f32.xlu0 %v1252
        %v1426 = vpop.xlane.xlu0 %1425
        %1427 = vmin.xlane.f32.xlu0 %v1254
        %v1428 = vpop.xlane.xlu0 %1427
        %vm1429 = vcmask 516096
        %v1430 = vsel %vm1429, %v1264, 0.0
        %1431 = vadd.xlane.f32.xlu0 %v1430
        %v1432 = vpop.xlane.xlu0 %1431
        %v1433 = vrot.slane %v1432, 4
        %v1434 = vadd.f32 %v1432, %v1433
        %v1435 = vrot.slane %v1434, 2
        %v1436 = vadd.f32 %v1434, %v1435
        %v1437 = vrot.slane %v1436, 1
        %v1438 = vadd.f32 %v1436, %v1437
        %s1439 = vtos %v1438
        %v1440 = vstv %s1439
        %vm1441 = vcmask 7168
        %v1442 = vsel %vm1441, %v1414, 0.0
        %v1443 = vsel %vm1441, %v1416, 0.0
        %v1444 = vadd.f32 %v1442, %v1443
        %v1445 = vsel %vm1441, %v1418, 0.0
        %v1446 = vadd.f32 %v1444, %v1445
        %v1447 = vsel %vm1441, %v1420, 0.0
        %v1448 = vadd.f32 %v1446, %v1447
        %v1449 = vsel %vm1441, %v1422, 0.0
        %v1450 = vadd.f32 %v1448, %v1449
        %v1451 = vsel %vm1441, %v1424, 0.0
        %v1452 = vadd.f32 %v1450, %v1451
        %v1453 = vsel %vm1441, %v1426, 0.0
        %v1454 = vadd.f32 %v1452, %v1453
        %v1455 = vsel %vm1441, %v1428, 0.0
        %v1456 = vadd.f32 %v1454, %v1455
        %1457 = vadd.xlane.f32.xlu0 %v1456
        %v1458 = vpop.xlane.xlu0 %1457
        %v1459 = vrot.slane %v1458, 4
        %v1460 = vadd.f32 %v1458, %v1459
        %v1461 = vrot.slane %v1460, 2
        %v1462 = vadd.f32 %v1460, %v1461
        %v1463 = vrot.slane %v1462, 1
        %v1464 = vadd.f32 %v1462, %v1463
        %s1465 = vtos %v1464
        %v1466 = vstv %s1465
        %v1467 = vadd.f32 %v1440, %v1466
        %vm1468 = vcmp.le.f32.partialorder %v1236, %v1412
        %vm1469 = vcmp.le.f32.partialorder %v1237, %v1412
        %vm1470 = vcmp.le.f32.partialorder %v1238, %v1412
        %vm1471 = vcmp.le.f32.partialorder %v1239, %v1412
        %vm1472 = vcmp.le.f32.partialorder %v1240, %v1412
        %vm1473 = vcmp.le.f32.partialorder %v1241, %v1412
        %vm1474 = vcmp.le.f32.partialorder %v1242, %v1412
        %vm1475 = vcmp.le.f32.partialorder %v1243, %v1412
        %v1476 = vadd.f32 %v1236, 1e-08
        %v1477 = vadd.f32 %v1237, 1e-08
        %v1478 = vadd.f32 %v1238, 1e-08
        %v1479 = vadd.f32 %v1239, 1e-08
        %v1480 = vadd.f32 %v1240, 1e-08
        %v1481 = vadd.f32 %v1241, 1e-08
        %v1482 = vadd.f32 %v1242, 1e-08
        %v1483 = vadd.f32 %v1243, 1e-08
        %v1484 = vrcp.pop %v1476
        %v1485 = vrcp.pop %v1477
        %v1486 = vrcp.pop %v1478
        %v1487 = vrcp.pop %v1479
        %v1488 = vrcp.pop %v1480
        %v1489 = vrcp.pop %v1481
        %v1490 = vrcp.pop %v1482
        %v1491 = vrcp.pop %v1483
        %v1492 = vsel %vm1468, %v1484, 0.0
        %v1493 = vsel %vm1469, %v1485, 0.0
        %v1494 = vsel %vm1470, %v1486, 0.0
        %v1495 = vsel %vm1471, %v1487, 0.0
        %v1496 = vsel %vm1472, %v1488, 0.0
        %v1497 = vsel %vm1473, %v1489, 0.0
        %v1498 = vsel %vm1474, %v1490, 0.0
        %v1499 = vsel %vm1475, %v1491, 0.0
        %v1500 = vsel %vm361, %v1492, 0.0
        %v1501 = vsel %vm361, %v1493, 0.0
        %v1502 = vadd.f32 %v1500, %v1501
        %v1503 = vsel %vm361, %v1494, 0.0
        %v1504 = vadd.f32 %v1502, %v1503
        %v1505 = vsel %vm361, %v1495, 0.0
        %v1506 = vadd.f32 %v1504, %v1505
        %v1507 = vsel %vm361, %v1496, 0.0
        %v1508 = vadd.f32 %v1506, %v1507
        %v1509 = vsel %vm361, %v1497, 0.0
        %v1510 = vadd.f32 %v1508, %v1509
        %v1511 = vsel %vm361, %v1498, 0.0
        %v1512 = vadd.f32 %v1510, %v1511
        %v1513 = vsel %vm361, %v1499, 0.0
        %v1514 = vadd.f32 %v1512, %v1513
        %v1515 = vrot.slane %v1514, 4
        %v1516 = vadd.f32 %v1514, %v1515
        %v1517 = vrot.slane %v1516, 2
        %v1518 = vadd.f32 %v1516, %v1517
        %v1519 = vrot.slane %v1518, 1
        %v1520 = vadd.f32 %v1518, %v1519
        %v1521 = vpack.c.bf16 %v1493, %v1492
        %v1522 = vpack.c.bf16 %v1495, %v1494
        %v1523 = vpack.c.bf16 %v1497, %v1496
        %v1524 = vpack.c.bf16 %v1499, %v1498
        %v1525 = vperm.slane %v187, 0
        %v1526 = vsub.f32 %v1076, %v1525
        %v1527 = vsub.f32 %v1081, %v1525
        %v1528 = vsub.f32 %v1086, %v1525
        %v1529 = vsub.f32 %v1091, %v1525
        %v1530 = vsub.f32 %v1096, %v1525
        %v1531 = vsub.f32 %v1101, %v1525
        %v1532 = vsub.f32 %v1106, %v1525
        %v1533 = vsub.f32 %v1111, %v1525
        %v1534 = vperm.slane %v187, 1
        %v1535 = vsub.f32 %v1124, %v1534
        %v1536 = vsub.f32 %v1128, %v1534
        %v1537 = vsub.f32 %v1132, %v1534
        %v1538 = vsub.f32 %v1136, %v1534
        %v1539 = vsub.f32 %v1140, %v1534
        %v1540 = vsub.f32 %v1144, %v1534
        %v1541 = vsub.f32 %v1148, %v1534
        %v1542 = vsub.f32 %v1152, %v1534
        %v1543 = vperm.slane %v187, 2
        %v1544 = vsub.f32 %v1165, %v1543
        %v1545 = vsub.f32 %v1169, %v1543
        %v1546 = vsub.f32 %v1173, %v1543
        %v1547 = vsub.f32 %v1177, %v1543
        %v1548 = vsub.f32 %v1181, %v1543
        %v1549 = vsub.f32 %v1185, %v1543
        %v1550 = vsub.f32 %v1189, %v1543
        %v1551 = vsub.f32 %v1193, %v1543
        %v1552 = vmul.f32 %v1526, %v1526
        %v1553 = vmul.f32 %v1527, %v1527
        %v1554 = vmul.f32 %v1528, %v1528
        %v1555 = vmul.f32 %v1529, %v1529
        %v1556 = vmul.f32 %v1530, %v1530
        %v1557 = vmul.f32 %v1531, %v1531
        %v1558 = vmul.f32 %v1532, %v1532
        %v1559 = vmul.f32 %v1533, %v1533
        %v1560 = vmul.f32 %v1535, %v1535
        %v1561 = vmul.f32 %v1536, %v1536
        %v1562 = vmul.f32 %v1537, %v1537
        %v1563 = vmul.f32 %v1538, %v1538
        %v1564 = vmul.f32 %v1539, %v1539
        %v1565 = vmul.f32 %v1540, %v1540
        %v1566 = vmul.f32 %v1541, %v1541
        %v1567 = vmul.f32 %v1542, %v1542
        %v1568 = vadd.f32 %v1552, %v1560
        %v1569 = vadd.f32 %v1553, %v1561
        %v1570 = vadd.f32 %v1554, %v1562
        %v1571 = vadd.f32 %v1555, %v1563
        %v1572 = vadd.f32 %v1556, %v1564
        %v1573 = vadd.f32 %v1557, %v1565
        %v1574 = vadd.f32 %v1558, %v1566
        %v1575 = vadd.f32 %v1559, %v1567
        %v1576 = vmul.f32 %v1544, %v1544
        %v1577 = vmul.f32 %v1545, %v1545
        %v1578 = vmul.f32 %v1546, %v1546
        %v1579 = vmul.f32 %v1547, %v1547
        %v1580 = vmul.f32 %v1548, %v1548
        %v1581 = vmul.f32 %v1549, %v1549
        %v1582 = vmul.f32 %v1550, %v1550
        %v1583 = vmul.f32 %v1551, %v1551
        %v1584 = vadd.f32 %v1568, %v1576
        %v1585 = vadd.f32 %v1569, %v1577
        %v1586 = vadd.f32 %v1570, %v1578
        %v1587 = vadd.f32 %v1571, %v1579
        %v1588 = vadd.f32 %v1572, %v1580
        %v1589 = vadd.f32 %v1573, %v1581
        %v1590 = vadd.f32 %v1574, %v1582
        %v1591 = vadd.f32 %v1575, %v1583
        %v1592 = vsel %vm361, %v1584, inf
        %v1593 = vsel %vm361, %v1585, inf
        %v1594 = vsel %vm361, %v1586, inf
        %v1595 = vsel %vm361, %v1587, inf
        %v1596 = vsel %vm361, %v1588, inf
        %v1597 = vmin.f32 %v1592, %v1596
        %v1598 = vsel %vm361, %v1589, inf
        %v1599 = vmin.f32 %v1593, %v1598
        %v1600 = vsel %vm361, %v1590, inf
        %v1601 = vmin.f32 %v1594, %v1600
        %v1602 = vsel %vm361, %v1591, inf
        %v1603 = vmin.f32 %v1595, %v1602
        %v1604 = vmin.f32 %v1597, %v1599
        %v1605 = vmin.f32 %v1601, %v1603
        %v1606 = vmin.f32 %v1604, %v1605
        %v1607 = vrot.slane %v1606, 4
        %v1608 = vmin.f32 %v1606, %v1607
        %v1609 = vrot.slane %v1608, 2
        %v1610 = vmin.f32 %v1608, %v1609
        %v1611 = vrot.slane %v1610, 1
        %v1612 = vmin.f32 %v1610, %v1611
        %vm1613 = vcmp.le.f32.partialorder %v1584, %v1612
        %vm1614 = vcmp.le.f32.partialorder %v1585, %v1612
        %vm1615 = vcmp.le.f32.partialorder %v1586, %v1612
        %vm1616 = vcmp.le.f32.partialorder %v1587, %v1612
        %vm1617 = vcmp.le.f32.partialorder %v1588, %v1612
        %vm1618 = vcmp.le.f32.partialorder %v1589, %v1612
        %vm1619 = vcmp.le.f32.partialorder %v1590, %v1612
        %vm1620 = vcmp.le.f32.partialorder %v1591, %v1612
        %v1621 = vsel %vm1613, 1e+30, %v1584
        %v1622 = vsel %vm1614, 1e+30, %v1585
        %v1623 = vsel %vm1615, 1e+30, %v1586
        %v1624 = vsel %vm1616, 1e+30, %v1587
        %v1625 = vsel %vm1617, 1e+30, %v1588
        %v1626 = vsel %vm1618, 1e+30, %v1589
        %v1627 = vsel %vm1619, 1e+30, %v1590
        %v1628 = vsel %vm1620, 1e+30, %v1591
        %v1629 = vsel %vm361, %v1621, inf
        %v1630 = vsel %vm361, %v1622, inf
        %v1631 = vsel %vm361, %v1623, inf
        %v1632 = vsel %vm361, %v1624, inf
        %v1633 = vsel %vm361, %v1625, inf
        %v1634 = vmin.f32 %v1629, %v1633
        %v1635 = vsel %vm361, %v1626, inf
        %v1636 = vmin.f32 %v1630, %v1635
        %v1637 = vsel %vm361, %v1627, inf
        %v1638 = vmin.f32 %v1631, %v1637
        %v1639 = vsel %vm361, %v1628, inf
        %v1640 = vmin.f32 %v1632, %v1639
        %v1641 = vmin.f32 %v1634, %v1636
        %v1642 = vmin.f32 %v1638, %v1640
        %v1643 = vmin.f32 %v1641, %v1642
        %v1644 = vrot.slane %v1643, 4
        %v1645 = vmin.f32 %v1643, %v1644
        %v1646 = vrot.slane %v1645, 2
        %v1647 = vmin.f32 %v1645, %v1646
        %v1648 = vrot.slane %v1647, 1
        %v1649 = vmin.f32 %v1647, %v1648
        %vm1650 = vcmp.le.f32.partialorder %v1621, %v1649
        %vm1651 = vcmp.le.f32.partialorder %v1622, %v1649
        %vm1652 = vcmp.le.f32.partialorder %v1623, %v1649
        %vm1653 = vcmp.le.f32.partialorder %v1624, %v1649
        %vm1654 = vcmp.le.f32.partialorder %v1625, %v1649
        %vm1655 = vcmp.le.f32.partialorder %v1626, %v1649
        %vm1656 = vcmp.le.f32.partialorder %v1627, %v1649
        %vm1657 = vcmp.le.f32.partialorder %v1628, %v1649
        %v1658 = vsel %vm1650, 1e+30, %v1621
        %v1659 = vsel %vm1651, 1e+30, %v1622
        %v1660 = vsel %vm1652, 1e+30, %v1623
        %v1661 = vsel %vm1653, 1e+30, %v1624
        %v1662 = vsel %vm1654, 1e+30, %v1625
        %v1663 = vsel %vm1655, 1e+30, %v1626
        %v1664 = vsel %vm1656, 1e+30, %v1627
        %v1665 = vsel %vm1657, 1e+30, %v1628
        %v1666 = vsel %vm361, %v1658, inf
        %v1667 = vsel %vm361, %v1659, inf
        %v1668 = vsel %vm361, %v1660, inf
        %v1669 = vsel %vm361, %v1661, inf
        %v1670 = vsel %vm361, %v1662, inf
        %v1671 = vmin.f32 %v1666, %v1670
        %v1672 = vsel %vm361, %v1663, inf
        %v1673 = vmin.f32 %v1667, %v1672
        %v1674 = vsel %vm361, %v1664, inf
        %v1675 = vmin.f32 %v1668, %v1674
        %v1676 = vsel %vm361, %v1665, inf
        %v1677 = vmin.f32 %v1669, %v1676
        %v1678 = vmin.f32 %v1671, %v1673
        %v1679 = vmin.f32 %v1675, %v1677
        %v1680 = vmin.f32 %v1678, %v1679
        %v1681 = vrot.slane %v1680, 4
        %v1682 = vmin.f32 %v1680, %v1681
        %v1683 = vrot.slane %v1682, 2
        %v1684 = vmin.f32 %v1682, %v1683
        %v1685 = vrot.slane %v1684, 1
        %v1686 = vmin.f32 %v1684, %v1685
        %vm1687 = vcmp.le.f32.partialorder %v1658, %v1686
        %vm1688 = vcmp.le.f32.partialorder %v1659, %v1686
        %vm1689 = vcmp.le.f32.partialorder %v1660, %v1686
        %vm1690 = vcmp.le.f32.partialorder %v1661, %v1686
        %vm1691 = vcmp.le.f32.partialorder %v1662, %v1686
        %vm1692 = vcmp.le.f32.partialorder %v1663, %v1686
        %vm1693 = vcmp.le.f32.partialorder %v1664, %v1686
        %vm1694 = vcmp.le.f32.partialorder %v1665, %v1686
        %v1695 = vsel %vm1687, 1e+30, %v1658
        %v1696 = vsel %vm1688, 1e+30, %v1659
        %v1697 = vsel %vm1689, 1e+30, %v1660
        %v1698 = vsel %vm1690, 1e+30, %v1661
        %v1699 = vsel %vm1691, 1e+30, %v1662
        %v1700 = vsel %vm1692, 1e+30, %v1663
        %v1701 = vsel %vm1693, 1e+30, %v1664
        %v1702 = vsel %vm1694, 1e+30, %v1665
        %v1703 = vsel %vm361, %v1695, inf
        %v1704 = vsel %vm361, %v1696, inf
        %v1705 = vsel %vm361, %v1697, inf
        %v1706 = vsel %vm361, %v1698, inf
        %v1707 = vsel %vm361, %v1699, inf
        %v1708 = vmin.f32 %v1703, %v1707
        %v1709 = vsel %vm361, %v1700, inf
        %v1710 = vmin.f32 %v1704, %v1709
        %v1711 = vsel %vm361, %v1701, inf
        %v1712 = vmin.f32 %v1705, %v1711
        %v1713 = vsel %vm361, %v1702, inf
        %v1714 = vmin.f32 %v1706, %v1713
        %v1715 = vmin.f32 %v1708, %v1710
        %v1716 = vmin.f32 %v1712, %v1714
        %v1717 = vmin.f32 %v1715, %v1716
        %v1718 = vrot.slane %v1717, 4
        %v1719 = vmin.f32 %v1717, %v1718
        %v1720 = vrot.slane %v1719, 2
        %v1721 = vmin.f32 %v1719, %v1720
        %v1722 = vrot.slane %v1721, 1
        %v1723 = vmin.f32 %v1721, %v1722
        %vm1724 = vcmp.le.f32.partialorder %v1695, %v1723
        %vm1725 = vcmp.le.f32.partialorder %v1696, %v1723
        %vm1726 = vcmp.le.f32.partialorder %v1697, %v1723
        %vm1727 = vcmp.le.f32.partialorder %v1698, %v1723
        %vm1728 = vcmp.le.f32.partialorder %v1699, %v1723
        %vm1729 = vcmp.le.f32.partialorder %v1700, %v1723
        %vm1730 = vcmp.le.f32.partialorder %v1701, %v1723
        %vm1731 = vcmp.le.f32.partialorder %v1702, %v1723
        %v1732 = vsel %vm1724, 1e+30, %v1695
        %v1733 = vsel %vm1725, 1e+30, %v1696
        %v1734 = vsel %vm1726, 1e+30, %v1697
        %v1735 = vsel %vm1727, 1e+30, %v1698
        %v1736 = vsel %vm1728, 1e+30, %v1699
        %v1737 = vsel %vm1729, 1e+30, %v1700
        %v1738 = vsel %vm1730, 1e+30, %v1701
        %v1739 = vsel %vm1731, 1e+30, %v1702
        %v1740 = vsel %vm361, %v1732, inf
        %v1741 = vsel %vm361, %v1733, inf
        %v1742 = vsel %vm361, %v1734, inf
        %v1743 = vsel %vm361, %v1735, inf
        %v1744 = vsel %vm361, %v1736, inf
        %v1745 = vmin.f32 %v1740, %v1744
        %v1746 = vsel %vm361, %v1737, inf
        %v1747 = vmin.f32 %v1741, %v1746
        %v1748 = vsel %vm361, %v1738, inf
        %v1749 = vmin.f32 %v1742, %v1748
        %v1750 = vsel %vm361, %v1739, inf
        %v1751 = vmin.f32 %v1743, %v1750
        %v1752 = vmin.f32 %v1745, %v1747
        %v1753 = vmin.f32 %v1749, %v1751
        %v1754 = vmin.f32 %v1752, %v1753
        %v1755 = vrot.slane %v1754, 4
        %v1756 = vmin.f32 %v1754, %v1755
        %v1757 = vrot.slane %v1756, 2
        %v1758 = vmin.f32 %v1756, %v1757
        %v1759 = vrot.slane %v1758, 1
        %v1760 = vmin.f32 %v1758, %v1759
        %vm1761 = vcmp.le.f32.partialorder %v1732, %v1760
        %vm1762 = vcmp.le.f32.partialorder %v1733, %v1760
        %vm1763 = vcmp.le.f32.partialorder %v1734, %v1760
        %vm1764 = vcmp.le.f32.partialorder %v1735, %v1760
        %vm1765 = vcmp.le.f32.partialorder %v1736, %v1760
        %vm1766 = vcmp.le.f32.partialorder %v1737, %v1760
        %vm1767 = vcmp.le.f32.partialorder %v1738, %v1760
        %vm1768 = vcmp.le.f32.partialorder %v1739, %v1760
        %v1769 = vsel %vm1761, 1e+30, %v1732
        %v1770 = vsel %vm1762, 1e+30, %v1733
        %v1771 = vsel %vm1763, 1e+30, %v1734
        %v1772 = vsel %vm1764, 1e+30, %v1735
        %v1773 = vsel %vm1765, 1e+30, %v1736
        %v1774 = vsel %vm1766, 1e+30, %v1737
        %v1775 = vsel %vm1767, 1e+30, %v1738
        %v1776 = vsel %vm1768, 1e+30, %v1739
        %v1777 = vsel %vm361, %v1769, inf
        %v1778 = vsel %vm361, %v1770, inf
        %v1779 = vsel %vm361, %v1771, inf
        %v1780 = vsel %vm361, %v1772, inf
        %v1781 = vsel %vm361, %v1773, inf
        %v1782 = vmin.f32 %v1777, %v1781
        %v1783 = vsel %vm361, %v1774, inf
        %v1784 = vmin.f32 %v1778, %v1783
        %v1785 = vsel %vm361, %v1775, inf
        %v1786 = vmin.f32 %v1779, %v1785
        %v1787 = vsel %vm361, %v1776, inf
        %v1788 = vmin.f32 %v1780, %v1787
        %v1789 = vmin.f32 %v1782, %v1784
        %v1790 = vmin.f32 %v1786, %v1788
        %v1791 = vmin.f32 %v1789, %v1790
        %v1792 = vrot.slane %v1791, 4
        %v1793 = vmin.f32 %v1791, %v1792
        %v1794 = vrot.slane %v1793, 2
        %v1795 = vmin.f32 %v1793, %v1794
        %v1796 = vrot.slane %v1795, 1
        %v1797 = vmin.f32 %v1795, %v1796
        %vm1798 = vcmp.le.f32.partialorder %v1769, %v1797
        %vm1799 = vcmp.le.f32.partialorder %v1770, %v1797
        %vm1800 = vcmp.le.f32.partialorder %v1771, %v1797
        %vm1801 = vcmp.le.f32.partialorder %v1772, %v1797
        %vm1802 = vcmp.le.f32.partialorder %v1773, %v1797
        %vm1803 = vcmp.le.f32.partialorder %v1774, %v1797
        %vm1804 = vcmp.le.f32.partialorder %v1775, %v1797
        %vm1805 = vcmp.le.f32.partialorder %v1776, %v1797
        %v1806 = vsel %vm1798, 1e+30, %v1769
        %v1807 = vsel %vm1799, 1e+30, %v1770
        %v1808 = vsel %vm1800, 1e+30, %v1771
        %v1809 = vsel %vm1801, 1e+30, %v1772
        %v1810 = vsel %vm1802, 1e+30, %v1773
        %v1811 = vsel %vm1803, 1e+30, %v1774
        %v1812 = vsel %vm1804, 1e+30, %v1775
        %v1813 = vsel %vm1805, 1e+30, %v1776
        %v1814 = vsel %vm361, %v1806, inf
        %v1815 = vsel %vm361, %v1807, inf
        %v1816 = vsel %vm361, %v1808, inf
        %v1817 = vsel %vm361, %v1809, inf
        %v1818 = vsel %vm361, %v1810, inf
        %v1819 = vmin.f32 %v1814, %v1818
        %v1820 = vsel %vm361, %v1811, inf
        %v1821 = vmin.f32 %v1815, %v1820
        %v1822 = vsel %vm361, %v1812, inf
        %v1823 = vmin.f32 %v1816, %v1822
        %v1824 = vsel %vm361, %v1813, inf
        %v1825 = vmin.f32 %v1817, %v1824
        %v1826 = vmin.f32 %v1819, %v1821
        %v1827 = vmin.f32 %v1823, %v1825
        %v1828 = vmin.f32 %v1826, %v1827
        %v1829 = vrot.slane %v1828, 4
        %v1830 = vmin.f32 %v1828, %v1829
        %v1831 = vrot.slane %v1830, 2
        %v1832 = vmin.f32 %v1830, %v1831
        %v1833 = vrot.slane %v1832, 1
        %v1834 = vmin.f32 %v1832, %v1833
        %vm1835 = vcmp.le.f32.partialorder %v1806, %v1834
        %vm1836 = vcmp.le.f32.partialorder %v1807, %v1834
        %vm1837 = vcmp.le.f32.partialorder %v1808, %v1834
        %vm1838 = vcmp.le.f32.partialorder %v1809, %v1834
        %vm1839 = vcmp.le.f32.partialorder %v1810, %v1834
        %vm1840 = vcmp.le.f32.partialorder %v1811, %v1834
        %vm1841 = vcmp.le.f32.partialorder %v1812, %v1834
        %vm1842 = vcmp.le.f32.partialorder %v1813, %v1834
        %v1843 = vsel %vm1835, 1e+30, %v1806
        %v1844 = vsel %vm1836, 1e+30, %v1807
        %v1845 = vsel %vm1837, 1e+30, %v1808
        %v1846 = vsel %vm1838, 1e+30, %v1809
        %v1847 = vsel %vm1839, 1e+30, %v1810
        %v1848 = vsel %vm1840, 1e+30, %v1811
        %v1849 = vsel %vm1841, 1e+30, %v1812
        %v1850 = vsel %vm1842, 1e+30, %v1813
        %v1851 = vsel %vm361, %v1843, inf
        %v1852 = vsel %vm361, %v1844, inf
        %v1853 = vsel %vm361, %v1845, inf
        %v1854 = vsel %vm361, %v1846, inf
        %v1855 = vsel %vm361, %v1847, inf
        %v1856 = vmin.f32 %v1851, %v1855
        %v1857 = vsel %vm361, %v1848, inf
        %v1858 = vmin.f32 %v1852, %v1857
        %v1859 = vsel %vm361, %v1849, inf
        %v1860 = vmin.f32 %v1853, %v1859
        %v1861 = vsel %vm361, %v1850, inf
        %v1862 = vmin.f32 %v1854, %v1861
        %v1863 = vmin.f32 %v1856, %v1858
        %v1864 = vmin.f32 %v1860, %v1862
        %v1865 = vmin.f32 %v1863, %v1864
        %v1866 = vrot.slane %v1865, 4
        %v1867 = vmin.f32 %v1865, %v1866
        %v1868 = vrot.slane %v1867, 2
        %v1869 = vmin.f32 %v1867, %v1868
        %v1870 = vrot.slane %v1869, 1
        %v1871 = vmin.f32 %v1869, %v1870
        %vm1872 = vcmp.le.f32.partialorder %v1843, %v1871
        %vm1873 = vcmp.le.f32.partialorder %v1844, %v1871
        %vm1874 = vcmp.le.f32.partialorder %v1845, %v1871
        %vm1875 = vcmp.le.f32.partialorder %v1846, %v1871
        %vm1876 = vcmp.le.f32.partialorder %v1847, %v1871
        %vm1877 = vcmp.le.f32.partialorder %v1848, %v1871
        %vm1878 = vcmp.le.f32.partialorder %v1849, %v1871
        %vm1879 = vcmp.le.f32.partialorder %v1850, %v1871
        %v1880 = vsel %vm1872, 1e+30, %v1843
        %v1881 = vsel %vm1873, 1e+30, %v1844
        %v1882 = vsel %vm1874, 1e+30, %v1845
        %v1883 = vsel %vm1875, 1e+30, %v1846
        %v1884 = vsel %vm1876, 1e+30, %v1847
        %v1885 = vsel %vm1877, 1e+30, %v1848
        %v1886 = vsel %vm1878, 1e+30, %v1849
        %v1887 = vsel %vm1879, 1e+30, %v1850
        %v1888 = vsel %vm361, %v1880, inf
        %v1889 = vsel %vm361, %v1881, inf
        %v1890 = vsel %vm361, %v1882, inf
        %v1891 = vsel %vm361, %v1883, inf
        %v1892 = vsel %vm361, %v1884, inf
        %v1893 = vmin.f32 %v1888, %v1892
        %v1894 = vsel %vm361, %v1885, inf
        %v1895 = vmin.f32 %v1889, %v1894
        %v1896 = vsel %vm361, %v1886, inf
        %v1897 = vmin.f32 %v1890, %v1896
        %v1898 = vsel %vm361, %v1887, inf
        %v1899 = vmin.f32 %v1891, %v1898
        %v1900 = vmin.f32 %v1893, %v1895
        %v1901 = vmin.f32 %v1897, %v1899
        %v1902 = vmin.f32 %v1900, %v1901
        %v1903 = vrot.slane %v1902, 4
        %v1904 = vmin.f32 %v1902, %v1903
        %v1905 = vrot.slane %v1904, 2
        %v1906 = vmin.f32 %v1904, %v1905
        %v1907 = vrot.slane %v1906, 1
        %v1908 = vmin.f32 %v1906, %v1907
        %vm1909 = vcmp.le.f32.partialorder %v1880, %v1908
        %vm1910 = vcmp.le.f32.partialorder %v1881, %v1908
        %vm1911 = vcmp.le.f32.partialorder %v1882, %v1908
        %vm1912 = vcmp.le.f32.partialorder %v1883, %v1908
        %vm1913 = vcmp.le.f32.partialorder %v1884, %v1908
        %vm1914 = vcmp.le.f32.partialorder %v1885, %v1908
        %vm1915 = vcmp.le.f32.partialorder %v1886, %v1908
        %vm1916 = vcmp.le.f32.partialorder %v1887, %v1908
        %v1917 = vsel %vm1909, 1e+30, %v1880
        %v1918 = vsel %vm1910, 1e+30, %v1881
        %v1919 = vsel %vm1911, 1e+30, %v1882
        %v1920 = vsel %vm1912, 1e+30, %v1883
        %v1921 = vsel %vm1913, 1e+30, %v1884
        %v1922 = vsel %vm1914, 1e+30, %v1885
        %v1923 = vsel %vm1915, 1e+30, %v1886
        %v1924 = vsel %vm1916, 1e+30, %v1887
        %v1925 = vsel %vm361, %v1917, inf
        %v1926 = vsel %vm361, %v1918, inf
        %v1927 = vsel %vm361, %v1919, inf
        %v1928 = vsel %vm361, %v1920, inf
        %v1929 = vsel %vm361, %v1921, inf
        %v1930 = vmin.f32 %v1925, %v1929
        %v1931 = vsel %vm361, %v1922, inf
        %v1932 = vmin.f32 %v1926, %v1931
        %v1933 = vsel %vm361, %v1923, inf
        %v1934 = vmin.f32 %v1927, %v1933
        %v1935 = vsel %vm361, %v1924, inf
        %v1936 = vmin.f32 %v1928, %v1935
        %v1937 = vmin.f32 %v1930, %v1932
        %v1938 = vmin.f32 %v1934, %v1936
        %v1939 = vmin.f32 %v1937, %v1938
        %v1940 = vrot.slane %v1939, 4
        %v1941 = vmin.f32 %v1939, %v1940
        %v1942 = vrot.slane %v1941, 2
        %v1943 = vmin.f32 %v1941, %v1942
        %v1944 = vrot.slane %v1943, 1
        %v1945 = vmin.f32 %v1943, %v1944
        %vm1946 = vcmp.le.f32.partialorder %v1584, %v1945
        %vm1947 = vcmp.le.f32.partialorder %v1585, %v1945
        %vm1948 = vcmp.le.f32.partialorder %v1586, %v1945
        %vm1949 = vcmp.le.f32.partialorder %v1587, %v1945
        %vm1950 = vcmp.le.f32.partialorder %v1588, %v1945
        %vm1951 = vcmp.le.f32.partialorder %v1589, %v1945
        %vm1952 = vcmp.le.f32.partialorder %v1590, %v1945
        %vm1953 = vcmp.le.f32.partialorder %v1591, %v1945
        %v1954 = vsel %vm1946, 1, 0
        %v1955 = vsel %vm1947, 1, 0
        %v1956 = vsel %vm1948, 1, 0
        %v1957 = vsel %vm1949, 1, 0
        %v1958 = vsel %vm1950, 1, 0
        %v1959 = vsel %vm1951, 1, 0
        %v1960 = vsel %vm1952, 1, 0
        %v1961 = vsel %vm1953, 1, 0
        %v1962 = vcvt.s32.f32 %v1954
        %v1963 = vcvt.s32.f32 %v1955
        %v1964 = vcvt.s32.f32 %v1956
        %v1965 = vcvt.s32.f32 %v1957
        %v1966 = vcvt.s32.f32 %v1958
        %v1967 = vcvt.s32.f32 %v1959
        %v1968 = vcvt.s32.f32 %v1960
        %v1969 = vcvt.s32.f32 %v1961
        %v1970 = vpack.c.bf16 %v1963, %v1962
        %v1971 = vpack.c.bf16 %v1965, %v1964
        %v1972 = vpack.c.bf16 %v1967, %v1966
        %v1973 = vpack.c.bf16 %v1969, %v1968
        %v1974 = vpack.c.bf16 %v187, %v187
        %v1976 = vsel %vm361, %v1974, 0
        %1978 = vmatpush.bf16.msra.mxu0 0
        %1979 = vmatpush.bf16.msra.mxu0 0
        %1980 = vmatpush.bf16.msra.mxu0 0
        %1981 = vmatpush.bf16.msra.mxu0 0
        %1982 = vmatpush.bf16.msra.mxu0 %v1973
        %1983 = vmatpush.bf16.msra.mxu0 %v1972
        %1984 = vmatpush.bf16.msra.mxu0 %v1971
        %1985 = vmatpush.bf16.msra.mxu0 %v1970
        %1986 = vmatmul.bf16.gmra.mxu0 %v1976
        %v1987 = vpop.f32.mrf.mxu0
        %v1988 = vadd.f32 0.0, %v1987
        %v1989 = vpop.f32.mrf.mxu0
        %1990 = vdwg.mxu0
        %v1991 = vmul.f32 %v187, 10.0
        %v1992 = vsub.f32 %v1988, %v1991
        %v1993 = vmul.f32 %v1992, 0.11111111
        %v1994 = vpack.c.bf16 %v1993, %v1993
        %v1996 = vsel %vm361, %v1994, 0
        %1998 = vmatpush.bf16.msra.mxu0 0
        %1999 = vmatpush.bf16.msra.mxu0 0
        %2000 = vmatpush.bf16.msra.mxu0 0
        %2001 = vmatpush.bf16.msra.mxu0 0
        %2002 = vmatpush.bf16.msra.mxu0 %v1524
        %2003 = vmatpush.bf16.msra.mxu0 %v1523
        %2004 = vmatpush.bf16.msra.mxu0 %v1522
        %2005 = vmatpush.bf16.msra.mxu0 %v1521
        %2006 = vmatmul.bf16.gmra.mxu0 %v1996
        %v2007 = vpop.f32.mrf.mxu0
        %v2008 = vadd.f32 0.0, %v2007
        %v2009 = vpop.f32.mrf.mxu0
        %2010 = vdwg.mxu0
        %v2011 = vrcp.pop %v1520
        %v2012 = vmul.f32 %v2008, %v2011
        %v2013 = vsub.f32 %v2012, %v771
        %v2014 = vmul.f32 %v2013, %v2013
        %vm2015 = vcmask 518144
        %v2016 = vsel %vm2015, %v2014, 0.0
        %2017 = vadd.xlane.f32.xlu0 %v2016
        %v2018 = vpop.xlane.xlu0 %2017
        %v2019 = vrot.slane %v2018, 4
        %v2020 = vadd.f32 %v2018, %v2019
        %v2021 = vrot.slane %v2020, 2
        %v2022 = vadd.f32 %v2020, %v2021
        %v2023 = vrot.slane %v2022, 1
        %v2024 = vadd.f32 %v2022, %v2023
        %s2025 = vtos %v2024
        %v2026 = vstv %s2025
        %v2027 = vmul.f32 %v1467, 0.02
        %v2028 = vadd.f32 %v2027, 0.0
        %v2029 = vmul.f32 %v1072, 0.02
        %v2030 = vadd.f32 %v2029, 0.0
        %v2031 = vmul.f32 %v2026, 0.02
        %v2032 = vadd.f32 %v2031, 0.0
        %v2033 = vld [vmem:[%s155 + $0xc0] sm:$0xff]
        %v2034 = vld [vmem:[%s155 + $0xc8] sm:$0xff]
        %v2035 = vld [vmem:[%s155 + $0xd0] sm:$0xff]
        %v2036 = vld [vmem:[%s155 + $0xd8] sm:$0xff]
        %v2037 = vld [vmem:[%s155 + $0xe0] sm:$0xff]
        %v2038 = vld [vmem:[%s155 + $0xe8] sm:$0xff]
        %v2039 = vld [vmem:[%s155 + $0xf0] sm:$0xff]
        %v2040 = vld [vmem:[%s155 + $0xf8] sm:$0xff]
        %v2041 = vld [vmem:[%s155 + $0x100] sm:$0xff]
        %v2042 = vld [vmem:[%s155 + $0x108] sm:$0xff]
        %v2043 = vld [vmem:[%s155 + $0x110] sm:$0xff]
        %v2044 = vld [vmem:[%s155 + $0x118] sm:$0xff]
        %v2045 = vld [vmem:[%s160 + $0xc] sm:$0x7]
        %v2046 = vld [vmem:[%s160 + $0x10] sm:$0x7]
        %v2047 = vld [vmem:[%s160 + $0x14] sm:$0x7]
        %v2048 = vadd.f32 %v2045, %v2047
        %2050 = vset.pattern.permute.xlu0 0
        %2051 = vperm.xlu0 %2050, %v2033
        %v2052 = vpop.permute.xlu0 %2051
        %2055 = vset.pattern.permute.xlu0 0
        %2056 = vperm.xlu0 %2055, %v2034
        %v2057 = vpop.permute.xlu0 %2056
        %2060 = vset.pattern.permute.xlu0 0
        %2061 = vperm.xlu0 %2060, %v2035
        %v2062 = vpop.permute.xlu0 %2061
        %2065 = vset.pattern.permute.xlu0 0
        %2066 = vperm.xlu0 %2065, %v2036
        %v2067 = vpop.permute.xlu0 %2066
        %v2069 = vperm.slane %v2045, 0
        %v2070 = vsub.f32 %v2052, %v2069
        %v2071 = vsub.f32 %v2057, %v2069
        %v2072 = vsub.f32 %v2062, %v2069
        %v2073 = vsub.f32 %v2067, %v2069
        %2074 = vset.pattern.permute.xlu0 1
        %2075 = vperm.xlu0 %2074, %v2033
        %v2076 = vpop.permute.xlu0 %2075
        %2078 = vset.pattern.permute.xlu0 1
        %2079 = vperm.xlu0 %2078, %v2034
        %v2080 = vpop.permute.xlu0 %2079
        %2082 = vset.pattern.permute.xlu0 1
        %2083 = vperm.xlu0 %2082, %v2035
        %v2084 = vpop.permute.xlu0 %2083
        %2086 = vset.pattern.permute.xlu0 1
        %2087 = vperm.xlu0 %2086, %v2036
        %v2088 = vpop.permute.xlu0 %2087
        %v2090 = vperm.slane %v2045, 1
        %v2091 = vsub.f32 %v2076, %v2090
        %v2092 = vsub.f32 %v2080, %v2090
        %v2093 = vsub.f32 %v2084, %v2090
        %v2094 = vsub.f32 %v2088, %v2090
        %2095 = vset.pattern.permute.xlu0 2
        %2096 = vperm.xlu0 %2095, %v2033
        %v2097 = vpop.permute.xlu0 %2096
        %2099 = vset.pattern.permute.xlu0 2
        %2100 = vperm.xlu0 %2099, %v2034
        %v2101 = vpop.permute.xlu0 %2100
        %2103 = vset.pattern.permute.xlu0 2
        %2104 = vperm.xlu0 %2103, %v2035
        %v2105 = vpop.permute.xlu0 %2104
        %2107 = vset.pattern.permute.xlu0 2
        %2108 = vperm.xlu0 %2107, %v2036
        %v2109 = vpop.permute.xlu0 %2108
        %v2111 = vperm.slane %v2045, 2
        %v2112 = vsub.f32 %v2097, %v2111
        %v2113 = vsub.f32 %v2101, %v2111
        %v2114 = vsub.f32 %v2105, %v2111
        %v2115 = vsub.f32 %v2109, %v2111
        %v2116 = vmul.f32 %v2070, %v2070
        %v2117 = vmul.f32 %v2071, %v2071
        %v2118 = vmul.f32 %v2072, %v2072
        %v2119 = vmul.f32 %v2073, %v2073
        %v2120 = vmul.f32 %v2091, %v2091
        %v2121 = vmul.f32 %v2092, %v2092
        %v2122 = vmul.f32 %v2093, %v2093
        %v2123 = vmul.f32 %v2094, %v2094
        %v2124 = vadd.f32 %v2116, %v2120
        %v2125 = vadd.f32 %v2117, %v2121
        %v2126 = vadd.f32 %v2118, %v2122
        %v2127 = vadd.f32 %v2119, %v2123
        %v2128 = vmul.f32 %v2112, %v2112
        %v2129 = vmul.f32 %v2113, %v2113
        %v2130 = vmul.f32 %v2114, %v2114
        %v2131 = vmul.f32 %v2115, %v2115
        %v2132 = vadd.f32 %v2124, %v2128
        %v2133 = vadd.f32 %v2125, %v2129
        %v2134 = vadd.f32 %v2126, %v2130
        %v2135 = vadd.f32 %v2127, %v2131
        %vm2136 = vcmask 261120
        %v2137 = vsel %vm2136, %v2132, inf
        %v2138 = vsel %vm2136, %v2133, inf
        %v2139 = vsel %vm2136, %v2134, inf
        %v2140 = vsel %vm2136, %v2135, inf
        %v2141 = vmin.f32 %v2137, %v2138
        %v2142 = vmin.f32 %v2139, %v2140
        %v2143 = vmin.f32 %v2141, %v2142
        %v2144 = vrot.slane %v2143, 4
        %v2145 = vmin.f32 %v2143, %v2144
        %v2146 = vrot.slane %v2145, 2
        %v2147 = vmin.f32 %v2145, %v2146
        %v2148 = vrot.slane %v2147, 1
        %v2149 = vmin.f32 %v2147, %v2148
        %vm2150 = vcmp.le.f32.partialorder %v2132, %v2149
        %vm2151 = vcmp.le.f32.partialorder %v2133, %v2149
        %vm2152 = vcmp.le.f32.partialorder %v2134, %v2149
        %vm2153 = vcmp.le.f32.partialorder %v2135, %v2149
        %v2154 = vsel %vm2150, 1e+30, %v2132
        %v2155 = vsel %vm2151, 1e+30, %v2133
        %v2156 = vsel %vm2152, 1e+30, %v2134
        %v2157 = vsel %vm2153, 1e+30, %v2135
        %v2158 = vsel %vm2136, %v2154, inf
        %v2159 = vsel %vm2136, %v2155, inf
        %v2160 = vsel %vm2136, %v2156, inf
        %v2161 = vsel %vm2136, %v2157, inf
        %v2162 = vmin.f32 %v2158, %v2159
        %v2163 = vmin.f32 %v2160, %v2161
        %v2164 = vmin.f32 %v2162, %v2163
        %v2165 = vrot.slane %v2164, 4
        %v2166 = vmin.f32 %v2164, %v2165
        %v2167 = vrot.slane %v2166, 2
        %v2168 = vmin.f32 %v2166, %v2167
        %v2169 = vrot.slane %v2168, 1
        %v2170 = vmin.f32 %v2168, %v2169
        %vm2171 = vcmp.le.f32.partialorder %v2154, %v2170
        %vm2172 = vcmp.le.f32.partialorder %v2155, %v2170
        %vm2173 = vcmp.le.f32.partialorder %v2156, %v2170
        %vm2174 = vcmp.le.f32.partialorder %v2157, %v2170
        %v2175 = vsel %vm2171, 1e+30, %v2154
        %v2176 = vsel %vm2172, 1e+30, %v2155
        %v2177 = vsel %vm2173, 1e+30, %v2156
        %v2178 = vsel %vm2174, 1e+30, %v2157
        %v2179 = vsel %vm2136, %v2175, inf
        %v2180 = vsel %vm2136, %v2176, inf
        %v2181 = vsel %vm2136, %v2177, inf
        %v2182 = vsel %vm2136, %v2178, inf
        %v2183 = vmin.f32 %v2179, %v2180
        %v2184 = vmin.f32 %v2181, %v2182
        %v2185 = vmin.f32 %v2183, %v2184
        %v2186 = vrot.slane %v2185, 4
        %v2187 = vmin.f32 %v2185, %v2186
        %v2188 = vrot.slane %v2187, 2
        %v2189 = vmin.f32 %v2187, %v2188
        %v2190 = vrot.slane %v2189, 1
        %v2191 = vmin.f32 %v2189, %v2190
        %vm2192 = vcmp.le.f32.partialorder %v2175, %v2191
        %vm2193 = vcmp.le.f32.partialorder %v2176, %v2191
        %vm2194 = vcmp.le.f32.partialorder %v2177, %v2191
        %vm2195 = vcmp.le.f32.partialorder %v2178, %v2191
        %v2196 = vsel %vm2192, 1e+30, %v2175
        %v2197 = vsel %vm2193, 1e+30, %v2176
        %v2198 = vsel %vm2194, 1e+30, %v2177
        %v2199 = vsel %vm2195, 1e+30, %v2178
        %v2200 = vsel %vm2136, %v2196, inf
        %v2201 = vsel %vm2136, %v2197, inf
        %v2202 = vsel %vm2136, %v2198, inf
        %v2203 = vsel %vm2136, %v2199, inf
        %v2204 = vmin.f32 %v2200, %v2201
        %v2205 = vmin.f32 %v2202, %v2203
        %v2206 = vmin.f32 %v2204, %v2205
        %v2207 = vrot.slane %v2206, 4
        %v2208 = vmin.f32 %v2206, %v2207
        %v2209 = vrot.slane %v2208, 2
        %v2210 = vmin.f32 %v2208, %v2209
        %v2211 = vrot.slane %v2210, 1
        %v2212 = vmin.f32 %v2210, %v2211
        %vm2213 = vcmp.le.f32.partialorder %v2196, %v2212
        %vm2214 = vcmp.le.f32.partialorder %v2197, %v2212
        %vm2215 = vcmp.le.f32.partialorder %v2198, %v2212
        %vm2216 = vcmp.le.f32.partialorder %v2199, %v2212
        %v2217 = vsel %vm2213, 1e+30, %v2196
        %v2218 = vsel %vm2214, 1e+30, %v2197
        %v2219 = vsel %vm2215, 1e+30, %v2198
        %v2220 = vsel %vm2216, 1e+30, %v2199
        %v2221 = vsel %vm2136, %v2217, inf
        %v2222 = vsel %vm2136, %v2218, inf
        %v2223 = vsel %vm2136, %v2219, inf
        %v2224 = vsel %vm2136, %v2220, inf
        %v2225 = vmin.f32 %v2221, %v2222
        %v2226 = vmin.f32 %v2223, %v2224
        %v2227 = vmin.f32 %v2225, %v2226
        %v2228 = vrot.slane %v2227, 4
        %v2229 = vmin.f32 %v2227, %v2228
        %v2230 = vrot.slane %v2229, 2
        %v2231 = vmin.f32 %v2229, %v2230
        %v2232 = vrot.slane %v2231, 1
        %v2233 = vmin.f32 %v2231, %v2232
        %vm2234 = vcmp.le.f32.partialorder %v2217, %v2233
        %vm2235 = vcmp.le.f32.partialorder %v2218, %v2233
        %vm2236 = vcmp.le.f32.partialorder %v2219, %v2233
        %vm2237 = vcmp.le.f32.partialorder %v2220, %v2233
        %v2238 = vsel %vm2234, 1e+30, %v2217
        %v2239 = vsel %vm2235, 1e+30, %v2218
        %v2240 = vsel %vm2236, 1e+30, %v2219
        %v2241 = vsel %vm2237, 1e+30, %v2220
        %v2242 = vsel %vm2136, %v2238, inf
        %v2243 = vsel %vm2136, %v2239, inf
        %v2244 = vsel %vm2136, %v2240, inf
        %v2245 = vsel %vm2136, %v2241, inf
        %v2246 = vmin.f32 %v2242, %v2243
        %v2247 = vmin.f32 %v2244, %v2245
        %v2248 = vmin.f32 %v2246, %v2247
        %v2249 = vrot.slane %v2248, 4
        %v2250 = vmin.f32 %v2248, %v2249
        %v2251 = vrot.slane %v2250, 2
        %v2252 = vmin.f32 %v2250, %v2251
        %v2253 = vrot.slane %v2252, 1
        %v2254 = vmin.f32 %v2252, %v2253
        %vm2255 = vcmp.le.f32.partialorder %v2238, %v2254
        %vm2256 = vcmp.le.f32.partialorder %v2239, %v2254
        %vm2257 = vcmp.le.f32.partialorder %v2240, %v2254
        %vm2258 = vcmp.le.f32.partialorder %v2241, %v2254
        %v2259 = vsel %vm2255, 1e+30, %v2238
        %v2260 = vsel %vm2256, 1e+30, %v2239
        %v2261 = vsel %vm2257, 1e+30, %v2240
        %v2262 = vsel %vm2258, 1e+30, %v2241
        %v2263 = vsel %vm2136, %v2259, inf
        %v2264 = vsel %vm2136, %v2260, inf
        %v2265 = vsel %vm2136, %v2261, inf
        %v2266 = vsel %vm2136, %v2262, inf
        %v2267 = vmin.f32 %v2263, %v2264
        %v2268 = vmin.f32 %v2265, %v2266
        %v2269 = vmin.f32 %v2267, %v2268
        %v2270 = vrot.slane %v2269, 4
        %v2271 = vmin.f32 %v2269, %v2270
        %v2272 = vrot.slane %v2271, 2
        %v2273 = vmin.f32 %v2271, %v2272
        %v2274 = vrot.slane %v2273, 1
        %v2275 = vmin.f32 %v2273, %v2274
        %vm2276 = vcmp.le.f32.partialorder %v2259, %v2275
        %vm2277 = vcmp.le.f32.partialorder %v2260, %v2275
        %vm2278 = vcmp.le.f32.partialorder %v2261, %v2275
        %vm2279 = vcmp.le.f32.partialorder %v2262, %v2275
        %v2280 = vsel %vm2276, 1e+30, %v2259
        %v2281 = vsel %vm2277, 1e+30, %v2260
        %v2282 = vsel %vm2278, 1e+30, %v2261
        %v2283 = vsel %vm2279, 1e+30, %v2262
        %v2284 = vsel %vm2136, %v2280, inf
        %v2285 = vsel %vm2136, %v2281, inf
        %v2286 = vsel %vm2136, %v2282, inf
        %v2287 = vsel %vm2136, %v2283, inf
        %v2288 = vmin.f32 %v2284, %v2285
        %v2289 = vmin.f32 %v2286, %v2287
        %v2290 = vmin.f32 %v2288, %v2289
        %v2291 = vrot.slane %v2290, 4
        %v2292 = vmin.f32 %v2290, %v2291
        %v2293 = vrot.slane %v2292, 2
        %v2294 = vmin.f32 %v2292, %v2293
        %v2295 = vrot.slane %v2294, 1
        %v2296 = vmin.f32 %v2294, %v2295
        %vm2297 = vcmp.le.f32.partialorder %v2280, %v2296
        %vm2298 = vcmp.le.f32.partialorder %v2281, %v2296
        %vm2299 = vcmp.le.f32.partialorder %v2282, %v2296
        %vm2300 = vcmp.le.f32.partialorder %v2283, %v2296
        %v2301 = vsel %vm2297, 1e+30, %v2280
        %v2302 = vsel %vm2298, 1e+30, %v2281
        %v2303 = vsel %vm2299, 1e+30, %v2282
        %v2304 = vsel %vm2300, 1e+30, %v2283
        %v2305 = vsel %vm2136, %v2301, inf
        %v2306 = vsel %vm2136, %v2302, inf
        %v2307 = vsel %vm2136, %v2303, inf
        %v2308 = vsel %vm2136, %v2304, inf
        %v2309 = vmin.f32 %v2305, %v2306
        %v2310 = vmin.f32 %v2307, %v2308
        %v2311 = vmin.f32 %v2309, %v2310
        %v2312 = vrot.slane %v2311, 4
        %v2313 = vmin.f32 %v2311, %v2312
        %v2314 = vrot.slane %v2313, 2
        %v2315 = vmin.f32 %v2313, %v2314
        %v2316 = vrot.slane %v2315, 1
        %v2317 = vmin.f32 %v2315, %v2316
        %vm2318 = vcmp.le.f32.partialorder %v2301, %v2317
        %vm2319 = vcmp.le.f32.partialorder %v2302, %v2317
        %vm2320 = vcmp.le.f32.partialorder %v2303, %v2317
        %vm2321 = vcmp.le.f32.partialorder %v2304, %v2317
        %v2322 = vsel %vm2318, 1e+30, %v2301
        %v2323 = vsel %vm2319, 1e+30, %v2302
        %v2324 = vsel %vm2320, 1e+30, %v2303
        %v2325 = vsel %vm2321, 1e+30, %v2304
        %v2326 = vsel %vm2136, %v2322, inf
        %v2327 = vsel %vm2136, %v2323, inf
        %v2328 = vsel %vm2136, %v2324, inf
        %v2329 = vsel %vm2136, %v2325, inf
        %v2330 = vmin.f32 %v2326, %v2327
        %v2331 = vmin.f32 %v2328, %v2329
        %v2332 = vmin.f32 %v2330, %v2331
        %v2333 = vrot.slane %v2332, 4
        %v2334 = vmin.f32 %v2332, %v2333
        %v2335 = vrot.slane %v2334, 2
        %v2336 = vmin.f32 %v2334, %v2335
        %v2337 = vrot.slane %v2336, 1
        %v2338 = vmin.f32 %v2336, %v2337
        %vm2339 = vcmp.le.f32.partialorder %v2132, %v2317
        %vm2340 = vcmp.le.f32.partialorder %v2133, %v2317
        %vm2341 = vcmp.le.f32.partialorder %v2134, %v2317
        %vm2342 = vcmp.le.f32.partialorder %v2135, %v2317
        %vm2343 = vcmp.le.f32.partialorder %v2132, %v2338
        %vm2344 = vcmp.le.f32.partialorder %v2133, %v2338
        %vm2345 = vcmp.le.f32.partialorder %v2134, %v2338
        %vm2346 = vcmp.le.f32.partialorder %v2135, %v2338
        %v2347 = vsel %vm2343, 1, 0
        %v2348 = vsel %vm2344, 1, 0
        %v2349 = vsel %vm2345, 1, 0
        %v2350 = vsel %vm2346, 1, 0
        %v2351 = vcvt.s32.f32 %v2347
        %v2352 = vcvt.s32.f32 %v2348
        %v2353 = vcvt.s32.f32 %v2349
        %v2354 = vcvt.s32.f32 %v2350
        %v2355 = vpack.c.bf16 %v2352, %v2351
        %v2356 = vpack.c.bf16 %v2354, %v2353
        %v2357 = vpack.c.bf16 %v2048, %v2048
        %v2359 = vsel %vm2136, %v2357, 0
        %2361 = vmatpush.bf16.msra.mxu0 0
        %2362 = vmatpush.bf16.msra.mxu0 0
        %2363 = vmatpush.bf16.msra.mxu0 0
        %2364 = vmatpush.bf16.msra.mxu0 0
        %2365 = vmatpush.bf16.msra.mxu0 0
        %2366 = vmatpush.bf16.msra.mxu0 0
        %2367 = vmatpush.bf16.msra.mxu0 %v2356
        %2368 = vmatpush.bf16.msra.mxu0 %v2355
        %2369 = vmatmul.bf16.gmra.mxu0 %v2359
        %v2370 = vpop.f32.mrf.mxu0
        %v2371 = vadd.f32 0.0, %v2370
        %v2372 = vpop.f32.mrf.mxu0
        %2373 = vdwg.mxu0
        %v2374 = vmul.f32 %v2048, 10.0
        %v2375 = vsub.f32 %v2371, %v2374
        %v2376 = vmul.f32 %v2375, 0.11111111
        %2378 = vset.pattern.permute.xlu0 0
        %2379 = vperm.xlu0 %2378, %v2041
        %v2380 = vpop.permute.xlu0 %2379
        %2383 = vset.pattern.permute.xlu0 0
        %2384 = vperm.xlu0 %2383, %v2042
        %v2385 = vpop.permute.xlu0 %2384
        %2388 = vset.pattern.permute.xlu0 0
        %2389 = vperm.xlu0 %2388, %v2043
        %v2390 = vpop.permute.xlu0 %2389
        %2393 = vset.pattern.permute.xlu0 0
        %2394 = vperm.xlu0 %2393, %v2044
        %v2395 = vpop.permute.xlu0 %2394
        %v2397 = vperm.slane %v2047, 0
        %v2398 = vsub.f32 %v2380, %v2397
        %v2399 = vsub.f32 %v2385, %v2397
        %v2400 = vsub.f32 %v2390, %v2397
        %v2401 = vsub.f32 %v2395, %v2397
        %2402 = vset.pattern.permute.xlu0 1
        %2403 = vperm.xlu0 %2402, %v2041
        %v2404 = vpop.permute.xlu0 %2403
        %2406 = vset.pattern.permute.xlu0 1
        %2407 = vperm.xlu0 %2406, %v2042
        %v2408 = vpop.permute.xlu0 %2407
        %2410 = vset.pattern.permute.xlu0 1
        %2411 = vperm.xlu0 %2410, %v2043
        %v2412 = vpop.permute.xlu0 %2411
        %2414 = vset.pattern.permute.xlu0 1
        %2415 = vperm.xlu0 %2414, %v2044
        %v2416 = vpop.permute.xlu0 %2415
        %v2418 = vperm.slane %v2047, 1
        %v2419 = vsub.f32 %v2404, %v2418
        %v2420 = vsub.f32 %v2408, %v2418
        %v2421 = vsub.f32 %v2412, %v2418
        %v2422 = vsub.f32 %v2416, %v2418
        %2423 = vset.pattern.permute.xlu0 2
        %2424 = vperm.xlu0 %2423, %v2041
        %v2425 = vpop.permute.xlu0 %2424
        %2427 = vset.pattern.permute.xlu0 2
        %2428 = vperm.xlu0 %2427, %v2042
        %v2429 = vpop.permute.xlu0 %2428
        %2431 = vset.pattern.permute.xlu0 2
        %2432 = vperm.xlu0 %2431, %v2043
        %v2433 = vpop.permute.xlu0 %2432
        %2435 = vset.pattern.permute.xlu0 2
        %2436 = vperm.xlu0 %2435, %v2044
        %v2437 = vpop.permute.xlu0 %2436
        %v2439 = vperm.slane %v2047, 2
        %v2440 = vsub.f32 %v2425, %v2439
        %v2441 = vsub.f32 %v2429, %v2439
        %v2442 = vsub.f32 %v2433, %v2439
        %v2443 = vsub.f32 %v2437, %v2439
        %v2444 = vmul.f32 %v2398, %v2398
        %v2445 = vmul.f32 %v2399, %v2399
        %v2446 = vmul.f32 %v2400, %v2400
        %v2447 = vmul.f32 %v2401, %v2401
        %v2448 = vmul.f32 %v2419, %v2419
        %v2449 = vmul.f32 %v2420, %v2420
        %v2450 = vmul.f32 %v2421, %v2421
        %v2451 = vmul.f32 %v2422, %v2422
        %v2452 = vadd.f32 %v2444, %v2448
        %v2453 = vadd.f32 %v2445, %v2449
        %v2454 = vadd.f32 %v2446, %v2450
        %v2455 = vadd.f32 %v2447, %v2451
        %v2456 = vmul.f32 %v2440, %v2440
        %v2457 = vmul.f32 %v2441, %v2441
        %v2458 = vmul.f32 %v2442, %v2442
        %v2459 = vmul.f32 %v2443, %v2443
        %v2460 = vadd.f32 %v2452, %v2456
        %v2461 = vadd.f32 %v2453, %v2457
        %v2462 = vadd.f32 %v2454, %v2458
        %v2463 = vadd.f32 %v2455, %v2459
        %v2464 = vsel %vm2339, %v2460, 0.0
        %v2465 = vsel %vm2340, %v2461, 0.0
        %v2466 = vsel %vm2341, %v2462, 0.0
        %v2467 = vsel %vm2342, %v2463, 0.0
        %v2468 = vrsqrt.pop %v2464
        %v2469 = vmul.f32 %v2468, %v2464
        %v2470 = vmul.f32 %v2469, %v2468
        %v2471 = vmul.f32 0.5, %v2470
        %v2472 = vsub.f32 1.5, %v2471
        %v2473 = vmul.f32 %v2468, %v2472
        %v2474 = vmul.f32 %v2464, %v2473
        %vm2475 = vcmp.eq.f32.partialorder %v2464, inf
        %v2476 = vsel %vm2475, %v2464, %v2474
        %vm2477 = vcmp.eq.f32.partialorder %v2464, 0.0
        %v2478 = vand.u32 %v2464, 2147483648
        %v2479 = vsel %vm2477, %v2478, %v2476
        %v2480 = vrsqrt.pop %v2465
        %v2481 = vmul.f32 %v2480, %v2465
        %v2482 = vmul.f32 %v2481, %v2480
        %v2483 = vmul.f32 0.5, %v2482
        %v2484 = vsub.f32 1.5, %v2483
        %v2485 = vmul.f32 %v2480, %v2484
        %v2486 = vmul.f32 %v2465, %v2485
        %vm2487 = vcmp.eq.f32.partialorder %v2465, inf
        %v2488 = vsel %vm2487, %v2465, %v2486
        %vm2489 = vcmp.eq.f32.partialorder %v2465, 0.0
        %v2490 = vand.u32 %v2465, 2147483648
        %v2491 = vsel %vm2489, %v2490, %v2488
        %v2492 = vrsqrt.pop %v2466
        %v2493 = vmul.f32 %v2492, %v2466
        %v2494 = vmul.f32 %v2493, %v2492
        %v2495 = vmul.f32 0.5, %v2494
        %v2496 = vsub.f32 1.5, %v2495
        %v2497 = vmul.f32 %v2492, %v2496
        %v2498 = vmul.f32 %v2466, %v2497
        %vm2499 = vcmp.eq.f32.partialorder %v2466, inf
        %v2500 = vsel %vm2499, %v2466, %v2498
        %vm2501 = vcmp.eq.f32.partialorder %v2466, 0.0
        %v2502 = vand.u32 %v2466, 2147483648
        %v2503 = vsel %vm2501, %v2502, %v2500
        %v2504 = vrsqrt.pop %v2467
        %v2505 = vmul.f32 %v2504, %v2467
        %v2506 = vmul.f32 %v2505, %v2504
        %v2507 = vmul.f32 0.5, %v2506
        %v2508 = vsub.f32 1.5, %v2507
        %v2509 = vmul.f32 %v2504, %v2508
        %v2510 = vmul.f32 %v2467, %v2509
        %vm2511 = vcmp.eq.f32.partialorder %v2467, inf
        %v2512 = vsel %vm2511, %v2467, %v2510
        %vm2513 = vcmp.eq.f32.partialorder %v2467, 0.0
        %v2514 = vand.u32 %v2467, 2147483648
        %v2515 = vsel %vm2513, %v2514, %v2512
        %v2516 = vsel %vm2136, %v2479, 0.0
        %v2517 = vsel %vm2136, %v2491, 0.0
        %v2518 = vadd.f32 %v2516, %v2517
        %v2519 = vsel %vm2136, %v2503, 0.0
        %v2520 = vadd.f32 %v2518, %v2519
        %v2521 = vsel %vm2136, %v2515, 0.0
        %v2522 = vadd.f32 %v2520, %v2521
        %2523 = vadd.xlane.f32.xlu0 %v2522
        %v2524 = vpop.xlane.xlu0 %2523
        %v2525 = vrot.slane %v2524, 4
        %v2526 = vadd.f32 %v2524, %v2525
        %v2527 = vrot.slane %v2526, 2
        %v2528 = vadd.f32 %v2526, %v2527
        %v2529 = vrot.slane %v2528, 1
        %v2530 = vadd.f32 %v2528, %v2529
        %s2531 = vtos %v2530
        %v2532 = vstv %s2531
        %v2533 = vmul.f32 %v2532, 0.125
        %2535 = vset.pattern.permute.xlu0 0
        %2536 = vperm.xlu0 %2535, %v2037
        %v2537 = vpop.permute.xlu0 %2536
        %2540 = vset.pattern.permute.xlu0 0
        %2541 = vperm.xlu0 %2540, %v2038
        %v2542 = vpop.permute.xlu0 %2541
        %2545 = vset.pattern.permute.xlu0 0
        %2546 = vperm.xlu0 %2545, %v2039
        %v2547 = vpop.permute.xlu0 %2546
        %2550 = vset.pattern.permute.xlu0 0
        %2551 = vperm.xlu0 %2550, %v2040
        %v2552 = vpop.permute.xlu0 %2551
        %v2554 = vperm.slane %v2048, 0
        %v2555 = vsub.f32 %v2537, %v2554
        %v2556 = vsub.f32 %v2542, %v2554
        %v2557 = vsub.f32 %v2547, %v2554
        %v2558 = vsub.f32 %v2552, %v2554
        %2559 = vset.pattern.permute.xlu0 1
        %2560 = vperm.xlu0 %2559, %v2037
        %v2561 = vpop.permute.xlu0 %2560
        %2563 = vset.pattern.permute.xlu0 1
        %2564 = vperm.xlu0 %2563, %v2038
        %v2565 = vpop.permute.xlu0 %2564
        %2567 = vset.pattern.permute.xlu0 1
        %2568 = vperm.xlu0 %2567, %v2039
        %v2569 = vpop.permute.xlu0 %2568
        %2571 = vset.pattern.permute.xlu0 1
        %2572 = vperm.xlu0 %2571, %v2040
        %v2573 = vpop.permute.xlu0 %2572
        %v2575 = vperm.slane %v2048, 1
        %v2576 = vsub.f32 %v2561, %v2575
        %v2577 = vsub.f32 %v2565, %v2575
        %v2578 = vsub.f32 %v2569, %v2575
        %v2579 = vsub.f32 %v2573, %v2575
        %2580 = vset.pattern.permute.xlu0 2
        %2581 = vperm.xlu0 %2580, %v2037
        %v2582 = vpop.permute.xlu0 %2581
        %2584 = vset.pattern.permute.xlu0 2
        %2585 = vperm.xlu0 %2584, %v2038
        %v2586 = vpop.permute.xlu0 %2585
        %2588 = vset.pattern.permute.xlu0 2
        %2589 = vperm.xlu0 %2588, %v2039
        %v2590 = vpop.permute.xlu0 %2589
        %2592 = vset.pattern.permute.xlu0 2
        %2593 = vperm.xlu0 %2592, %v2040
        %v2594 = vpop.permute.xlu0 %2593
        %v2596 = vperm.slane %v2048, 2
        %v2597 = vsub.f32 %v2582, %v2596
        %v2598 = vsub.f32 %v2586, %v2596
        %v2599 = vsub.f32 %v2590, %v2596
        %v2600 = vsub.f32 %v2594, %v2596
        %v2601 = vmul.f32 %v2555, %v2555
        %v2602 = vmul.f32 %v2556, %v2556
        %v2603 = vmul.f32 %v2557, %v2557
        %v2604 = vmul.f32 %v2558, %v2558
        %v2605 = vmul.f32 %v2576, %v2576
        %v2606 = vmul.f32 %v2577, %v2577
        %v2607 = vmul.f32 %v2578, %v2578
        %v2608 = vmul.f32 %v2579, %v2579
        %v2609 = vadd.f32 %v2601, %v2605
        %v2610 = vadd.f32 %v2602, %v2606
        %v2611 = vadd.f32 %v2603, %v2607
        %v2612 = vadd.f32 %v2604, %v2608
        %v2613 = vmul.f32 %v2597, %v2597
        %v2614 = vmul.f32 %v2598, %v2598
        %v2615 = vmul.f32 %v2599, %v2599
        %v2616 = vmul.f32 %v2600, %v2600
        %v2617 = vadd.f32 %v2609, %v2613
        %v2618 = vadd.f32 %v2610, %v2614
        %v2619 = vadd.f32 %v2611, %v2615
        %v2620 = vadd.f32 %v2612, %v2616
        %v2621 = vsel %vm2136, %v2617, inf
        %v2622 = vsel %vm2136, %v2618, inf
        %v2623 = vsel %vm2136, %v2619, inf
        %v2624 = vsel %vm2136, %v2620, inf
        %v2625 = vmin.f32 %v2621, %v2622
        %v2626 = vmin.f32 %v2623, %v2624
        %v2627 = vmin.f32 %v2625, %v2626
        %v2628 = vrot.slane %v2627, 4
        %v2629 = vmin.f32 %v2627, %v2628
        %v2630 = vrot.slane %v2629, 2
        %v2631 = vmin.f32 %v2629, %v2630
        %v2632 = vrot.slane %v2631, 1
        %v2633 = vmin.f32 %v2631, %v2632
        %vm2634 = vcmp.le.f32.partialorder %v2617, %v2633
        %vm2635 = vcmp.le.f32.partialorder %v2618, %v2633
        %vm2636 = vcmp.le.f32.partialorder %v2619, %v2633
        %vm2637 = vcmp.le.f32.partialorder %v2620, %v2633
        %v2638 = vsel %vm2634, 1e+30, %v2617
        %v2639 = vsel %vm2635, 1e+30, %v2618
        %v2640 = vsel %vm2636, 1e+30, %v2619
        %v2641 = vsel %vm2637, 1e+30, %v2620
        %v2642 = vsel %vm2136, %v2638, inf
        %v2643 = vsel %vm2136, %v2639, inf
        %v2644 = vsel %vm2136, %v2640, inf
        %v2645 = vsel %vm2136, %v2641, inf
        %v2646 = vmin.f32 %v2642, %v2643
        %v2647 = vmin.f32 %v2644, %v2645
        %v2648 = vmin.f32 %v2646, %v2647
        %v2649 = vrot.slane %v2648, 4
        %v2650 = vmin.f32 %v2648, %v2649
        %v2651 = vrot.slane %v2650, 2
        %v2652 = vmin.f32 %v2650, %v2651
        %v2653 = vrot.slane %v2652, 1
        %v2654 = vmin.f32 %v2652, %v2653
        %vm2655 = vcmp.le.f32.partialorder %v2638, %v2654
        %vm2656 = vcmp.le.f32.partialorder %v2639, %v2654
        %vm2657 = vcmp.le.f32.partialorder %v2640, %v2654
        %vm2658 = vcmp.le.f32.partialorder %v2641, %v2654
        %v2659 = vsel %vm2655, 1e+30, %v2638
        %v2660 = vsel %vm2656, 1e+30, %v2639
        %v2661 = vsel %vm2657, 1e+30, %v2640
        %v2662 = vsel %vm2658, 1e+30, %v2641
        %v2663 = vsel %vm2136, %v2659, inf
        %v2664 = vsel %vm2136, %v2660, inf
        %v2665 = vsel %vm2136, %v2661, inf
        %v2666 = vsel %vm2136, %v2662, inf
        %v2667 = vmin.f32 %v2663, %v2664
        %v2668 = vmin.f32 %v2665, %v2666
        %v2669 = vmin.f32 %v2667, %v2668
        %v2670 = vrot.slane %v2669, 4
        %v2671 = vmin.f32 %v2669, %v2670
        %v2672 = vrot.slane %v2671, 2
        %v2673 = vmin.f32 %v2671, %v2672
        %v2674 = vrot.slane %v2673, 1
        %v2675 = vmin.f32 %v2673, %v2674
        %vm2676 = vcmp.le.f32.partialorder %v2659, %v2675
        %vm2677 = vcmp.le.f32.partialorder %v2660, %v2675
        %vm2678 = vcmp.le.f32.partialorder %v2661, %v2675
        %vm2679 = vcmp.le.f32.partialorder %v2662, %v2675
        %v2680 = vsel %vm2676, 1e+30, %v2659
        %v2681 = vsel %vm2677, 1e+30, %v2660
        %v2682 = vsel %vm2678, 1e+30, %v2661
        %v2683 = vsel %vm2679, 1e+30, %v2662
        %v2684 = vsel %vm2136, %v2680, inf
        %v2685 = vsel %vm2136, %v2681, inf
        %v2686 = vsel %vm2136, %v2682, inf
        %v2687 = vsel %vm2136, %v2683, inf
        %v2688 = vmin.f32 %v2684, %v2685
        %v2689 = vmin.f32 %v2686, %v2687
        %v2690 = vmin.f32 %v2688, %v2689
        %v2691 = vrot.slane %v2690, 4
        %v2692 = vmin.f32 %v2690, %v2691
        %v2693 = vrot.slane %v2692, 2
        %v2694 = vmin.f32 %v2692, %v2693
        %v2695 = vrot.slane %v2694, 1
        %v2696 = vmin.f32 %v2694, %v2695
        %vm2697 = vcmp.le.f32.partialorder %v2680, %v2696
        %vm2698 = vcmp.le.f32.partialorder %v2681, %v2696
        %vm2699 = vcmp.le.f32.partialorder %v2682, %v2696
        %vm2700 = vcmp.le.f32.partialorder %v2683, %v2696
        %v2701 = vsel %vm2697, 1e+30, %v2680
        %v2702 = vsel %vm2698, 1e+30, %v2681
        %v2703 = vsel %vm2699, 1e+30, %v2682
        %v2704 = vsel %vm2700, 1e+30, %v2683
        %v2705 = vsel %vm2136, %v2701, inf
        %v2706 = vsel %vm2136, %v2702, inf
        %v2707 = vsel %vm2136, %v2703, inf
        %v2708 = vsel %vm2136, %v2704, inf
        %v2709 = vmin.f32 %v2705, %v2706
        %v2710 = vmin.f32 %v2707, %v2708
        %v2711 = vmin.f32 %v2709, %v2710
        %v2712 = vrot.slane %v2711, 4
        %v2713 = vmin.f32 %v2711, %v2712
        %v2714 = vrot.slane %v2713, 2
        %v2715 = vmin.f32 %v2713, %v2714
        %v2716 = vrot.slane %v2715, 1
        %v2717 = vmin.f32 %v2715, %v2716
        %2718 = vmin.xlane.f32.xlu0 %v2621
        %v2719 = vpop.xlane.xlu0 %2718
        %2720 = vmin.xlane.f32.xlu0 %v2622
        %v2721 = vpop.xlane.xlu0 %2720
        %2722 = vmin.xlane.f32.xlu0 %v2623
        %v2723 = vpop.xlane.xlu0 %2722
        %2724 = vmin.xlane.f32.xlu0 %v2624
        %v2725 = vpop.xlane.xlu0 %2724
        %vm2726 = vcmask 253952
        %v2727 = vsel %vm2726, %v2633, 0.0
        %2728 = vadd.xlane.f32.xlu0 %v2727
        %v2729 = vpop.xlane.xlu0 %2728
        %v2730 = vrot.slane %v2729, 4
        %v2731 = vadd.f32 %v2729, %v2730
        %v2732 = vrot.slane %v2731, 2
        %v2733 = vadd.f32 %v2731, %v2732
        %v2734 = vrot.slane %v2733, 1
        %v2735 = vadd.f32 %v2733, %v2734
        %s2736 = vtos %v2735
        %v2737 = vstv %s2736
        %v2738 = vsel %vm1441, %v2719, 0.0
        %v2739 = vsel %vm1441, %v2721, 0.0
        %v2740 = vadd.f32 %v2738, %v2739
        %v2741 = vsel %vm1441, %v2723, 0.0
        %v2742 = vadd.f32 %v2740, %v2741
        %v2743 = vsel %vm1441, %v2725, 0.0
        %v2744 = vadd.f32 %v2742, %v2743
        %2745 = vadd.xlane.f32.xlu0 %v2744
        %v2746 = vpop.xlane.xlu0 %2745
        %v2747 = vrot.slane %v2746, 4
        %v2748 = vadd.f32 %v2746, %v2747
        %v2749 = vrot.slane %v2748, 2
        %v2750 = vadd.f32 %v2748, %v2749
        %v2751 = vrot.slane %v2750, 1
        %v2752 = vadd.f32 %v2750, %v2751
        %s2753 = vtos %v2752
        %v2754 = vstv %s2753
        %v2755 = vadd.f32 %v2737, %v2754
        %vm2756 = vcmp.le.f32.partialorder %v2617, %v2717
        %vm2757 = vcmp.le.f32.partialorder %v2618, %v2717
        %vm2758 = vcmp.le.f32.partialorder %v2619, %v2717
        %vm2759 = vcmp.le.f32.partialorder %v2620, %v2717
        %v2760 = vadd.f32 %v2617, 1e-08
        %v2761 = vadd.f32 %v2618, 1e-08
        %v2762 = vadd.f32 %v2619, 1e-08
        %v2763 = vadd.f32 %v2620, 1e-08
        %v2764 = vrcp.pop %v2760
        %v2765 = vrcp.pop %v2761
        %v2766 = vrcp.pop %v2762
        %v2767 = vrcp.pop %v2763
        %v2768 = vsel %vm2756, %v2764, 0.0
        %v2769 = vsel %vm2757, %v2765, 0.0
        %v2770 = vsel %vm2758, %v2766, 0.0
        %v2771 = vsel %vm2759, %v2767, 0.0
        %v2772 = vsel %vm2136, %v2768, 0.0
        %v2773 = vsel %vm2136, %v2769, 0.0
        %v2774 = vadd.f32 %v2772, %v2773
        %v2775 = vsel %vm2136, %v2770, 0.0
        %v2776 = vadd.f32 %v2774, %v2775
        %v2777 = vsel %vm2136, %v2771, 0.0
        %v2778 = vadd.f32 %v2776, %v2777
        %v2779 = vrot.slane %v2778, 4
        %v2780 = vadd.f32 %v2778, %v2779
        %v2781 = vrot.slane %v2780, 2
        %v2782 = vadd.f32 %v2780, %v2781
        %v2783 = vrot.slane %v2782, 1
        %v2784 = vadd.f32 %v2782, %v2783
        %v2785 = vpack.c.bf16 %v2769, %v2768
        %v2786 = vpack.c.bf16 %v2771, %v2770
        %v2787 = vperm.slane %v2046, 0
        %v2788 = vsub.f32 %v2537, %v2787
        %v2789 = vsub.f32 %v2542, %v2787
        %v2790 = vsub.f32 %v2547, %v2787
        %v2791 = vsub.f32 %v2552, %v2787
        %v2792 = vperm.slane %v2046, 1
        %v2793 = vsub.f32 %v2561, %v2792
        %v2794 = vsub.f32 %v2565, %v2792
        %v2795 = vsub.f32 %v2569, %v2792
        %v2796 = vsub.f32 %v2573, %v2792
        %v2797 = vperm.slane %v2046, 2
        %v2798 = vsub.f32 %v2582, %v2797
        %v2799 = vsub.f32 %v2586, %v2797
        %v2800 = vsub.f32 %v2590, %v2797
        %v2801 = vsub.f32 %v2594, %v2797
        %v2802 = vmul.f32 %v2788, %v2788
        %v2803 = vmul.f32 %v2789, %v2789
        %v2804 = vmul.f32 %v2790, %v2790
        %v2805 = vmul.f32 %v2791, %v2791
        %v2806 = vmul.f32 %v2793, %v2793
        %v2807 = vmul.f32 %v2794, %v2794
        %v2808 = vmul.f32 %v2795, %v2795
        %v2809 = vmul.f32 %v2796, %v2796
        %v2810 = vadd.f32 %v2802, %v2806
        %v2811 = vadd.f32 %v2803, %v2807
        %v2812 = vadd.f32 %v2804, %v2808
        %v2813 = vadd.f32 %v2805, %v2809
        %v2814 = vmul.f32 %v2798, %v2798
        %v2815 = vmul.f32 %v2799, %v2799
        %v2816 = vmul.f32 %v2800, %v2800
        %v2817 = vmul.f32 %v2801, %v2801
        %v2818 = vadd.f32 %v2810, %v2814
        %v2819 = vadd.f32 %v2811, %v2815
        %v2820 = vadd.f32 %v2812, %v2816
        %v2821 = vadd.f32 %v2813, %v2817
        %v2822 = vsel %vm2136, %v2818, inf
        %v2823 = vsel %vm2136, %v2819, inf
        %v2824 = vsel %vm2136, %v2820, inf
        %v2825 = vsel %vm2136, %v2821, inf
        %v2826 = vmin.f32 %v2822, %v2823
        %v2827 = vmin.f32 %v2824, %v2825
        %v2828 = vmin.f32 %v2826, %v2827
        %v2829 = vrot.slane %v2828, 4
        %v2830 = vmin.f32 %v2828, %v2829
        %v2831 = vrot.slane %v2830, 2
        %v2832 = vmin.f32 %v2830, %v2831
        %v2833 = vrot.slane %v2832, 1
        %v2834 = vmin.f32 %v2832, %v2833
        %vm2835 = vcmp.le.f32.partialorder %v2818, %v2834
        %vm2836 = vcmp.le.f32.partialorder %v2819, %v2834
        %vm2837 = vcmp.le.f32.partialorder %v2820, %v2834
        %vm2838 = vcmp.le.f32.partialorder %v2821, %v2834
        %v2839 = vsel %vm2835, 1e+30, %v2818
        %v2840 = vsel %vm2836, 1e+30, %v2819
        %v2841 = vsel %vm2837, 1e+30, %v2820
        %v2842 = vsel %vm2838, 1e+30, %v2821
        %v2843 = vsel %vm2136, %v2839, inf
        %v2844 = vsel %vm2136, %v2840, inf
        %v2845 = vsel %vm2136, %v2841, inf
        %v2846 = vsel %vm2136, %v2842, inf
        %v2847 = vmin.f32 %v2843, %v2844
        %v2848 = vmin.f32 %v2845, %v2846
        %v2849 = vmin.f32 %v2847, %v2848
        %v2850 = vrot.slane %v2849, 4
        %v2851 = vmin.f32 %v2849, %v2850
        %v2852 = vrot.slane %v2851, 2
        %v2853 = vmin.f32 %v2851, %v2852
        %v2854 = vrot.slane %v2853, 1
        %v2855 = vmin.f32 %v2853, %v2854
        %vm2856 = vcmp.le.f32.partialorder %v2839, %v2855
        %vm2857 = vcmp.le.f32.partialorder %v2840, %v2855
        %vm2858 = vcmp.le.f32.partialorder %v2841, %v2855
        %vm2859 = vcmp.le.f32.partialorder %v2842, %v2855
        %v2860 = vsel %vm2856, 1e+30, %v2839
        %v2861 = vsel %vm2857, 1e+30, %v2840
        %v2862 = vsel %vm2858, 1e+30, %v2841
        %v2863 = vsel %vm2859, 1e+30, %v2842
        %v2864 = vsel %vm2136, %v2860, inf
        %v2865 = vsel %vm2136, %v2861, inf
        %v2866 = vsel %vm2136, %v2862, inf
        %v2867 = vsel %vm2136, %v2863, inf
        %v2868 = vmin.f32 %v2864, %v2865
        %v2869 = vmin.f32 %v2866, %v2867
        %v2870 = vmin.f32 %v2868, %v2869
        %v2871 = vrot.slane %v2870, 4
        %v2872 = vmin.f32 %v2870, %v2871
        %v2873 = vrot.slane %v2872, 2
        %v2874 = vmin.f32 %v2872, %v2873
        %v2875 = vrot.slane %v2874, 1
        %v2876 = vmin.f32 %v2874, %v2875
        %vm2877 = vcmp.le.f32.partialorder %v2860, %v2876
        %vm2878 = vcmp.le.f32.partialorder %v2861, %v2876
        %vm2879 = vcmp.le.f32.partialorder %v2862, %v2876
        %vm2880 = vcmp.le.f32.partialorder %v2863, %v2876
        %v2881 = vsel %vm2877, 1e+30, %v2860
        %v2882 = vsel %vm2878, 1e+30, %v2861
        %v2883 = vsel %vm2879, 1e+30, %v2862
        %v2884 = vsel %vm2880, 1e+30, %v2863
        %v2885 = vsel %vm2136, %v2881, inf
        %v2886 = vsel %vm2136, %v2882, inf
        %v2887 = vsel %vm2136, %v2883, inf
        %v2888 = vsel %vm2136, %v2884, inf
        %v2889 = vmin.f32 %v2885, %v2886
        %v2890 = vmin.f32 %v2887, %v2888
        %v2891 = vmin.f32 %v2889, %v2890
        %v2892 = vrot.slane %v2891, 4
        %v2893 = vmin.f32 %v2891, %v2892
        %v2894 = vrot.slane %v2893, 2
        %v2895 = vmin.f32 %v2893, %v2894
        %v2896 = vrot.slane %v2895, 1
        %v2897 = vmin.f32 %v2895, %v2896
        %vm2898 = vcmp.le.f32.partialorder %v2881, %v2897
        %vm2899 = vcmp.le.f32.partialorder %v2882, %v2897
        %vm2900 = vcmp.le.f32.partialorder %v2883, %v2897
        %vm2901 = vcmp.le.f32.partialorder %v2884, %v2897
        %v2902 = vsel %vm2898, 1e+30, %v2881
        %v2903 = vsel %vm2899, 1e+30, %v2882
        %v2904 = vsel %vm2900, 1e+30, %v2883
        %v2905 = vsel %vm2901, 1e+30, %v2884
        %v2906 = vsel %vm2136, %v2902, inf
        %v2907 = vsel %vm2136, %v2903, inf
        %v2908 = vsel %vm2136, %v2904, inf
        %v2909 = vsel %vm2136, %v2905, inf
        %v2910 = vmin.f32 %v2906, %v2907
        %v2911 = vmin.f32 %v2908, %v2909
        %v2912 = vmin.f32 %v2910, %v2911
        %v2913 = vrot.slane %v2912, 4
        %v2914 = vmin.f32 %v2912, %v2913
        %v2915 = vrot.slane %v2914, 2
        %v2916 = vmin.f32 %v2914, %v2915
        %v2917 = vrot.slane %v2916, 1
        %v2918 = vmin.f32 %v2916, %v2917
        %vm2919 = vcmp.le.f32.partialorder %v2902, %v2918
        %vm2920 = vcmp.le.f32.partialorder %v2903, %v2918
        %vm2921 = vcmp.le.f32.partialorder %v2904, %v2918
        %vm2922 = vcmp.le.f32.partialorder %v2905, %v2918
        %v2923 = vsel %vm2919, 1e+30, %v2902
        %v2924 = vsel %vm2920, 1e+30, %v2903
        %v2925 = vsel %vm2921, 1e+30, %v2904
        %v2926 = vsel %vm2922, 1e+30, %v2905
        %v2927 = vsel %vm2136, %v2923, inf
        %v2928 = vsel %vm2136, %v2924, inf
        %v2929 = vsel %vm2136, %v2925, inf
        %v2930 = vsel %vm2136, %v2926, inf
        %v2931 = vmin.f32 %v2927, %v2928
        %v2932 = vmin.f32 %v2929, %v2930
        %v2933 = vmin.f32 %v2931, %v2932
        %v2934 = vrot.slane %v2933, 4
        %v2935 = vmin.f32 %v2933, %v2934
        %v2936 = vrot.slane %v2935, 2
        %v2937 = vmin.f32 %v2935, %v2936
        %v2938 = vrot.slane %v2937, 1
        %v2939 = vmin.f32 %v2937, %v2938
        %vm2940 = vcmp.le.f32.partialorder %v2923, %v2939
        %vm2941 = vcmp.le.f32.partialorder %v2924, %v2939
        %vm2942 = vcmp.le.f32.partialorder %v2925, %v2939
        %vm2943 = vcmp.le.f32.partialorder %v2926, %v2939
        %v2944 = vsel %vm2940, 1e+30, %v2923
        %v2945 = vsel %vm2941, 1e+30, %v2924
        %v2946 = vsel %vm2942, 1e+30, %v2925
        %v2947 = vsel %vm2943, 1e+30, %v2926
        %v2948 = vsel %vm2136, %v2944, inf
        %v2949 = vsel %vm2136, %v2945, inf
        %v2950 = vsel %vm2136, %v2946, inf
        %v2951 = vsel %vm2136, %v2947, inf
        %v2952 = vmin.f32 %v2948, %v2949
        %v2953 = vmin.f32 %v2950, %v2951
        %v2954 = vmin.f32 %v2952, %v2953
        %v2955 = vrot.slane %v2954, 4
        %v2956 = vmin.f32 %v2954, %v2955
        %v2957 = vrot.slane %v2956, 2
        %v2958 = vmin.f32 %v2956, %v2957
        %v2959 = vrot.slane %v2958, 1
        %v2960 = vmin.f32 %v2958, %v2959
        %vm2961 = vcmp.le.f32.partialorder %v2944, %v2960
        %vm2962 = vcmp.le.f32.partialorder %v2945, %v2960
        %vm2963 = vcmp.le.f32.partialorder %v2946, %v2960
        %vm2964 = vcmp.le.f32.partialorder %v2947, %v2960
        %v2965 = vsel %vm2961, 1e+30, %v2944
        %v2966 = vsel %vm2962, 1e+30, %v2945
        %v2967 = vsel %vm2963, 1e+30, %v2946
        %v2968 = vsel %vm2964, 1e+30, %v2947
        %v2969 = vsel %vm2136, %v2965, inf
        %v2970 = vsel %vm2136, %v2966, inf
        %v2971 = vsel %vm2136, %v2967, inf
        %v2972 = vsel %vm2136, %v2968, inf
        %v2973 = vmin.f32 %v2969, %v2970
        %v2974 = vmin.f32 %v2971, %v2972
        %v2975 = vmin.f32 %v2973, %v2974
        %v2976 = vrot.slane %v2975, 4
        %v2977 = vmin.f32 %v2975, %v2976
        %v2978 = vrot.slane %v2977, 2
        %v2979 = vmin.f32 %v2977, %v2978
        %v2980 = vrot.slane %v2979, 1
        %v2981 = vmin.f32 %v2979, %v2980
        %vm2982 = vcmp.le.f32.partialorder %v2965, %v2981
        %vm2983 = vcmp.le.f32.partialorder %v2966, %v2981
        %vm2984 = vcmp.le.f32.partialorder %v2967, %v2981
        %vm2985 = vcmp.le.f32.partialorder %v2968, %v2981
        %v2986 = vsel %vm2982, 1e+30, %v2965
        %v2987 = vsel %vm2983, 1e+30, %v2966
        %v2988 = vsel %vm2984, 1e+30, %v2967
        %v2989 = vsel %vm2985, 1e+30, %v2968
        %v2990 = vsel %vm2136, %v2986, inf
        %v2991 = vsel %vm2136, %v2987, inf
        %v2992 = vsel %vm2136, %v2988, inf
        %v2993 = vsel %vm2136, %v2989, inf
        %v2994 = vmin.f32 %v2990, %v2991
        %v2995 = vmin.f32 %v2992, %v2993
        %v2996 = vmin.f32 %v2994, %v2995
        %v2997 = vrot.slane %v2996, 4
        %v2998 = vmin.f32 %v2996, %v2997
        %v2999 = vrot.slane %v2998, 2
        %v3000 = vmin.f32 %v2998, %v2999
        %v3001 = vrot.slane %v3000, 1
        %v3002 = vmin.f32 %v3000, %v3001
        %vm3003 = vcmp.le.f32.partialorder %v2986, %v3002
        %vm3004 = vcmp.le.f32.partialorder %v2987, %v3002
        %vm3005 = vcmp.le.f32.partialorder %v2988, %v3002
        %vm3006 = vcmp.le.f32.partialorder %v2989, %v3002
        %v3007 = vsel %vm3003, 1e+30, %v2986
        %v3008 = vsel %vm3004, 1e+30, %v2987
        %v3009 = vsel %vm3005, 1e+30, %v2988
        %v3010 = vsel %vm3006, 1e+30, %v2989
        %v3011 = vsel %vm2136, %v3007, inf
        %v3012 = vsel %vm2136, %v3008, inf
        %v3013 = vsel %vm2136, %v3009, inf
        %v3014 = vsel %vm2136, %v3010, inf
        %v3015 = vmin.f32 %v3011, %v3012
        %v3016 = vmin.f32 %v3013, %v3014
        %v3017 = vmin.f32 %v3015, %v3016
        %v3018 = vrot.slane %v3017, 4
        %v3019 = vmin.f32 %v3017, %v3018
        %v3020 = vrot.slane %v3019, 2
        %v3021 = vmin.f32 %v3019, %v3020
        %v3022 = vrot.slane %v3021, 1
        %v3023 = vmin.f32 %v3021, %v3022
        %vm3024 = vcmp.le.f32.partialorder %v2818, %v3023
        %vm3025 = vcmp.le.f32.partialorder %v2819, %v3023
        %vm3026 = vcmp.le.f32.partialorder %v2820, %v3023
        %vm3027 = vcmp.le.f32.partialorder %v2821, %v3023
        %v3028 = vsel %vm3024, 1, 0
        %v3029 = vsel %vm3025, 1, 0
        %v3030 = vsel %vm3026, 1, 0
        %v3031 = vsel %vm3027, 1, 0
        %v3032 = vcvt.s32.f32 %v3028
        %v3033 = vcvt.s32.f32 %v3029
        %v3034 = vcvt.s32.f32 %v3030
        %v3035 = vcvt.s32.f32 %v3031
        %v3036 = vpack.c.bf16 %v3033, %v3032
        %v3037 = vpack.c.bf16 %v3035, %v3034
        %v3038 = vpack.c.bf16 %v2046, %v2046
        %v3040 = vsel %vm2136, %v3038, 0
        %3042 = vmatpush.bf16.msra.mxu0 0
        %3043 = vmatpush.bf16.msra.mxu0 0
        %3044 = vmatpush.bf16.msra.mxu0 0
        %3045 = vmatpush.bf16.msra.mxu0 0
        %3046 = vmatpush.bf16.msra.mxu0 0
        %3047 = vmatpush.bf16.msra.mxu0 0
        %3048 = vmatpush.bf16.msra.mxu0 %v3037
        %3049 = vmatpush.bf16.msra.mxu0 %v3036
        %3050 = vmatmul.bf16.gmra.mxu0 %v3040
        %v3051 = vpop.f32.mrf.mxu0
        %v3052 = vadd.f32 0.0, %v3051
        %v3053 = vpop.f32.mrf.mxu0
        %3054 = vdwg.mxu0
        %v3055 = vmul.f32 %v2046, 10.0
        %v3056 = vsub.f32 %v3052, %v3055
        %v3057 = vmul.f32 %v3056, 0.11111111
        %v3058 = vpack.c.bf16 %v3057, %v3057
        %v3060 = vsel %vm2136, %v3058, 0
        %3062 = vmatpush.bf16.msra.mxu0 0
        %3063 = vmatpush.bf16.msra.mxu0 0
        %3064 = vmatpush.bf16.msra.mxu0 0
        %3065 = vmatpush.bf16.msra.mxu0 0
        %3066 = vmatpush.bf16.msra.mxu0 0
        %3067 = vmatpush.bf16.msra.mxu0 0
        %3068 = vmatpush.bf16.msra.mxu0 %v2786
        %3069 = vmatpush.bf16.msra.mxu0 %v2785
        %3070 = vmatmul.bf16.gmra.mxu0 %v3060
        %v3071 = vpop.f32.mrf.mxu0
        %v3072 = vadd.f32 0.0, %v3071
        %v3073 = vpop.f32.mrf.mxu0
        %3074 = vdwg.mxu0
        %v3075 = vrcp.pop %v2784
        %v3076 = vmul.f32 %v3072, %v3075
        %v3077 = vsub.f32 %v3076, %v2376
        %v3078 = vmul.f32 %v3077, %v3077
        %vm3079 = vcmask 256000
        %v3080 = vsel %vm3079, %v3078, 0.0
        %3081 = vadd.xlane.f32.xlu0 %v3080
        %v3082 = vpop.xlane.xlu0 %3081
        %v3083 = vrot.slane %v3082, 4
        %v3084 = vadd.f32 %v3082, %v3083
        %v3085 = vrot.slane %v3084, 2
        %v3086 = vadd.f32 %v3084, %v3085
        %v3087 = vrot.slane %v3086, 1
        %v3088 = vadd.f32 %v3086, %v3087
        %s3089 = vtos %v3088
        %v3090 = vstv %s3089
        %v3091 = vmul.f32 %v2755, 0.04
        %v3092 = vadd.f32 %v2028, %v3091
        %v3093 = vmul.f32 %v2533, 0.04
        %v3094 = vadd.f32 %v2030, %v3093
        %v3095 = vmul.f32 %v3090, 0.04
        %v3096 = vadd.f32 %v2032, %v3095
        %v3097 = vld [vmem:[%s155 + $0x120] sm:$0xff]
        %v3098 = vld [vmem:[%s155 + $0x128] sm:$0xff]
        %v3099 = vld [vmem:[%s155 + $0x130] sm:$0xff]
        %v3100 = vld [vmem:[%s155 + $0x138] sm:$0xff]
        %v3101 = vld [vmem:[%s155 + $0x140] sm:$0xff]
        %v3102 = vld [vmem:[%s155 + $0x148] sm:$0xff]
        %v3103 = vld [vmem:[%s160 + $0x18] sm:$0x7]
        %v3104 = vld [vmem:[%s160 + $0x1c] sm:$0x7]
        %v3105 = vld [vmem:[%s160 + $0x20] sm:$0x7]
        %v3106 = vadd.f32 %v3103, %v3105
        %3108 = vset.pattern.permute.xlu0 0
        %3109 = vperm.xlu0 %3108, %v3097
        %v3110 = vpop.permute.xlu0 %3109
        %3113 = vset.pattern.permute.xlu0 0
        %3114 = vperm.xlu0 %3113, %v3098
        %v3115 = vpop.permute.xlu0 %3114
        %v3117 = vperm.slane %v3103, 0
        %v3118 = vsub.f32 %v3110, %v3117
        %v3119 = vsub.f32 %v3115, %v3117
        %3120 = vset.pattern.permute.xlu0 1
        %3121 = vperm.xlu0 %3120, %v3097
        %v3122 = vpop.permute.xlu0 %3121
        %3124 = vset.pattern.permute.xlu0 1
        %3125 = vperm.xlu0 %3124, %v3098
        %v3126 = vpop.permute.xlu0 %3125
        %v3128 = vperm.slane %v3103, 1
        %v3129 = vsub.f32 %v3122, %v3128
        %v3130 = vsub.f32 %v3126, %v3128
        %3131 = vset.pattern.permute.xlu0 2
        %3132 = vperm.xlu0 %3131, %v3097
        %v3133 = vpop.permute.xlu0 %3132
        %3135 = vset.pattern.permute.xlu0 2
        %3136 = vperm.xlu0 %3135, %v3098
        %v3137 = vpop.permute.xlu0 %3136
        %v3139 = vperm.slane %v3103, 2
        %v3140 = vsub.f32 %v3133, %v3139
        %v3141 = vsub.f32 %v3137, %v3139
        %v3142 = vmul.f32 %v3118, %v3118
        %v3143 = vmul.f32 %v3119, %v3119
        %v3144 = vmul.f32 %v3129, %v3129
        %v3145 = vmul.f32 %v3130, %v3130
        %v3146 = vadd.f32 %v3142, %v3144
        %v3147 = vadd.f32 %v3143, %v3145
        %v3148 = vmul.f32 %v3140, %v3140
        %v3149 = vmul.f32 %v3141, %v3141
        %v3150 = vadd.f32 %v3146, %v3148
        %v3151 = vadd.f32 %v3147, %v3149
        %vm3152 = vcmask 130048
        %v3153 = vsel %vm3152, %v3150, inf
        %v3154 = vsel %vm3152, %v3151, inf
        %v3155 = vmin.f32 %v3153, %v3154
        %v3156 = vrot.slane %v3155, 4
        %v3157 = vmin.f32 %v3155, %v3156
        %v3158 = vrot.slane %v3157, 2
        %v3159 = vmin.f32 %v3157, %v3158
        %v3160 = vrot.slane %v3159, 1
        %v3161 = vmin.f32 %v3159, %v3160
        %vm3162 = vcmp.le.f32.partialorder %v3150, %v3161
        %vm3163 = vcmp.le.f32.partialorder %v3151, %v3161
        %v3164 = vsel %vm3162, 1e+30, %v3150
        %v3165 = vsel %vm3163, 1e+30, %v3151
        %v3166 = vsel %vm3152, %v3164, inf
        %v3167 = vsel %vm3152, %v3165, inf
        %v3168 = vmin.f32 %v3166, %v3167
        %v3169 = vrot.slane %v3168, 4
        %v3170 = vmin.f32 %v3168, %v3169
        %v3171 = vrot.slane %v3170, 2
        %v3172 = vmin.f32 %v3170, %v3171
        %v3173 = vrot.slane %v3172, 1
        %v3174 = vmin.f32 %v3172, %v3173
        %vm3175 = vcmp.le.f32.partialorder %v3164, %v3174
        %vm3176 = vcmp.le.f32.partialorder %v3165, %v3174
        %v3177 = vsel %vm3175, 1e+30, %v3164
        %v3178 = vsel %vm3176, 1e+30, %v3165
        %v3179 = vsel %vm3152, %v3177, inf
        %v3180 = vsel %vm3152, %v3178, inf
        %v3181 = vmin.f32 %v3179, %v3180
        %v3182 = vrot.slane %v3181, 4
        %v3183 = vmin.f32 %v3181, %v3182
        %v3184 = vrot.slane %v3183, 2
        %v3185 = vmin.f32 %v3183, %v3184
        %v3186 = vrot.slane %v3185, 1
        %v3187 = vmin.f32 %v3185, %v3186
        %vm3188 = vcmp.le.f32.partialorder %v3177, %v3187
        %vm3189 = vcmp.le.f32.partialorder %v3178, %v3187
        %v3190 = vsel %vm3188, 1e+30, %v3177
        %v3191 = vsel %vm3189, 1e+30, %v3178
        %v3192 = vsel %vm3152, %v3190, inf
        %v3193 = vsel %vm3152, %v3191, inf
        %v3194 = vmin.f32 %v3192, %v3193
        %v3195 = vrot.slane %v3194, 4
        %v3196 = vmin.f32 %v3194, %v3195
        %v3197 = vrot.slane %v3196, 2
        %v3198 = vmin.f32 %v3196, %v3197
        %v3199 = vrot.slane %v3198, 1
        %v3200 = vmin.f32 %v3198, %v3199
        %vm3201 = vcmp.le.f32.partialorder %v3190, %v3200
        %vm3202 = vcmp.le.f32.partialorder %v3191, %v3200
        %v3203 = vsel %vm3201, 1e+30, %v3190
        %v3204 = vsel %vm3202, 1e+30, %v3191
        %v3205 = vsel %vm3152, %v3203, inf
        %v3206 = vsel %vm3152, %v3204, inf
        %v3207 = vmin.f32 %v3205, %v3206
        %v3208 = vrot.slane %v3207, 4
        %v3209 = vmin.f32 %v3207, %v3208
        %v3210 = vrot.slane %v3209, 2
        %v3211 = vmin.f32 %v3209, %v3210
        %v3212 = vrot.slane %v3211, 1
        %v3213 = vmin.f32 %v3211, %v3212
        %vm3214 = vcmp.le.f32.partialorder %v3203, %v3213
        %vm3215 = vcmp.le.f32.partialorder %v3204, %v3213
        %v3216 = vsel %vm3214, 1e+30, %v3203
        %v3217 = vsel %vm3215, 1e+30, %v3204
        %v3218 = vsel %vm3152, %v3216, inf
        %v3219 = vsel %vm3152, %v3217, inf
        %v3220 = vmin.f32 %v3218, %v3219
        %v3221 = vrot.slane %v3220, 4
        %v3222 = vmin.f32 %v3220, %v3221
        %v3223 = vrot.slane %v3222, 2
        %v3224 = vmin.f32 %v3222, %v3223
        %v3225 = vrot.slane %v3224, 1
        %v3226 = vmin.f32 %v3224, %v3225
        %vm3227 = vcmp.le.f32.partialorder %v3216, %v3226
        %vm3228 = vcmp.le.f32.partialorder %v3217, %v3226
        %v3229 = vsel %vm3227, 1e+30, %v3216
        %v3230 = vsel %vm3228, 1e+30, %v3217
        %v3231 = vsel %vm3152, %v3229, inf
        %v3232 = vsel %vm3152, %v3230, inf
        %v3233 = vmin.f32 %v3231, %v3232
        %v3234 = vrot.slane %v3233, 4
        %v3235 = vmin.f32 %v3233, %v3234
        %v3236 = vrot.slane %v3235, 2
        %v3237 = vmin.f32 %v3235, %v3236
        %v3238 = vrot.slane %v3237, 1
        %v3239 = vmin.f32 %v3237, %v3238
        %vm3240 = vcmp.le.f32.partialorder %v3229, %v3239
        %vm3241 = vcmp.le.f32.partialorder %v3230, %v3239
        %v3242 = vsel %vm3240, 1e+30, %v3229
        %v3243 = vsel %vm3241, 1e+30, %v3230
        %v3244 = vsel %vm3152, %v3242, inf
        %v3245 = vsel %vm3152, %v3243, inf
        %v3246 = vmin.f32 %v3244, %v3245
        %v3247 = vrot.slane %v3246, 4
        %v3248 = vmin.f32 %v3246, %v3247
        %v3249 = vrot.slane %v3248, 2
        %v3250 = vmin.f32 %v3248, %v3249
        %v3251 = vrot.slane %v3250, 1
        %v3252 = vmin.f32 %v3250, %v3251
        %vm3253 = vcmp.le.f32.partialorder %v3242, %v3252
        %vm3254 = vcmp.le.f32.partialorder %v3243, %v3252
        %v3255 = vsel %vm3253, 1e+30, %v3242
        %v3256 = vsel %vm3254, 1e+30, %v3243
        %v3257 = vsel %vm3152, %v3255, inf
        %v3258 = vsel %vm3152, %v3256, inf
        %v3259 = vmin.f32 %v3257, %v3258
        %v3260 = vrot.slane %v3259, 4
        %v3261 = vmin.f32 %v3259, %v3260
        %v3262 = vrot.slane %v3261, 2
        %v3263 = vmin.f32 %v3261, %v3262
        %v3264 = vrot.slane %v3263, 1
        %v3265 = vmin.f32 %v3263, %v3264
        %vm3266 = vcmp.le.f32.partialorder %v3255, %v3265
        %vm3267 = vcmp.le.f32.partialorder %v3256, %v3265
        %v3268 = vsel %vm3266, 1e+30, %v3255
        %v3269 = vsel %vm3267, 1e+30, %v3256
        %v3270 = vsel %vm3152, %v3268, inf
        %v3271 = vsel %vm3152, %v3269, inf
        %v3272 = vmin.f32 %v3270, %v3271
        %v3273 = vrot.slane %v3272, 4
        %v3274 = vmin.f32 %v3272, %v3273
        %v3275 = vrot.slane %v3274, 2
        %v3276 = vmin.f32 %v3274, %v3275
        %v3277 = vrot.slane %v3276, 1
        %v3278 = vmin.f32 %v3276, %v3277
        %vm3279 = vcmp.le.f32.partialorder %v3150, %v3265
        %vm3280 = vcmp.le.f32.partialorder %v3151, %v3265
        %vm3281 = vcmp.le.f32.partialorder %v3150, %v3278
        %vm3282 = vcmp.le.f32.partialorder %v3151, %v3278
        %v3283 = vsel %vm3281, 1, 0
        %v3284 = vsel %vm3282, 1, 0
        %v3285 = vcvt.s32.f32 %v3283
        %v3286 = vcvt.s32.f32 %v3284
        %v3287 = vpack.c.bf16 %v3286, %v3285
        %v3288 = vpack.c.bf16 %v3106, %v3106
        %v3290 = vsel %vm3152, %v3288, 0
        %3292 = vmatpush.bf16.msra.mxu0 0
        %3293 = vmatpush.bf16.msra.mxu0 0
        %3294 = vmatpush.bf16.msra.mxu0 0
        %3295 = vmatpush.bf16.msra.mxu0 0
        %3296 = vmatpush.bf16.msra.mxu0 0
        %3297 = vmatpush.bf16.msra.mxu0 0
        %3298 = vmatpush.bf16.msra.mxu0 0
        %3299 = vmatpush.bf16.msra.mxu0 %v3287
        %3300 = vmatmul.bf16.gmra.mxu0 %v3290
        %v3301 = vpop.f32.mrf.mxu0
        %v3302 = vadd.f32 0.0, %v3301
        %v3303 = vpop.f32.mrf.mxu0
        %3304 = vdwg.mxu0
        %v3305 = vmul.f32 %v3106, 10.0
        %v3306 = vsub.f32 %v3302, %v3305
        %v3307 = vmul.f32 %v3306, 0.11111111
        %3309 = vset.pattern.permute.xlu0 0
        %3310 = vperm.xlu0 %3309, %v3101
        %v3311 = vpop.permute.xlu0 %3310
        %3314 = vset.pattern.permute.xlu0 0
        %3315 = vperm.xlu0 %3314, %v3102
        %v3316 = vpop.permute.xlu0 %3315
        %v3318 = vperm.slane %v3105, 0
        %v3319 = vsub.f32 %v3311, %v3318
        %v3320 = vsub.f32 %v3316, %v3318
        %3321 = vset.pattern.permute.xlu0 1
        %3322 = vperm.xlu0 %3321, %v3101
        %v3323 = vpop.permute.xlu0 %3322
        %3325 = vset.pattern.permute.xlu0 1
        %3326 = vperm.xlu0 %3325, %v3102
        %v3327 = vpop.permute.xlu0 %3326
        %v3329 = vperm.slane %v3105, 1
        %v3330 = vsub.f32 %v3323, %v3329
        %v3331 = vsub.f32 %v3327, %v3329
        %3332 = vset.pattern.permute.xlu0 2
        %3333 = vperm.xlu0 %3332, %v3101
        %v3334 = vpop.permute.xlu0 %3333
        %3336 = vset.pattern.permute.xlu0 2
        %3337 = vperm.xlu0 %3336, %v3102
        %v3338 = vpop.permute.xlu0 %3337
        %v3340 = vperm.slane %v3105, 2
        %v3341 = vsub.f32 %v3334, %v3340
        %v3342 = vsub.f32 %v3338, %v3340
        %v3343 = vmul.f32 %v3319, %v3319
        %v3344 = vmul.f32 %v3320, %v3320
        %v3345 = vmul.f32 %v3330, %v3330
        %v3346 = vmul.f32 %v3331, %v3331
        %v3347 = vadd.f32 %v3343, %v3345
        %v3348 = vadd.f32 %v3344, %v3346
        %v3349 = vmul.f32 %v3341, %v3341
        %v3350 = vmul.f32 %v3342, %v3342
        %v3351 = vadd.f32 %v3347, %v3349
        %v3352 = vadd.f32 %v3348, %v3350
        %v3353 = vsel %vm3279, %v3351, 0.0
        %v3354 = vsel %vm3280, %v3352, 0.0
        %v3355 = vrsqrt.pop %v3353
        %v3356 = vmul.f32 %v3355, %v3353
        %v3357 = vmul.f32 %v3356, %v3355
        %v3358 = vmul.f32 0.5, %v3357
        %v3359 = vsub.f32 1.5, %v3358
        %v3360 = vmul.f32 %v3355, %v3359
        %v3361 = vmul.f32 %v3353, %v3360
        %vm3362 = vcmp.eq.f32.partialorder %v3353, inf
        %v3363 = vsel %vm3362, %v3353, %v3361
        %vm3364 = vcmp.eq.f32.partialorder %v3353, 0.0
        %v3365 = vand.u32 %v3353, 2147483648
        %v3366 = vsel %vm3364, %v3365, %v3363
        %v3367 = vrsqrt.pop %v3354
        %v3368 = vmul.f32 %v3367, %v3354
        %v3369 = vmul.f32 %v3368, %v3367
        %v3370 = vmul.f32 0.5, %v3369
        %v3371 = vsub.f32 1.5, %v3370
        %v3372 = vmul.f32 %v3367, %v3371
        %v3373 = vmul.f32 %v3354, %v3372
        %vm3374 = vcmp.eq.f32.partialorder %v3354, inf
        %v3375 = vsel %vm3374, %v3354, %v3373
        %vm3376 = vcmp.eq.f32.partialorder %v3354, 0.0
        %v3377 = vand.u32 %v3354, 2147483648
        %v3378 = vsel %vm3376, %v3377, %v3375
        %v3379 = vsel %vm3152, %v3366, 0.0
        %v3380 = vsel %vm3152, %v3378, 0.0
        %v3381 = vadd.f32 %v3379, %v3380
        %3382 = vadd.xlane.f32.xlu0 %v3381
        %v3383 = vpop.xlane.xlu0 %3382
        %v3384 = vrot.slane %v3383, 4
        %v3385 = vadd.f32 %v3383, %v3384
        %v3386 = vrot.slane %v3385, 2
        %v3387 = vadd.f32 %v3385, %v3386
        %v3388 = vrot.slane %v3387, 1
        %v3389 = vadd.f32 %v3387, %v3388
        %s3390 = vtos %v3389
        %v3391 = vstv %s3390
        %v3392 = vmul.f32 %v3391, 0.125
        %3394 = vset.pattern.permute.xlu0 0
        %3395 = vperm.xlu0 %3394, %v3099
        %v3396 = vpop.permute.xlu0 %3395
        %3399 = vset.pattern.permute.xlu0 0
        %3400 = vperm.xlu0 %3399, %v3100
        %v3401 = vpop.permute.xlu0 %3400
        %v3403 = vperm.slane %v3106, 0
        %v3404 = vsub.f32 %v3396, %v3403
        %v3405 = vsub.f32 %v3401, %v3403
        %3406 = vset.pattern.permute.xlu0 1
        %3407 = vperm.xlu0 %3406, %v3099
        %v3408 = vpop.permute.xlu0 %3407
        %3410 = vset.pattern.permute.xlu0 1
        %3411 = vperm.xlu0 %3410, %v3100
        %v3412 = vpop.permute.xlu0 %3411
        %v3414 = vperm.slane %v3106, 1
        %v3415 = vsub.f32 %v3408, %v3414
        %v3416 = vsub.f32 %v3412, %v3414
        %3417 = vset.pattern.permute.xlu0 2
        %3418 = vperm.xlu0 %3417, %v3099
        %v3419 = vpop.permute.xlu0 %3418
        %3421 = vset.pattern.permute.xlu0 2
        %3422 = vperm.xlu0 %3421, %v3100
        %v3423 = vpop.permute.xlu0 %3422
        %v3425 = vperm.slane %v3106, 2
        %v3426 = vsub.f32 %v3419, %v3425
        %v3427 = vsub.f32 %v3423, %v3425
        %v3428 = vmul.f32 %v3404, %v3404
        %v3429 = vmul.f32 %v3405, %v3405
        %v3430 = vmul.f32 %v3415, %v3415
        %v3431 = vmul.f32 %v3416, %v3416
        %v3432 = vadd.f32 %v3428, %v3430
        %v3433 = vadd.f32 %v3429, %v3431
        %v3434 = vmul.f32 %v3426, %v3426
        %v3435 = vmul.f32 %v3427, %v3427
        %v3436 = vadd.f32 %v3432, %v3434
        %v3437 = vadd.f32 %v3433, %v3435
        %v3438 = vsel %vm3152, %v3436, inf
        %v3439 = vsel %vm3152, %v3437, inf
        %v3440 = vmin.f32 %v3438, %v3439
        %v3441 = vrot.slane %v3440, 4
        %v3442 = vmin.f32 %v3440, %v3441
        %v3443 = vrot.slane %v3442, 2
        %v3444 = vmin.f32 %v3442, %v3443
        %v3445 = vrot.slane %v3444, 1
        %v3446 = vmin.f32 %v3444, %v3445
        %vm3447 = vcmp.le.f32.partialorder %v3436, %v3446
        %vm3448 = vcmp.le.f32.partialorder %v3437, %v3446
        %v3449 = vsel %vm3447, 1e+30, %v3436
        %v3450 = vsel %vm3448, 1e+30, %v3437
        %v3451 = vsel %vm3152, %v3449, inf
        %v3452 = vsel %vm3152, %v3450, inf
        %v3453 = vmin.f32 %v3451, %v3452
        %v3454 = vrot.slane %v3453, 4
        %v3455 = vmin.f32 %v3453, %v3454
        %v3456 = vrot.slane %v3455, 2
        %v3457 = vmin.f32 %v3455, %v3456
        %v3458 = vrot.slane %v3457, 1
        %v3459 = vmin.f32 %v3457, %v3458
        %vm3460 = vcmp.le.f32.partialorder %v3449, %v3459
        %vm3461 = vcmp.le.f32.partialorder %v3450, %v3459
        %v3462 = vsel %vm3460, 1e+30, %v3449
        %v3463 = vsel %vm3461, 1e+30, %v3450
        %v3464 = vsel %vm3152, %v3462, inf
        %v3465 = vsel %vm3152, %v3463, inf
        %v3466 = vmin.f32 %v3464, %v3465
        %v3467 = vrot.slane %v3466, 4
        %v3468 = vmin.f32 %v3466, %v3467
        %v3469 = vrot.slane %v3468, 2
        %v3470 = vmin.f32 %v3468, %v3469
        %v3471 = vrot.slane %v3470, 1
        %v3472 = vmin.f32 %v3470, %v3471
        %vm3473 = vcmp.le.f32.partialorder %v3462, %v3472
        %vm3474 = vcmp.le.f32.partialorder %v3463, %v3472
        %v3475 = vsel %vm3473, 1e+30, %v3462
        %v3476 = vsel %vm3474, 1e+30, %v3463
        %v3477 = vsel %vm3152, %v3475, inf
        %v3478 = vsel %vm3152, %v3476, inf
        %v3479 = vmin.f32 %v3477, %v3478
        %v3480 = vrot.slane %v3479, 4
        %v3481 = vmin.f32 %v3479, %v3480
        %v3482 = vrot.slane %v3481, 2
        %v3483 = vmin.f32 %v3481, %v3482
        %v3484 = vrot.slane %v3483, 1
        %v3485 = vmin.f32 %v3483, %v3484
        %vm3486 = vcmp.le.f32.partialorder %v3475, %v3485
        %vm3487 = vcmp.le.f32.partialorder %v3476, %v3485
        %v3488 = vsel %vm3486, 1e+30, %v3475
        %v3489 = vsel %vm3487, 1e+30, %v3476
        %v3490 = vsel %vm3152, %v3488, inf
        %v3491 = vsel %vm3152, %v3489, inf
        %v3492 = vmin.f32 %v3490, %v3491
        %v3493 = vrot.slane %v3492, 4
        %v3494 = vmin.f32 %v3492, %v3493
        %v3495 = vrot.slane %v3494, 2
        %v3496 = vmin.f32 %v3494, %v3495
        %v3497 = vrot.slane %v3496, 1
        %v3498 = vmin.f32 %v3496, %v3497
        %3499 = vmin.xlane.f32.xlu0 %v3438
        %v3500 = vpop.xlane.xlu0 %3499
        %3501 = vmin.xlane.f32.xlu0 %v3439
        %v3502 = vpop.xlane.xlu0 %3501
        %vm3503 = vcmask 122880
        %v3504 = vsel %vm3503, %v3446, 0.0
        %3505 = vadd.xlane.f32.xlu0 %v3504
        %v3506 = vpop.xlane.xlu0 %3505
        %v3507 = vrot.slane %v3506, 4
        %v3508 = vadd.f32 %v3506, %v3507
        %v3509 = vrot.slane %v3508, 2
        %v3510 = vadd.f32 %v3508, %v3509
        %v3511 = vrot.slane %v3510, 1
        %v3512 = vadd.f32 %v3510, %v3511
        %s3513 = vtos %v3512
        %v3514 = vstv %s3513
        %v3515 = vsel %vm1441, %v3500, 0.0
        %v3516 = vsel %vm1441, %v3502, 0.0
        %v3517 = vadd.f32 %v3515, %v3516
        %3518 = vadd.xlane.f32.xlu0 %v3517
        %v3519 = vpop.xlane.xlu0 %3518
        %v3520 = vrot.slane %v3519, 4
        %v3521 = vadd.f32 %v3519, %v3520
        %v3522 = vrot.slane %v3521, 2
        %v3523 = vadd.f32 %v3521, %v3522
        %v3524 = vrot.slane %v3523, 1
        %v3525 = vadd.f32 %v3523, %v3524
        %s3526 = vtos %v3525
        %v3527 = vstv %s3526
        %v3528 = vadd.f32 %v3514, %v3527
        %vm3529 = vcmp.le.f32.partialorder %v3436, %v3498
        %vm3530 = vcmp.le.f32.partialorder %v3437, %v3498
        %v3531 = vadd.f32 %v3436, 1e-08
        %v3532 = vadd.f32 %v3437, 1e-08
        %v3533 = vrcp.pop %v3531
        %v3534 = vrcp.pop %v3532
        %v3535 = vsel %vm3529, %v3533, 0.0
        %v3536 = vsel %vm3530, %v3534, 0.0
        %v3537 = vsel %vm3152, %v3535, 0.0
        %v3538 = vsel %vm3152, %v3536, 0.0
        %v3539 = vadd.f32 %v3537, %v3538
        %v3540 = vrot.slane %v3539, 4
        %v3541 = vadd.f32 %v3539, %v3540
        %v3542 = vrot.slane %v3541, 2
        %v3543 = vadd.f32 %v3541, %v3542
        %v3544 = vrot.slane %v3543, 1
        %v3545 = vadd.f32 %v3543, %v3544
        %v3546 = vpack.c.bf16 %v3536, %v3535
        %v3547 = vperm.slane %v3104, 0
        %v3548 = vsub.f32 %v3396, %v3547
        %v3549 = vsub.f32 %v3401, %v3547
        %v3550 = vperm.slane %v3104, 1
        %v3551 = vsub.f32 %v3408, %v3550
        %v3552 = vsub.f32 %v3412, %v3550
        %v3553 = vperm.slane %v3104, 2
        %v3554 = vsub.f32 %v3419, %v3553
        %v3555 = vsub.f32 %v3423, %v3553
        %v3556 = vmul.f32 %v3548, %v3548
        %v3557 = vmul.f32 %v3549, %v3549
        %v3558 = vmul.f32 %v3551, %v3551
        %v3559 = vmul.f32 %v3552, %v3552
        %v3560 = vadd.f32 %v3556, %v3558
        %v3561 = vadd.f32 %v3557, %v3559
        %v3562 = vmul.f32 %v3554, %v3554
        %v3563 = vmul.f32 %v3555, %v3555
        %v3564 = vadd.f32 %v3560, %v3562
        %v3565 = vadd.f32 %v3561, %v3563
        %v3566 = vsel %vm3152, %v3564, inf
        %v3567 = vsel %vm3152, %v3565, inf
        %v3568 = vmin.f32 %v3566, %v3567
        %v3569 = vrot.slane %v3568, 4
        %v3570 = vmin.f32 %v3568, %v3569
        %v3571 = vrot.slane %v3570, 2
        %v3572 = vmin.f32 %v3570, %v3571
        %v3573 = vrot.slane %v3572, 1
        %v3574 = vmin.f32 %v3572, %v3573
        %vm3575 = vcmp.le.f32.partialorder %v3564, %v3574
        %vm3576 = vcmp.le.f32.partialorder %v3565, %v3574
        %v3577 = vsel %vm3575, 1e+30, %v3564
        %v3578 = vsel %vm3576, 1e+30, %v3565
        %v3579 = vsel %vm3152, %v3577, inf
        %v3580 = vsel %vm3152, %v3578, inf
        %v3581 = vmin.f32 %v3579, %v3580
        %v3582 = vrot.slane %v3581, 4
        %v3583 = vmin.f32 %v3581, %v3582
        %v3584 = vrot.slane %v3583, 2
        %v3585 = vmin.f32 %v3583, %v3584
        %v3586 = vrot.slane %v3585, 1
        %v3587 = vmin.f32 %v3585, %v3586
        %vm3588 = vcmp.le.f32.partialorder %v3577, %v3587
        %vm3589 = vcmp.le.f32.partialorder %v3578, %v3587
        %v3590 = vsel %vm3588, 1e+30, %v3577
        %v3591 = vsel %vm3589, 1e+30, %v3578
        %v3592 = vsel %vm3152, %v3590, inf
        %v3593 = vsel %vm3152, %v3591, inf
        %v3594 = vmin.f32 %v3592, %v3593
        %v3595 = vrot.slane %v3594, 4
        %v3596 = vmin.f32 %v3594, %v3595
        %v3597 = vrot.slane %v3596, 2
        %v3598 = vmin.f32 %v3596, %v3597
        %v3599 = vrot.slane %v3598, 1
        %v3600 = vmin.f32 %v3598, %v3599
        %vm3601 = vcmp.le.f32.partialorder %v3590, %v3600
        %vm3602 = vcmp.le.f32.partialorder %v3591, %v3600
        %v3603 = vsel %vm3601, 1e+30, %v3590
        %v3604 = vsel %vm3602, 1e+30, %v3591
        %v3605 = vsel %vm3152, %v3603, inf
        %v3606 = vsel %vm3152, %v3604, inf
        %v3607 = vmin.f32 %v3605, %v3606
        %v3608 = vrot.slane %v3607, 4
        %v3609 = vmin.f32 %v3607, %v3608
        %v3610 = vrot.slane %v3609, 2
        %v3611 = vmin.f32 %v3609, %v3610
        %v3612 = vrot.slane %v3611, 1
        %v3613 = vmin.f32 %v3611, %v3612
        %vm3614 = vcmp.le.f32.partialorder %v3603, %v3613
        %vm3615 = vcmp.le.f32.partialorder %v3604, %v3613
        %v3616 = vsel %vm3614, 1e+30, %v3603
        %v3617 = vsel %vm3615, 1e+30, %v3604
        %v3618 = vsel %vm3152, %v3616, inf
        %v3619 = vsel %vm3152, %v3617, inf
        %v3620 = vmin.f32 %v3618, %v3619
        %v3621 = vrot.slane %v3620, 4
        %v3622 = vmin.f32 %v3620, %v3621
        %v3623 = vrot.slane %v3622, 2
        %v3624 = vmin.f32 %v3622, %v3623
        %v3625 = vrot.slane %v3624, 1
        %v3626 = vmin.f32 %v3624, %v3625
        %vm3627 = vcmp.le.f32.partialorder %v3616, %v3626
        %vm3628 = vcmp.le.f32.partialorder %v3617, %v3626
        %v3629 = vsel %vm3627, 1e+30, %v3616
        %v3630 = vsel %vm3628, 1e+30, %v3617
        %v3631 = vsel %vm3152, %v3629, inf
        %v3632 = vsel %vm3152, %v3630, inf
        %v3633 = vmin.f32 %v3631, %v3632
        %v3634 = vrot.slane %v3633, 4
        %v3635 = vmin.f32 %v3633, %v3634
        %v3636 = vrot.slane %v3635, 2
        %v3637 = vmin.f32 %v3635, %v3636
        %v3638 = vrot.slane %v3637, 1
        %v3639 = vmin.f32 %v3637, %v3638
        %vm3640 = vcmp.le.f32.partialorder %v3629, %v3639
        %vm3641 = vcmp.le.f32.partialorder %v3630, %v3639
        %v3642 = vsel %vm3640, 1e+30, %v3629
        %v3643 = vsel %vm3641, 1e+30, %v3630
        %v3644 = vsel %vm3152, %v3642, inf
        %v3645 = vsel %vm3152, %v3643, inf
        %v3646 = vmin.f32 %v3644, %v3645
        %v3647 = vrot.slane %v3646, 4
        %v3648 = vmin.f32 %v3646, %v3647
        %v3649 = vrot.slane %v3648, 2
        %v3650 = vmin.f32 %v3648, %v3649
        %v3651 = vrot.slane %v3650, 1
        %v3652 = vmin.f32 %v3650, %v3651
        %vm3653 = vcmp.le.f32.partialorder %v3642, %v3652
        %vm3654 = vcmp.le.f32.partialorder %v3643, %v3652
        %v3655 = vsel %vm3653, 1e+30, %v3642
        %v3656 = vsel %vm3654, 1e+30, %v3643
        %v3657 = vsel %vm3152, %v3655, inf
        %v3658 = vsel %vm3152, %v3656, inf
        %v3659 = vmin.f32 %v3657, %v3658
        %v3660 = vrot.slane %v3659, 4
        %v3661 = vmin.f32 %v3659, %v3660
        %v3662 = vrot.slane %v3661, 2
        %v3663 = vmin.f32 %v3661, %v3662
        %v3664 = vrot.slane %v3663, 1
        %v3665 = vmin.f32 %v3663, %v3664
        %vm3666 = vcmp.le.f32.partialorder %v3655, %v3665
        %vm3667 = vcmp.le.f32.partialorder %v3656, %v3665
        %v3668 = vsel %vm3666, 1e+30, %v3655
        %v3669 = vsel %vm3667, 1e+30, %v3656
        %v3670 = vsel %vm3152, %v3668, inf
        %v3671 = vsel %vm3152, %v3669, inf
        %v3672 = vmin.f32 %v3670, %v3671
        %v3673 = vrot.slane %v3672, 4
        %v3674 = vmin.f32 %v3672, %v3673
        %v3675 = vrot.slane %v3674, 2
        %v3676 = vmin.f32 %v3674, %v3675
        %v3677 = vrot.slane %v3676, 1
        %v3678 = vmin.f32 %v3676, %v3677
        %vm3679 = vcmp.le.f32.partialorder %v3668, %v3678
        %vm3680 = vcmp.le.f32.partialorder %v3669, %v3678
        %v3681 = vsel %vm3679, 1e+30, %v3668
        %v3682 = vsel %vm3680, 1e+30, %v3669
        %v3683 = vsel %vm3152, %v3681, inf
        %v3684 = vsel %vm3152, %v3682, inf
        %v3685 = vmin.f32 %v3683, %v3684
        %v3686 = vrot.slane %v3685, 4
        %v3687 = vmin.f32 %v3685, %v3686
        %v3688 = vrot.slane %v3687, 2
        %v3689 = vmin.f32 %v3687, %v3688
        %v3690 = vrot.slane %v3689, 1
        %v3691 = vmin.f32 %v3689, %v3690
        %vm3692 = vcmp.le.f32.partialorder %v3564, %v3691
        %vm3693 = vcmp.le.f32.partialorder %v3565, %v3691
        %v3694 = vsel %vm3692, 1, 0
        %v3695 = vsel %vm3693, 1, 0
        %v3696 = vcvt.s32.f32 %v3694
        %v3697 = vcvt.s32.f32 %v3695
        %v3698 = vpack.c.bf16 %v3697, %v3696
        %v3699 = vpack.c.bf16 %v3104, %v3104
        %v3701 = vsel %vm3152, %v3699, 0
        %3703 = vmatpush.bf16.msra.mxu0 0
        %3704 = vmatpush.bf16.msra.mxu0 0
        %3705 = vmatpush.bf16.msra.mxu0 0
        %3706 = vmatpush.bf16.msra.mxu0 0
        %3707 = vmatpush.bf16.msra.mxu0 0
        %3708 = vmatpush.bf16.msra.mxu0 0
        %3709 = vmatpush.bf16.msra.mxu0 0
        %3710 = vmatpush.bf16.msra.mxu0 %v3698
        %3711 = vmatmul.bf16.gmra.mxu0 %v3701
        %v3712 = vpop.f32.mrf.mxu0
        %v3713 = vadd.f32 0.0, %v3712
        %v3714 = vpop.f32.mrf.mxu0
        %3715 = vdwg.mxu0
        %v3716 = vmul.f32 %v3104, 10.0
        %v3717 = vsub.f32 %v3713, %v3716
        %v3718 = vmul.f32 %v3717, 0.11111111
        %v3719 = vpack.c.bf16 %v3718, %v3718
        %v3721 = vsel %vm3152, %v3719, 0
        %3723 = vmatpush.bf16.msra.mxu0 0
        %3724 = vmatpush.bf16.msra.mxu0 0
        %3725 = vmatpush.bf16.msra.mxu0 0
        %3726 = vmatpush.bf16.msra.mxu0 0
        %3727 = vmatpush.bf16.msra.mxu0 0
        %3728 = vmatpush.bf16.msra.mxu0 0
        %3729 = vmatpush.bf16.msra.mxu0 0
        %3730 = vmatpush.bf16.msra.mxu0 %v3546
        %3731 = vmatmul.bf16.gmra.mxu0 %v3721
        %v3732 = vpop.f32.mrf.mxu0
        %v3733 = vadd.f32 0.0, %v3732
        %v3734 = vpop.f32.mrf.mxu0
        %3735 = vdwg.mxu0
        %v3736 = vrcp.pop %v3545
        %v3737 = vmul.f32 %v3733, %v3736
        %v3738 = vsub.f32 %v3737, %v3307
        %v3739 = vmul.f32 %v3738, %v3738
        %vm3740 = vcmask 124928
        %v3741 = vsel %vm3740, %v3739, 0.0
        %3742 = vadd.xlane.f32.xlu0 %v3741
        %v3743 = vpop.xlane.xlu0 %3742
        %v3744 = vrot.slane %v3743, 4
        %v3745 = vadd.f32 %v3743, %v3744
        %v3746 = vrot.slane %v3745, 2
        %v3747 = vadd.f32 %v3745, %v3746
        %v3748 = vrot.slane %v3747, 1
        %v3749 = vadd.f32 %v3747, %v3748
        %s3750 = vtos %v3749
        %v3751 = vstv %s3750
        %v3752 = vmul.f32 %v3528, 0.08
        %v3753 = vadd.f32 %v3092, %v3752
        %v3754 = vmul.f32 %v3392, 0.08
        %v3755 = vadd.f32 %v3094, %v3754
        %v3756 = vmul.f32 %v3751, 0.08
        %v3757 = vadd.f32 %v3096, %v3756
        %v3758 = vld [vmem:[%s155 + $0x150] sm:$0xff]
        %v3759 = vld [vmem:[%s155 + $0x158] sm:$0xff]
        %v3760 = vld [vmem:[%s155 + $0x160] sm:$0xff]
        %v3761 = vld [vmem:[%s155 + $0x168] sm:$0xff]
        %v3762 = vld [vmem:[%s155 + $0x170] sm:$0xff]
        %v3763 = vld [vmem:[%s155 + $0x178] sm:$0xff]
        %v3764 = vld [vmem:[%s160 + $0x24] sm:$0x7]
        %v3765 = vld [vmem:[%s160 + $0x28] sm:$0x7]
        %v3766 = vld [vmem:[%s160 + $0x2c] sm:$0x7]
        %v3767 = vadd.f32 %v3764, %v3766
        %3769 = vset.pattern.permute.xlu0 0
        %3770 = vperm.xlu0 %3769, %v3758
        %v3771 = vpop.permute.xlu0 %3770
        %3774 = vset.pattern.permute.xlu0 0
        %3775 = vperm.xlu0 %3774, %v3759
        %v3776 = vpop.permute.xlu0 %3775
        %v3778 = vperm.slane %v3764, 0
        %v3779 = vsub.f32 %v3771, %v3778
        %v3780 = vsub.f32 %v3776, %v3778
        %3781 = vset.pattern.permute.xlu0 1
        %3782 = vperm.xlu0 %3781, %v3758
        %v3783 = vpop.permute.xlu0 %3782
        %3785 = vset.pattern.permute.xlu0 1
        %3786 = vperm.xlu0 %3785, %v3759
        %v3787 = vpop.permute.xlu0 %3786
        %v3789 = vperm.slane %v3764, 1
        %v3790 = vsub.f32 %v3783, %v3789
        %v3791 = vsub.f32 %v3787, %v3789
        %3792 = vset.pattern.permute.xlu0 2
        %3793 = vperm.xlu0 %3792, %v3758
        %v3794 = vpop.permute.xlu0 %3793
        %3796 = vset.pattern.permute.xlu0 2
        %3797 = vperm.xlu0 %3796, %v3759
        %v3798 = vpop.permute.xlu0 %3797
        %v3800 = vperm.slane %v3764, 2
        %v3801 = vsub.f32 %v3794, %v3800
        %v3802 = vsub.f32 %v3798, %v3800
        %v3803 = vmul.f32 %v3779, %v3779
        %v3804 = vmul.f32 %v3780, %v3780
        %v3805 = vmul.f32 %v3790, %v3790
        %v3806 = vmul.f32 %v3791, %v3791
        %v3807 = vadd.f32 %v3803, %v3805
        %v3808 = vadd.f32 %v3804, %v3806
        %v3809 = vmul.f32 %v3801, %v3801
        %v3810 = vmul.f32 %v3802, %v3802
        %v3811 = vadd.f32 %v3807, %v3809
        %v3812 = vadd.f32 %v3808, %v3810
        %v3813 = vsel %vm3152, %v3811, inf
        %v3814 = vsel %vm3152, %v3812, inf
        %v3815 = vmin.f32 %v3813, %v3814
        %v3816 = vrot.slane %v3815, 4
        %v3817 = vmin.f32 %v3815, %v3816
        %v3818 = vrot.slane %v3817, 2
        %v3819 = vmin.f32 %v3817, %v3818
        %v3820 = vrot.slane %v3819, 1
        %v3821 = vmin.f32 %v3819, %v3820
        %vm3822 = vcmp.le.f32.partialorder %v3811, %v3821
        %vm3823 = vcmp.le.f32.partialorder %v3812, %v3821
        %v3824 = vsel %vm3822, 1e+30, %v3811
        %v3825 = vsel %vm3823, 1e+30, %v3812
        %v3826 = vsel %vm3152, %v3824, inf
        %v3827 = vsel %vm3152, %v3825, inf
        %v3828 = vmin.f32 %v3826, %v3827
        %v3829 = vrot.slane %v3828, 4
        %v3830 = vmin.f32 %v3828, %v3829
        %v3831 = vrot.slane %v3830, 2
        %v3832 = vmin.f32 %v3830, %v3831
        %v3833 = vrot.slane %v3832, 1
        %v3834 = vmin.f32 %v3832, %v3833
        %vm3835 = vcmp.le.f32.partialorder %v3824, %v3834
        %vm3836 = vcmp.le.f32.partialorder %v3825, %v3834
        %v3837 = vsel %vm3835, 1e+30, %v3824
        %v3838 = vsel %vm3836, 1e+30, %v3825
        %v3839 = vsel %vm3152, %v3837, inf
        %v3840 = vsel %vm3152, %v3838, inf
        %v3841 = vmin.f32 %v3839, %v3840
        %v3842 = vrot.slane %v3841, 4
        %v3843 = vmin.f32 %v3841, %v3842
        %v3844 = vrot.slane %v3843, 2
        %v3845 = vmin.f32 %v3843, %v3844
        %v3846 = vrot.slane %v3845, 1
        %v3847 = vmin.f32 %v3845, %v3846
        %vm3848 = vcmp.le.f32.partialorder %v3837, %v3847
        %vm3849 = vcmp.le.f32.partialorder %v3838, %v3847
        %v3850 = vsel %vm3848, 1e+30, %v3837
        %v3851 = vsel %vm3849, 1e+30, %v3838
        %v3852 = vsel %vm3152, %v3850, inf
        %v3853 = vsel %vm3152, %v3851, inf
        %v3854 = vmin.f32 %v3852, %v3853
        %v3855 = vrot.slane %v3854, 4
        %v3856 = vmin.f32 %v3854, %v3855
        %v3857 = vrot.slane %v3856, 2
        %v3858 = vmin.f32 %v3856, %v3857
        %v3859 = vrot.slane %v3858, 1
        %v3860 = vmin.f32 %v3858, %v3859
        %vm3861 = vcmp.le.f32.partialorder %v3850, %v3860
        %vm3862 = vcmp.le.f32.partialorder %v3851, %v3860
        %v3863 = vsel %vm3861, 1e+30, %v3850
        %v3864 = vsel %vm3862, 1e+30, %v3851
        %v3865 = vsel %vm3152, %v3863, inf
        %v3866 = vsel %vm3152, %v3864, inf
        %v3867 = vmin.f32 %v3865, %v3866
        %v3868 = vrot.slane %v3867, 4
        %v3869 = vmin.f32 %v3867, %v3868
        %v3870 = vrot.slane %v3869, 2
        %v3871 = vmin.f32 %v3869, %v3870
        %v3872 = vrot.slane %v3871, 1
        %v3873 = vmin.f32 %v3871, %v3872
        %vm3874 = vcmp.le.f32.partialorder %v3863, %v3873
        %vm3875 = vcmp.le.f32.partialorder %v3864, %v3873
        %v3876 = vsel %vm3874, 1e+30, %v3863
        %v3877 = vsel %vm3875, 1e+30, %v3864
        %v3878 = vsel %vm3152, %v3876, inf
        %v3879 = vsel %vm3152, %v3877, inf
        %v3880 = vmin.f32 %v3878, %v3879
        %v3881 = vrot.slane %v3880, 4
        %v3882 = vmin.f32 %v3880, %v3881
        %v3883 = vrot.slane %v3882, 2
        %v3884 = vmin.f32 %v3882, %v3883
        %v3885 = vrot.slane %v3884, 1
        %v3886 = vmin.f32 %v3884, %v3885
        %vm3887 = vcmp.le.f32.partialorder %v3876, %v3886
        %vm3888 = vcmp.le.f32.partialorder %v3877, %v3886
        %v3889 = vsel %vm3887, 1e+30, %v3876
        %v3890 = vsel %vm3888, 1e+30, %v3877
        %v3891 = vsel %vm3152, %v3889, inf
        %v3892 = vsel %vm3152, %v3890, inf
        %v3893 = vmin.f32 %v3891, %v3892
        %v3894 = vrot.slane %v3893, 4
        %v3895 = vmin.f32 %v3893, %v3894
        %v3896 = vrot.slane %v3895, 2
        %v3897 = vmin.f32 %v3895, %v3896
        %v3898 = vrot.slane %v3897, 1
        %v3899 = vmin.f32 %v3897, %v3898
        %vm3900 = vcmp.le.f32.partialorder %v3889, %v3899
        %vm3901 = vcmp.le.f32.partialorder %v3890, %v3899
        %v3902 = vsel %vm3900, 1e+30, %v3889
        %v3903 = vsel %vm3901, 1e+30, %v3890
        %v3904 = vsel %vm3152, %v3902, inf
        %v3905 = vsel %vm3152, %v3903, inf
        %v3906 = vmin.f32 %v3904, %v3905
        %v3907 = vrot.slane %v3906, 4
        %v3908 = vmin.f32 %v3906, %v3907
        %v3909 = vrot.slane %v3908, 2
        %v3910 = vmin.f32 %v3908, %v3909
        %v3911 = vrot.slane %v3910, 1
        %v3912 = vmin.f32 %v3910, %v3911
        %vm3913 = vcmp.le.f32.partialorder %v3902, %v3912
        %vm3914 = vcmp.le.f32.partialorder %v3903, %v3912
        %v3915 = vsel %vm3913, 1e+30, %v3902
        %v3916 = vsel %vm3914, 1e+30, %v3903
        %v3917 = vsel %vm3152, %v3915, inf
        %v3918 = vsel %vm3152, %v3916, inf
        %v3919 = vmin.f32 %v3917, %v3918
        %v3920 = vrot.slane %v3919, 4
        %v3921 = vmin.f32 %v3919, %v3920
        %v3922 = vrot.slane %v3921, 2
        %v3923 = vmin.f32 %v3921, %v3922
        %v3924 = vrot.slane %v3923, 1
        %v3925 = vmin.f32 %v3923, %v3924
        %vm3926 = vcmp.le.f32.partialorder %v3915, %v3925
        %vm3927 = vcmp.le.f32.partialorder %v3916, %v3925
        %v3928 = vsel %vm3926, 1e+30, %v3915
        %v3929 = vsel %vm3927, 1e+30, %v3916
        %v3930 = vsel %vm3152, %v3928, inf
        %v3931 = vsel %vm3152, %v3929, inf
        %v3932 = vmin.f32 %v3930, %v3931
        %v3933 = vrot.slane %v3932, 4
        %v3934 = vmin.f32 %v3932, %v3933
        %v3935 = vrot.slane %v3934, 2
        %v3936 = vmin.f32 %v3934, %v3935
        %v3937 = vrot.slane %v3936, 1
        %v3938 = vmin.f32 %v3936, %v3937
        %vm3939 = vcmp.le.f32.partialorder %v3811, %v3925
        %vm3940 = vcmp.le.f32.partialorder %v3812, %v3925
        %vm3941 = vcmp.le.f32.partialorder %v3811, %v3938
        %vm3942 = vcmp.le.f32.partialorder %v3812, %v3938
        %v3943 = vsel %vm3941, 1, 0
        %v3944 = vsel %vm3942, 1, 0
        %v3945 = vcvt.s32.f32 %v3943
        %v3946 = vcvt.s32.f32 %v3944
        %v3947 = vpack.c.bf16 %v3946, %v3945
        %v3948 = vpack.c.bf16 %v3767, %v3767
        %v3950 = vsel %vm3152, %v3948, 0
        %3952 = vmatpush.bf16.msra.mxu0 0
        %3953 = vmatpush.bf16.msra.mxu0 0
        %3954 = vmatpush.bf16.msra.mxu0 0
        %3955 = vmatpush.bf16.msra.mxu0 0
        %3956 = vmatpush.bf16.msra.mxu0 0
        %3957 = vmatpush.bf16.msra.mxu0 0
        %3958 = vmatpush.bf16.msra.mxu0 0
        %3959 = vmatpush.bf16.msra.mxu0 %v3947
        %3960 = vmatmul.bf16.gmra.mxu0 %v3950
        %v3961 = vpop.f32.mrf.mxu0
        %v3962 = vadd.f32 0.0, %v3961
        %v3963 = vpop.f32.mrf.mxu0
        %3964 = vdwg.mxu0
        %v3965 = vmul.f32 %v3767, 10.0
        %v3966 = vsub.f32 %v3962, %v3965
        %v3967 = vmul.f32 %v3966, 0.11111111
        %3969 = vset.pattern.permute.xlu0 0
        %3970 = vperm.xlu0 %3969, %v3762
        %v3971 = vpop.permute.xlu0 %3970
        %3974 = vset.pattern.permute.xlu0 0
        %3975 = vperm.xlu0 %3974, %v3763
        %v3976 = vpop.permute.xlu0 %3975
        %v3978 = vperm.slane %v3766, 0
        %v3979 = vsub.f32 %v3971, %v3978
        %v3980 = vsub.f32 %v3976, %v3978
        %3981 = vset.pattern.permute.xlu0 1
        %3982 = vperm.xlu0 %3981, %v3762
        %v3983 = vpop.permute.xlu0 %3982
        %3985 = vset.pattern.permute.xlu0 1
        %3986 = vperm.xlu0 %3985, %v3763
        %v3987 = vpop.permute.xlu0 %3986
        %v3989 = vperm.slane %v3766, 1
        %v3990 = vsub.f32 %v3983, %v3989
        %v3991 = vsub.f32 %v3987, %v3989
        %3992 = vset.pattern.permute.xlu0 2
        %3993 = vperm.xlu0 %3992, %v3762
        %v3994 = vpop.permute.xlu0 %3993
        %3996 = vset.pattern.permute.xlu0 2
        %3997 = vperm.xlu0 %3996, %v3763
        %v3998 = vpop.permute.xlu0 %3997
        %v4000 = vperm.slane %v3766, 2
        %v4001 = vsub.f32 %v3994, %v4000
        %v4002 = vsub.f32 %v3998, %v4000
        %v4003 = vmul.f32 %v3979, %v3979
        %v4004 = vmul.f32 %v3980, %v3980
        %v4005 = vmul.f32 %v3990, %v3990
        %v4006 = vmul.f32 %v3991, %v3991
        %v4007 = vadd.f32 %v4003, %v4005
        %v4008 = vadd.f32 %v4004, %v4006
        %v4009 = vmul.f32 %v4001, %v4001
        %v4010 = vmul.f32 %v4002, %v4002
        %v4011 = vadd.f32 %v4007, %v4009
        %v4012 = vadd.f32 %v4008, %v4010
        %v4013 = vsel %vm3939, %v4011, 0.0
        %v4014 = vsel %vm3940, %v4012, 0.0
        %v4015 = vrsqrt.pop %v4013
        %v4016 = vmul.f32 %v4015, %v4013
        %v4017 = vmul.f32 %v4016, %v4015
        %v4018 = vmul.f32 0.5, %v4017
        %v4019 = vsub.f32 1.5, %v4018
        %v4020 = vmul.f32 %v4015, %v4019
        %v4021 = vmul.f32 %v4013, %v4020
        %vm4022 = vcmp.eq.f32.partialorder %v4013, inf
        %v4023 = vsel %vm4022, %v4013, %v4021
        %vm4024 = vcmp.eq.f32.partialorder %v4013, 0.0
        %v4025 = vand.u32 %v4013, 2147483648
        %v4026 = vsel %vm4024, %v4025, %v4023
        %v4027 = vrsqrt.pop %v4014
        %v4028 = vmul.f32 %v4027, %v4014
        %v4029 = vmul.f32 %v4028, %v4027
        %v4030 = vmul.f32 0.5, %v4029
        %v4031 = vsub.f32 1.5, %v4030
        %v4032 = vmul.f32 %v4027, %v4031
        %v4033 = vmul.f32 %v4014, %v4032
        %vm4034 = vcmp.eq.f32.partialorder %v4014, inf
        %v4035 = vsel %vm4034, %v4014, %v4033
        %vm4036 = vcmp.eq.f32.partialorder %v4014, 0.0
        %v4037 = vand.u32 %v4014, 2147483648
        %v4038 = vsel %vm4036, %v4037, %v4035
        %v4039 = vsel %vm3152, %v4026, 0.0
        %v4040 = vsel %vm3152, %v4038, 0.0
        %v4041 = vadd.f32 %v4039, %v4040
        %4042 = vadd.xlane.f32.xlu0 %v4041
        %v4043 = vpop.xlane.xlu0 %4042
        %v4044 = vrot.slane %v4043, 4
        %v4045 = vadd.f32 %v4043, %v4044
        %v4046 = vrot.slane %v4045, 2
        %v4047 = vadd.f32 %v4045, %v4046
        %v4048 = vrot.slane %v4047, 1
        %v4049 = vadd.f32 %v4047, %v4048
        %s4050 = vtos %v4049
        %v4051 = vstv %s4050
        %v4052 = vmul.f32 %v4051, 0.125
        %4054 = vset.pattern.permute.xlu0 0
        %4055 = vperm.xlu0 %4054, %v3760
        %v4056 = vpop.permute.xlu0 %4055
        %4059 = vset.pattern.permute.xlu0 0
        %4060 = vperm.xlu0 %4059, %v3761
        %v4061 = vpop.permute.xlu0 %4060
        %v4063 = vperm.slane %v3767, 0
        %v4064 = vsub.f32 %v4056, %v4063
        %v4065 = vsub.f32 %v4061, %v4063
        %4066 = vset.pattern.permute.xlu0 1
        %4067 = vperm.xlu0 %4066, %v3760
        %v4068 = vpop.permute.xlu0 %4067
        %4070 = vset.pattern.permute.xlu0 1
        %4071 = vperm.xlu0 %4070, %v3761
        %v4072 = vpop.permute.xlu0 %4071
        %v4074 = vperm.slane %v3767, 1
        %v4075 = vsub.f32 %v4068, %v4074
        %v4076 = vsub.f32 %v4072, %v4074
        %4077 = vset.pattern.permute.xlu0 2
        %4078 = vperm.xlu0 %4077, %v3760
        %v4079 = vpop.permute.xlu0 %4078
        %4081 = vset.pattern.permute.xlu0 2
        %4082 = vperm.xlu0 %4081, %v3761
        %v4083 = vpop.permute.xlu0 %4082
        %v4085 = vperm.slane %v3767, 2
        %v4086 = vsub.f32 %v4079, %v4085
        %v4087 = vsub.f32 %v4083, %v4085
        %v4088 = vmul.f32 %v4064, %v4064
        %v4089 = vmul.f32 %v4065, %v4065
        %v4090 = vmul.f32 %v4075, %v4075
        %v4091 = vmul.f32 %v4076, %v4076
        %v4092 = vadd.f32 %v4088, %v4090
        %v4093 = vadd.f32 %v4089, %v4091
        %v4094 = vmul.f32 %v4086, %v4086
        %v4095 = vmul.f32 %v4087, %v4087
        %v4096 = vadd.f32 %v4092, %v4094
        %v4097 = vadd.f32 %v4093, %v4095
        %v4098 = vsel %vm3152, %v4096, inf
        %v4099 = vsel %vm3152, %v4097, inf
        %v4100 = vmin.f32 %v4098, %v4099
        %v4101 = vrot.slane %v4100, 4
        %v4102 = vmin.f32 %v4100, %v4101
        %v4103 = vrot.slane %v4102, 2
        %v4104 = vmin.f32 %v4102, %v4103
        %v4105 = vrot.slane %v4104, 1
        %v4106 = vmin.f32 %v4104, %v4105
        %vm4107 = vcmp.le.f32.partialorder %v4096, %v4106
        %vm4108 = vcmp.le.f32.partialorder %v4097, %v4106
        %v4109 = vsel %vm4107, 1e+30, %v4096
        %v4110 = vsel %vm4108, 1e+30, %v4097
        %v4111 = vsel %vm3152, %v4109, inf
        %v4112 = vsel %vm3152, %v4110, inf
        %v4113 = vmin.f32 %v4111, %v4112
        %v4114 = vrot.slane %v4113, 4
        %v4115 = vmin.f32 %v4113, %v4114
        %v4116 = vrot.slane %v4115, 2
        %v4117 = vmin.f32 %v4115, %v4116
        %v4118 = vrot.slane %v4117, 1
        %v4119 = vmin.f32 %v4117, %v4118
        %vm4120 = vcmp.le.f32.partialorder %v4109, %v4119
        %vm4121 = vcmp.le.f32.partialorder %v4110, %v4119
        %v4122 = vsel %vm4120, 1e+30, %v4109
        %v4123 = vsel %vm4121, 1e+30, %v4110
        %v4124 = vsel %vm3152, %v4122, inf
        %v4125 = vsel %vm3152, %v4123, inf
        %v4126 = vmin.f32 %v4124, %v4125
        %v4127 = vrot.slane %v4126, 4
        %v4128 = vmin.f32 %v4126, %v4127
        %v4129 = vrot.slane %v4128, 2
        %v4130 = vmin.f32 %v4128, %v4129
        %v4131 = vrot.slane %v4130, 1
        %v4132 = vmin.f32 %v4130, %v4131
        %vm4133 = vcmp.le.f32.partialorder %v4122, %v4132
        %vm4134 = vcmp.le.f32.partialorder %v4123, %v4132
        %v4135 = vsel %vm4133, 1e+30, %v4122
        %v4136 = vsel %vm4134, 1e+30, %v4123
        %v4137 = vsel %vm3152, %v4135, inf
        %v4138 = vsel %vm3152, %v4136, inf
        %v4139 = vmin.f32 %v4137, %v4138
        %v4140 = vrot.slane %v4139, 4
        %v4141 = vmin.f32 %v4139, %v4140
        %v4142 = vrot.slane %v4141, 2
        %v4143 = vmin.f32 %v4141, %v4142
        %v4144 = vrot.slane %v4143, 1
        %v4145 = vmin.f32 %v4143, %v4144
        %vm4146 = vcmp.le.f32.partialorder %v4135, %v4145
        %vm4147 = vcmp.le.f32.partialorder %v4136, %v4145
        %v4148 = vsel %vm4146, 1e+30, %v4135
        %v4149 = vsel %vm4147, 1e+30, %v4136
        %v4150 = vsel %vm3152, %v4148, inf
        %v4151 = vsel %vm3152, %v4149, inf
        %v4152 = vmin.f32 %v4150, %v4151
        %v4153 = vrot.slane %v4152, 4
        %v4154 = vmin.f32 %v4152, %v4153
        %v4155 = vrot.slane %v4154, 2
        %v4156 = vmin.f32 %v4154, %v4155
        %v4157 = vrot.slane %v4156, 1
        %v4158 = vmin.f32 %v4156, %v4157
        %4159 = vmin.xlane.f32.xlu0 %v4098
        %v4160 = vpop.xlane.xlu0 %4159
        %4161 = vmin.xlane.f32.xlu0 %v4099
        %v4162 = vpop.xlane.xlu0 %4161
        %v4163 = vsel %vm3503, %v4106, 0.0
        %4164 = vadd.xlane.f32.xlu0 %v4163
        %v4165 = vpop.xlane.xlu0 %4164
        %v4166 = vrot.slane %v4165, 4
        %v4167 = vadd.f32 %v4165, %v4166
        %v4168 = vrot.slane %v4167, 2
        %v4169 = vadd.f32 %v4167, %v4168
        %v4170 = vrot.slane %v4169, 1
        %v4171 = vadd.f32 %v4169, %v4170
        %s4172 = vtos %v4171
        %v4173 = vstv %s4172
        %v4174 = vsel %vm1441, %v4160, 0.0
        %v4175 = vsel %vm1441, %v4162, 0.0
        %v4176 = vadd.f32 %v4174, %v4175
        %4177 = vadd.xlane.f32.xlu0 %v4176
        %v4178 = vpop.xlane.xlu0 %4177
        %v4179 = vrot.slane %v4178, 4
        %v4180 = vadd.f32 %v4178, %v4179
        %v4181 = vrot.slane %v4180, 2
        %v4182 = vadd.f32 %v4180, %v4181
        %v4183 = vrot.slane %v4182, 1
        %v4184 = vadd.f32 %v4182, %v4183
        %s4185 = vtos %v4184
        %v4186 = vstv %s4185
        %v4187 = vadd.f32 %v4173, %v4186
        %vm4188 = vcmp.le.f32.partialorder %v4096, %v4158
        %vm4189 = vcmp.le.f32.partialorder %v4097, %v4158
        %v4190 = vadd.f32 %v4096, 1e-08
        %v4191 = vadd.f32 %v4097, 1e-08
        %v4192 = vrcp.pop %v4190
        %v4193 = vrcp.pop %v4191
        %v4194 = vsel %vm4188, %v4192, 0.0
        %v4195 = vsel %vm4189, %v4193, 0.0
        %v4196 = vsel %vm3152, %v4194, 0.0
        %v4197 = vsel %vm3152, %v4195, 0.0
        %v4198 = vadd.f32 %v4196, %v4197
        %v4199 = vrot.slane %v4198, 4
        %v4200 = vadd.f32 %v4198, %v4199
        %v4201 = vrot.slane %v4200, 2
        %v4202 = vadd.f32 %v4200, %v4201
        %v4203 = vrot.slane %v4202, 1
        %v4204 = vadd.f32 %v4202, %v4203
        %v4205 = vpack.c.bf16 %v4195, %v4194
        %v4206 = vperm.slane %v3765, 0
        %v4207 = vsub.f32 %v4056, %v4206
        %v4208 = vsub.f32 %v4061, %v4206
        %v4209 = vperm.slane %v3765, 1
        %v4210 = vsub.f32 %v4068, %v4209
        %v4211 = vsub.f32 %v4072, %v4209
        %v4212 = vperm.slane %v3765, 2
        %v4213 = vsub.f32 %v4079, %v4212
        %v4214 = vsub.f32 %v4083, %v4212
        %v4215 = vmul.f32 %v4207, %v4207
        %v4216 = vmul.f32 %v4208, %v4208
        %v4217 = vmul.f32 %v4210, %v4210
        %v4218 = vmul.f32 %v4211, %v4211
        %v4219 = vadd.f32 %v4215, %v4217
        %v4220 = vadd.f32 %v4216, %v4218
        %v4221 = vmul.f32 %v4213, %v4213
        %v4222 = vmul.f32 %v4214, %v4214
        %v4223 = vadd.f32 %v4219, %v4221
        %v4224 = vadd.f32 %v4220, %v4222
        %v4225 = vsel %vm3152, %v4223, inf
        %v4226 = vsel %vm3152, %v4224, inf
        %v4227 = vmin.f32 %v4225, %v4226
        %v4228 = vrot.slane %v4227, 4
        %v4229 = vmin.f32 %v4227, %v4228
        %v4230 = vrot.slane %v4229, 2
        %v4231 = vmin.f32 %v4229, %v4230
        %v4232 = vrot.slane %v4231, 1
        %v4233 = vmin.f32 %v4231, %v4232
        %vm4234 = vcmp.le.f32.partialorder %v4223, %v4233
        %vm4235 = vcmp.le.f32.partialorder %v4224, %v4233
        %v4236 = vsel %vm4234, 1e+30, %v4223
        %v4237 = vsel %vm4235, 1e+30, %v4224
        %v4238 = vsel %vm3152, %v4236, inf
        %v4239 = vsel %vm3152, %v4237, inf
        %v4240 = vmin.f32 %v4238, %v4239
        %v4241 = vrot.slane %v4240, 4
        %v4242 = vmin.f32 %v4240, %v4241
        %v4243 = vrot.slane %v4242, 2
        %v4244 = vmin.f32 %v4242, %v4243
        %v4245 = vrot.slane %v4244, 1
        %v4246 = vmin.f32 %v4244, %v4245
        %vm4247 = vcmp.le.f32.partialorder %v4236, %v4246
        %vm4248 = vcmp.le.f32.partialorder %v4237, %v4246
        %v4249 = vsel %vm4247, 1e+30, %v4236
        %v4250 = vsel %vm4248, 1e+30, %v4237
        %v4251 = vsel %vm3152, %v4249, inf
        %v4252 = vsel %vm3152, %v4250, inf
        %v4253 = vmin.f32 %v4251, %v4252
        %v4254 = vrot.slane %v4253, 4
        %v4255 = vmin.f32 %v4253, %v4254
        %v4256 = vrot.slane %v4255, 2
        %v4257 = vmin.f32 %v4255, %v4256
        %v4258 = vrot.slane %v4257, 1
        %v4259 = vmin.f32 %v4257, %v4258
        %vm4260 = vcmp.le.f32.partialorder %v4249, %v4259
        %vm4261 = vcmp.le.f32.partialorder %v4250, %v4259
        %v4262 = vsel %vm4260, 1e+30, %v4249
        %v4263 = vsel %vm4261, 1e+30, %v4250
        %v4264 = vsel %vm3152, %v4262, inf
        %v4265 = vsel %vm3152, %v4263, inf
        %v4266 = vmin.f32 %v4264, %v4265
        %v4267 = vrot.slane %v4266, 4
        %v4268 = vmin.f32 %v4266, %v4267
        %v4269 = vrot.slane %v4268, 2
        %v4270 = vmin.f32 %v4268, %v4269
        %v4271 = vrot.slane %v4270, 1
        %v4272 = vmin.f32 %v4270, %v4271
        %vm4273 = vcmp.le.f32.partialorder %v4262, %v4272
        %vm4274 = vcmp.le.f32.partialorder %v4263, %v4272
        %v4275 = vsel %vm4273, 1e+30, %v4262
        %v4276 = vsel %vm4274, 1e+30, %v4263
        %v4277 = vsel %vm3152, %v4275, inf
        %v4278 = vsel %vm3152, %v4276, inf
        %v4279 = vmin.f32 %v4277, %v4278
        %v4280 = vrot.slane %v4279, 4
        %v4281 = vmin.f32 %v4279, %v4280
        %v4282 = vrot.slane %v4281, 2
        %v4283 = vmin.f32 %v4281, %v4282
        %v4284 = vrot.slane %v4283, 1
        %v4285 = vmin.f32 %v4283, %v4284
        %vm4286 = vcmp.le.f32.partialorder %v4275, %v4285
        %vm4287 = vcmp.le.f32.partialorder %v4276, %v4285
        %v4288 = vsel %vm4286, 1e+30, %v4275
        %v4289 = vsel %vm4287, 1e+30, %v4276
        %v4290 = vsel %vm3152, %v4288, inf
        %v4291 = vsel %vm3152, %v4289, inf
        %v4292 = vmin.f32 %v4290, %v4291
        %v4293 = vrot.slane %v4292, 4
        %v4294 = vmin.f32 %v4292, %v4293
        %v4295 = vrot.slane %v4294, 2
        %v4296 = vmin.f32 %v4294, %v4295
        %v4297 = vrot.slane %v4296, 1
        %v4298 = vmin.f32 %v4296, %v4297
        %vm4299 = vcmp.le.f32.partialorder %v4288, %v4298
        %vm4300 = vcmp.le.f32.partialorder %v4289, %v4298
        %v4301 = vsel %vm4299, 1e+30, %v4288
        %v4302 = vsel %vm4300, 1e+30, %v4289
        %v4303 = vsel %vm3152, %v4301, inf
        %v4304 = vsel %vm3152, %v4302, inf
        %v4305 = vmin.f32 %v4303, %v4304
        %v4306 = vrot.slane %v4305, 4
        %v4307 = vmin.f32 %v4305, %v4306
        %v4308 = vrot.slane %v4307, 2
        %v4309 = vmin.f32 %v4307, %v4308
        %v4310 = vrot.slane %v4309, 1
        %v4311 = vmin.f32 %v4309, %v4310
        %vm4312 = vcmp.le.f32.partialorder %v4301, %v4311
        %vm4313 = vcmp.le.f32.partialorder %v4302, %v4311
        %v4314 = vsel %vm4312, 1e+30, %v4301
        %v4315 = vsel %vm4313, 1e+30, %v4302
        %v4316 = vsel %vm3152, %v4314, inf
        %v4317 = vsel %vm3152, %v4315, inf
        %v4318 = vmin.f32 %v4316, %v4317
        %v4319 = vrot.slane %v4318, 4
        %v4320 = vmin.f32 %v4318, %v4319
        %v4321 = vrot.slane %v4320, 2
        %v4322 = vmin.f32 %v4320, %v4321
        %v4323 = vrot.slane %v4322, 1
        %v4324 = vmin.f32 %v4322, %v4323
        %vm4325 = vcmp.le.f32.partialorder %v4314, %v4324
        %vm4326 = vcmp.le.f32.partialorder %v4315, %v4324
        %v4327 = vsel %vm4325, 1e+30, %v4314
        %v4328 = vsel %vm4326, 1e+30, %v4315
        %v4329 = vsel %vm3152, %v4327, inf
        %v4330 = vsel %vm3152, %v4328, inf
        %v4331 = vmin.f32 %v4329, %v4330
        %v4332 = vrot.slane %v4331, 4
        %v4333 = vmin.f32 %v4331, %v4332
        %v4334 = vrot.slane %v4333, 2
        %v4335 = vmin.f32 %v4333, %v4334
        %v4336 = vrot.slane %v4335, 1
        %v4337 = vmin.f32 %v4335, %v4336
        %vm4338 = vcmp.le.f32.partialorder %v4327, %v4337
        %vm4339 = vcmp.le.f32.partialorder %v4328, %v4337
        %v4340 = vsel %vm4338, 1e+30, %v4327
        %v4341 = vsel %vm4339, 1e+30, %v4328
        %v4342 = vsel %vm3152, %v4340, inf
        %v4343 = vsel %vm3152, %v4341, inf
        %v4344 = vmin.f32 %v4342, %v4343
        %v4345 = vrot.slane %v4344, 4
        %v4346 = vmin.f32 %v4344, %v4345
        %v4347 = vrot.slane %v4346, 2
        %v4348 = vmin.f32 %v4346, %v4347
        %v4349 = vrot.slane %v4348, 1
        %v4350 = vmin.f32 %v4348, %v4349
        %vm4351 = vcmp.le.f32.partialorder %v4223, %v4350
        %vm4352 = vcmp.le.f32.partialorder %v4224, %v4350
        %v4353 = vsel %vm4351, 1, 0
        %v4354 = vsel %vm4352, 1, 0
        %v4355 = vcvt.s32.f32 %v4353
        %v4356 = vcvt.s32.f32 %v4354
        %v4357 = vpack.c.bf16 %v4356, %v4355
        %v4358 = vpack.c.bf16 %v3765, %v3765
        %v4360 = vsel %vm3152, %v4358, 0
        %4362 = vmatpush.bf16.msra.mxu0 0
        %4363 = vmatpush.bf16.msra.mxu0 0
        %4364 = vmatpush.bf16.msra.mxu0 0
        %4365 = vmatpush.bf16.msra.mxu0 0
        %4366 = vmatpush.bf16.msra.mxu0 0
        %4367 = vmatpush.bf16.msra.mxu0 0
        %4368 = vmatpush.bf16.msra.mxu0 0
        %4369 = vmatpush.bf16.msra.mxu0 %v4357
        %4370 = vmatmul.bf16.gmra.mxu0 %v4360
        %v4371 = vpop.f32.mrf.mxu0
        %v4372 = vadd.f32 0.0, %v4371
        %v4373 = vpop.f32.mrf.mxu0
        %4374 = vdwg.mxu0
        %v4375 = vmul.f32 %v3765, 10.0
        %v4376 = vsub.f32 %v4372, %v4375
        %v4377 = vmul.f32 %v4376, 0.11111111
        %v4378 = vpack.c.bf16 %v4377, %v4377
        %v4380 = vsel %vm3152, %v4378, 0
        %4382 = vmatpush.bf16.msra.mxu0 0
        %4383 = vmatpush.bf16.msra.mxu0 0
        %4384 = vmatpush.bf16.msra.mxu0 0
        %4385 = vmatpush.bf16.msra.mxu0 0
        %4386 = vmatpush.bf16.msra.mxu0 0
        %4387 = vmatpush.bf16.msra.mxu0 0
        %4388 = vmatpush.bf16.msra.mxu0 0
        %4389 = vmatpush.bf16.msra.mxu0 %v4205
        %4390 = vmatmul.bf16.gmra.mxu0 %v4380
        %v4391 = vpop.f32.mrf.mxu0
        %v4392 = vadd.f32 0.0, %v4391
        %v4393 = vpop.f32.mrf.mxu0
        %4394 = vdwg.mxu0
        %v4395 = vrcp.pop %v4204
        %v4396 = vmul.f32 %v4392, %v4395
        %v4397 = vsub.f32 %v4396, %v3967
        %v4398 = vmul.f32 %v4397, %v4397
        %v4399 = vsel %vm3740, %v4398, 0.0
        %4400 = vadd.xlane.f32.xlu0 %v4399
        %v4401 = vpop.xlane.xlu0 %4400
        %v4402 = vrot.slane %v4401, 4
        %v4403 = vadd.f32 %v4401, %v4402
        %v4404 = vrot.slane %v4403, 2
        %v4405 = vadd.f32 %v4403, %v4404
        %v4406 = vrot.slane %v4405, 1
        %v4407 = vadd.f32 %v4405, %v4406
        %s4408 = vtos %v4407
        %v4409 = vstv %s4408
        %v4410 = vmul.f32 %v4187, 0.16
        %v4411 = vadd.f32 %v3753, %v4410
        %v4412 = vmul.f32 %v4052, 0.16
        %v4413 = vadd.f32 %v3755, %v4412
        %v4414 = vmul.f32 %v4409, 0.16
        %v4415 = vadd.f32 %v3757, %v4414
        %vm4416 = vcmask 0
        %4417 = vst.msk [vmem:[%s150] sm:$0x1] %vm4416, %v4411
        %vm4418 = vcmask 8200
        %4419 = vst.msk [vmem:[%s150] sm:$0x1] %vm4418, %v4413
        %vm4420 = vcmask 16400
        %4421 = vst.msk [vmem:[%s150] sm:$0x1] %vm4420, %v4415
        %s4422 = sand.u32 %s76, 1
        %s4423 = scalar_lea.sflag [#allocation3], %s4422
        %s4424 = sand.u32 %s76, 1
        %s4425 = scalar_lea.vmem [#allocation2], %s4424
        // Predicated region
        $region29: #{tpu_custom_call.1} parent=27 // pred_check
          %p4426 = pneg %p86
        $region30: #{tpu_custom_call.1} parent=27 // pred_check_branch
          %4428 = sbr.rel (%p4426) target = $region32
        $region31: #{tpu_custom_call.1} parent=27 // pred_region
          %4430 = vsyncadd %s4423, 0
          %s4431 = scalar_lea.hbm %s2, %s16
          %s4433 = sshll.u32 %s4425, 4
          %s4434 = int_to_ptr.vmem [resolvable:$true] %s4433
          %s4435 = sshll.u32 %s4431, 4
          %s4436 = int_to_ptr.hbm [resolvable:$true] %s4435
          %4438 = dma.vmem_to_hbm [thread:$0]  %s4434, 16, %s4436, %s4423
        $region32: #{tpu_custom_call.1} parent=27 // pred_fallthru
          _
      $region28: #{tpu_custom_call.1} parent=5 // pred_fallthru
        _
      %p4439 = scmp.le.s32.totalorder 2, %s11
      // Predicated region
      $region33: #{tpu_custom_call.1} parent=5 // pred_check
        %p4440 = pneg %p4439
      $region34: #{tpu_custom_call.1} parent=5 // pred_check_branch
        %4442 = sbr.rel (%p4440) target = $region36
      $region35: #{tpu_custom_call.1} parent=5 // pred_region
        %s4443 = ssub.s32 %s11, 2
        // Predicated region
        $region37: #{tpu_custom_call.1} parent=35 // pred_check
          %p4444 = pneg %p92
        $region38: #{tpu_custom_call.1} parent=35 // pred_check_branch
          %4446 = sbr.rel (%p4444) target = $region40
        $region39: #{tpu_custom_call.1} parent=35 // pred_region
          %s4447 = sand.u32 %s77, 1
          %s4448 = scalar_lea.sflag [#allocation3], %s4447
          %s4449 = sand.u32 %s77, 1
          %s4450 = scalar_lea.vmem [#allocation2], %s4449
          %4452 = dma.done %s4448, 16
        $region40: #{tpu_custom_call.1} parent=35 // pred_fallthru
          _
      $region36: #{tpu_custom_call.1} parent=5 // pred_fallthru
        _
    $region6: #{tpu_custom_call.1} parent=1 // loop_footer
      %s15 = sadd.s32 1, %s11
    $region7: #{tpu_custom_call.1} parent=1 // loop_footer_branch
      %10 = sbr.rel target = $region3
    $region8: #{tpu_custom_call.1} parent=1 // loop_exit
      _
    %4453 = vsyncpa [#allocation3], 1
    %s4454 = scalar_lea.sflag [#allocation3], 1
    %4455 = vsyncpa %s4454, 1

</llo_original>
